<compile_context>
chip_gen: v5e
topology: v5e:2x2
jax: 0.10.0
libtpu: 0.0.40
codegen_flags: <defaults>
</compile_context>

<pallas_src>
import functools

import jax
import jax.numpy as jnp
import numpy as np
from jax import lax
from jax.experimental import pallas as pl
from jax.experimental.pallas import tpu as pltpu


def _round_up(x, m):
    return ((x + m - 1) // m) * m


# ----------------------------- Pallas kernels ------------------------------

def _maxpool_2x2x2_kernel(x_ref, o_ref):
    # x_ref: (1, Do, 2, Ho, 2, Wo, 2)   one (n, c) slab, pooling pairs split out
    # o_ref: (1, Do, Ho, Wo, 1)
    do = x_ref.shape[1]
    for d in range(do):                       # static unroll, small
        x00 = x_ref[0, d, 0, :, 0]            # (Ho, Wo, 2)
        x01 = x_ref[0, d, 0, :, 1]
        x10 = x_ref[0, d, 1, :, 0]
        x11 = x_ref[0, d, 1, :, 1]
        m = jnp.maximum(jnp.maximum(x00, x01), jnp.maximum(x10, x11))
        o_ref[0, d] = jnp.max(m, axis=-1, keepdims=True)   # (Ho, Wo, 1)


def _conv3x3x3_kernel(x_ref, w_ref, scale_ref, shift_ref, valid_ref, mask_ref,
                      y_ref, ssum_ref, ssq_ref, xs_ref, cols_ref, *,
                      HW, W, HP, Mp, Cp, halo_out, apply_input_act):
    # x_ref:     (1, Cp, L)  halo'd flat activation, L = HP + Mp + HP,
    #            voxel (d*H+h)*W+w of the (pre-BN) previous layer at lane HP+idx
    # w_ref:     (Cout_p, 27*Cp)  folded weights, col = t*Cp + cin, t=kd*9+kh*3+kw
    # scale/shift_ref: (Cp, 1)    folded BN of the *previous* layer
    # valid_ref: (1, L)   1.0 on real voxels, 0.0 on halo / tail lanes
    # mask_ref:  (9, Mp)  1.0 where tap (kh, kw) stays inside the H/W borders
    # y_ref:     (1, Cout_p, L) halo'd pre-BN output   (halo_out == HP), or
    #            (1, Cout_p, Mp) dense pre-BN output   (halo_out == 0)
    # ssum/ssq_ref: (1, Cout_p, 1) per-channel sum / sum-of-squares of y
    # xs_ref:    (Cp, L)       VMEM scratch: activated, halo-zeroed input
    # cols_ref:  (27*Cp, Mp)   VMEM scratch: stacked masked taps (im2col in VMEM)
    x = x_ref[0]                                           # (Cp, L)
    if apply_input_act:
        # Fused BN+ReLU of the previous layer, applied on load.
        x = jnp.maximum(x * scale_ref[...] + shift_ref[...], 0.0)
    xs_ref[...] = x * valid_ref[...]                       # zero halo + tail

    t = 0
    for kd in range(3):
        for kh in range(3):
            for kw in range(3):
                off = HP + (kd - 1) * HW + (kh - 1) * W + (kw - 1)
                tap = xs_ref[:, off:off + Mp]              # (Cp, Mp) static
                tap = tap * mask_ref[3 * kh + kw:3 * kh + kw + 1, :]
                cols_ref[t * Cp:(t + 1) * Cp, :] = tap     # sublane-aligned
                t += 1

    # One MXU dot: (Cout_p, 27*Cp) @ (27*Cp, Mp) -> (Cout_p, Mp)
    acc = jnp.dot(w_ref[...], cols_ref[...],
                  preferred_element_type=jnp.float32)

    cout = y_ref.shape[1]
    if halo_out:
        y_ref[0, :, :halo_out] = jnp.zeros((cout, halo_out), jnp.float32)
        y_ref[0, :, halo_out:halo_out + Mp] = acc
        tail = y_ref.shape[2] - halo_out - Mp
        y_ref[0, :, halo_out + Mp:] = jnp.zeros((cout, tail), jnp.float32)
    else:
        y_ref[0] = acc

    ssum_ref[0] = jnp.sum(acc, axis=1, keepdims=True)      # (Cout_p, 1)
    ssq_ref[0] = jnp.sum(acc * acc, axis=1, keepdims=True)


def _bn_relu_kernel(y_ref, scale_ref, shift_ref, o_ref):
    # y_ref/o_ref: (1, C, Mp) lane-dense; scale/shift: (C, 1)
    o_ref[0] = jnp.maximum(y_ref[0] * scale_ref[...] + shift_ref[...], 0.0)


# ------------------------------ wrappers ------------------------------------

def maxpool3d_2x2x2(x):
    """MaxPool3d(kernel=2, stride=2).  x: (N, C, D, H, W) -> (N, C, Do*Ho*Wo)."""
    N, C, D, H, W = x.shape
    assert D % 2 == 0 and H % 2 == 0 and W % 2 == 0
    Do, Ho, Wo = D // 2, H // 2, W // 2
    xr = x.reshape(N * C, Do, 2, Ho, 2, Wo, 2)       # free (contiguous) reshape
    out = pl.pallas_call(
        _maxpool_2x2x2_kernel,
        out_shape=jax.ShapeDtypeStruct((N * C, Do, Ho, Wo, 1), x.dtype),
        grid=(N * C,),
        in_specs=[pl.BlockSpec((1, Do, 2, Ho, 2, Wo, 2),
                               lambda i: (i, 0, 0, 0, 0, 0, 0))],
        out_specs=pl.BlockSpec((1, Do, Ho, Wo, 1), lambda i: (i, 0, 0, 0, 0)),
        compiler_params=pltpu.CompilerParams(dimension_semantics=("parallel",)),
    )(xr)
    return out.reshape(N, C, Do * Ho * Wo)


def conv3x3x3_flat(x_hal, weight, D, H, W, *, in_scale=None, in_shift=None,
                   halo_out=False):
    """Conv3d(kernel=3, padding=1, stride=1, no bias) on halo'd flat activations.

    x_hal: (N, Cin_p, L) f32 with L = HP + Mp + HP, Cin_p = round_up(Cin, 8),
    HP = round_up(H*W + W + 1, 128), Mp = round_up(D*H*W, 128).  The flat voxel
    index (d*H + h)*W + w of the previous layer's *pre-BN* activation sits at
    lane HP + idx; halo / tail lanes only need to hold finite values (they are
    zeroed inside the kernel).  If in_scale/in_shift are given, the previous
    layer's folded BN + ReLU is applied to the input inside the kernel.

    Returns (y, ssum, ssq).  y is the pre-BN output: (N, Cout_p, L) in the same
    halo'd layout when halo_out=True (ready to feed the next conv), else
    (N, Cout_p, Mp) dense.  ssum/ssq are per-channel sum / sum-of-squares over
    the N*D*H*W valid outputs (for the following BN fold).
    """
    N, Cp, L = x_hal.shape
    Cout, Cin = weight.shape[0], weight.shape[1]
    M = D * H * W
    Mp = _round_up(M, 128)
    HP = _round_up(H * W + W + 1, 128)
    assert L == HP + Mp + HP and Cp == _round_up(Cin, 8)
    Cout_p = _round_up(Cout, 8)
    Kbig = 27 * Cp
    apply_act = in_scale is not None

    # Folded weight matrix (Cout_p, 27*Cp), tap-major / channel-minor columns.
    w = jnp.transpose(weight.astype(jnp.float32),
                      (2, 3, 4, 0, 1)).reshape(27, Cout, Cin)
    w = jnp.pad(w, ((0, 0), (0, Cout_p - Cout), (0, Cp - Cin)))
    w = jnp.transpose(w, (1, 0, 2)).reshape(Cout_p, Kbig)

    if in_scale is None:
        in_scale = jnp.zeros((Cp, 1), jnp.float32)
        in_shift = jnp.zeros((Cp, 1), jnp.float32)

    # Tiny constant masks, built once in XLA (avoids in-kernel int div/mod).
    lane = jnp.arange(L)
    valid = ((lane >= HP) & (lane < HP + M)).astype(jnp.float32).reshape(1, L)
    m = jnp.arange(Mp)
    w_i = m % W
    h_i = (m // W) % H
    masks = []
    for kh in range(3):
        for kw in range(3):
            ok = ((h_i + kh - 1 >= 0) & (h_i + kh - 1 < H)
                  & (w_i + kw - 1 >= 0) & (w_i + kw - 1 < W) & (m < M))
            masks.append(ok)
    tapmask = jnp.stack(masks, axis=0).astype(jnp.float32)      # (9, Mp)

    L_out = L if halo_out else Mp
    kern = functools.partial(_conv3x3x3_kernel, HW=H * W, W=W, HP=HP, Mp=Mp,
                             Cp=Cp, halo_out=(HP if halo_out else 0),
                             apply_input_act=apply_act)
    y, ssum, ssq = pl.pallas_call(
        kern,
        out_shape=(jax.ShapeDtypeStruct((N, Cout_p, L_out), jnp.float32),
                   jax.ShapeDtypeStruct((N, Cout_p, 1), jnp.float32),
                   jax.ShapeDtypeStruct((N, Cout_p, 1), jnp.float32)),
        grid=(N,),
        in_specs=[
            pl.BlockSpec((1, Cp, L), lambda n: (n, 0, 0)),
            pl.BlockSpec((Cout_p, Kbig), lambda n: (0, 0)),
            pl.BlockSpec((Cp, 1), lambda n: (0, 0)),
            pl.BlockSpec((Cp, 1), lambda n: (0, 0)),
            pl.BlockSpec((1, L), lambda n: (0, 0)),
            pl.BlockSpec((9, Mp), lambda n: (0, 0)),
        ],
        out_specs=(
            pl.BlockSpec((1, Cout_p, L_out), lambda n: (n, 0, 0)),
            pl.BlockSpec((1, Cout_p, 1), lambda n: (n, 0, 0)),
            pl.BlockSpec((1, Cout_p, 1), lambda n: (n, 0, 0)),
        ),
        scratch_shapes=[pltpu.VMEM((Cp, L), jnp.float32),
                        pltpu.VMEM((Kbig, Mp), jnp.float32)],
        compiler_params=pltpu.CompilerParams(dimension_semantics=("parallel",)),
    )(x_hal, w, in_scale, in_shift, valid, tapmask)
    return y, ssum, ssq


def _fold_bn(ssum, ssq, count, gamma, beta, c_real, c_pad, eps=1e-5):
    """Fold training-mode batch stats into per-channel scale/shift (tiny glue)."""
    s = jnp.sum(ssum[:, :c_real, 0], axis=0)          # (C,)
    sq = jnp.sum(ssq[:, :c_real, 0], axis=0)          # (C,)
    mean = s / count
    var = sq / count - mean * mean                    # biased var, like PyTorch
    inv = gamma / jnp.sqrt(var + eps)
    scale = jnp.pad(inv, (0, c_pad - c_real)).reshape(-1, 1).astype(jnp.float32)
    shift = jnp.pad(beta - mean * inv,
                    (0, c_pad - c_real)).reshape(-1, 1).astype(jnp.float32)
    return scale, shift


def bn_relu_apply(y, scale, shift):
    """Standalone BN+ReLU (only needed for the last layer). y: (N, C, Mp)."""
    N, C, Mp = y.shape
    return pl.pallas_call(
        _bn_relu_kernel,
        out_shape=jax.ShapeDtypeStruct((N, C, Mp), jnp.float32),
        grid=(N,),
        in_specs=[pl.BlockSpec((1, C, Mp), lambda n: (n, 0, 0)),
                  pl.BlockSpec((C, 1), lambda n: (0, 0)),
                  pl.BlockSpec((C, 1), lambda n: (0, 0))],
        out_specs=pl.BlockSpec((1, C, Mp), lambda n: (n, 0, 0)),
        compiler_params=pltpu.CompilerParams(dimension_semantics=("parallel",)),
    )(y, scale, shift)


def down_forward(x, params, kernel_size_pad=2, stride=2, eps=1e-5):
    """Down.forward: MaxPool3d(2,2) -> (Conv3d 3x3x3 + BN + ReLU) x 2."""
    if kernel_size_pad != 2 or stride != 2:
        # TODO(synk): only the kernel_size_pad=2, stride=2 pooling used by the
        # module's default/test config is implemented as a Pallas kernel.
        raise NotImplementedError("Pallas maxpool path only supports k=s=2")
    N, Cin, D, H, W = x.shape
    Do, Ho, Wo = D // 2, H // 2, W // 2
    M = Do * Ho * Wo
    Mp = _round_up(M, 128)
    HP = _round_up(Ho * Wo + Wo + 1, 128)
    Cin_p = _round_up(Cin, 8)
    C1 = params["w1"].shape[0]
    C1p = _round_up(C1, 8)
    C2 = params["w2"].shape[0]
    C2p = _round_up(C2, 8)

    p = maxpool3d_2x2x2(x)                                    # (N, Cin, M)
    # Halo'd, channel-padded layout for conv1 (the only XLA pad on the path;
    # conv1's kernel emits the halo'd layout conv2 consumes directly).
    p_hal = jnp.pad(p.astype(jnp.float32),
                    ((0, 0), (0, Cin_p - Cin), (HP, HP + Mp - M)))

    # Conv1 (bias dropped: cancelled by training-mode BN); emits BN1 stats and
    # a halo'd output ready for conv2.
    y1, s1, q1 = conv3x3x3_flat(p_hal, params["w1"], Do, Ho, Wo, halo_out=True)
    sc1, sh1 = _fold_bn(s1, q1, N * M, params["g1"], params["be1"], C1, C1p, eps)

    # Conv2 with BN1+ReLU fused into its input load; emits BN2 stats.
    y2, s2, q2 = conv3x3x3_flat(y1, params["w2"], Do, Ho, Wo,
                                in_scale=sc1, in_shift=sh1, halo_out=False)
    sc2, sh2 = _fold_bn(s2, q2, N * M, params["g2"], params["be2"], C2, C2p, eps)

    out = bn_relu_apply(y2, sc2, sh2)                          # (N, C2p, Mp)
    return out[:, :C2, :M].reshape(N, C2, Do, Ho, Wo)          # NCDHW


# --------------------------- pure-JAX reference -----------------------------

def down_reference(x, params, k=2, s=2, eps=1e-5):
    p = lax.reduce_window(x, -jnp.inf, lax.max,
                          (1, 1, k, k, k), (1, 1, s, s, s), "VALID")

    def conv_bn_relu(h, w, b, g, be):
        y = lax.conv_general_dilated(
            h, w, (1, 1, 1), [(1, 1)] * 3,
            dimension_numbers=("NCDHW", "OIDHW", "NCDHW"),
            precision=lax.Precision.HIGHEST) + b.reshape(1, -1, 1, 1, 1)
        mean = y.mean(axis=(0, 2, 3, 4), keepdims=True)
        var = ((y - mean) ** 2).mean(axis=(0, 2, 3, 4), keepdims=True)
        yn = (y - mean) / jnp.sqrt(var + eps)
        yn = yn * g.reshape(1, -1, 1, 1, 1) + be.reshape(1, -1, 1, 1, 1)
        return jnp.maximum(yn, 0.0)

    h = conv_bn_relu(p, params["w1"], params["b1"], params["g1"], params["be1"])
    h = conv_bn_relu(h, params["w2"], params["b2"], params["g2"], params["be2"])
    return h


# --------------------------------- main --------------------------------------

if __name__ == "__main__":
    key = jax.random.PRNGKey(0)
    ks = jax.random.split(key, 9)

    N, Cin, Cout = 2, 4, 8
    D = H = W = 16
    kernel_size_pad, stride = 2, 2

    x = jax.random.normal(ks[0], (N, Cin, D, H, W), jnp.float32)

    params = {
        "w1": jax.random.normal(ks[1], (Cout, Cin, 3, 3, 3), jnp.float32)
              / np.sqrt(Cin * 27),
        "b1": 0.1 * jax.random.normal(ks[2], (Cout,), jnp.float32),
        "g1": 1.0 + 0.1 * jax.random.normal(ks[3], (Cout,), jnp.float32),
        "be1": 0.1 * jax.random.normal(ks[4], (Cout,), jnp.float32),
        "w2": jax.random.normal(ks[5], (Cout, Cout, 3, 3, 3), jnp.float32)
              / np.sqrt(Cout * 27),
        "b2": 0.1 * jax.random.normal(ks[6], (Cout,), jnp.float32),
        "g2": 1.0 + 0.1 * jax.random.normal(ks[7], (Cout,), jnp.float32),
        "be2": 0.1 * jax.random.normal(ks[8], (Cout,), jnp.float32),
    }

    fwd = jax.jit(functools.partial(down_forward,
                                    kernel_size_pad=kernel_size_pad,
                                    stride=stride))
    out = jax.block_until_ready(fwd(x, params))

    ref = jax.block_until_ready(
        down_reference(x, params, k=kernel_size_pad, s=stride))

    np.testing.assert_allclose(np.asarray(out), np.asarray(ref),
                               rtol=5e-3, atol=5e-3)
    print("KERNEL_OK")
</pallas_src>

<mosaic_0001>
module attributes {stable_mosaic.version = 11 : i64} {
  func.func @_maxpool_2x2x2_kernel(%arg0: i32, %arg1: memref<1x8x2x8x2x8x2xf32, #tpu.memory_space<vmem>>, %arg2: memref<1x8x8x8x1xf32, #tpu.memory_space<vmem>>) attributes {dimension_semantics = [#tpu.dimension_semantics<parallel>], iteration_bounds = array<i64: 8>, scalar_prefetch = 0 : i64, scratch_operands = 0 : i64, tpu.core_type = #tpu.core_type<tc>, window_params = [{transform_indices = @transform_0, window_bounds = array<i64: 1, 8, 2, 8, 2, 8, 2>}, {transform_indices = @transform_1, window_bounds = array<i64: 1, 8, 8, 8, 1>}]} {
    %c0 = arith.constant 0 : index
    %c0_0 = arith.constant 0 : index
    %c0_1 = arith.constant 0 : index
    %c0_2 = arith.constant 0 : index
    %c0_3 = arith.constant 0 : index
    %c0_4 = arith.constant 0 : index
    %c0_5 = arith.constant 0 : index
    %0 = vector.load %arg1[%c0, %c0_0, %c0_1, %c0_2, %c0_3, %c0_4, %c0_5] : memref<1x8x2x8x2x8x2xf32, #tpu.memory_space<vmem>>, vector<1x1x1x8x1x8x2xf32>
    %1 = vector.shape_cast %0 : vector<1x1x1x8x1x8x2xf32> to vector<8x8x2xf32>
    %c0_6 = arith.constant 0 : index
    %c0_7 = arith.constant 0 : index
    %c0_8 = arith.constant 0 : index
    %c0_9 = arith.constant 0 : index
    %c1 = arith.constant 1 : index
    %c0_10 = arith.constant 0 : index
    %c0_11 = arith.constant 0 : index
    %2 = vector.load %arg1[%c0_6, %c0_7, %c0_8, %c0_9, %c1, %c0_10, %c0_11] : memref<1x8x2x8x2x8x2xf32, #tpu.memory_space<vmem>>, vector<1x1x1x8x1x8x2xf32>
    %3 = vector.shape_cast %2 : vector<1x1x1x8x1x8x2xf32> to vector<8x8x2xf32>
    %c0_12 = arith.constant 0 : index
    %c0_13 = arith.constant 0 : index
    %c1_14 = arith.constant 1 : index
    %c0_15 = arith.constant 0 : index
    %c0_16 = arith.constant 0 : index
    %c0_17 = arith.constant 0 : index
    %c0_18 = arith.constant 0 : index
    %4 = vector.load %arg1[%c0_12, %c0_13, %c1_14, %c0_15, %c0_16, %c0_17, %c0_18] : memref<1x8x2x8x2x8x2xf32, #tpu.memory_space<vmem>>, vector<1x1x1x8x1x8x2xf32>
    %5 = vector.shape_cast %4 : vector<1x1x1x8x1x8x2xf32> to vector<8x8x2xf32>
    %c0_19 = arith.constant 0 : index
    %c0_20 = arith.constant 0 : index
    %c1_21 = arith.constant 1 : index
    %c0_22 = arith.constant 0 : index
    %c1_23 = arith.constant 1 : index
    %c0_24 = arith.constant 0 : index
    %c0_25 = arith.constant 0 : index
    %6 = vector.load %arg1[%c0_19, %c0_20, %c1_21, %c0_22, %c1_23, %c0_24, %c0_25] : memref<1x8x2x8x2x8x2xf32, #tpu.memory_space<vmem>>, vector<1x1x1x8x1x8x2xf32>
    %7 = vector.shape_cast %6 : vector<1x1x1x8x1x8x2xf32> to vector<8x8x2xf32>
    %8 = arith.maximumf %1, %3 : vector<8x8x2xf32>
    %9 = arith.maximumf %5, %7 : vector<8x8x2xf32>
    %10 = arith.maximumf %8, %9 : vector<8x8x2xf32>
    %cst = arith.constant dense<0xFF800000> : vector<8x8xf32>
    %11 = vector.multi_reduction <maximumf>, %10, %cst [2] : vector<8x8x2xf32> to vector<8x8xf32>
    %12 = vector.shape_cast %11 : vector<8x8xf32> to vector<8x8x1xf32>
    %c0_26 = arith.constant 0 : index
    %c0_27 = arith.constant 0 : index
    %c0_28 = arith.constant 0 : index
    %c0_29 = arith.constant 0 : index
    %c0_30 = arith.constant 0 : index
    %13 = vector.load %arg2[%c0_26, %c0_27, %c0_28, %c0_29, %c0_30] : memref<1x8x8x8x1xf32, #tpu.memory_space<vmem>>, vector<1x1x8x8x1xf32>
    %14 = vector.shape_cast %13 : vector<1x1x8x8x1xf32> to vector<8x8x1xf32>
    %15 = vector.shape_cast %12 : vector<8x8x1xf32> to vector<1x1x8x8x1xf32>
    tpu.vector_store %arg2[%c0_26, %c0_27, %c0_28, %c0_29, %c0_30], %15 {strides = array<i32>} : memref<1x8x8x8x1xf32, #tpu.memory_space<vmem>>, vector<1x1x8x8x1xf32>,
    %c0_31 = arith.constant 0 : index
    %c1_32 = arith.constant 1 : index
    %c0_33 = arith.constant 0 : index
    %c0_34 = arith.constant 0 : index
    %c0_35 = arith.constant 0 : index
    %c0_36 = arith.constant 0 : index
    %c0_37 = arith.constant 0 : index
    %16 = vector.load %arg1[%c0_31, %c1_32, %c0_33, %c0_34, %c0_35, %c0_36, %c0_37] : memref<1x8x2x8x2x8x2xf32, #tpu.memory_space<vmem>>, vector<1x1x1x8x1x8x2xf32>
    %17 = vector.shape_cast %16 : vector<1x1x1x8x1x8x2xf32> to vector<8x8x2xf32>
    %c0_38 = arith.constant 0 : index
    %c1_39 = arith.constant 1 : index
    %c0_40 = arith.constant 0 : index
    %c0_41 = arith.constant 0 : index
    %c1_42 = arith.constant 1 : index
    %c0_43 = arith.constant 0 : index
    %c0_44 = arith.constant 0 : index
    %18 = vector.load %arg1[%c0_38, %c1_39, %c0_40, %c0_41, %c1_42, %c0_43, %c0_44] : memref<1x8x2x8x2x8x2xf32, #tpu.memory_space<vmem>>, vector<1x1x1x8x1x8x2xf32>
    %19 = vector.shape_cast %18 : vector<1x1x1x8x1x8x2xf32> to vector<8x8x2xf32>
    %c0_45 = arith.constant 0 : index
    %c1_46 = arith.constant 1 : index
    %c1_47 = arith.constant 1 : index
    %c0_48 = arith.constant 0 : index
    %c0_49 = arith.constant 0 : index
    %c0_50 = arith.constant 0 : index
    %c0_51 = arith.constant 0 : index
    %20 = vector.load %arg1[%c0_45, %c1_46, %c1_47, %c0_48, %c0_49, %c0_50, %c0_51] : memref<1x8x2x8x2x8x2xf32, #tpu.memory_space<vmem>>, vector<1x1x1x8x1x8x2xf32>
    %21 = vector.shape_cast %20 : vector<1x1x1x8x1x8x2xf32> to vector<8x8x2xf32>
    %c0_52 = arith.constant 0 : index
    %c1_53 = arith.constant 1 : index
    %c1_54 = arith.constant 1 : index
    %c0_55 = arith.constant 0 : index
    %c1_56 = arith.constant 1 : index
    %c0_57 = arith.constant 0 : index
    %c0_58 = arith.constant 0 : index
    %22 = vector.load %arg1[%c0_52, %c1_53, %c1_54, %c0_55, %c1_56, %c0_57, %c0_58] : memref<1x8x2x8x2x8x2xf32, #tpu.memory_space<vmem>>, vector<1x1x1x8x1x8x2xf32>
    %23 = vector.shape_cast %22 : vector<1x1x1x8x1x8x2xf32> to vector<8x8x2xf32>
    %24 = arith.maximumf %17, %19 : vector<8x8x2xf32>
    %25 = arith.maximumf %21, %23 : vector<8x8x2xf32>
    %26 = arith.maximumf %24, %25 : vector<8x8x2xf32>
    %cst_59 = arith.constant dense<0xFF800000> : vector<8x8xf32>
    %27 = vector.multi_reduction <maximumf>, %26, %cst_59 [2] : vector<8x8x2xf32> to vector<8x8xf32>
    %28 = vector.shape_cast %27 : vector<8x8xf32> to vector<8x8x1xf32>
    %c0_60 = arith.constant 0 : index
    %c1_61 = arith.constant 1 : index
    %c0_62 = arith.constant 0 : index
    %c0_63 = arith.constant 0 : index
    %c0_64 = arith.constant 0 : index
    %29 = vector.load %arg2[%c0_60, %c1_61, %c0_62, %c0_63, %c0_64] : memref<1x8x8x8x1xf32, #tpu.memory_space<vmem>>, vector<1x1x8x8x1xf32>
    %30 = vector.shape_cast %29 : vector<1x1x8x8x1xf32> to vector<8x8x1xf32>
    %31 = vector.shape_cast %28 : vector<8x8x1xf32> to vector<1x1x8x8x1xf32>
    tpu.vector_store %arg2[%c0_60, %c1_61, %c0_62, %c0_63, %c0_64], %31 {strides = array<i32>} : memref<1x8x8x8x1xf32, #tpu.memory_space<vmem>>, vector<1x1x8x8x1xf32>,
    %c0_65 = arith.constant 0 : index
    %c2 = arith.constant 2 : index
    %c0_66 = arith.constant 0 : index
    %c0_67 = arith.constant 0 : index
    %c0_68 = arith.constant 0 : index
    %c0_69 = arith.constant 0 : index
    %c0_70 = arith.constant 0 : index
    %32 = vector.load %arg1[%c0_65, %c2, %c0_66, %c0_67, %c0_68, %c0_69, %c0_70] : memref<1x8x2x8x2x8x2xf32, #tpu.memory_space<vmem>>, vector<1x1x1x8x1x8x2xf32>
    %33 = vector.shape_cast %32 : vector<1x1x1x8x1x8x2xf32> to vector<8x8x2xf32>
    %c0_71 = arith.constant 0 : index
    %c2_72 = arith.constant 2 : index
    %c0_73 = arith.constant 0 : index
    %c0_74 = arith.constant 0 : index
    %c1_75 = arith.constant 1 : index
    %c0_76 = arith.constant 0 : index
    %c0_77 = arith.constant 0 : index
    %34 = vector.load %arg1[%c0_71, %c2_72, %c0_73, %c0_74, %c1_75, %c0_76, %c0_77] : memref<1x8x2x8x2x8x2xf32, #tpu.memory_space<vmem>>, vector<1x1x1x8x1x8x2xf32>
    %35 = vector.shape_cast %34 : vector<1x1x1x8x1x8x2xf32> to vector<8x8x2xf32>
    %c0_78 = arith.constant 0 : index
    %c2_79 = arith.constant 2 : index
    %c1_80 = arith.constant 1 : index
    %c0_81 = arith.constant 0 : index
    %c0_82 = arith.constant 0 : index
    %c0_83 = arith.constant 0 : index
    %c0_84 = arith.constant 0 : index
    %36 = vector.load %arg1[%c0_78, %c2_79, %c1_80, %c0_81, %c0_82, %c0_83, %c0_84] : memref<1x8x2x8x2x8x2xf32, #tpu.memory_space<vmem>>, vector<1x1x1x8x1x8x2xf32>
    %37 = vector.shape_cast %36 : vector<1x1x1x8x1x8x2xf32> to vector<8x8x2xf32>
    %c0_85 = arith.constant 0 : index
    %c2_86 = arith.constant 2 : index
    %c1_87 = arith.constant 1 : index
    %c0_88 = arith.constant 0 : index
    %c1_89 = arith.constant 1 : index
    %c0_90 = arith.constant 0 : index
    %c0_91 = arith.constant 0 : index
    %38 = vector.load %arg1[%c0_85, %c2_86, %c1_87, %c0_88, %c1_89, %c0_90, %c0_91] : memref<1x8x2x8x2x8x2xf32, #tpu.memory_space<vmem>>, vector<1x1x1x8x1x8x2xf32>
    %39 = vector.shape_cast %38 : vector<1x1x1x8x1x8x2xf32> to vector<8x8x2xf32>
    %40 = arith.maximumf %33, %35 : vector<8x8x2xf32>
    %41 = arith.maximumf %37, %39 : vector<8x8x2xf32>
    %42 = arith.maximumf %40, %41 : vector<8x8x2xf32>
    %cst_92 = arith.constant dense<0xFF800000> : vector<8x8xf32>
    %43 = vector.multi_reduction <maximumf>, %42, %cst_92 [2] : vector<8x8x2xf32> to vector<8x8xf32>
    %44 = vector.shape_cast %43 : vector<8x8xf32> to vector<8x8x1xf32>
    %c0_93 = arith.constant 0 : index
    %c2_94 = arith.constant 2 : index
    %c0_95 = arith.constant 0 : index
    %c0_96 = arith.constant 0 : index
    %c0_97 = arith.constant 0 : index
    %45 = vector.load %arg2[%c0_93, %c2_94, %c0_95, %c0_96, %c0_97] : memref<1x8x8x8x1xf32, #tpu.memory_space<vmem>>, vector<1x1x8x8x1xf32>
    %46 = vector.shape_cast %45 : vector<1x1x8x8x1xf32> to vector<8x8x1xf32>
    %47 = vector.shape_cast %44 : vector<8x8x1xf32> to vector<1x1x8x8x1xf32>
    tpu.vector_store %arg2[%c0_93, %c2_94, %c0_95, %c0_96, %c0_97], %47 {strides = array<i32>} : memref<1x8x8x8x1xf32, #tpu.memory_space<vmem>>, vector<1x1x8x8x1xf32>,
    %c0_98 = arith.constant 0 : index
    %c3 = arith.constant 3 : index
    %c0_99 = arith.constant 0 : index
    %c0_100 = arith.constant 0 : index
    %c0_101 = arith.constant 0 : index
    %c0_102 = arith.constant 0 : index
    %c0_103 = arith.constant 0 : index
    %48 = vector.load %arg1[%c0_98, %c3, %c0_99, %c0_100, %c0_101, %c0_102, %c0_103] : memref<1x8x2x8x2x8x2xf32, #tpu.memory_space<vmem>>, vector<1x1x1x8x1x8x2xf32>
    %49 = vector.shape_cast %48 : vector<1x1x1x8x1x8x2xf32> to vector<8x8x2xf32>
    %c0_104 = arith.constant 0 : index
    %c3_105 = arith.constant 3 : index
    %c0_106 = arith.constant 0 : index
    %c0_107 = arith.constant 0 : index
    %c1_108 = arith.constant 1 : index
    %c0_109 = arith.constant 0 : index
    %c0_110 = arith.constant 0 : index
    %50 = vector.load %arg1[%c0_104, %c3_105, %c0_106, %c0_107, %c1_108, %c0_109, %c0_110] : memref<1x8x2x8x2x8x2xf32, #tpu.memory_space<vmem>>, vector<1x1x1x8x1x8x2xf32>
    %51 = vector.shape_cast %50 : vector<1x1x1x8x1x8x2xf32> to vector<8x8x2xf32>
    %c0_111 = arith.constant 0 : index
    %c3_112 = arith.constant 3 : index
    %c1_113 = arith.constant 1 : index
    %c0_114 = arith.constant 0 : index
    %c0_115 = arith.constant 0 : index
    %c0_116 = arith.constant 0 : index
    %c0_117 = arith.constant 0 : index
    %52 = vector.load %arg1[%c0_111, %c3_112, %c1_113, %c0_114, %c0_115, %c0_116, %c0_117] : memref<1x8x2x8x2x8x2xf32, #tpu.memory_space<vmem>>, vector<1x1x1x8x1x8x2xf32>
    %53 = vector.shape_cast %52 : vector<1x1x1x8x1x8x2xf32> to vector<8x8x2xf32>
    %c0_118 = arith.constant 0 : index
    %c3_119 = arith.constant 3 : index
    %c1_120 = arith.constant 1 : index
    %c0_121 = arith.constant 0 : index
    %c1_122 = arith.constant 1 : index
    %c0_123 = arith.constant 0 : index
    %c0_124 = arith.constant 0 : index
    %54 = vector.load %arg1[%c0_118, %c3_119, %c1_120, %c0_121, %c1_122, %c0_123, %c0_124] : memref<1x8x2x8x2x8x2xf32, #tpu.memory_space<vmem>>, vector<1x1x1x8x1x8x2xf32>
    %55 = vector.shape_cast %54 : vector<1x1x1x8x1x8x2xf32> to vector<8x8x2xf32>
    %56 = arith.maximumf %49, %51 : vector<8x8x2xf32>
    %57 = arith.maximumf %53, %55 : vector<8x8x2xf32>
    %58 = arith.maximumf %56, %57 : vector<8x8x2xf32>
    %cst_125 = arith.constant dense<0xFF800000> : vector<8x8xf32>
    %59 = vector.multi_reduction <maximumf>, %58, %cst_125 [2] : vector<8x8x2xf32> to vector<8x8xf32>
    %60 = vector.shape_cast %59 : vector<8x8xf32> to vector<8x8x1xf32>
    %c0_126 = arith.constant 0 : index
    %c3_127 = arith.constant 3 : index
    %c0_128 = arith.constant 0 : index
    %c0_129 = arith.constant 0 : index
    %c0_130 = arith.constant 0 : index
    %61 = vector.load %arg2[%c0_126, %c3_127, %c0_128, %c0_129, %c0_130] : memref<1x8x8x8x1xf32, #tpu.memory_space<vmem>>, vector<1x1x8x8x1xf32>
    %62 = vector.shape_cast %61 : vector<1x1x8x8x1xf32> to vector<8x8x1xf32>
    %63 = vector.shape_cast %60 : vector<8x8x1xf32> to vector<1x1x8x8x1xf32>
    tpu.vector_store %arg2[%c0_126, %c3_127, %c0_128, %c0_129, %c0_130], %63 {strides = array<i32>} : memref<1x8x8x8x1xf32, #tpu.memory_space<vmem>>, vector<1x1x8x8x1xf32>,
    %c0_131 = arith.constant 0 : index
    %c4 = arith.constant 4 : index
    %c0_132 = arith.constant 0 : index
    %c0_133 = arith.constant 0 : index
    %c0_134 = arith.constant 0 : index
    %c0_135 = arith.constant 0 : index
    %c0_136 = arith.constant 0 : index
    %64 = vector.load %arg1[%c0_131, %c4, %c0_132, %c0_133, %c0_134, %c0_135, %c0_136] : memref<1x8x2x8x2x8x2xf32, #tpu.memory_space<vmem>>, vector<1x1x1x8x1x8x2xf32>
    %65 = vector.shape_cast %64 : vector<1x1x1x8x1x8x2xf32> to vector<8x8x2xf32>
    %c0_137 = arith.constant 0 : index
    %c4_138 = arith.constant 4 : index
    %c0_139 = arith.constant 0 : index
    %c0_140 = arith.constant 0 : index
    %c1_141 = arith.constant 1 : index
    %c0_142 = arith.constant 0 : index
    %c0_143 = arith.constant 0 : index
    %66 = vector.load %arg1[%c0_137, %c4_138, %c0_139, %c0_140, %c1_141, %c0_142, %c0_143] : memref<1x8x2x8x2x8x2xf32, #tpu.memory_space<vmem>>, vector<1x1x1x8x1x8x2xf32>
    %67 = vector.shape_cast %66 : vector<1x1x1x8x1x8x2xf32> to vector<8x8x2xf32>
    %c0_144 = arith.constant 0 : index
    %c4_145 = arith.constant 4 : index
    %c1_146 = arith.constant 1 : index
    %c0_147 = arith.constant 0 : index
    %c0_148 = arith.constant 0 : index
    %c0_149 = arith.constant 0 : index
    %c0_150 = arith.constant 0 : index
    %68 = vector.load %arg1[%c0_144, %c4_145, %c1_146, %c0_147, %c0_148, %c0_149, %c0_150] : memref<1x8x2x8x2x8x2xf32, #tpu.memory_space<vmem>>, vector<1x1x1x8x1x8x2xf32>
    %69 = vector.shape_cast %68 : vector<1x1x1x8x1x8x2xf32> to vector<8x8x2xf32>
    %c0_151 = arith.constant 0 : index
    %c4_152 = arith.constant 4 : index
    %c1_153 = arith.constant 1 : index
    %c0_154 = arith.constant 0 : index
    %c1_155 = arith.constant 1 : index
    %c0_156 = arith.constant 0 : index
    %c0_157 = arith.constant 0 : index
    %70 = vector.load %arg1[%c0_151, %c4_152, %c1_153, %c0_154, %c1_155, %c0_156, %c0_157] : memref<1x8x2x8x2x8x2xf32, #tpu.memory_space<vmem>>, vector<1x1x1x8x1x8x2xf32>
    %71 = vector.shape_cast %70 : vector<1x1x1x8x1x8x2xf32> to vector<8x8x2xf32>
    %72 = arith.maximumf %65, %67 : vector<8x8x2xf32>
    %73 = arith.maximumf %69, %71 : vector<8x8x2xf32>
    %74 = arith.maximumf %72, %73 : vector<8x8x2xf32>
    %cst_158 = arith.constant dense<0xFF800000> : vector<8x8xf32>
    %75 = vector.multi_reduction <maximumf>, %74, %cst_158 [2] : vector<8x8x2xf32> to vector<8x8xf32>
    %76 = vector.shape_cast %75 : vector<8x8xf32> to vector<8x8x1xf32>
    %c0_159 = arith.constant 0 : index
    %c4_160 = arith.constant 4 : index
    %c0_161 = arith.constant 0 : index
    %c0_162 = arith.constant 0 : index
    %c0_163 = arith.constant 0 : index
    %77 = vector.load %arg2[%c0_159, %c4_160, %c0_161, %c0_162, %c0_163] : memref<1x8x8x8x1xf32, #tpu.memory_space<vmem>>, vector<1x1x8x8x1xf32>
    %78 = vector.shape_cast %77 : vector<1x1x8x8x1xf32> to vector<8x8x1xf32>
    %79 = vector.shape_cast %76 : vector<8x8x1xf32> to vector<1x1x8x8x1xf32>
    tpu.vector_store %arg2[%c0_159, %c4_160, %c0_161, %c0_162, %c0_163], %79 {strides = array<i32>} : memref<1x8x8x8x1xf32, #tpu.memory_space<vmem>>, vector<1x1x8x8x1xf32>,
    %c0_164 = arith.constant 0 : index
    %c5 = arith.constant 5 : index
    %c0_165 = arith.constant 0 : index
    %c0_166 = arith.constant 0 : index
    %c0_167 = arith.constant 0 : index
    %c0_168 = arith.constant 0 : index
    %c0_169 = arith.constant 0 : index
    %80 = vector.load %arg1[%c0_164, %c5, %c0_165, %c0_166, %c0_167, %c0_168, %c0_169] : memref<1x8x2x8x2x8x2xf32, #tpu.memory_space<vmem>>, vector<1x1x1x8x1x8x2xf32>
    %81 = vector.shape_cast %80 : vector<1x1x1x8x1x8x2xf32> to vector<8x8x2xf32>
    %c0_170 = arith.constant 0 : index
    %c5_171 = arith.constant 5 : index
    %c0_172 = arith.constant 0 : index
    %c0_173 = arith.constant 0 : index
    %c1_174 = arith.constant 1 : index
    %c0_175 = arith.constant 0 : index
    %c0_176 = arith.constant 0 : index
    %82 = vector.load %arg1[%c0_170, %c5_171, %c0_172, %c0_173, %c1_174, %c0_175, %c0_176] : memref<1x8x2x8x2x8x2xf32, #tpu.memory_space<vmem>>, vector<1x1x1x8x1x8x2xf32>
    %83 = vector.shape_cast %82 : vector<1x1x1x8x1x8x2xf32> to vector<8x8x2xf32>
    %c0_177 = arith.constant 0 : index
    %c5_178 = arith.constant 5 : index
    %c1_179 = arith.constant 1 : index
    %c0_180 = arith.constant 0 : index
    %c0_181 = arith.constant 0 : index
    %c0_182 = arith.constant 0 : index
    %c0_183 = arith.constant 0 : index
    %84 = vector.load %arg1[%c0_177, %c5_178, %c1_179, %c0_180, %c0_181, %c0_182, %c0_183] : memref<1x8x2x8x2x8x2xf32, #tpu.memory_space<vmem>>, vector<1x1x1x8x1x8x2xf32>
    %85 = vector.shape_cast %84 : vector<1x1x1x8x1x8x2xf32> to vector<8x8x2xf32>
    %c0_184 = arith.constant 0 : index
    %c5_185 = arith.constant 5 : index
    %c1_186 = arith.constant 1 : index
    %c0_187 = arith.constant 0 : index
    %c1_188 = arith.constant 1 : index
    %c0_189 = arith.constant 0 : index
    %c0_190 = arith.constant 0 : index
    %86 = vector.load %arg1[%c0_184, %c5_185, %c1_186, %c0_187, %c1_188, %c0_189, %c0_190] : memref<1x8x2x8x2x8x2xf32, #tpu.memory_space<vmem>>, vector<1x1x1x8x1x8x2xf32>
    %87 = vector.shape_cast %86 : vector<1x1x1x8x1x8x2xf32> to vector<8x8x2xf32>
    %88 = arith.maximumf %81, %83 : vector<8x8x2xf32>
    %89 = arith.maximumf %85, %87 : vector<8x8x2xf32>
    %90 = arith.maximumf %88, %89 : vector<8x8x2xf32>
    %cst_191 = arith.constant dense<0xFF800000> : vector<8x8xf32>
    %91 = vector.multi_reduction <maximumf>, %90, %cst_191 [2] : vector<8x8x2xf32> to vector<8x8xf32>
    %92 = vector.shape_cast %91 : vector<8x8xf32> to vector<8x8x1xf32>
    %c0_192 = arith.constant 0 : index
    %c5_193 = arith.constant 5 : index
    %c0_194 = arith.constant 0 : index
    %c0_195 = arith.constant 0 : index
    %c0_196 = arith.constant 0 : index
    %93 = vector.load %arg2[%c0_192, %c5_193, %c0_194, %c0_195, %c0_196] : memref<1x8x8x8x1xf32, #tpu.memory_space<vmem>>, vector<1x1x8x8x1xf32>
    %94 = vector.shape_cast %93 : vector<1x1x8x8x1xf32> to vector<8x8x1xf32>
    %95 = vector.shape_cast %92 : vector<8x8x1xf32> to vector<1x1x8x8x1xf32>
    tpu.vector_store %arg2[%c0_192, %c5_193, %c0_194, %c0_195, %c0_196], %95 {strides = array<i32>} : memref<1x8x8x8x1xf32, #tpu.memory_space<vmem>>, vector<1x1x8x8x1xf32>,
    %c0_197 = arith.constant 0 : index
    %c6 = arith.constant 6 : index
    %c0_198 = arith.constant 0 : index
    %c0_199 = arith.constant 0 : index
    %c0_200 = arith.constant 0 : index
    %c0_201 = arith.constant 0 : index
    %c0_202 = arith.constant 0 : index
    %96 = vector.load %arg1[%c0_197, %c6, %c0_198, %c0_199, %c0_200, %c0_201, %c0_202] : memref<1x8x2x8x2x8x2xf32, #tpu.memory_space<vmem>>, vector<1x1x1x8x1x8x2xf32>
    %97 = vector.shape_cast %96 : vector<1x1x1x8x1x8x2xf32> to vector<8x8x2xf32>
    %c0_203 = arith.constant 0 : index
    %c6_204 = arith.constant 6 : index
    %c0_205 = arith.constant 0 : index
    %c0_206 = arith.constant 0 : index
    %c1_207 = arith.constant 1 : index
    %c0_208 = arith.constant 0 : index
    %c0_209 = arith.constant 0 : index
    %98 = vector.load %arg1[%c0_203, %c6_204, %c0_205, %c0_206, %c1_207, %c0_208, %c0_209] : memref<1x8x2x8x2x8x2xf32, #tpu.memory_space<vmem>>, vector<1x1x1x8x1x8x2xf32>
    %99 = vector.shape_cast %98 : vector<1x1x1x8x1x8x2xf32> to vector<8x8x2xf32>
    %c0_210 = arith.constant 0 : index
    %c6_211 = arith.constant 6 : index
    %c1_212 = arith.constant 1 : index
    %c0_213 = arith.constant 0 : index
    %c0_214 = arith.constant 0 : index
    %c0_215 = arith.constant 0 : index
    %c0_216 = arith.constant 0 : index
    %100 = vector.load %arg1[%c0_210, %c6_211, %c1_212, %c0_213, %c0_214, %c0_215, %c0_216] : memref<1x8x2x8x2x8x2xf32, #tpu.memory_space<vmem>>, vector<1x1x1x8x1x8x2xf32>
    %101 = vector.shape_cast %100 : vector<1x1x1x8x1x8x2xf32> to vector<8x8x2xf32>
    %c0_217 = arith.constant 0 : index
    %c6_218 = arith.constant 6 : index
    %c1_219 = arith.constant 1 : index
    %c0_220 = arith.constant 0 : index
    %c1_221 = arith.constant 1 : index
    %c0_222 = arith.constant 0 : index
    %c0_223 = arith.constant 0 : index
    %102 = vector.load %arg1[%c0_217, %c6_218, %c1_219, %c0_220, %c1_221, %c0_222, %c0_223] : memref<1x8x2x8x2x8x2xf32, #tpu.memory_space<vmem>>, vector<1x1x1x8x1x8x2xf32>
    %103 = vector.shape_cast %102 : vector<1x1x1x8x1x8x2xf32> to vector<8x8x2xf32>
    %104 = arith.maximumf %97, %99 : vector<8x8x2xf32>
    %105 = arith.maximumf %101, %103 : vector<8x8x2xf32>
    %106 = arith.maximumf %104, %105 : vector<8x8x2xf32>
    %cst_224 = arith.constant dense<0xFF800000> : vector<8x8xf32>
    %107 = vector.multi_reduction <maximumf>, %106, %cst_224 [2] : vector<8x8x2xf32> to vector<8x8xf32>
    %108 = vector.shape_cast %107 : vector<8x8xf32> to vector<8x8x1xf32>
    %c0_225 = arith.constant 0 : index
    %c6_226 = arith.constant 6 : index
    %c0_227 = arith.constant 0 : index
    %c0_228 = arith.constant 0 : index
    %c0_229 = arith.constant 0 : index
    %109 = vector.load %arg2[%c0_225, %c6_226, %c0_227, %c0_228, %c0_229] : memref<1x8x8x8x1xf32, #tpu.memory_space<vmem>>, vector<1x1x8x8x1xf32>
    %110 = vector.shape_cast %109 : vector<1x1x8x8x1xf32> to vector<8x8x1xf32>
    %111 = vector.shape_cast %108 : vector<8x8x1xf32> to vector<1x1x8x8x1xf32>
    tpu.vector_store %arg2[%c0_225, %c6_226, %c0_227, %c0_228, %c0_229], %111 {strides = array<i32>} : memref<1x8x8x8x1xf32, #tpu.memory_space<vmem>>, vector<1x1x8x8x1xf32>,
    %c0_230 = arith.constant 0 : index
    %c7 = arith.constant 7 : index
    %c0_231 = arith.constant 0 : index
    %c0_232 = arith.constant 0 : index
    %c0_233 = arith.constant 0 : index
    %c0_234 = arith.constant 0 : index
    %c0_235 = arith.constant 0 : index
    %112 = vector.load %arg1[%c0_230, %c7, %c0_231, %c0_232, %c0_233, %c0_234, %c0_235] : memref<1x8x2x8x2x8x2xf32, #tpu.memory_space<vmem>>, vector<1x1x1x8x1x8x2xf32>
    %113 = vector.shape_cast %112 : vector<1x1x1x8x1x8x2xf32> to vector<8x8x2xf32>
    %c0_236 = arith.constant 0 : index
    %c7_237 = arith.constant 7 : index
    %c0_238 = arith.constant 0 : index
    %c0_239 = arith.constant 0 : index
    %c1_240 = arith.constant 1 : index
    %c0_241 = arith.constant 0 : index
    %c0_242 = arith.constant 0 : index
    %114 = vector.load %arg1[%c0_236, %c7_237, %c0_238, %c0_239, %c1_240, %c0_241, %c0_242] : memref<1x8x2x8x2x8x2xf32, #tpu.memory_space<vmem>>, vector<1x1x1x8x1x8x2xf32>
    %115 = vector.shape_cast %114 : vector<1x1x1x8x1x8x2xf32> to vector<8x8x2xf32>
    %c0_243 = arith.constant 0 : index
    %c7_244 = arith.constant 7 : index
    %c1_245 = arith.constant 1 : index
    %c0_246 = arith.constant 0 : index
    %c0_247 = arith.constant 0 : index
    %c0_248 = arith.constant 0 : index
    %c0_249 = arith.constant 0 : index
    %116 = vector.load %arg1[%c0_243, %c7_244, %c1_245, %c0_246, %c0_247, %c0_248, %c0_249] : memref<1x8x2x8x2x8x2xf32, #tpu.memory_space<vmem>>, vector<1x1x1x8x1x8x2xf32>
    %117 = vector.shape_cast %116 : vector<1x1x1x8x1x8x2xf32> to vector<8x8x2xf32>
    %c0_250 = arith.constant 0 : index
    %c7_251 = arith.constant 7 : index
    %c1_252 = arith.constant 1 : index
    %c0_253 = arith.constant 0 : index
    %c1_254 = arith.constant 1 : index
    %c0_255 = arith.constant 0 : index
    %c0_256 = arith.constant 0 : index
    %118 = vector.load %arg1[%c0_250, %c7_251, %c1_252, %c0_253, %c1_254, %c0_255, %c0_256] : memref<1x8x2x8x2x8x2xf32, #tpu.memory_space<vmem>>, vector<1x1x1x8x1x8x2xf32>
    %119 = vector.shape_cast %118 : vector<1x1x1x8x1x8x2xf32> to vector<8x8x2xf32>
    %120 = arith.maximumf %113, %115 : vector<8x8x2xf32>
    %121 = arith.maximumf %117, %119 : vector<8x8x2xf32>
    %122 = arith.maximumf %120, %121 : vector<8x8x2xf32>
    %cst_257 = arith.constant dense<0xFF800000> : vector<8x8xf32>
    %123 = vector.multi_reduction <maximumf>, %122, %cst_257 [2] : vector<8x8x2xf32> to vector<8x8xf32>
    %124 = vector.shape_cast %123 : vector<8x8xf32> to vector<8x8x1xf32>
    %c0_258 = arith.constant 0 : index
    %c7_259 = arith.constant 7 : index
    %c0_260 = arith.constant 0 : index
    %c0_261 = arith.constant 0 : index
    %c0_262 = arith.constant 0 : index
    %125 = vector.load %arg2[%c0_258, %c7_259, %c0_260, %c0_261, %c0_262] : memref<1x8x8x8x1xf32, #tpu.memory_space<vmem>>, vector<1x1x8x8x1xf32>
    %126 = vector.shape_cast %125 : vector<1x1x8x8x1xf32> to vector<8x8x1xf32>
    %127 = vector.shape_cast %124 : vector<8x8x1xf32> to vector<1x1x8x8x1xf32>
    tpu.vector_store %arg2[%c0_258, %c7_259, %c0_260, %c0_261, %c0_262], %127 {strides = array<i32>} : memref<1x8x8x8x1xf32, #tpu.memory_space<vmem>>, vector<1x1x8x8x1xf32>,
    return
  }
  func.func @transform_0(%arg0: i32) -> (i32, i32, i32, i32, i32, i32, i32) {
    %c0_i32 = arith.constant 0 : i32
    %c0_i32_0 = arith.constant 0 : i32
    %c0_i32_1 = arith.constant 0 : i32
    %c0_i32_2 = arith.constant 0 : i32
    %c0_i32_3 = arith.constant 0 : i32
    %c0_i32_4 = arith.constant 0 : i32
    %c0_i32_5 = arith.constant 0 : i32
    return %arg0, %c0_i32, %c0_i32_0, %c0_i32_1, %c0_i32_2, %c0_i32_3, %c0_i32_4 : i32, i32, i32, i32, i32, i32, i32
  }
  func.func @transform_1(%arg0: i32) -> (i32, i32, i32, i32, i32) {
    %c0_i32 = arith.constant 0 : i32
    %c0_i32_0 = arith.constant 0 : i32
    %c0_i32_1 = arith.constant 0 : i32
    %c0_i32_2 = arith.constant 0 : i32
    %c0_i32_3 = arith.constant 0 : i32
    return %arg0, %c0_i32, %c0_i32_0, %c0_i32_1, %c0_i32_2 : i32, i32, i32, i32, i32
  }
}

module attributes {stable_mosaic.version = 11 : i64} {
  func.func @_conv3x3x3_kernel(%arg0: i32, %arg1: memref<1x8x768xf32, #tpu.memory_space<vmem>>, %arg2: memref<8x216xf32, #tpu.memory_space<vmem>>, %arg3: memref<8x1xf32, #tpu.memory_space<vmem>>, %arg4: memref<8x1xf32, #tpu.memory_space<vmem>>, %arg5: memref<1x768xf32, #tpu.memory_space<vmem>>, %arg6: memref<9x512xf32, #tpu.memory_space<vmem>>, %arg7: memref<1x8x768xf32, #tpu.memory_space<vmem>>, %arg8: memref<1x8x1xf32, #tpu.memory_space<vmem>>, %arg9: memref<1x8x1xf32, #tpu.memory_space<vmem>>, %arg10: memref<8x768xf32, #tpu.memory_space<vmem>>, %arg11: memref<216x512xf32, #tpu.memory_space<vmem>>) attributes {dimension_semantics = [#tpu.dimension_semantics<parallel>], iteration_bounds = array<i64: 2>, scalar_prefetch = 0 : i64, scratch_operands = 2 : i64, tpu.core_type = #tpu.core_type<tc>, window_params = [{transform_indices = @transform_0, window_bounds = array<i64: 1, 8, 768>}, {pipeline_mode = #tpu.pipeline_mode<synchronous>, transform_indices = @transform_1, window_bounds = array<i64: 8, 216>}, {pipeline_mode = #tpu.pipeline_mode<synchronous>, transform_indices = @transform_2, window_bounds = array<i64: 8, 1>}, {pipeline_mode = #tpu.pipeline_mode<synchronous>, transform_indices = @transform_3, window_bounds = array<i64: 8, 1>}, {pipeline_mode = #tpu.pipeline_mode<synchronous>, transform_indices = @transform_4, window_bounds = array<i64: 1, 768>}, {pipeline_mode = #tpu.pipeline_mode<synchronous>, transform_indices = @transform_5, window_bounds = array<i64: 9, 512>}, {transform_indices = @transform_6, window_bounds = array<i64: 1, 8, 768>}, {transform_indices = @transform_7, window_bounds = array<i64: 1, 8, 1>}, {transform_indices = @transform_8, window_bounds = array<i64: 1, 8, 1>}]} {
    %c0 = arith.constant 0 : index
    %c0_0 = arith.constant 0 : index
    %c0_1 = arith.constant 0 : index
    %0 = vector.load %arg1[%c0, %c0_0, %c0_1] : memref<1x8x768xf32, #tpu.memory_space<vmem>>, vector<1x8x768xf32>
    %1 = vector.shape_cast %0 : vector<1x8x768xf32> to vector<8x768xf32>
    %c0_2 = arith.constant 0 : index
    %c0_3 = arith.constant 0 : index
    %2 = vector.load %arg5[%c0_2, %c0_3] : memref<1x768xf32, #tpu.memory_space<vmem>>, vector<1x768xf32>
    %3 = vector.broadcast %2 : vector<1x768xf32> to vector<8x768xf32>
    %4 = arith.mulf %1, %3 : vector<8x768xf32>
    %c0_4 = arith.constant 0 : index
    %c0_5 = arith.constant 0 : index
    %5 = vector.load %arg10[%c0_4, %c0_5] : memref<8x768xf32, #tpu.memory_space<vmem>>, vector<8x768xf32>
    tpu.vector_store %arg10[%c0_4, %c0_5], %4 {strides = array<i32>} : memref<8x768xf32, #tpu.memory_space<vmem>>, vector<8x768xf32>,
    %c0_6 = arith.constant 0 : index
    %c55 = arith.constant 55 : index
    %6 = vector.load %arg10[%c0_6, %c55] : memref<8x768xf32, #tpu.memory_space<vmem>>, vector<8x512xf32>
    %c0_7 = arith.constant 0 : index
    %c0_8 = arith.constant 0 : index
    %7 = vector.load %arg6[%c0_7, %c0_8] : memref<9x512xf32, #tpu.memory_space<vmem>>, vector<1x512xf32>
    %8 = vector.broadcast %7 : vector<1x512xf32> to vector<8x512xf32>
    %9 = arith.mulf %6, %8 : vector<8x512xf32>
    %c0_9 = arith.constant 0 : index
    %c0_10 = arith.constant 0 : index
    %10 = vector.load %arg11[%c0_9, %c0_10] : memref<216x512xf32, #tpu.memory_space<vmem>>, vector<8x512xf32>
    tpu.vector_store %arg11[%c0_9, %c0_10], %9 {strides = array<i32>} : memref<216x512xf32, #tpu.memory_space<vmem>>, vector<8x512xf32>,
    %c0_11 = arith.constant 0 : index
    %c56 = arith.constant 56 : index
    %11 = vector.load %arg10[%c0_11, %c56] : memref<8x768xf32, #tpu.memory_space<vmem>>, vector<8x512xf32>
    %c1 = arith.constant 1 : index
    %c0_12 = arith.constant 0 : index
    %12 = vector.load %arg6[%c1, %c0_12] : memref<9x512xf32, #tpu.memory_space<vmem>>, vector<1x512xf32>
    %13 = vector.broadcast %12 : vector<1x512xf32> to vector<8x512xf32>
    %14 = arith.mulf %11, %13 : vector<8x512xf32>
    %c8 = arith.constant 8 : index
    %c0_13 = arith.constant 0 : index
    %15 = vector.load %arg11[%c8, %c0_13] : memref<216x512xf32, #tpu.memory_space<vmem>>, vector<8x512xf32>
    tpu.vector_store %arg11[%c8, %c0_13], %14 {strides = array<i32>} : memref<216x512xf32, #tpu.memory_space<vmem>>, vector<8x512xf32>,
    %c0_14 = arith.constant 0 : index
    %c57 = arith.constant 57 : index
    %16 = vector.load %arg10[%c0_14, %c57] : memref<8x768xf32, #tpu.memory_space<vmem>>, vector<8x512xf32>
    %c2 = arith.constant 2 : index
    %c0_15 = arith.constant 0 : index
    %17 = vector.load %arg6[%c2, %c0_15] : memref<9x512xf32, #tpu.memory_space<vmem>>, vector<1x512xf32>
    %18 = vector.broadcast %17 : vector<1x512xf32> to vector<8x512xf32>
    %19 = arith.mulf %16, %18 : vector<8x512xf32>
    %c16 = arith.constant 16 : index
    %c0_16 = arith.constant 0 : index
    %20 = vector.load %arg11[%c16, %c0_16] : memref<216x512xf32, #tpu.memory_space<vmem>>, vector<8x512xf32>
    tpu.vector_store %arg11[%c16, %c0_16], %19 {strides = array<i32>} : memref<216x512xf32, #tpu.memory_space<vmem>>, vector<8x512xf32>,
    %c0_17 = arith.constant 0 : index
    %c63 = arith.constant 63 : index
    %21 = vector.load %arg10[%c0_17, %c63] : memref<8x768xf32, #tpu.memory_space<vmem>>, vector<8x512xf32>
    %c3 = arith.constant 3 : index
    %c0_18 = arith.constant 0 : index
    %22 = vector.load %arg6[%c3, %c0_18] : memref<9x512xf32, #tpu.memory_space<vmem>>, vector<1x512xf32>
    %23 = vector.broadcast %22 : vector<1x512xf32> to vector<8x512xf32>
    %24 = arith.mulf %21, %23 : vector<8x512xf32>
    %c24 = arith.constant 24 : index
    %c0_19 = arith.constant 0 : index
    %25 = vector.load %arg11[%c24, %c0_19] : memref<216x512xf32, #tpu.memory_space<vmem>>, vector<8x512xf32>
    tpu.vector_store %arg11[%c24, %c0_19], %24 {strides = array<i32>} : memref<216x512xf32, #tpu.memory_space<vmem>>, vector<8x512xf32>,
    %c0_20 = arith.constant 0 : index
    %c64 = arith.constant 64 : index
    %26 = vector.load %arg10[%c0_20, %c64] : memref<8x768xf32, #tpu.memory_space<vmem>>, vector<8x512xf32>
    %c4 = arith.constant 4 : index
    %c0_21 = arith.constant 0 : index
    %27 = vector.load %arg6[%c4, %c0_21] : memref<9x512xf32, #tpu.memory_space<vmem>>, vector<1x512xf32>
    %28 = vector.broadcast %27 : vector<1x512xf32> to vector<8x512xf32>
    %29 = arith.mulf %26, %28 : vector<8x512xf32>
    %c32 = arith.constant 32 : index
    %c0_22 = arith.constant 0 : index
    %30 = vector.load %arg11[%c32, %c0_22] : memref<216x512xf32, #tpu.memory_space<vmem>>, vector<8x512xf32>
    tpu.vector_store %arg11[%c32, %c0_22], %29 {strides = array<i32>} : memref<216x512xf32, #tpu.memory_space<vmem>>, vector<8x512xf32>,
    %c0_23 = arith.constant 0 : index
    %c65 = arith.constant 65 : index
    %31 = vector.load %arg10[%c0_23, %c65] : memref<8x768xf32, #tpu.memory_space<vmem>>, vector<8x512xf32>
    %c5 = arith.constant 5 : index
    %c0_24 = arith.constant 0 : index
    %32 = vector.load %arg6[%c5, %c0_24] : memref<9x512xf32, #tpu.memory_space<vmem>>, vector<1x512xf32>
    %33 = vector.broadcast %32 : vector<1x512xf32> to vector<8x512xf32>
    %34 = arith.mulf %31, %33 : vector<8x512xf32>
    %c40 = arith.constant 40 : index
    %c0_25 = arith.constant 0 : index
    %35 = vector.load %arg11[%c40, %c0_25] : memref<216x512xf32, #tpu.memory_space<vmem>>, vector<8x512xf32>
    tpu.vector_store %arg11[%c40, %c0_25], %34 {strides = array<i32>} : memref<216x512xf32, #tpu.memory_space<vmem>>, vector<8x512xf32>,
    %c0_26 = arith.constant 0 : index
    %c71 = arith.constant 71 : index
    %36 = vector.load %arg10[%c0_26, %c71] : memref<8x768xf32, #tpu.memory_space<vmem>>, vector<8x512xf32>
    %c6 = arith.constant 6 : index
    %c0_27 = arith.constant 0 : index
    %37 = vector.load %arg6[%c6, %c0_27] : memref<9x512xf32, #tpu.memory_space<vmem>>, vector<1x512xf32>
    %38 = vector.broadcast %37 : vector<1x512xf32> to vector<8x512xf32>
    %39 = arith.mulf %36, %38 : vector<8x512xf32>
    %c48 = arith.constant 48 : index
    %c0_28 = arith.constant 0 : index
    %40 = vector.load %arg11[%c48, %c0_28] : memref<216x512xf32, #tpu.memory_space<vmem>>, vector<8x512xf32>
    tpu.vector_store %arg11[%c48, %c0_28], %39 {strides = array<i32>} : memref<216x512xf32, #tpu.memory_space<vmem>>, vector<8x512xf32>,
    %c0_29 = arith.constant 0 : index
    %c72 = arith.constant 72 : index
    %41 = vector.load %arg10[%c0_29, %c72] : memref<8x768xf32, #tpu.memory_space<vmem>>, vector<8x512xf32>
    %c7 = arith.constant 7 : index
    %c0_30 = arith.constant 0 : index
    %42 = vector.load %arg6[%c7, %c0_30] : memref<9x512xf32, #tpu.memory_space<vmem>>, vector<1x512xf32>
    %43 = vector.broadcast %42 : vector<1x512xf32> to vector<8x512xf32>
    %44 = arith.mulf %41, %43 : vector<8x512xf32>
    %c56_31 = arith.constant 56 : index
    %c0_32 = arith.constant 0 : index
    %45 = vector.load %arg11[%c56_31, %c0_32] : memref<216x512xf32, #tpu.memory_space<vmem>>, vector<8x512xf32>
    tpu.vector_store %arg11[%c56_31, %c0_32], %44 {strides = array<i32>} : memref<216x512xf32, #tpu.memory_space<vmem>>, vector<8x512xf32>,
    %c0_33 = arith.constant 0 : index
    %c73 = arith.constant 73 : index
    %46 = vector.load %arg10[%c0_33, %c73] : memref<8x768xf32, #tpu.memory_space<vmem>>, vector<8x512xf32>
    %c8_34 = arith.constant 8 : index
    %c0_35 = arith.constant 0 : index
    %47 = vector.load %arg6[%c8_34, %c0_35] : memref<9x512xf32, #tpu.memory_space<vmem>>, vector<1x512xf32>
    %48 = vector.broadcast %47 : vector<1x512xf32> to vector<8x512xf32>
    %49 = arith.mulf %46, %48 : vector<8x512xf32>
    %c64_36 = arith.constant 64 : index
    %c0_37 = arith.constant 0 : index
    %50 = vector.load %arg11[%c64_36, %c0_37] : memref<216x512xf32, #tpu.memory_space<vmem>>, vector<8x512xf32>
    tpu.vector_store %arg11[%c64_36, %c0_37], %49 {strides = array<i32>} : memref<216x512xf32, #tpu.memory_space<vmem>>, vector<8x512xf32>,
    %c0_38 = arith.constant 0 : index
    %c119 = arith.constant 119 : index
    %51 = vector.load %arg10[%c0_38, %c119] : memref<8x768xf32, #tpu.memory_space<vmem>>, vector<8x512xf32>
    %c0_39 = arith.constant 0 : index
    %c0_40 = arith.constant 0 : index
    %52 = vector.load %arg6[%c0_39, %c0_40] : memref<9x512xf32, #tpu.memory_space<vmem>>, vector<1x512xf32>
    %53 = vector.broadcast %52 : vector<1x512xf32> to vector<8x512xf32>
    %54 = arith.mulf %51, %53 : vector<8x512xf32>
    %c72_41 = arith.constant 72 : index
    %c0_42 = arith.constant 0 : index
    %55 = vector.load %arg11[%c72_41, %c0_42] : memref<216x512xf32, #tpu.memory_space<vmem>>, vector<8x512xf32>
    tpu.vector_store %arg11[%c72_41, %c0_42], %54 {strides = array<i32>} : memref<216x512xf32, #tpu.memory_space<vmem>>, vector<8x512xf32>,
    %c0_43 = arith.constant 0 : index
    %c120 = arith.constant 120 : index
    %56 = vector.load %arg10[%c0_43, %c120] : memref<8x768xf32, #tpu.memory_space<vmem>>, vector<8x512xf32>
    %c1_44 = arith.constant 1 : index
    %c0_45 = arith.constant 0 : index
    %57 = vector.load %arg6[%c1_44, %c0_45] : memref<9x512xf32, #tpu.memory_space<vmem>>, vector<1x512xf32>
    %58 = vector.broadcast %57 : vector<1x512xf32> to vector<8x512xf32>
    %59 = arith.mulf %56, %58 : vector<8x512xf32>
    %c80 = arith.constant 80 : index
    %c0_46 = arith.constant 0 : index
    %60 = vector.load %arg11[%c80, %c0_46] : memref<216x512xf32, #tpu.memory_space<vmem>>, vector<8x512xf32>
    tpu.vector_store %arg11[%c80, %c0_46], %59 {strides = array<i32>} : memref<216x512xf32, #tpu.memory_space<vmem>>, vector<8x512xf32>,
    %c0_47 = arith.constant 0 : index
    %c121 = arith.constant 121 : index
    %61 = vector.load %arg10[%c0_47, %c121] : memref<8x768xf32, #tpu.memory_space<vmem>>, vector<8x512xf32>
    %c2_48 = arith.constant 2 : index
    %c0_49 = arith.constant 0 : index
    %62 = vector.load %arg6[%c2_48, %c0_49] : memref<9x512xf32, #tpu.memory_space<vmem>>, vector<1x512xf32>
    %63 = vector.broadcast %62 : vector<1x512xf32> to vector<8x512xf32>
    %64 = arith.mulf %61, %63 : vector<8x512xf32>
    %c88 = arith.constant 88 : index
    %c0_50 = arith.constant 0 : index
    %65 = vector.load %arg11[%c88, %c0_50] : memref<216x512xf32, #tpu.memory_space<vmem>>, vector<8x512xf32>
    tpu.vector_store %arg11[%c88, %c0_50], %64 {strides = array<i32>} : memref<216x512xf32, #tpu.memory_space<vmem>>, vector<8x512xf32>,
    %c0_51 = arith.constant 0 : index
    %c127 = arith.constant 127 : index
    %66 = vector.load %arg10[%c0_51, %c127] : memref<8x768xf32, #tpu.memory_space<vmem>>, vector<8x512xf32>
    %c3_52 = arith.constant 3 : index
    %c0_53 = arith.constant 0 : index
    %67 = vector.load %arg6[%c3_52, %c0_53] : memref<9x512xf32, #tpu.memory_space<vmem>>, vector<1x512xf32>
    %68 = vector.broadcast %67 : vector<1x512xf32> to vector<8x512xf32>
    %69 = arith.mulf %66, %68 : vector<8x512xf32>
    %c96 = arith.constant 96 : index
    %c0_54 = arith.constant 0 : index
    %70 = vector.load %arg11[%c96, %c0_54] : memref<216x512xf32, #tpu.memory_space<vmem>>, vector<8x512xf32>
    tpu.vector_store %arg11[%c96, %c0_54], %69 {strides = array<i32>} : memref<216x512xf32, #tpu.memory_space<vmem>>, vector<8x512xf32>,
    %c0_55 = arith.constant 0 : index
    %c128 = arith.constant 128 : index
    %71 = vector.load %arg10[%c0_55, %c128] : memref<8x768xf32, #tpu.memory_space<vmem>>, vector<8x512xf32>
    %c4_56 = arith.constant 4 : index
    %c0_57 = arith.constant 0 : index
    %72 = vector.load %arg6[%c4_56, %c0_57] : memref<9x512xf32, #tpu.memory_space<vmem>>, vector<1x512xf32>
    %73 = vector.broadcast %72 : vector<1x512xf32> to vector<8x512xf32>
    %74 = arith.mulf %71, %73 : vector<8x512xf32>
    %c104 = arith.constant 104 : index
    %c0_58 = arith.constant 0 : index
    %75 = vector.load %arg11[%c104, %c0_58] : memref<216x512xf32, #tpu.memory_space<vmem>>, vector<8x512xf32>
    tpu.vector_store %arg11[%c104, %c0_58], %74 {strides = array<i32>} : memref<216x512xf32, #tpu.memory_space<vmem>>, vector<8x512xf32>,
    %c0_59 = arith.constant 0 : index
    %c129 = arith.constant 129 : index
    %76 = vector.load %arg10[%c0_59, %c129] : memref<8x768xf32, #tpu.memory_space<vmem>>, vector<8x512xf32>
    %c5_60 = arith.constant 5 : index
    %c0_61 = arith.constant 0 : index
    %77 = vector.load %arg6[%c5_60, %c0_61] : memref<9x512xf32, #tpu.memory_space<vmem>>, vector<1x512xf32>
    %78 = vector.broadcast %77 : vector<1x512xf32> to vector<8x512xf32>
    %79 = arith.mulf %76, %78 : vector<8x512xf32>
    %c112 = arith.constant 112 : index
    %c0_62 = arith.constant 0 : index
    %80 = vector.load %arg11[%c112, %c0_62] : memref<216x512xf32, #tpu.memory_space<vmem>>, vector<8x512xf32>
    tpu.vector_store %arg11[%c112, %c0_62], %79 {strides = array<i32>} : memref<216x512xf32, #tpu.memory_space<vmem>>, vector<8x512xf32>,
    %c0_63 = arith.constant 0 : index
    %c135 = arith.constant 135 : index
    %81 = vector.load %arg10[%c0_63, %c135] : memref<8x768xf32, #tpu.memory_space<vmem>>, vector<8x512xf32>
    %c6_64 = arith.constant 6 : index
    %c0_65 = arith.constant 0 : index
    %82 = vector.load %arg6[%c6_64, %c0_65] : memref<9x512xf32, #tpu.memory_space<vmem>>, vector<1x512xf32>
    %83 = vector.broadcast %82 : vector<1x512xf32> to vector<8x512xf32>
    %84 = arith.mulf %81, %83 : vector<8x512xf32>
    %c120_66 = arith.constant 120 : index
    %c0_67 = arith.constant 0 : index
    %85 = vector.load %arg11[%c120_66, %c0_67] : memref<216x512xf32, #tpu.memory_space<vmem>>, vector<8x512xf32>
    tpu.vector_store %arg11[%c120_66, %c0_67], %84 {strides = array<i32>} : memref<216x512xf32, #tpu.memory_space<vmem>>, vector<8x512xf32>,
    %c0_68 = arith.constant 0 : index
    %c136 = arith.constant 136 : index
    %86 = vector.load %arg10[%c0_68, %c136] : memref<8x768xf32, #tpu.memory_space<vmem>>, vector<8x512xf32>
    %c7_69 = arith.constant 7 : index
    %c0_70 = arith.constant 0 : index
    %87 = vector.load %arg6[%c7_69, %c0_70] : memref<9x512xf32, #tpu.memory_space<vmem>>, vector<1x512xf32>
    %88 = vector.broadcast %87 : vector<1x512xf32> to vector<8x512xf32>
    %89 = arith.mulf %86, %88 : vector<8x512xf32>
    %c128_71 = arith.constant 128 : index
    %c0_72 = arith.constant 0 : index
    %90 = vector.load %arg11[%c128_71, %c0_72] : memref<216x512xf32, #tpu.memory_space<vmem>>, vector<8x512xf32>
    tpu.vector_store %arg11[%c128_71, %c0_72], %89 {strides = array<i32>} : memref<216x512xf32, #tpu.memory_space<vmem>>, vector<8x512xf32>,
    %c0_73 = arith.constant 0 : index
    %c137 = arith.constant 137 : index
    %91 = vector.load %arg10[%c0_73, %c137] : memref<8x768xf32, #tpu.memory_space<vmem>>, vector<8x512xf32>
    %c8_74 = arith.constant 8 : index
    %c0_75 = arith.constant 0 : index
    %92 = vector.load %arg6[%c8_74, %c0_75] : memref<9x512xf32, #tpu.memory_space<vmem>>, vector<1x512xf32>
    %93 = vector.broadcast %92 : vector<1x512xf32> to vector<8x512xf32>
    %94 = arith.mulf %91, %93 : vector<8x512xf32>
    %c136_76 = arith.constant 136 : index
    %c0_77 = arith.constant 0 : index
    %95 = vector.load %arg11[%c136_76, %c0_77] : memref<216x512xf32, #tpu.memory_space<vmem>>, vector<8x512xf32>
    tpu.vector_store %arg11[%c136_76, %c0_77], %94 {strides = array<i32>} : memref<216x512xf32, #tpu.memory_space<vmem>>, vector<8x512xf32>,
    %c0_78 = arith.constant 0 : index
    %c183 = arith.constant 183 : index
    %96 = vector.load %arg10[%c0_78, %c183] : memref<8x768xf32, #tpu.memory_space<vmem>>, vector<8x512xf32>
    %c0_79 = arith.constant 0 : index
    %c0_80 = arith.constant 0 : index
    %97 = vector.load %arg6[%c0_79, %c0_80] : memref<9x512xf32, #tpu.memory_space<vmem>>, vector<1x512xf32>
    %98 = vector.broadcast %97 : vector<1x512xf32> to vector<8x512xf32>
    %99 = arith.mulf %96, %98 : vector<8x512xf32>
    %c144 = arith.constant 144 : index
    %c0_81 = arith.constant 0 : index
    %100 = vector.load %arg11[%c144, %c0_81] : memref<216x512xf32, #tpu.memory_space<vmem>>, vector<8x512xf32>
    tpu.vector_store %arg11[%c144, %c0_81], %99 {strides = array<i32>} : memref<216x512xf32, #tpu.memory_space<vmem>>, vector<8x512xf32>,
    %c0_82 = arith.constant 0 : index
    %c184 = arith.constant 184 : index
    %101 = vector.load %arg10[%c0_82, %c184] : memref<8x768xf32, #tpu.memory_space<vmem>>, vector<8x512xf32>
    %c1_83 = arith.constant 1 : index
    %c0_84 = arith.constant 0 : index
    %102 = vector.load %arg6[%c1_83, %c0_84] : memref<9x512xf32, #tpu.memory_space<vmem>>, vector<1x512xf32>
    %103 = vector.broadcast %102 : vector<1x512xf32> to vector<8x512xf32>
    %104 = arith.mulf %101, %103 : vector<8x512xf32>
    %c152 = arith.constant 152 : index
    %c0_85 = arith.constant 0 : index
    %105 = vector.load %arg11[%c152, %c0_85] : memref<216x512xf32, #tpu.memory_space<vmem>>, vector<8x512xf32>
    tpu.vector_store %arg11[%c152, %c0_85], %104 {strides = array<i32>} : memref<216x512xf32, #tpu.memory_space<vmem>>, vector<8x512xf32>,
    %c0_86 = arith.constant 0 : index
    %c185 = arith.constant 185 : index
    %106 = vector.load %arg10[%c0_86, %c185] : memref<8x768xf32, #tpu.memory_space<vmem>>, vector<8x512xf32>
    %c2_87 = arith.constant 2 : index
    %c0_88 = arith.constant 0 : index
    %107 = vector.load %arg6[%c2_87, %c0_88] : memref<9x512xf32, #tpu.memory_space<vmem>>, vector<1x512xf32>
    %108 = vector.broadcast %107 : vector<1x512xf32> to vector<8x512xf32>
    %109 = arith.mulf %106, %108 : vector<8x512xf32>
    %c160 = arith.constant 160 : index
    %c0_89 = arith.constant 0 : index
    %110 = vector.load %arg11[%c160, %c0_89] : memref<216x512xf32, #tpu.memory_space<vmem>>, vector<8x512xf32>
    tpu.vector_store %arg11[%c160, %c0_89], %109 {strides = array<i32>} : memref<216x512xf32, #tpu.memory_space<vmem>>, vector<8x512xf32>,
    %c0_90 = arith.constant 0 : index
    %c191 = arith.constant 191 : index
    %111 = vector.load %arg10[%c0_90, %c191] : memref<8x768xf32, #tpu.memory_space<vmem>>, vector<8x512xf32>
    %c3_91 = arith.constant 3 : index
    %c0_92 = arith.constant 0 : index
    %112 = vector.load %arg6[%c3_91, %c0_92] : memref<9x512xf32, #tpu.memory_space<vmem>>, vector<1x512xf32>
    %113 = vector.broadcast %112 : vector<1x512xf32> to vector<8x512xf32>
    %114 = arith.mulf %111, %113 : vector<8x512xf32>
    %c168 = arith.constant 168 : index
    %c0_93 = arith.constant 0 : index
    %115 = vector.load %arg11[%c168, %c0_93] : memref<216x512xf32, #tpu.memory_space<vmem>>, vector<8x512xf32>
    tpu.vector_store %arg11[%c168, %c0_93], %114 {strides = array<i32>} : memref<216x512xf32, #tpu.memory_space<vmem>>, vector<8x512xf32>,
    %c0_94 = arith.constant 0 : index
    %c192 = arith.constant 192 : index
    %116 = vector.load %arg10[%c0_94, %c192] : memref<8x768xf32, #tpu.memory_space<vmem>>, vector<8x512xf32>
    %c4_95 = arith.constant 4 : index
    %c0_96 = arith.constant 0 : index
    %117 = vector.load %arg6[%c4_95, %c0_96] : memref<9x512xf32, #tpu.memory_space<vmem>>, vector<1x512xf32>
    %118 = vector.broadcast %117 : vector<1x512xf32> to vector<8x512xf32>
    %119 = arith.mulf %116, %118 : vector<8x512xf32>
    %c176 = arith.constant 176 : index
    %c0_97 = arith.constant 0 : index
    %120 = vector.load %arg11[%c176, %c0_97] : memref<216x512xf32, #tpu.memory_space<vmem>>, vector<8x512xf32>
    tpu.vector_store %arg11[%c176, %c0_97], %119 {strides = array<i32>} : memref<216x512xf32, #tpu.memory_space<vmem>>, vector<8x512xf32>,
    %c0_98 = arith.constant 0 : index
    %c193 = arith.constant 193 : index
    %121 = vector.load %arg10[%c0_98, %c193] : memref<8x768xf32, #tpu.memory_space<vmem>>, vector<8x512xf32>
    %c5_99 = arith.constant 5 : index
    %c0_100 = arith.constant 0 : index
    %122 = vector.load %arg6[%c5_99, %c0_100] : memref<9x512xf32, #tpu.memory_space<vmem>>, vector<1x512xf32>
    %123 = vector.broadcast %122 : vector<1x512xf32> to vector<8x512xf32>
    %124 = arith.mulf %121, %123 : vector<8x512xf32>
    %c184_101 = arith.constant 184 : index
    %c0_102 = arith.constant 0 : index
    %125 = vector.load %arg11[%c184_101, %c0_102] : memref<216x512xf32, #tpu.memory_space<vmem>>, vector<8x512xf32>
    tpu.vector_store %arg11[%c184_101, %c0_102], %124 {strides = array<i32>} : memref<216x512xf32, #tpu.memory_space<vmem>>, vector<8x512xf32>,
    %c0_103 = arith.constant 0 : index
    %c199 = arith.constant 199 : index
    %126 = vector.load %arg10[%c0_103, %c199] : memref<8x768xf32, #tpu.memory_space<vmem>>, vector<8x512xf32>
    %c6_104 = arith.constant 6 : index
    %c0_105 = arith.constant 0 : index
    %127 = vector.load %arg6[%c6_104, %c0_105] : memref<9x512xf32, #tpu.memory_space<vmem>>, vector<1x512xf32>
    %128 = vector.broadcast %127 : vector<1x512xf32> to vector<8x512xf32>
    %129 = arith.mulf %126, %128 : vector<8x512xf32>
    %c192_106 = arith.constant 192 : index
    %c0_107 = arith.constant 0 : index
    %130 = vector.load %arg11[%c192_106, %c0_107] : memref<216x512xf32, #tpu.memory_space<vmem>>, vector<8x512xf32>
    tpu.vector_store %arg11[%c192_106, %c0_107], %129 {strides = array<i32>} : memref<216x512xf32, #tpu.memory_space<vmem>>, vector<8x512xf32>,
    %c0_108 = arith.constant 0 : index
    %c200 = arith.constant 200 : index
    %131 = vector.load %arg10[%c0_108, %c200] : memref<8x768xf32, #tpu.memory_space<vmem>>, vector<8x512xf32>
    %c7_109 = arith.constant 7 : index
    %c0_110 = arith.constant 0 : index
    %132 = vector.load %arg6[%c7_109, %c0_110] : memref<9x512xf32, #tpu.memory_space<vmem>>, vector<1x512xf32>
    %133 = vector.broadcast %132 : vector<1x512xf32> to vector<8x512xf32>
    %134 = arith.mulf %131, %133 : vector<8x512xf32>
    %c200_111 = arith.constant 200 : index
    %c0_112 = arith.constant 0 : index
    %135 = vector.load %arg11[%c200_111, %c0_112] : memref<216x512xf32, #tpu.memory_space<vmem>>, vector<8x512xf32>
    tpu.vector_store %arg11[%c200_111, %c0_112], %134 {strides = array<i32>} : memref<216x512xf32, #tpu.memory_space<vmem>>, vector<8x512xf32>,
    %c0_113 = arith.constant 0 : index
    %c201 = arith.constant 201 : index
    %136 = vector.load %arg10[%c0_113, %c201] : memref<8x768xf32, #tpu.memory_space<vmem>>, vector<8x512xf32>
    %c8_114 = arith.constant 8 : index
    %c0_115 = arith.constant 0 : index
    %137 = vector.load %arg6[%c8_114, %c0_115] : memref<9x512xf32, #tpu.memory_space<vmem>>, vector<1x512xf32>
    %138 = vector.broadcast %137 : vector<1x512xf32> to vector<8x512xf32>
    %139 = arith.mulf %136, %138 : vector<8x512xf32>
    %c208 = arith.constant 208 : index
    %c0_116 = arith.constant 0 : index
    %140 = vector.load %arg11[%c208, %c0_116] : memref<216x512xf32, #tpu.memory_space<vmem>>, vector<8x512xf32>
    tpu.vector_store %arg11[%c208, %c0_116], %139 {strides = array<i32>} : memref<216x512xf32, #tpu.memory_space<vmem>>, vector<8x512xf32>,
    %c0_117 = arith.constant 0 : index
    %c0_118 = arith.constant 0 : index
    %141 = vector.load %arg2[%c0_117, %c0_118] : memref<8x216xf32, #tpu.memory_space<vmem>>, vector<8x216xf32>
    %c0_119 = arith.constant 0 : index
    %c0_120 = arith.constant 0 : index
    %142 = vector.load %arg11[%c0_119, %c0_120] : memref<216x512xf32, #tpu.memory_space<vmem>>, vector<216x512xf32>
    %cst = arith.constant dense<0.000000e+00> : vector<8x512xf32>
    %143 = tpu.matmul %141, %142, %cst {dimension_numbers = #tpu.dot_dimension_numbers<[1], [0], [0], [1], [0, 0, 1, 1], [], []>} : vector<8x216xf32>, vector<216x512xf32>, vector<8x512xf32> -> vector<8x512xf32>
    %cst_121 = arith.constant 0.000000e+00 : f32
    %144 = vector.broadcast %cst_121 : f32 to vector<8x128xf32>
    %c0_122 = arith.constant 0 : index
    %c0_123 = arith.constant 0 : index
    %c0_124 = arith.constant 0 : index
    %145 = vector.load %arg7[%c0_122, %c0_123, %c0_124] : memref<1x8x768xf32, #tpu.memory_space<vmem>>, vector<1x8x128xf32>
    %146 = vector.shape_cast %145 : vector<1x8x128xf32> to vector<8x128xf32>
    %147 = vector.shape_cast %144 : vector<8x128xf32> to vector<1x8x128xf32>
    tpu.vector_store %arg7[%c0_122, %c0_123, %c0_124], %147 {strides = array<i32>} : memref<1x8x768xf32, #tpu.memory_space<vmem>>, vector<1x8x128xf32>,
    %c0_125 = arith.constant 0 : index
    %c0_126 = arith.constant 0 : index
    %c128_127 = arith.constant 128 : index
    %148 = vector.load %arg7[%c0_125, %c0_126, %c128_127] : memref<1x8x768xf32, #tpu.memory_space<vmem>>, vector<1x8x512xf32>
    %149 = vector.shape_cast %148 : vector<1x8x512xf32> to vector<8x512xf32>
    %150 = vector.shape_cast %143 : vector<8x512xf32> to vector<1x8x512xf32>
    tpu.vector_store %arg7[%c0_125, %c0_126, %c128_127], %150 {strides = array<i32>} : memref<1x8x768xf32, #tpu.memory_space<vmem>>, vector<1x8x512xf32>,
    %cst_128 = arith.constant 0.000000e+00 : f32
    %151 = vector.broadcast %cst_128 : f32 to vector<8x128xf32>
    %c0_129 = arith.constant 0 : index
    %c0_130 = arith.constant 0 : index
    %c640 = arith.constant 640 : index
    %152 = vector.load %arg7[%c0_129, %c0_130, %c640] : memref<1x8x768xf32, #tpu.memory_space<vmem>>, vector<1x8x128xf32>
    %153 = vector.shape_cast %152 : vector<1x8x128xf32> to vector<8x128xf32>
    %154 = vector.shape_cast %151 : vector<8x128xf32> to vector<1x8x128xf32>
    tpu.vector_store %arg7[%c0_129, %c0_130, %c640], %154 {strides = array<i32>} : memref<1x8x768xf32, #tpu.memory_space<vmem>>, vector<1x8x128xf32>,
    %cst_131 = arith.constant dense<0.000000e+00> : vector<8xf32>
    %155 = vector.multi_reduction <add>, %143, %cst_131 [1] : vector<8x512xf32> to vector<8xf32>
    %156 = vector.shape_cast %155 : vector<8xf32> to vector<8x1xf32>
    %c0_132 = arith.constant 0 : index
    %c0_133 = arith.constant 0 : index
    %c0_134 = arith.constant 0 : index
    %157 = vector.load %arg8[%c0_132, %c0_133, %c0_134] : memref<1x8x1xf32, #tpu.memory_space<vmem>>, vector<1x8x1xf32>
    %158 = vector.shape_cast %157 : vector<1x8x1xf32> to vector<8x1xf32>
    %159 = vector.shape_cast %156 : vector<8x1xf32> to vector<1x8x1xf32>
    tpu.vector_store %arg8[%c0_132, %c0_133, %c0_134], %159 {strides = array<i32>} : memref<1x8x1xf32, #tpu.memory_space<vmem>>, vector<1x8x1xf32>,
    %160 = arith.mulf %143, %143 : vector<8x512xf32>
    %cst_135 = arith.constant dense<0.000000e+00> : vector<8xf32>
    %161 = vector.multi_reduction <add>, %160, %cst_135 [1] : vector<8x512xf32> to vector<8xf32>
    %162 = vector.shape_cast %161 : vector<8xf32> to vector<8x1xf32>
    %c0_136 = arith.constant 0 : index
    %c0_137 = arith.constant 0 : index
    %c0_138 = arith.constant 0 : index
    %163 = vector.load %arg9[%c0_136, %c0_137, %c0_138] : memref<1x8x1xf32, #tpu.memory_space<vmem>>, vector<1x8x1xf32>
    %164 = vector.shape_cast %163 : vector<1x8x1xf32> to vector<8x1xf32>
    %165 = vector.shape_cast %162 : vector<8x1xf32> to vector<1x8x1xf32>
    tpu.vector_store %arg9[%c0_136, %c0_137, %c0_138], %165 {strides = array<i32>} : memref<1x8x1xf32, #tpu.memory_space<vmem>>, vector<1x8x1xf32>,
    return
  }
  func.func @transform_0(%arg0: i32) -> (i32, i32, i32) {
    %c0_i32 = arith.constant 0 : i32
    %c0_i32_0 = arith.constant 0 : i32
    %c0_i32_1 = arith.constant 0 : i32
    return %arg0, %c0_i32, %c0_i32_0 : i32, i32, i32
  }
  func.func @transform_1(%arg0: i32) -> (i32, i32) {
    %c0_i32 = arith.constant 0 : i32
    %c0_i32_0 = arith.constant 0 : i32
    %c0_i32_1 = arith.constant 0 : i32
    return %c0_i32, %c0_i32_0 : i32, i32
  }
  func.func @transform_2(%arg0: i32) -> (i32, i32) {
    %c0_i32 = arith.constant 0 : i32
    %c0_i32_0 = arith.constant 0 : i32
    %c0_i32_1 = arith.constant 0 : i32
    return %c0_i32, %c0_i32_0 : i32, i32
  }
  func.func @transform_3(%arg0: i32) -> (i32, i32) {
    %c0_i32 = arith.constant 0 : i32
    %c0_i32_0 = arith.constant 0 : i32
    %c0_i32_1 = arith.constant 0 : i32
    return %c0_i32, %c0_i32_0 : i32, i32
  }
  func.func @transform_4(%arg0: i32) -> (i32, i32) {
    %c0_i32 = arith.constant 0 : i32
    %c0_i32_0 = arith.constant 0 : i32
    %c0_i32_1 = arith.constant 0 : i32
    return %c0_i32, %c0_i32_0 : i32, i32
  }
  func.func @transform_5(%arg0: i32) -> (i32, i32) {
    %c0_i32 = arith.constant 0 : i32
    %c0_i32_0 = arith.constant 0 : i32
    %c0_i32_1 = arith.constant 0 : i32
    return %c0_i32, %c0_i32_0 : i32, i32
  }
  func.func @transform_6(%arg0: i32) -> (i32, i32, i32) {
    %c0_i32 = arith.constant 0 : i32
    %c0_i32_0 = arith.constant 0 : i32
    %c0_i32_1 = arith.constant 0 : i32
    return %arg0, %c0_i32, %c0_i32_0 : i32, i32, i32
  }
  func.func @transform_7(%arg0: i32) -> (i32, i32, i32) {
    %c0_i32 = arith.constant 0 : i32
    %c0_i32_0 = arith.constant 0 : i32
    %c0_i32_1 = arith.constant 0 : i32
    return %arg0, %c0_i32, %c0_i32_0 : i32, i32, i32
  }
  func.func @transform_8(%arg0: i32) -> (i32, i32, i32) {
    %c0_i32 = arith.constant 0 : i32
    %c0_i32_0 = arith.constant 0 : i32
    %c0_i32_1 = arith.constant 0 : i32
    return %arg0, %c0_i32, %c0_i32_0 : i32, i32, i32
  }
}

module attributes {stable_mosaic.version = 11 : i64} {
  func.func @_bn_relu_kernel(%arg0: i32, %arg1: memref<1x8x512xf32, #tpu.memory_space<vmem>>, %arg2: memref<8x1xf32, #tpu.memory_space<vmem>>, %arg3: memref<8x1xf32, #tpu.memory_space<vmem>>, %arg4: memref<1x8x512xf32, #tpu.memory_space<vmem>>) attributes {dimension_semantics = [#tpu.dimension_semantics<parallel>], iteration_bounds = array<i64: 2>, scalar_prefetch = 0 : i64, scratch_operands = 0 : i64, tpu.core_type = #tpu.core_type<tc>, window_params = [{transform_indices = @transform_0, window_bounds = array<i64: 1, 8, 512>}, {pipeline_mode = #tpu.pipeline_mode<synchronous>, transform_indices = @transform_1, window_bounds = array<i64: 8, 1>}, {pipeline_mode = #tpu.pipeline_mode<synchronous>, transform_indices = @transform_2, window_bounds = array<i64: 8, 1>}, {transform_indices = @transform_3, window_bounds = array<i64: 1, 8, 512>}]} {
    %c0 = arith.constant 0 : index
    %c0_0 = arith.constant 0 : index
    %c0_1 = arith.constant 0 : index
    %0 = vector.load %arg1[%c0, %c0_0, %c0_1] : memref<1x8x512xf32, #tpu.memory_space<vmem>>, vector<1x8x512xf32>
    %1 = vector.shape_cast %0 : vector<1x8x512xf32> to vector<8x512xf32>
    %c0_2 = arith.constant 0 : index
    %c0_3 = arith.constant 0 : index
    %2 = vector.load %arg2[%c0_2, %c0_3] : memref<8x1xf32, #tpu.memory_space<vmem>>, vector<8x1xf32>
    %3 = vector.broadcast %2 : vector<8x1xf32> to vector<8x512xf32>
    %4 = arith.mulf %1, %3 : vector<8x512xf32>
    %c0_4 = arith.constant 0 : index
    %c0_5 = arith.constant 0 : index
    %5 = vector.load %arg3[%c0_4, %c0_5] : memref<8x1xf32, #tpu.memory_space<vmem>>, vector<8x1xf32>
    %6 = vector.broadcast %5 : vector<8x1xf32> to vector<8x512xf32>
    %7 = arith.addf %4, %6 : vector<8x512xf32>
    %cst = arith.constant 0.000000e+00 : f32
    %8 = vector.broadcast %cst : f32 to vector<8x512xf32>
    %9 = arith.maximumf %7, %8 : vector<8x512xf32>
    %c0_6 = arith.constant 0 : index
    %c0_7 = arith.constant 0 : index
    %c0_8 = arith.constant 0 : index
    %10 = vector.load %arg4[%c0_6, %c0_7, %c0_8] : memref<1x8x512xf32, #tpu.memory_space<vmem>>, vector<1x8x512xf32>
    %11 = vector.shape_cast %10 : vector<1x8x512xf32> to vector<8x512xf32>
    %12 = vector.shape_cast %9 : vector<8x512xf32> to vector<1x8x512xf32>
    tpu.vector_store %arg4[%c0_6, %c0_7, %c0_8], %12 {strides = array<i32>} : memref<1x8x512xf32, #tpu.memory_space<vmem>>, vector<1x8x512xf32>,
    return
  }
  func.func @transform_0(%arg0: i32) -> (i32, i32, i32) {
    %c0_i32 = arith.constant 0 : i32
    %c0_i32_0 = arith.constant 0 : i32
    %c0_i32_1 = arith.constant 0 : i32
    return %arg0, %c0_i32, %c0_i32_0 : i32, i32, i32
  }
  func.func @transform_1(%arg0: i32) -> (i32, i32) {
    %c0_i32 = arith.constant 0 : i32
    %c0_i32_0 = arith.constant 0 : i32
    %c0_i32_1 = arith.constant 0 : i32
    return %c0_i32, %c0_i32_0 : i32, i32
  }
  func.func @transform_2(%arg0: i32) -> (i32, i32) {
    %c0_i32 = arith.constant 0 : i32
    %c0_i32_0 = arith.constant 0 : i32
    %c0_i32_1 = arith.constant 0 : i32
    return %c0_i32, %c0_i32_0 : i32, i32
  }
  func.func @transform_3(%arg0: i32) -> (i32, i32, i32) {
    %c0_i32 = arith.constant 0 : i32
    %c0_i32_0 = arith.constant 0 : i32
    %c0_i32_1 = arith.constant 0 : i32
    return %arg0, %c0_i32, %c0_i32_0 : i32, i32, i32
  }
}

module attributes {stable_mosaic.version = 11 : i64} {
  func.func @_conv3x3x3_kernel(%arg0: i32, %arg1: memref<1x8x768xf32, #tpu.memory_space<vmem>>, %arg2: memref<8x216xf32, #tpu.memory_space<vmem>>, %arg3: memref<8x1xf32, #tpu.memory_space<vmem>>, %arg4: memref<8x1xf32, #tpu.memory_space<vmem>>, %arg5: memref<1x768xf32, #tpu.memory_space<vmem>>, %arg6: memref<9x512xf32, #tpu.memory_space<vmem>>, %arg7: memref<1x8x512xf32, #tpu.memory_space<vmem>>, %arg8: memref<1x8x1xf32, #tpu.memory_space<vmem>>, %arg9: memref<1x8x1xf32, #tpu.memory_space<vmem>>, %arg10: memref<8x768xf32, #tpu.memory_space<vmem>>, %arg11: memref<216x512xf32, #tpu.memory_space<vmem>>) attributes {dimension_semantics = [#tpu.dimension_semantics<parallel>], iteration_bounds = array<i64: 2>, scalar_prefetch = 0 : i64, scratch_operands = 2 : i64, tpu.core_type = #tpu.core_type<tc>, window_params = [{transform_indices = @transform_0, window_bounds = array<i64: 1, 8, 768>}, {pipeline_mode = #tpu.pipeline_mode<synchronous>, transform_indices = @transform_1, window_bounds = array<i64: 8, 216>}, {pipeline_mode = #tpu.pipeline_mode<synchronous>, transform_indices = @transform_2, window_bounds = array<i64: 8, 1>}, {pipeline_mode = #tpu.pipeline_mode<synchronous>, transform_indices = @transform_3, window_bounds = array<i64: 8, 1>}, {pipeline_mode = #tpu.pipeline_mode<synchronous>, transform_indices = @transform_4, window_bounds = array<i64: 1, 768>}, {pipeline_mode = #tpu.pipeline_mode<synchronous>, transform_indices = @transform_5, window_bounds = array<i64: 9, 512>}, {transform_indices = @transform_6, window_bounds = array<i64: 1, 8, 512>}, {transform_indices = @transform_7, window_bounds = array<i64: 1, 8, 1>}, {transform_indices = @transform_8, window_bounds = array<i64: 1, 8, 1>}]} {
    %c0 = arith.constant 0 : index
    %c0_0 = arith.constant 0 : index
    %c0_1 = arith.constant 0 : index
    %0 = vector.load %arg1[%c0, %c0_0, %c0_1] : memref<1x8x768xf32, #tpu.memory_space<vmem>>, vector<1x8x768xf32>
    %1 = vector.shape_cast %0 : vector<1x8x768xf32> to vector<8x768xf32>
    %c0_2 = arith.constant 0 : index
    %c0_3 = arith.constant 0 : index
    %2 = vector.load %arg3[%c0_2, %c0_3] : memref<8x1xf32, #tpu.memory_space<vmem>>, vector<8x1xf32>
    %3 = vector.broadcast %2 : vector<8x1xf32> to vector<8x768xf32>
    %4 = arith.mulf %1, %3 : vector<8x768xf32>
    %c0_4 = arith.constant 0 : index
    %c0_5 = arith.constant 0 : index
    %5 = vector.load %arg4[%c0_4, %c0_5] : memref<8x1xf32, #tpu.memory_space<vmem>>, vector<8x1xf32>
    %6 = vector.broadcast %5 : vector<8x1xf32> to vector<8x768xf32>
    %7 = arith.addf %4, %6 : vector<8x768xf32>
    %cst = arith.constant 0.000000e+00 : f32
    %8 = vector.broadcast %cst : f32 to vector<8x768xf32>
    %9 = arith.maximumf %7, %8 : vector<8x768xf32>
    %c0_6 = arith.constant 0 : index
    %c0_7 = arith.constant 0 : index
    %10 = vector.load %arg5[%c0_6, %c0_7] : memref<1x768xf32, #tpu.memory_space<vmem>>, vector<1x768xf32>
    %11 = vector.broadcast %10 : vector<1x768xf32> to vector<8x768xf32>
    %12 = arith.mulf %9, %11 : vector<8x768xf32>
    %c0_8 = arith.constant 0 : index
    %c0_9 = arith.constant 0 : index
    %13 = vector.load %arg10[%c0_8, %c0_9] : memref<8x768xf32, #tpu.memory_space<vmem>>, vector<8x768xf32>
    tpu.vector_store %arg10[%c0_8, %c0_9], %12 {strides = array<i32>} : memref<8x768xf32, #tpu.memory_space<vmem>>, vector<8x768xf32>,
    %c0_10 = arith.constant 0 : index
    %c55 = arith.constant 55 : index
    %14 = vector.load %arg10[%c0_10, %c55] : memref<8x768xf32, #tpu.memory_space<vmem>>, vector<8x512xf32>
    %c0_11 = arith.constant 0 : index
    %c0_12 = arith.constant 0 : index
    %15 = vector.load %arg6[%c0_11, %c0_12] : memref<9x512xf32, #tpu.memory_space<vmem>>, vector<1x512xf32>
    %16 = vector.broadcast %15 : vector<1x512xf32> to vector<8x512xf32>
    %17 = arith.mulf %14, %16 : vector<8x512xf32>
    %c0_13 = arith.constant 0 : index
    %c0_14 = arith.constant 0 : index
    %18 = vector.load %arg11[%c0_13, %c0_14] : memref<216x512xf32, #tpu.memory_space<vmem>>, vector<8x512xf32>
    tpu.vector_store %arg11[%c0_13, %c0_14], %17 {strides = array<i32>} : memref<216x512xf32, #tpu.memory_space<vmem>>, vector<8x512xf32>,
    %c0_15 = arith.constant 0 : index
    %c56 = arith.constant 56 : index
    %19 = vector.load %arg10[%c0_15, %c56] : memref<8x768xf32, #tpu.memory_space<vmem>>, vector<8x512xf32>
    %c1 = arith.constant 1 : index
    %c0_16 = arith.constant 0 : index
    %20 = vector.load %arg6[%c1, %c0_16] : memref<9x512xf32, #tpu.memory_space<vmem>>, vector<1x512xf32>
    %21 = vector.broadcast %20 : vector<1x512xf32> to vector<8x512xf32>
    %22 = arith.mulf %19, %21 : vector<8x512xf32>
    %c8 = arith.constant 8 : index
    %c0_17 = arith.constant 0 : index
    %23 = vector.load %arg11[%c8, %c0_17] : memref<216x512xf32, #tpu.memory_space<vmem>>, vector<8x512xf32>
    tpu.vector_store %arg11[%c8, %c0_17], %22 {strides = array<i32>} : memref<216x512xf32, #tpu.memory_space<vmem>>, vector<8x512xf32>,
    %c0_18 = arith.constant 0 : index
    %c57 = arith.constant 57 : index
    %24 = vector.load %arg10[%c0_18, %c57] : memref<8x768xf32, #tpu.memory_space<vmem>>, vector<8x512xf32>
    %c2 = arith.constant 2 : index
    %c0_19 = arith.constant 0 : index
    %25 = vector.load %arg6[%c2, %c0_19] : memref<9x512xf32, #tpu.memory_space<vmem>>, vector<1x512xf32>
    %26 = vector.broadcast %25 : vector<1x512xf32> to vector<8x512xf32>
    %27 = arith.mulf %24, %26 : vector<8x512xf32>
    %c16 = arith.constant 16 : index
    %c0_20 = arith.constant 0 : index
    %28 = vector.load %arg11[%c16, %c0_20] : memref<216x512xf32, #tpu.memory_space<vmem>>, vector<8x512xf32>
    tpu.vector_store %arg11[%c16, %c0_20], %27 {strides = array<i32>} : memref<216x512xf32, #tpu.memory_space<vmem>>, vector<8x512xf32>,
    %c0_21 = arith.constant 0 : index
    %c63 = arith.constant 63 : index
    %29 = vector.load %arg10[%c0_21, %c63] : memref<8x768xf32, #tpu.memory_space<vmem>>, vector<8x512xf32>
    %c3 = arith.constant 3 : index
    %c0_22 = arith.constant 0 : index
    %30 = vector.load %arg6[%c3, %c0_22] : memref<9x512xf32, #tpu.memory_space<vmem>>, vector<1x512xf32>
    %31 = vector.broadcast %30 : vector<1x512xf32> to vector<8x512xf32>
    %32 = arith.mulf %29, %31 : vector<8x512xf32>
    %c24 = arith.constant 24 : index
    %c0_23 = arith.constant 0 : index
    %33 = vector.load %arg11[%c24, %c0_23] : memref<216x512xf32, #tpu.memory_space<vmem>>, vector<8x512xf32>
    tpu.vector_store %arg11[%c24, %c0_23], %32 {strides = array<i32>} : memref<216x512xf32, #tpu.memory_space<vmem>>, vector<8x512xf32>,
    %c0_24 = arith.constant 0 : index
    %c64 = arith.constant 64 : index
    %34 = vector.load %arg10[%c0_24, %c64] : memref<8x768xf32, #tpu.memory_space<vmem>>, vector<8x512xf32>
    %c4 = arith.constant 4 : index
    %c0_25 = arith.constant 0 : index
    %35 = vector.load %arg6[%c4, %c0_25] : memref<9x512xf32, #tpu.memory_space<vmem>>, vector<1x512xf32>
    %36 = vector.broadcast %35 : vector<1x512xf32> to vector<8x512xf32>
    %37 = arith.mulf %34, %36 : vector<8x512xf32>
    %c32 = arith.constant 32 : index
    %c0_26 = arith.constant 0 : index
    %38 = vector.load %arg11[%c32, %c0_26] : memref<216x512xf32, #tpu.memory_space<vmem>>, vector<8x512xf32>
    tpu.vector_store %arg11[%c32, %c0_26], %37 {strides = array<i32>} : memref<216x512xf32, #tpu.memory_space<vmem>>, vector<8x512xf32>,
    %c0_27 = arith.constant 0 : index
    %c65 = arith.constant 65 : index
    %39 = vector.load %arg10[%c0_27, %c65] : memref<8x768xf32, #tpu.memory_space<vmem>>, vector<8x512xf32>
    %c5 = arith.constant 5 : index
    %c0_28 = arith.constant 0 : index
    %40 = vector.load %arg6[%c5, %c0_28] : memref<9x512xf32, #tpu.memory_space<vmem>>, vector<1x512xf32>
    %41 = vector.broadcast %40 : vector<1x512xf32> to vector<8x512xf32>
    %42 = arith.mulf %39, %41 : vector<8x512xf32>
    %c40 = arith.constant 40 : index
    %c0_29 = arith.constant 0 : index
    %43 = vector.load %arg11[%c40, %c0_29] : memref<216x512xf32, #tpu.memory_space<vmem>>, vector<8x512xf32>
    tpu.vector_store %arg11[%c40, %c0_29], %42 {strides = array<i32>} : memref<216x512xf32, #tpu.memory_space<vmem>>, vector<8x512xf32>,
    %c0_30 = arith.constant 0 : index
    %c71 = arith.constant 71 : index
    %44 = vector.load %arg10[%c0_30, %c71] : memref<8x768xf32, #tpu.memory_space<vmem>>, vector<8x512xf32>
    %c6 = arith.constant 6 : index
    %c0_31 = arith.constant 0 : index
    %45 = vector.load %arg6[%c6, %c0_31] : memref<9x512xf32, #tpu.memory_space<vmem>>, vector<1x512xf32>
    %46 = vector.broadcast %45 : vector<1x512xf32> to vector<8x512xf32>
    %47 = arith.mulf %44, %46 : vector<8x512xf32>
    %c48 = arith.constant 48 : index
    %c0_32 = arith.constant 0 : index
    %48 = vector.load %arg11[%c48, %c0_32] : memref<216x512xf32, #tpu.memory_space<vmem>>, vector<8x512xf32>
    tpu.vector_store %arg11[%c48, %c0_32], %47 {strides = array<i32>} : memref<216x512xf32, #tpu.memory_space<vmem>>, vector<8x512xf32>,
    %c0_33 = arith.constant 0 : index
    %c72 = arith.constant 72 : index
    %49 = vector.load %arg10[%c0_33, %c72] : memref<8x768xf32, #tpu.memory_space<vmem>>, vector<8x512xf32>
    %c7 = arith.constant 7 : index
    %c0_34 = arith.constant 0 : index
    %50 = vector.load %arg6[%c7, %c0_34] : memref<9x512xf32, #tpu.memory_space<vmem>>, vector<1x512xf32>
    %51 = vector.broadcast %50 : vector<1x512xf32> to vector<8x512xf32>
    %52 = arith.mulf %49, %51 : vector<8x512xf32>
    %c56_35 = arith.constant 56 : index
    %c0_36 = arith.constant 0 : index
    %53 = vector.load %arg11[%c56_35, %c0_36] : memref<216x512xf32, #tpu.memory_space<vmem>>, vector<8x512xf32>
    tpu.vector_store %arg11[%c56_35, %c0_36], %52 {strides = array<i32>} : memref<216x512xf32, #tpu.memory_space<vmem>>, vector<8x512xf32>,
    %c0_37 = arith.constant 0 : index
    %c73 = arith.constant 73 : index
    %54 = vector.load %arg10[%c0_37, %c73] : memref<8x768xf32, #tpu.memory_space<vmem>>, vector<8x512xf32>
    %c8_38 = arith.constant 8 : index
    %c0_39 = arith.constant 0 : index
    %55 = vector.load %arg6[%c8_38, %c0_39] : memref<9x512xf32, #tpu.memory_space<vmem>>, vector<1x512xf32>
    %56 = vector.broadcast %55 : vector<1x512xf32> to vector<8x512xf32>
    %57 = arith.mulf %54, %56 : vector<8x512xf32>
    %c64_40 = arith.constant 64 : index
    %c0_41 = arith.constant 0 : index
    %58 = vector.load %arg11[%c64_40, %c0_41] : memref<216x512xf32, #tpu.memory_space<vmem>>, vector<8x512xf32>
    tpu.vector_store %arg11[%c64_40, %c0_41], %57 {strides = array<i32>} : memref<216x512xf32, #tpu.memory_space<vmem>>, vector<8x512xf32>,
    %c0_42 = arith.constant 0 : index
    %c119 = arith.constant 119 : index
    %59 = vector.load %arg10[%c0_42, %c119] : memref<8x768xf32, #tpu.memory_space<vmem>>, vector<8x512xf32>
    %c0_43 = arith.constant 0 : index
    %c0_44 = arith.constant 0 : index
    %60 = vector.load %arg6[%c0_43, %c0_44] : memref<9x512xf32, #tpu.memory_space<vmem>>, vector<1x512xf32>
    %61 = vector.broadcast %60 : vector<1x512xf32> to vector<8x512xf32>
    %62 = arith.mulf %59, %61 : vector<8x512xf32>
    %c72_45 = arith.constant 72 : index
    %c0_46 = arith.constant 0 : index
    %63 = vector.load %arg11[%c72_45, %c0_46] : memref<216x512xf32, #tpu.memory_space<vmem>>, vector<8x512xf32>
    tpu.vector_store %arg11[%c72_45, %c0_46], %62 {strides = array<i32>} : memref<216x512xf32, #tpu.memory_space<vmem>>, vector<8x512xf32>,
    %c0_47 = arith.constant 0 : index
    %c120 = arith.constant 120 : index
    %64 = vector.load %arg10[%c0_47, %c120] : memref<8x768xf32, #tpu.memory_space<vmem>>, vector<8x512xf32>
    %c1_48 = arith.constant 1 : index
    %c0_49 = arith.constant 0 : index
    %65 = vector.load %arg6[%c1_48, %c0_49] : memref<9x512xf32, #tpu.memory_space<vmem>>, vector<1x512xf32>
    %66 = vector.broadcast %65 : vector<1x512xf32> to vector<8x512xf32>
    %67 = arith.mulf %64, %66 : vector<8x512xf32>
    %c80 = arith.constant 80 : index
    %c0_50 = arith.constant 0 : index
    %68 = vector.load %arg11[%c80, %c0_50] : memref<216x512xf32, #tpu.memory_space<vmem>>, vector<8x512xf32>
    tpu.vector_store %arg11[%c80, %c0_50], %67 {strides = array<i32>} : memref<216x512xf32, #tpu.memory_space<vmem>>, vector<8x512xf32>,
    %c0_51 = arith.constant 0 : index
    %c121 = arith.constant 121 : index
    %69 = vector.load %arg10[%c0_51, %c121] : memref<8x768xf32, #tpu.memory_space<vmem>>, vector<8x512xf32>
    %c2_52 = arith.constant 2 : index
    %c0_53 = arith.constant 0 : index
    %70 = vector.load %arg6[%c2_52, %c0_53] : memref<9x512xf32, #tpu.memory_space<vmem>>, vector<1x512xf32>
    %71 = vector.broadcast %70 : vector<1x512xf32> to vector<8x512xf32>
    %72 = arith.mulf %69, %71 : vector<8x512xf32>
    %c88 = arith.constant 88 : index
    %c0_54 = arith.constant 0 : index
    %73 = vector.load %arg11[%c88, %c0_54] : memref<216x512xf32, #tpu.memory_space<vmem>>, vector<8x512xf32>
    tpu.vector_store %arg11[%c88, %c0_54], %72 {strides = array<i32>} : memref<216x512xf32, #tpu.memory_space<vmem>>, vector<8x512xf32>,
    %c0_55 = arith.constant 0 : index
    %c127 = arith.constant 127 : index
    %74 = vector.load %arg10[%c0_55, %c127] : memref<8x768xf32, #tpu.memory_space<vmem>>, vector<8x512xf32>
    %c3_56 = arith.constant 3 : index
    %c0_57 = arith.constant 0 : index
    %75 = vector.load %arg6[%c3_56, %c0_57] : memref<9x512xf32, #tpu.memory_space<vmem>>, vector<1x512xf32>
    %76 = vector.broadcast %75 : vector<1x512xf32> to vector<8x512xf32>
    %77 = arith.mulf %74, %76 : vector<8x512xf32>
    %c96 = arith.constant 96 : index
    %c0_58 = arith.constant 0 : index
    %78 = vector.load %arg11[%c96, %c0_58] : memref<216x512xf32, #tpu.memory_space<vmem>>, vector<8x512xf32>
    tpu.vector_store %arg11[%c96, %c0_58], %77 {strides = array<i32>} : memref<216x512xf32, #tpu.memory_space<vmem>>, vector<8x512xf32>,
    %c0_59 = arith.constant 0 : index
    %c128 = arith.constant 128 : index
    %79 = vector.load %arg10[%c0_59, %c128] : memref<8x768xf32, #tpu.memory_space<vmem>>, vector<8x512xf32>
    %c4_60 = arith.constant 4 : index
    %c0_61 = arith.constant 0 : index
    %80 = vector.load %arg6[%c4_60, %c0_61] : memref<9x512xf32, #tpu.memory_space<vmem>>, vector<1x512xf32>
    %81 = vector.broadcast %80 : vector<1x512xf32> to vector<8x512xf32>
    %82 = arith.mulf %79, %81 : vector<8x512xf32>
    %c104 = arith.constant 104 : index
    %c0_62 = arith.constant 0 : index
    %83 = vector.load %arg11[%c104, %c0_62] : memref<216x512xf32, #tpu.memory_space<vmem>>, vector<8x512xf32>
    tpu.vector_store %arg11[%c104, %c0_62], %82 {strides = array<i32>} : memref<216x512xf32, #tpu.memory_space<vmem>>, vector<8x512xf32>,
    %c0_63 = arith.constant 0 : index
    %c129 = arith.constant 129 : index
    %84 = vector.load %arg10[%c0_63, %c129] : memref<8x768xf32, #tpu.memory_space<vmem>>, vector<8x512xf32>
    %c5_64 = arith.constant 5 : index
    %c0_65 = arith.constant 0 : index
    %85 = vector.load %arg6[%c5_64, %c0_65] : memref<9x512xf32, #tpu.memory_space<vmem>>, vector<1x512xf32>
    %86 = vector.broadcast %85 : vector<1x512xf32> to vector<8x512xf32>
    %87 = arith.mulf %84, %86 : vector<8x512xf32>
    %c112 = arith.constant 112 : index
    %c0_66 = arith.constant 0 : index
    %88 = vector.load %arg11[%c112, %c0_66] : memref<216x512xf32, #tpu.memory_space<vmem>>, vector<8x512xf32>
    tpu.vector_store %arg11[%c112, %c0_66], %87 {strides = array<i32>} : memref<216x512xf32, #tpu.memory_space<vmem>>, vector<8x512xf32>,
    %c0_67 = arith.constant 0 : index
    %c135 = arith.constant 135 : index
    %89 = vector.load %arg10[%c0_67, %c135] : memref<8x768xf32, #tpu.memory_space<vmem>>, vector<8x512xf32>
    %c6_68 = arith.constant 6 : index
    %c0_69 = arith.constant 0 : index
    %90 = vector.load %arg6[%c6_68, %c0_69] : memref<9x512xf32, #tpu.memory_space<vmem>>, vector<1x512xf32>
    %91 = vector.broadcast %90 : vector<1x512xf32> to vector<8x512xf32>
    %92 = arith.mulf %89, %91 : vector<8x512xf32>
    %c120_70 = arith.constant 120 : index
    %c0_71 = arith.constant 0 : index
    %93 = vector.load %arg11[%c120_70, %c0_71] : memref<216x512xf32, #tpu.memory_space<vmem>>, vector<8x512xf32>
    tpu.vector_store %arg11[%c120_70, %c0_71], %92 {strides = array<i32>} : memref<216x512xf32, #tpu.memory_space<vmem>>, vector<8x512xf32>,
    %c0_72 = arith.constant 0 : index
    %c136 = arith.constant 136 : index
    %94 = vector.load %arg10[%c0_72, %c136] : memref<8x768xf32, #tpu.memory_space<vmem>>, vector<8x512xf32>
    %c7_73 = arith.constant 7 : index
    %c0_74 = arith.constant 0 : index
    %95 = vector.load %arg6[%c7_73, %c0_74] : memref<9x512xf32, #tpu.memory_space<vmem>>, vector<1x512xf32>
    %96 = vector.broadcast %95 : vector<1x512xf32> to vector<8x512xf32>
    %97 = arith.mulf %94, %96 : vector<8x512xf32>
    %c128_75 = arith.constant 128 : index
    %c0_76 = arith.constant 0 : index
    %98 = vector.load %arg11[%c128_75, %c0_76] : memref<216x512xf32, #tpu.memory_space<vmem>>, vector<8x512xf32>
    tpu.vector_store %arg11[%c128_75, %c0_76], %97 {strides = array<i32>} : memref<216x512xf32, #tpu.memory_space<vmem>>, vector<8x512xf32>,
    %c0_77 = arith.constant 0 : index
    %c137 = arith.constant 137 : index
    %99 = vector.load %arg10[%c0_77, %c137] : memref<8x768xf32, #tpu.memory_space<vmem>>, vector<8x512xf32>
    %c8_78 = arith.constant 8 : index
    %c0_79 = arith.constant 0 : index
    %100 = vector.load %arg6[%c8_78, %c0_79] : memref<9x512xf32, #tpu.memory_space<vmem>>, vector<1x512xf32>
    %101 = vector.broadcast %100 : vector<1x512xf32> to vector<8x512xf32>
    %102 = arith.mulf %99, %101 : vector<8x512xf32>
    %c136_80 = arith.constant 136 : index
    %c0_81 = arith.constant 0 : index
    %103 = vector.load %arg11[%c136_80, %c0_81] : memref<216x512xf32, #tpu.memory_space<vmem>>, vector<8x512xf32>
    tpu.vector_store %arg11[%c136_80, %c0_81], %102 {strides = array<i32>} : memref<216x512xf32, #tpu.memory_space<vmem>>, vector<8x512xf32>,
    %c0_82 = arith.constant 0 : index
    %c183 = arith.constant 183 : index
    %104 = vector.load %arg10[%c0_82, %c183] : memref<8x768xf32, #tpu.memory_space<vmem>>, vector<8x512xf32>
    %c0_83 = arith.constant 0 : index
    %c0_84 = arith.constant 0 : index
    %105 = vector.load %arg6[%c0_83, %c0_84] : memref<9x512xf32, #tpu.memory_space<vmem>>, vector<1x512xf32>
    %106 = vector.broadcast %105 : vector<1x512xf32> to vector<8x512xf32>
    %107 = arith.mulf %104, %106 : vector<8x512xf32>
    %c144 = arith.constant 144 : index
    %c0_85 = arith.constant 0 : index
    %108 = vector.load %arg11[%c144, %c0_85] : memref<216x512xf32, #tpu.memory_space<vmem>>, vector<8x512xf32>
    tpu.vector_store %arg11[%c144, %c0_85], %107 {strides = array<i32>} : memref<216x512xf32, #tpu.memory_space<vmem>>, vector<8x512xf32>,
    %c0_86 = arith.constant 0 : index
    %c184 = arith.constant 184 : index
    %109 = vector.load %arg10[%c0_86, %c184] : memref<8x768xf32, #tpu.memory_space<vmem>>, vector<8x512xf32>
    %c1_87 = arith.constant 1 : index
    %c0_88 = arith.constant 0 : index
    %110 = vector.load %arg6[%c1_87, %c0_88] : memref<9x512xf32, #tpu.memory_space<vmem>>, vector<1x512xf32>
    %111 = vector.broadcast %110 : vector<1x512xf32> to vector<8x512xf32>
    %112 = arith.mulf %109, %111 : vector<8x512xf32>
    %c152 = arith.constant 152 : index
    %c0_89 = arith.constant 0 : index
    %113 = vector.load %arg11[%c152, %c0_89] : memref<216x512xf32, #tpu.memory_space<vmem>>, vector<8x512xf32>
    tpu.vector_store %arg11[%c152, %c0_89], %112 {strides = array<i32>} : memref<216x512xf32, #tpu.memory_space<vmem>>, vector<8x512xf32>,
    %c0_90 = arith.constant 0 : index
    %c185 = arith.constant 185 : index
    %114 = vector.load %arg10[%c0_90, %c185] : memref<8x768xf32, #tpu.memory_space<vmem>>, vector<8x512xf32>
    %c2_91 = arith.constant 2 : index
    %c0_92 = arith.constant 0 : index
    %115 = vector.load %arg6[%c2_91, %c0_92] : memref<9x512xf32, #tpu.memory_space<vmem>>, vector<1x512xf32>
    %116 = vector.broadcast %115 : vector<1x512xf32> to vector<8x512xf32>
    %117 = arith.mulf %114, %116 : vector<8x512xf32>
    %c160 = arith.constant 160 : index
    %c0_93 = arith.constant 0 : index
    %118 = vector.load %arg11[%c160, %c0_93] : memref<216x512xf32, #tpu.memory_space<vmem>>, vector<8x512xf32>
    tpu.vector_store %arg11[%c160, %c0_93], %117 {strides = array<i32>} : memref<216x512xf32, #tpu.memory_space<vmem>>, vector<8x512xf32>,
    %c0_94 = arith.constant 0 : index
    %c191 = arith.constant 191 : index
    %119 = vector.load %arg10[%c0_94, %c191] : memref<8x768xf32, #tpu.memory_space<vmem>>, vector<8x512xf32>
    %c3_95 = arith.constant 3 : index
    %c0_96 = arith.constant 0 : index
    %120 = vector.load %arg6[%c3_95, %c0_96] : memref<9x512xf32, #tpu.memory_space<vmem>>, vector<1x512xf32>
    %121 = vector.broadcast %120 : vector<1x512xf32> to vector<8x512xf32>
    %122 = arith.mulf %119, %121 : vector<8x512xf32>
    %c168 = arith.constant 168 : index
    %c0_97 = arith.constant 0 : index
    %123 = vector.load %arg11[%c168, %c0_97] : memref<216x512xf32, #tpu.memory_space<vmem>>, vector<8x512xf32>
    tpu.vector_store %arg11[%c168, %c0_97], %122 {strides = array<i32>} : memref<216x512xf32, #tpu.memory_space<vmem>>, vector<8x512xf32>,
    %c0_98 = arith.constant 0 : index
    %c192 = arith.constant 192 : index
    %124 = vector.load %arg10[%c0_98, %c192] : memref<8x768xf32, #tpu.memory_space<vmem>>, vector<8x512xf32>
    %c4_99 = arith.constant 4 : index
    %c0_100 = arith.constant 0 : index
    %125 = vector.load %arg6[%c4_99, %c0_100] : memref<9x512xf32, #tpu.memory_space<vmem>>, vector<1x512xf32>
    %126 = vector.broadcast %125 : vector<1x512xf32> to vector<8x512xf32>
    %127 = arith.mulf %124, %126 : vector<8x512xf32>
    %c176 = arith.constant 176 : index
    %c0_101 = arith.constant 0 : index
    %128 = vector.load %arg11[%c176, %c0_101] : memref<216x512xf32, #tpu.memory_space<vmem>>, vector<8x512xf32>
    tpu.vector_store %arg11[%c176, %c0_101], %127 {strides = array<i32>} : memref<216x512xf32, #tpu.memory_space<vmem>>, vector<8x512xf32>,
    %c0_102 = arith.constant 0 : index
    %c193 = arith.constant 193 : index
    %129 = vector.load %arg10[%c0_102, %c193] : memref<8x768xf32, #tpu.memory_space<vmem>>, vector<8x512xf32>
    %c5_103 = arith.constant 5 : index
    %c0_104 = arith.constant 0 : index
    %130 = vector.load %arg6[%c5_103, %c0_104] : memref<9x512xf32, #tpu.memory_space<vmem>>, vector<1x512xf32>
    %131 = vector.broadcast %130 : vector<1x512xf32> to vector<8x512xf32>
    %132 = arith.mulf %129, %131 : vector<8x512xf32>
    %c184_105 = arith.constant 184 : index
    %c0_106 = arith.constant 0 : index
    %133 = vector.load %arg11[%c184_105, %c0_106] : memref<216x512xf32, #tpu.memory_space<vmem>>, vector<8x512xf32>
    tpu.vector_store %arg11[%c184_105, %c0_106], %132 {strides = array<i32>} : memref<216x512xf32, #tpu.memory_space<vmem>>, vector<8x512xf32>,
    %c0_107 = arith.constant 0 : index
    %c199 = arith.constant 199 : index
    %134 = vector.load %arg10[%c0_107, %c199] : memref<8x768xf32, #tpu.memory_space<vmem>>, vector<8x512xf32>
    %c6_108 = arith.constant 6 : index
    %c0_109 = arith.constant 0 : index
    %135 = vector.load %arg6[%c6_108, %c0_109] : memref<9x512xf32, #tpu.memory_space<vmem>>, vector<1x512xf32>
    %136 = vector.broadcast %135 : vector<1x512xf32> to vector<8x512xf32>
    %137 = arith.mulf %134, %136 : vector<8x512xf32>
    %c192_110 = arith.constant 192 : index
    %c0_111 = arith.constant 0 : index
    %138 = vector.load %arg11[%c192_110, %c0_111] : memref<216x512xf32, #tpu.memory_space<vmem>>, vector<8x512xf32>
    tpu.vector_store %arg11[%c192_110, %c0_111], %137 {strides = array<i32>} : memref<216x512xf32, #tpu.memory_space<vmem>>, vector<8x512xf32>,
    %c0_112 = arith.constant 0 : index
    %c200 = arith.constant 200 : index
    %139 = vector.load %arg10[%c0_112, %c200] : memref<8x768xf32, #tpu.memory_space<vmem>>, vector<8x512xf32>
    %c7_113 = arith.constant 7 : index
    %c0_114 = arith.constant 0 : index
    %140 = vector.load %arg6[%c7_113, %c0_114] : memref<9x512xf32, #tpu.memory_space<vmem>>, vector<1x512xf32>
    %141 = vector.broadcast %140 : vector<1x512xf32> to vector<8x512xf32>
    %142 = arith.mulf %139, %141 : vector<8x512xf32>
    %c200_115 = arith.constant 200 : index
    %c0_116 = arith.constant 0 : index
    %143 = vector.load %arg11[%c200_115, %c0_116] : memref<216x512xf32, #tpu.memory_space<vmem>>, vector<8x512xf32>
    tpu.vector_store %arg11[%c200_115, %c0_116], %142 {strides = array<i32>} : memref<216x512xf32, #tpu.memory_space<vmem>>, vector<8x512xf32>,
    %c0_117 = arith.constant 0 : index
    %c201 = arith.constant 201 : index
    %144 = vector.load %arg10[%c0_117, %c201] : memref<8x768xf32, #tpu.memory_space<vmem>>, vector<8x512xf32>
    %c8_118 = arith.constant 8 : index
    %c0_119 = arith.constant 0 : index
    %145 = vector.load %arg6[%c8_118, %c0_119] : memref<9x512xf32, #tpu.memory_space<vmem>>, vector<1x512xf32>
    %146 = vector.broadcast %145 : vector<1x512xf32> to vector<8x512xf32>
    %147 = arith.mulf %144, %146 : vector<8x512xf32>
    %c208 = arith.constant 208 : index
    %c0_120 = arith.constant 0 : index
    %148 = vector.load %arg11[%c208, %c0_120] : memref<216x512xf32, #tpu.memory_space<vmem>>, vector<8x512xf32>
    tpu.vector_store %arg11[%c208, %c0_120], %147 {strides = array<i32>} : memref<216x512xf32, #tpu.memory_space<vmem>>, vector<8x512xf32>,
    %c0_121 = arith.constant 0 : index
    %c0_122 = arith.constant 0 : index
    %149 = vector.load %arg2[%c0_121, %c0_122] : memref<8x216xf32, #tpu.memory_space<vmem>>, vector<8x216xf32>
    %c0_123 = arith.constant 0 : index
    %c0_124 = arith.constant 0 : index
    %150 = vector.load %arg11[%c0_123, %c0_124] : memref<216x512xf32, #tpu.memory_space<vmem>>, vector<216x512xf32>
    %cst_125 = arith.constant dense<0.000000e+00> : vector<8x512xf32>
    %151 = tpu.matmul %149, %150, %cst_125 {dimension_numbers = #tpu.dot_dimension_numbers<[1], [0], [0], [1], [0, 0, 1, 1], [], []>} : vector<8x216xf32>, vector<216x512xf32>, vector<8x512xf32> -> vector<8x512xf32>
    %c0_126 = arith.constant 0 : index
    %c0_127 = arith.constant 0 : index
    %c0_128 = arith.constant 0 : index
    %152 = vector.load %arg7[%c0_126, %c0_127, %c0_128] : memref<1x8x512xf32, #tpu.memory_space<vmem>>, vector<1x8x512xf32>
    %153 = vector.shape_cast %152 : vector<1x8x512xf32> to vector<8x512xf32>
    %154 = vector.shape_cast %151 : vector<8x512xf32> to vector<1x8x512xf32>
    tpu.vector_store %arg7[%c0_126, %c0_127, %c0_128], %154 {strides = array<i32>} : memref<1x8x512xf32, #tpu.memory_space<vmem>>, vector<1x8x512xf32>,
    %cst_129 = arith.constant dense<0.000000e+00> : vector<8xf32>
    %155 = vector.multi_reduction <add>, %151, %cst_129 [1] : vector<8x512xf32> to vector<8xf32>
    %156 = vector.shape_cast %155 : vector<8xf32> to vector<8x1xf32>
    %c0_130 = arith.constant 0 : index
    %c0_131 = arith.constant 0 : index
    %c0_132 = arith.constant 0 : index
    %157 = vector.load %arg8[%c0_130, %c0_131, %c0_132] : memref<1x8x1xf32, #tpu.memory_space<vmem>>, vector<1x8x1xf32>
    %158 = vector.shape_cast %157 : vector<1x8x1xf32> to vector<8x1xf32>
    %159 = vector.shape_cast %156 : vector<8x1xf32> to vector<1x8x1xf32>
    tpu.vector_store %arg8[%c0_130, %c0_131, %c0_132], %159 {strides = array<i32>} : memref<1x8x1xf32, #tpu.memory_space<vmem>>, vector<1x8x1xf32>,
    %160 = arith.mulf %151, %151 : vector<8x512xf32>
    %cst_133 = arith.constant dense<0.000000e+00> : vector<8xf32>
    %161 = vector.multi_reduction <add>, %160, %cst_133 [1] : vector<8x512xf32> to vector<8xf32>
    %162 = vector.shape_cast %161 : vector<8xf32> to vector<8x1xf32>
    %c0_134 = arith.constant 0 : index
    %c0_135 = arith.constant 0 : index
    %c0_136 = arith.constant 0 : index
    %163 = vector.load %arg9[%c0_134, %c0_135, %c0_136] : memref<1x8x1xf32, #tpu.memory_space<vmem>>, vector<1x8x1xf32>
    %164 = vector.shape_cast %163 : vector<1x8x1xf32> to vector<8x1xf32>
    %165 = vector.shape_cast %162 : vector<8x1xf32> to vector<1x8x1xf32>
    tpu.vector_store %arg9[%c0_134, %c0_135, %c0_136], %165 {strides = array<i32>} : memref<1x8x1xf32, #tpu.memory_space<vmem>>, vector<1x8x1xf32>,
    return
  }
  func.func @transform_0(%arg0: i32) -> (i32, i32, i32) {
    %c0_i32 = arith.constant 0 : i32
    %c0_i32_0 = arith.constant 0 : i32
    %c0_i32_1 = arith.constant 0 : i32
    return %arg0, %c0_i32, %c0_i32_0 : i32, i32, i32
  }
  func.func @transform_1(%arg0: i32) -> (i32, i32) {
    %c0_i32 = arith.constant 0 : i32
    %c0_i32_0 = arith.constant 0 : i32
    %c0_i32_1 = arith.constant 0 : i32
    return %c0_i32, %c0_i32_0 : i32, i32
  }
  func.func @transform_2(%arg0: i32) -> (i32, i32) {
    %c0_i32 = arith.constant 0 : i32
    %c0_i32_0 = arith.constant 0 : i32
    %c0_i32_1 = arith.constant 0 : i32
    return %c0_i32, %c0_i32_0 : i32, i32
  }
  func.func @transform_3(%arg0: i32) -> (i32, i32) {
    %c0_i32 = arith.constant 0 : i32
    %c0_i32_0 = arith.constant 0 : i32
    %c0_i32_1 = arith.constant 0 : i32
    return %c0_i32, %c0_i32_0 : i32, i32
  }
  func.func @transform_4(%arg0: i32) -> (i32, i32) {
    %c0_i32 = arith.constant 0 : i32
    %c0_i32_0 = arith.constant 0 : i32
    %c0_i32_1 = arith.constant 0 : i32
    return %c0_i32, %c0_i32_0 : i32, i32
  }
  func.func @transform_5(%arg0: i32) -> (i32, i32) {
    %c0_i32 = arith.constant 0 : i32
    %c0_i32_0 = arith.constant 0 : i32
    %c0_i32_1 = arith.constant 0 : i32
    return %c0_i32, %c0_i32_0 : i32, i32
  }
  func.func @transform_6(%arg0: i32) -> (i32, i32, i32) {
    %c0_i32 = arith.constant 0 : i32
    %c0_i32_0 = arith.constant 0 : i32
    %c0_i32_1 = arith.constant 0 : i32
    return %arg0, %c0_i32, %c0_i32_0 : i32, i32, i32
  }
  func.func @transform_7(%arg0: i32) -> (i32, i32, i32) {
    %c0_i32 = arith.constant 0 : i32
    %c0_i32_0 = arith.constant 0 : i32
    %c0_i32_1 = arith.constant 0 : i32
    return %arg0, %c0_i32, %c0_i32_0 : i32, i32, i32
  }
  func.func @transform_8(%arg0: i32) -> (i32, i32, i32) {
    %c0_i32 = arith.constant 0 : i32
    %c0_i32_0 = arith.constant 0 : i32
    %c0_i32_1 = arith.constant 0 : i32
    return %arg0, %c0_i32, %c0_i32_0 : i32, i32, i32
  }
}

</mosaic_0001>

<llo_original>
// kernel: down_forward.4
$region0: #{down_forward.4}
  #allocation0 [shape = 'u32[]', space=smem, size = 0x4, offset = 0x4, fixed_abs, tag = 'smem constant byte address 0x4 - core index']
  #allocation1 [shape = 'u32[72,128]{1,0:T(1,128)}', space=vmem, size = 0x9000, scoped, tag = 'internal scratch']
  %s0 = inlined_call_operand.vmem [shape: f32[8,8,2,8,2,8,2], index: 0, kind: input, shape index: {}]
  %s1 = inlined_call_operand.vmem [shape: f32[8,8,8,8,1], index: 1, kind: output, shape index: {}]
  %s2 = sld [smem:[#allocation0]]
  $region37: #{down_forward.4} parent=0
    _
  %s4 = ssub.s32 1, %s2
  %s5 = scalar_select 0, %s4, %s2
  loop: start=0, step=1, limit=10
  $region2: #{down_forward.4} parent=0 // loop_pre_header
    _
  $region3: #{down_forward.4} parent=0 // loop_header
    %s7 = sphi 0, %s11
    %p8 = scmp.ge.s32.totalorder %s7, 10
    %s17 = sphi 0, %s19
    %s20 = sphi 0, %s17
    %s21 = sphi 0, %s20
    %s37 = sphi 0, %s21
    %s43 = sphi 0, %s45
    %s46 = sphi 0, %s43
    %s47 = sphi 0, %s46
    %s63 = sphi 0, %s47
  $region4: #{down_forward.4} parent=0 // loop_header_branch
    %10 = sbr.rel (%p8) target = $region8
  $region5: #{down_forward.4} parent=0 // loop_body
    %s12 = ssub.s32 %s7, 1
    %s13 = ssub.s32 %s7, 2
    %s14 = sadd.s32 %s7, 1
    %s15 = ssub.s32 %s7, %s14
    %p16 = scmp.eq.s32.totalorder %s15, 0
    %s18 = sadd.s32 %s17, 1
    %s19 = scalar_select %p16, %s17, %s18
    %p22 = pneg %p16
    %p23 = scmp.eq.s32.totalorder %s7, 7
    %p24 = por %p22, %p23
    %p25 = scmp.ne.s32.totalorder %s17, %s20
    %p26 = scmp.eq.s32.totalorder %s7, 0
    %p27 = por %p25, %p26
    %p28 = scmp.ne.s32.totalorder %s17, %s20
    %p29 = scmp.eq.s32.totalorder %s12, 7
    %p30 = por %p28, %p29
    %p31 = scmp.ne.s32.totalorder %s20, %s21
    %p32 = scmp.eq.s32.totalorder %s12, 0
    %p33 = por %p31, %p32
    %p34 = scmp.ne.s32.totalorder %s20, %s21
    %p35 = scmp.eq.s32.totalorder %s13, 7
    %p36 = por %p34, %p35
    %p38 = scmp.ne.s32.totalorder %s21, %s37
    %p39 = scmp.eq.s32.totalorder %s13, 0
    %p40 = por %p38, %p39
    %s41 = ssub.s32 %s7, %s14
    %p42 = scmp.eq.s32.totalorder %s41, 0
    %s44 = sadd.s32 %s43, 1
    %s45 = scalar_select %p42, %s43, %s44
    %p48 = pneg %p42
    %p49 = scmp.eq.s32.totalorder %s7, 7
    %p50 = por %p48, %p49
    %p51 = scmp.ne.s32.totalorder %s43, %s46
    %p52 = scmp.eq.s32.totalorder %s7, 0
    %p53 = por %p51, %p52
    %p54 = scmp.ne.s32.totalorder %s43, %s46
    %p55 = scmp.eq.s32.totalorder %s12, 7
    %p56 = por %p54, %p55
    %p57 = scmp.ne.s32.totalorder %s46, %s47
    %p58 = scmp.eq.s32.totalorder %s12, 0
    %p59 = por %p57, %p58
    %p60 = scmp.ne.s32.totalorder %s46, %s47
    %p61 = scmp.eq.s32.totalorder %s13, 7
    %p62 = por %p60, %p61
    %p64 = scmp.ne.s32.totalorder %s47, %s63
    %p65 = scmp.eq.s32.totalorder %s13, 0
    %p66 = por %p64, %p65
    %p67 = scmp.le.s32.totalorder 1, %s7
    %p68 = scmp.lt.s32.totalorder %s7, 9
    %p69 = pnand %p67, %p68
    %p70 = pneg %p69
    // Predicated region
    $region9: #{down_forward.4} parent=5 // pred_check
      _
    $region10: #{down_forward.4} parent=5 // pred_check_branch
      %72 = sbr.rel (%p69) target = $region12
    $region11: #{down_forward.4} parent=5 // pred_region
      %s73 = ssub.s32 %s7, 1
    $region12: #{down_forward.4} parent=5 // pred_fallthru
      _
    %p74 = scmp.lt.s32.totalorder %s7, 8
    // Predicated region
    $region13: #{down_forward.4} parent=5 // pred_check
      %p75 = pneg %p74
    $region14: #{down_forward.4} parent=5 // pred_check_branch
      %77 = sbr.rel (%p75) target = $region16
    $region15: #{down_forward.4} parent=5 // pred_region
      // Predicated region
      $region17: #{down_forward.4} parent=15 // pred_check
        %p78 = pneg %p27
      $region18: #{down_forward.4} parent=15 // pred_check_branch
        %80 = sbr.rel (%p78) target = $region20
      $region19: #{down_forward.4} parent=15 // pred_region
        %p81 = scmp.lt.s32.totalorder %s7, 7
        %s82 = scalar_select %p81, %s7, 7
        %s83 = smul.addr %s82, 256
        %s84 = smul.addr %s83, 8
        %s85 = scalar_lea.vmem %s0, %s84
      $region20: #{down_forward.4} parent=15 // pred_fallthru
        _
    $region16: #{down_forward.4} parent=5 // pred_fallthru
      _
    %p86 = scmp.le.s32.totalorder 1, %s7
    %p87 = scmp.lt.s32.totalorder %s7, 9
    %p88 = pnand %p86, %p87
    %p89 = pneg %p88
    // Predicated region
    $region21: #{down_forward.4} parent=5 // pred_check
      _
    $region22: #{down_forward.4} parent=5 // pred_check_branch
      %91 = sbr.rel (%p88) target = $region24
    $region23: #{down_forward.4} parent=5 // pred_region
      %s92 = ssub.s32 %s7, 1
      %p93 = scmp.lt.s32.totalorder %s12, 7
      %s94 = scalar_select %p93, %s12, 7
      %s95 = smul.addr %s94, 256
      %s96 = smul.addr %s95, 8
      %s97 = scalar_lea.vmem %s0, %s96
      %p98 = pneg %p33
      %p99 = pneg %p30
      %p100 = pneg %p59
      %p101 = pneg %p56
      %p102 = scmp.lt.s32.totalorder %s12, 7
      %s103 = scalar_select %p102, %s12, 7
      %s104 = smul.addr %s103, 64
      %s105 = smul.addr %s104, 8
      %s106 = scalar_lea.vmem %s1, %s105
      %p107 = scmp.lt.s32.totalorder %s12, 7
      %s108 = scalar_select %p107, %s12, 7
      %s109 = smul.addr %s108, 256
      %s110 = smul.addr %s109, 8
      %s111 = scalar_lea.vmem %s0, %s110
      %p112 = scmp.lt.s32.totalorder %s12, 7
      %s113 = scalar_select %p112, %s12, 7
      %s114 = smul.addr %s113, 64
      %s115 = smul.addr %s114, 8
      %s116 = scalar_lea.vmem %s1, %s115
      %v117 = vld [vmem:[%s111] sm:$0xff]
      %v118 = vld [vmem:[%s111 + $0x10] sm:$0xff]
      %v119 = vld [vmem:[%s111 + $0x20] sm:$0xff]
      %v120 = vld [vmem:[%s111 + $0x30] sm:$0xff]
      %v121 = vld [vmem:[%s111 + $0x40] sm:$0xff]
      %v122 = vld [vmem:[%s111 + $0x50] sm:$0xff]
      %v123 = vld [vmem:[%s111 + $0x60] sm:$0xff]
      %v124 = vld [vmem:[%s111 + $0x70] sm:$0xff]
      %s125 = scalar_lea.vmem %s111, 8
      %v126 = vld [vmem:[%s125] sm:$0xff]
      %v127 = vld [vmem:[%s125 + $0x10] sm:$0xff]
      %v128 = vld [vmem:[%s125 + $0x20] sm:$0xff]
      %v129 = vld [vmem:[%s125 + $0x30] sm:$0xff]
      %v130 = vld [vmem:[%s125 + $0x40] sm:$0xff]
      %v131 = vld [vmem:[%s125 + $0x50] sm:$0xff]
      %v132 = vld [vmem:[%s125 + $0x60] sm:$0xff]
      %v133 = vld [vmem:[%s125 + $0x70] sm:$0xff]
      %s134 = scalar_lea.vmem %s111, 128
      %v135 = vld [vmem:[%s134] sm:$0xff]
      %v136 = vld [vmem:[%s134 + $0x10] sm:$0xff]
      %v137 = vld [vmem:[%s134 + $0x20] sm:$0xff]
      %v138 = vld [vmem:[%s134 + $0x30] sm:$0xff]
      %v139 = vld [vmem:[%s134 + $0x40] sm:$0xff]
      %v140 = vld [vmem:[%s134 + $0x50] sm:$0xff]
      %v141 = vld [vmem:[%s134 + $0x60] sm:$0xff]
      %v142 = vld [vmem:[%s134 + $0x70] sm:$0xff]
      %s143 = scalar_lea.vmem %s111, 136
      %v144 = vld [vmem:[%s143] sm:$0xff]
      %v145 = vld [vmem:[%s143 + $0x10] sm:$0xff]
      %v146 = vld [vmem:[%s143 + $0x20] sm:$0xff]
      %v147 = vld [vmem:[%s143 + $0x30] sm:$0xff]
      %v148 = vld [vmem:[%s143 + $0x40] sm:$0xff]
      %v149 = vld [vmem:[%s143 + $0x50] sm:$0xff]
      %v150 = vld [vmem:[%s143 + $0x60] sm:$0xff]
      %v151 = vld [vmem:[%s143 + $0x70] sm:$0xff]
      %v152 = vmax.f32 %v117, %v126
      %v153 = vmax.f32 %v118, %v127
      %v154 = vmax.f32 %v119, %v128
      %v155 = vmax.f32 %v120, %v129
      %v156 = vmax.f32 %v121, %v130
      %v157 = vmax.f32 %v122, %v131
      %v158 = vmax.f32 %v123, %v132
      %v159 = vmax.f32 %v124, %v133
      %v160 = vmax.f32 %v135, %v144
      %v161 = vmax.f32 %v136, %v145
      %v162 = vmax.f32 %v137, %v146
      %v163 = vmax.f32 %v138, %v147
      %v164 = vmax.f32 %v139, %v148
      %v165 = vmax.f32 %v140, %v149
      %v166 = vmax.f32 %v141, %v150
      %v167 = vmax.f32 %v142, %v151
      %v168 = vmax.f32 %v152, %v160
      %v169 = vmax.f32 %v153, %v161
      %v170 = vmax.f32 %v154, %v162
      %v171 = vmax.f32 %v155, %v163
      %v172 = vmax.f32 %v156, %v164
      %v173 = vmax.f32 %v157, %v165
      %v174 = vmax.f32 %v158, %v166
      %v175 = vmax.f32 %v159, %v167
      %vm176 = vcmask 15360
      %v177 = vsel %vm176, %v168, -inf
      %178 = vmax.xlane.f32.xlu0 %v177
      %v179 = vpop.xlane.xlu0 %178
      %v180 = vsel %vm176, %v169, -inf
      %181 = vmax.xlane.f32.xlu0 %v180
      %v182 = vpop.xlane.xlu0 %181
      %v183 = vsel %vm176, %v170, -inf
      %184 = vmax.xlane.f32.xlu0 %v183
      %v185 = vpop.xlane.xlu0 %184
      %v186 = vsel %vm176, %v171, -inf
      %187 = vmax.xlane.f32.xlu0 %v186
      %v188 = vpop.xlane.xlu0 %187
      %v189 = vsel %vm176, %v172, -inf
      %190 = vmax.xlane.f32.xlu0 %v189
      %v191 = vpop.xlane.xlu0 %190
      %v192 = vsel %vm176, %v173, -inf
      %193 = vmax.xlane.f32.xlu0 %v192
      %v194 = vpop.xlane.xlu0 %193
      %v195 = vsel %vm176, %v174, -inf
      %196 = vmax.xlane.f32.xlu0 %v195
      %v197 = vpop.xlane.xlu0 %196
      %v198 = vsel %vm176, %v175, -inf
      %199 = vmax.xlane.f32.xlu0 %v198
      %v200 = vpop.xlane.xlu0 %199
      %vm201 = vcmask 7168
      %202 = vst.msk [vmem:[%s116] sm:$0xff] %vm201, %v179
      %203 = vst.msk [vmem:[%s116 + $0x8] sm:$0xff] %vm201, %v182
      %204 = vst.msk [vmem:[%s116 + $0x10] sm:$0xff] %vm201, %v185
      %205 = vst.msk [vmem:[%s116 + $0x18] sm:$0xff] %vm201, %v188
      %206 = vst.msk [vmem:[%s116 + $0x20] sm:$0xff] %vm201, %v191
      %207 = vst.msk [vmem:[%s116 + $0x28] sm:$0xff] %vm201, %v194
      %208 = vst.msk [vmem:[%s116 + $0x30] sm:$0xff] %vm201, %v197
      %209 = vst.msk [vmem:[%s116 + $0x38] sm:$0xff] %vm201, %v200
      %s210 = scalar_lea.vmem %s111, 256
      %v211 = vld [vmem:[%s210] sm:$0xff]
      %v212 = vld [vmem:[%s210 + $0x10] sm:$0xff]
      %v213 = vld [vmem:[%s210 + $0x20] sm:$0xff]
      %v214 = vld [vmem:[%s210 + $0x30] sm:$0xff]
      %v215 = vld [vmem:[%s210 + $0x40] sm:$0xff]
      %v216 = vld [vmem:[%s210 + $0x50] sm:$0xff]
      %v217 = vld [vmem:[%s210 + $0x60] sm:$0xff]
      %v218 = vld [vmem:[%s210 + $0x70] sm:$0xff]
      %s219 = scalar_lea.vmem %s111, 264
      %v220 = vld [vmem:[%s219] sm:$0xff]
      %v221 = vld [vmem:[%s219 + $0x10] sm:$0xff]
      %v222 = vld [vmem:[%s219 + $0x20] sm:$0xff]
      %v223 = vld [vmem:[%s219 + $0x30] sm:$0xff]
      %v224 = vld [vmem:[%s219 + $0x40] sm:$0xff]
      %v225 = vld [vmem:[%s219 + $0x50] sm:$0xff]
      %v226 = vld [vmem:[%s219 + $0x60] sm:$0xff]
      %v227 = vld [vmem:[%s219 + $0x70] sm:$0xff]
      %s228 = scalar_lea.vmem %s111, 384
      %v229 = vld [vmem:[%s228] sm:$0xff]
      %v230 = vld [vmem:[%s228 + $0x10] sm:$0xff]
      %v231 = vld [vmem:[%s228 + $0x20] sm:$0xff]
      %v232 = vld [vmem:[%s228 + $0x30] sm:$0xff]
      %v233 = vld [vmem:[%s228 + $0x40] sm:$0xff]
      %v234 = vld [vmem:[%s228 + $0x50] sm:$0xff]
      %v235 = vld [vmem:[%s228 + $0x60] sm:$0xff]
      %v236 = vld [vmem:[%s228 + $0x70] sm:$0xff]
      %s237 = scalar_lea.vmem %s111, 392
      %v238 = vld [vmem:[%s237] sm:$0xff]
      %v239 = vld [vmem:[%s237 + $0x10] sm:$0xff]
      %v240 = vld [vmem:[%s237 + $0x20] sm:$0xff]
      %v241 = vld [vmem:[%s237 + $0x30] sm:$0xff]
      %v242 = vld [vmem:[%s237 + $0x40] sm:$0xff]
      %v243 = vld [vmem:[%s237 + $0x50] sm:$0xff]
      %v244 = vld [vmem:[%s237 + $0x60] sm:$0xff]
      %v245 = vld [vmem:[%s237 + $0x70] sm:$0xff]
      %v246 = vmax.f32 %v211, %v220
      %v247 = vmax.f32 %v212, %v221
      %v248 = vmax.f32 %v213, %v222
      %v249 = vmax.f32 %v214, %v223
      %v250 = vmax.f32 %v215, %v224
      %v251 = vmax.f32 %v216, %v225
      %v252 = vmax.f32 %v217, %v226
      %v253 = vmax.f32 %v218, %v227
      %v254 = vmax.f32 %v229, %v238
      %v255 = vmax.f32 %v230, %v239
      %v256 = vmax.f32 %v231, %v240
      %v257 = vmax.f32 %v232, %v241
      %v258 = vmax.f32 %v233, %v242
      %v259 = vmax.f32 %v234, %v243
      %v260 = vmax.f32 %v235, %v244
      %v261 = vmax.f32 %v236, %v245
      %v262 = vmax.f32 %v246, %v254
      %v263 = vmax.f32 %v247, %v255
      %v264 = vmax.f32 %v248, %v256
      %v265 = vmax.f32 %v249, %v257
      %v266 = vmax.f32 %v250, %v258
      %v267 = vmax.f32 %v251, %v259
      %v268 = vmax.f32 %v252, %v260
      %v269 = vmax.f32 %v253, %v261
      %v270 = vsel %vm176, %v262, -inf
      %271 = vmax.xlane.f32.xlu0 %v270
      %v272 = vpop.xlane.xlu0 %271
      %v273 = vsel %vm176, %v263, -inf
      %274 = vmax.xlane.f32.xlu0 %v273
      %v275 = vpop.xlane.xlu0 %274
      %v276 = vsel %vm176, %v264, -inf
      %277 = vmax.xlane.f32.xlu0 %v276
      %v278 = vpop.xlane.xlu0 %277
      %v279 = vsel %vm176, %v265, -inf
      %280 = vmax.xlane.f32.xlu0 %v279
      %v281 = vpop.xlane.xlu0 %280
      %v282 = vsel %vm176, %v266, -inf
      %283 = vmax.xlane.f32.xlu0 %v282
      %v284 = vpop.xlane.xlu0 %283
      %v285 = vsel %vm176, %v267, -inf
      %286 = vmax.xlane.f32.xlu0 %v285
      %v287 = vpop.xlane.xlu0 %286
      %v288 = vsel %vm176, %v268, -inf
      %289 = vmax.xlane.f32.xlu0 %v288
      %v290 = vpop.xlane.xlu0 %289
      %v291 = vsel %vm176, %v269, -inf
      %292 = vmax.xlane.f32.xlu0 %v291
      %v293 = vpop.xlane.xlu0 %292
      %s294 = scalar_lea.vmem %s116, 64
      %295 = vst.msk [vmem:[%s294] sm:$0xff] %vm201, %v272
      %296 = vst.msk [vmem:[%s294 + $0x8] sm:$0xff] %vm201, %v275
      %297 = vst.msk [vmem:[%s294 + $0x10] sm:$0xff] %vm201, %v278
      %298 = vst.msk [vmem:[%s294 + $0x18] sm:$0xff] %vm201, %v281
      %299 = vst.msk [vmem:[%s294 + $0x20] sm:$0xff] %vm201, %v284
      %300 = vst.msk [vmem:[%s294 + $0x28] sm:$0xff] %vm201, %v287
      %301 = vst.msk [vmem:[%s294 + $0x30] sm:$0xff] %vm201, %v290
      %302 = vst.msk [vmem:[%s294 + $0x38] sm:$0xff] %vm201, %v293
      %s303 = scalar_lea.vmem %s111, 512
      %v304 = vld [vmem:[%s303] sm:$0xff]
      %v305 = vld [vmem:[%s303 + $0x10] sm:$0xff]
      %v306 = vld [vmem:[%s303 + $0x20] sm:$0xff]
      %v307 = vld [vmem:[%s303 + $0x30] sm:$0xff]
      %v308 = vld [vmem:[%s303 + $0x40] sm:$0xff]
      %v309 = vld [vmem:[%s303 + $0x50] sm:$0xff]
      %v310 = vld [vmem:[%s303 + $0x60] sm:$0xff]
      %v311 = vld [vmem:[%s303 + $0x70] sm:$0xff]
      %s312 = scalar_lea.vmem %s111, 520
      %v313 = vld [vmem:[%s312] sm:$0xff]
      %v314 = vld [vmem:[%s312 + $0x10] sm:$0xff]
      %v315 = vld [vmem:[%s312 + $0x20] sm:$0xff]
      %v316 = vld [vmem:[%s312 + $0x30] sm:$0xff]
      %v317 = vld [vmem:[%s312 + $0x40] sm:$0xff]
      %v318 = vld [vmem:[%s312 + $0x50] sm:$0xff]
      %v319 = vld [vmem:[%s312 + $0x60] sm:$0xff]
      %v320 = vld [vmem:[%s312 + $0x70] sm:$0xff]
      %s321 = scalar_lea.vmem %s111, 640
      %v322 = vld [vmem:[%s321] sm:$0xff]
      %v323 = vld [vmem:[%s321 + $0x10] sm:$0xff]
      %v324 = vld [vmem:[%s321 + $0x20] sm:$0xff]
      %v325 = vld [vmem:[%s321 + $0x30] sm:$0xff]
      %v326 = vld [vmem:[%s321 + $0x40] sm:$0xff]
      %v327 = vld [vmem:[%s321 + $0x50] sm:$0xff]
      %v328 = vld [vmem:[%s321 + $0x60] sm:$0xff]
      %v329 = vld [vmem:[%s321 + $0x70] sm:$0xff]
      %s330 = scalar_lea.vmem %s111, 648
      %v331 = vld [vmem:[%s330] sm:$0xff]
      %v332 = vld [vmem:[%s330 + $0x10] sm:$0xff]
      %v333 = vld [vmem:[%s330 + $0x20] sm:$0xff]
      %v334 = vld [vmem:[%s330 + $0x30] sm:$0xff]
      %v335 = vld [vmem:[%s330 + $0x40] sm:$0xff]
      %v336 = vld [vmem:[%s330 + $0x50] sm:$0xff]
      %v337 = vld [vmem:[%s330 + $0x60] sm:$0xff]
      %v338 = vld [vmem:[%s330 + $0x70] sm:$0xff]
      %v339 = vmax.f32 %v304, %v313
      %v340 = vmax.f32 %v305, %v314
      %v341 = vmax.f32 %v306, %v315
      %v342 = vmax.f32 %v307, %v316
      %v343 = vmax.f32 %v308, %v317
      %v344 = vmax.f32 %v309, %v318
      %v345 = vmax.f32 %v310, %v319
      %v346 = vmax.f32 %v311, %v320
      %v347 = vmax.f32 %v322, %v331
      %v348 = vmax.f32 %v323, %v332
      %v349 = vmax.f32 %v324, %v333
      %v350 = vmax.f32 %v325, %v334
      %v351 = vmax.f32 %v326, %v335
      %v352 = vmax.f32 %v327, %v336
      %v353 = vmax.f32 %v328, %v337
      %v354 = vmax.f32 %v329, %v338
      %v355 = vmax.f32 %v339, %v347
      %v356 = vmax.f32 %v340, %v348
      %v357 = vmax.f32 %v341, %v349
      %v358 = vmax.f32 %v342, %v350
      %v359 = vmax.f32 %v343, %v351
      %v360 = vmax.f32 %v344, %v352
      %v361 = vmax.f32 %v345, %v353
      %v362 = vmax.f32 %v346, %v354
      %v363 = vsel %vm176, %v355, -inf
      %364 = vmax.xlane.f32.xlu0 %v363
      %v365 = vpop.xlane.xlu0 %364
      %v366 = vsel %vm176, %v356, -inf
      %367 = vmax.xlane.f32.xlu0 %v366
      %v368 = vpop.xlane.xlu0 %367
      %v369 = vsel %vm176, %v357, -inf
      %370 = vmax.xlane.f32.xlu0 %v369
      %v371 = vpop.xlane.xlu0 %370
      %v372 = vsel %vm176, %v358, -inf
      %373 = vmax.xlane.f32.xlu0 %v372
      %v374 = vpop.xlane.xlu0 %373
      %v375 = vsel %vm176, %v359, -inf
      %376 = vmax.xlane.f32.xlu0 %v375
      %v377 = vpop.xlane.xlu0 %376
      %v378 = vsel %vm176, %v360, -inf
      %379 = vmax.xlane.f32.xlu0 %v378
      %v380 = vpop.xlane.xlu0 %379
      %v381 = vsel %vm176, %v361, -inf
      %382 = vmax.xlane.f32.xlu0 %v381
      %v383 = vpop.xlane.xlu0 %382
      %v384 = vsel %vm176, %v362, -inf
      %385 = vmax.xlane.f32.xlu0 %v384
      %v386 = vpop.xlane.xlu0 %385
      %s387 = scalar_lea.vmem %s116, 128
      %388 = vst.msk [vmem:[%s387] sm:$0xff] %vm201, %v365
      %389 = vst.msk [vmem:[%s387 + $0x8] sm:$0xff] %vm201, %v368
      %390 = vst.msk [vmem:[%s387 + $0x10] sm:$0xff] %vm201, %v371
      %391 = vst.msk [vmem:[%s387 + $0x18] sm:$0xff] %vm201, %v374
      %392 = vst.msk [vmem:[%s387 + $0x20] sm:$0xff] %vm201, %v377
      %393 = vst.msk [vmem:[%s387 + $0x28] sm:$0xff] %vm201, %v380
      %394 = vst.msk [vmem:[%s387 + $0x30] sm:$0xff] %vm201, %v383
      %395 = vst.msk [vmem:[%s387 + $0x38] sm:$0xff] %vm201, %v386
      %s396 = scalar_lea.vmem %s111, 768
      %v397 = vld [vmem:[%s396] sm:$0xff]
      %v398 = vld [vmem:[%s396 + $0x10] sm:$0xff]
      %v399 = vld [vmem:[%s396 + $0x20] sm:$0xff]
      %v400 = vld [vmem:[%s396 + $0x30] sm:$0xff]
      %v401 = vld [vmem:[%s396 + $0x40] sm:$0xff]
      %v402 = vld [vmem:[%s396 + $0x50] sm:$0xff]
      %v403 = vld [vmem:[%s396 + $0x60] sm:$0xff]
      %v404 = vld [vmem:[%s396 + $0x70] sm:$0xff]
      %s405 = scalar_lea.vmem %s111, 776
      %v406 = vld [vmem:[%s405] sm:$0xff]
      %v407 = vld [vmem:[%s405 + $0x10] sm:$0xff]
      %v408 = vld [vmem:[%s405 + $0x20] sm:$0xff]
      %v409 = vld [vmem:[%s405 + $0x30] sm:$0xff]
      %v410 = vld [vmem:[%s405 + $0x40] sm:$0xff]
      %v411 = vld [vmem:[%s405 + $0x50] sm:$0xff]
      %v412 = vld [vmem:[%s405 + $0x60] sm:$0xff]
      %v413 = vld [vmem:[%s405 + $0x70] sm:$0xff]
      %s414 = scalar_lea.vmem %s111, 896
      %v415 = vld [vmem:[%s414] sm:$0xff]
      %v416 = vld [vmem:[%s414 + $0x10] sm:$0xff]
      %v417 = vld [vmem:[%s414 + $0x20] sm:$0xff]
      %v418 = vld [vmem:[%s414 + $0x30] sm:$0xff]
      %v419 = vld [vmem:[%s414 + $0x40] sm:$0xff]
      %v420 = vld [vmem:[%s414 + $0x50] sm:$0xff]
      %v421 = vld [vmem:[%s414 + $0x60] sm:$0xff]
      %v422 = vld [vmem:[%s414 + $0x70] sm:$0xff]
      %s423 = scalar_lea.vmem %s111, 904
      %v424 = vld [vmem:[%s423] sm:$0xff]
      %v425 = vld [vmem:[%s423 + $0x10] sm:$0xff]
      %v426 = vld [vmem:[%s423 + $0x20] sm:$0xff]
      %v427 = vld [vmem:[%s423 + $0x30] sm:$0xff]
      %v428 = vld [vmem:[%s423 + $0x40] sm:$0xff]
      %v429 = vld [vmem:[%s423 + $0x50] sm:$0xff]
      %v430 = vld [vmem:[%s423 + $0x60] sm:$0xff]
      %v431 = vld [vmem:[%s423 + $0x70] sm:$0xff]
      %v432 = vmax.f32 %v397, %v406
      %v433 = vmax.f32 %v398, %v407
      %v434 = vmax.f32 %v399, %v408
      %v435 = vmax.f32 %v400, %v409
      %v436 = vmax.f32 %v401, %v410
      %v437 = vmax.f32 %v402, %v411
      %v438 = vmax.f32 %v403, %v412
      %v439 = vmax.f32 %v404, %v413
      %v440 = vmax.f32 %v415, %v424
      %v441 = vmax.f32 %v416, %v425
      %v442 = vmax.f32 %v417, %v426
      %v443 = vmax.f32 %v418, %v427
      %v444 = vmax.f32 %v419, %v428
      %v445 = vmax.f32 %v420, %v429
      %v446 = vmax.f32 %v421, %v430
      %v447 = vmax.f32 %v422, %v431
      %v448 = vmax.f32 %v432, %v440
      %v449 = vmax.f32 %v433, %v441
      %v450 = vmax.f32 %v434, %v442
      %v451 = vmax.f32 %v435, %v443
      %v452 = vmax.f32 %v436, %v444
      %v453 = vmax.f32 %v437, %v445
      %v454 = vmax.f32 %v438, %v446
      %v455 = vmax.f32 %v439, %v447
      %v456 = vsel %vm176, %v448, -inf
      %457 = vmax.xlane.f32.xlu0 %v456
      %v458 = vpop.xlane.xlu0 %457
      %v459 = vsel %vm176, %v449, -inf
      %460 = vmax.xlane.f32.xlu0 %v459
      %v461 = vpop.xlane.xlu0 %460
      %v462 = vsel %vm176, %v450, -inf
      %463 = vmax.xlane.f32.xlu0 %v462
      %v464 = vpop.xlane.xlu0 %463
      %v465 = vsel %vm176, %v451, -inf
      %466 = vmax.xlane.f32.xlu0 %v465
      %v467 = vpop.xlane.xlu0 %466
      %v468 = vsel %vm176, %v452, -inf
      %469 = vmax.xlane.f32.xlu0 %v468
      %v470 = vpop.xlane.xlu0 %469
      %v471 = vsel %vm176, %v453, -inf
      %472 = vmax.xlane.f32.xlu0 %v471
      %v473 = vpop.xlane.xlu0 %472
      %v474 = vsel %vm176, %v454, -inf
      %475 = vmax.xlane.f32.xlu0 %v474
      %v476 = vpop.xlane.xlu0 %475
      %v477 = vsel %vm176, %v455, -inf
      %478 = vmax.xlane.f32.xlu0 %v477
      %v479 = vpop.xlane.xlu0 %478
      %s480 = scalar_lea.vmem %s116, 192
      %481 = vst.msk [vmem:[%s480] sm:$0xff] %vm201, %v458
      %482 = vst.msk [vmem:[%s480 + $0x8] sm:$0xff] %vm201, %v461
      %483 = vst.msk [vmem:[%s480 + $0x10] sm:$0xff] %vm201, %v464
      %484 = vst.msk [vmem:[%s480 + $0x18] sm:$0xff] %vm201, %v467
      %485 = vst.msk [vmem:[%s480 + $0x20] sm:$0xff] %vm201, %v470
      %486 = vst.msk [vmem:[%s480 + $0x28] sm:$0xff] %vm201, %v473
      %487 = vst.msk [vmem:[%s480 + $0x30] sm:$0xff] %vm201, %v476
      %488 = vst.msk [vmem:[%s480 + $0x38] sm:$0xff] %vm201, %v479
      %s489 = scalar_lea.vmem %s111, 1024
      %v490 = vld [vmem:[%s489] sm:$0xff]
      %v491 = vld [vmem:[%s489 + $0x10] sm:$0xff]
      %v492 = vld [vmem:[%s489 + $0x20] sm:$0xff]
      %v493 = vld [vmem:[%s489 + $0x30] sm:$0xff]
      %v494 = vld [vmem:[%s489 + $0x40] sm:$0xff]
      %v495 = vld [vmem:[%s489 + $0x50] sm:$0xff]
      %v496 = vld [vmem:[%s489 + $0x60] sm:$0xff]
      %v497 = vld [vmem:[%s489 + $0x70] sm:$0xff]
      %s498 = scalar_lea.vmem %s111, 1032
      %v499 = vld [vmem:[%s498] sm:$0xff]
      %v500 = vld [vmem:[%s498 + $0x10] sm:$0xff]
      %v501 = vld [vmem:[%s498 + $0x20] sm:$0xff]
      %v502 = vld [vmem:[%s498 + $0x30] sm:$0xff]
      %v503 = vld [vmem:[%s498 + $0x40] sm:$0xff]
      %v504 = vld [vmem:[%s498 + $0x50] sm:$0xff]
      %v505 = vld [vmem:[%s498 + $0x60] sm:$0xff]
      %v506 = vld [vmem:[%s498 + $0x70] sm:$0xff]
      %s507 = scalar_lea.vmem %s111, 1152
      %v508 = vld [vmem:[%s507] sm:$0xff]
      %v509 = vld [vmem:[%s507 + $0x10] sm:$0xff]
      %v510 = vld [vmem:[%s507 + $0x20] sm:$0xff]
      %v511 = vld [vmem:[%s507 + $0x30] sm:$0xff]
      %v512 = vld [vmem:[%s507 + $0x40] sm:$0xff]
      %v513 = vld [vmem:[%s507 + $0x50] sm:$0xff]
      %v514 = vld [vmem:[%s507 + $0x60] sm:$0xff]
      %v515 = vld [vmem:[%s507 + $0x70] sm:$0xff]
      %s516 = scalar_lea.vmem %s111, 1160
      %v517 = vld [vmem:[%s516] sm:$0xff]
      %v518 = vld [vmem:[%s516 + $0x10] sm:$0xff]
      %v519 = vld [vmem:[%s516 + $0x20] sm:$0xff]
      %v520 = vld [vmem:[%s516 + $0x30] sm:$0xff]
      %v521 = vld [vmem:[%s516 + $0x40] sm:$0xff]
      %v522 = vld [vmem:[%s516 + $0x50] sm:$0xff]
      %v523 = vld [vmem:[%s516 + $0x60] sm:$0xff]
      %v524 = vld [vmem:[%s516 + $0x70] sm:$0xff]
      %v525 = vmax.f32 %v490, %v499
      %v526 = vmax.f32 %v491, %v500
      %v527 = vmax.f32 %v492, %v501
      %v528 = vmax.f32 %v493, %v502
      %v529 = vmax.f32 %v494, %v503
      %v530 = vmax.f32 %v495, %v504
      %v531 = vmax.f32 %v496, %v505
      %v532 = vmax.f32 %v497, %v506
      %v533 = vmax.f32 %v508, %v517
      %v534 = vmax.f32 %v509, %v518
      %v535 = vmax.f32 %v510, %v519
      %v536 = vmax.f32 %v511, %v520
      %v537 = vmax.f32 %v512, %v521
      %v538 = vmax.f32 %v513, %v522
      %v539 = vmax.f32 %v514, %v523
      %v540 = vmax.f32 %v515, %v524
      %v541 = vmax.f32 %v525, %v533
      %v542 = vmax.f32 %v526, %v534
      %v543 = vmax.f32 %v527, %v535
      %v544 = vmax.f32 %v528, %v536
      %v545 = vmax.f32 %v529, %v537
      %v546 = vmax.f32 %v530, %v538
      %v547 = vmax.f32 %v531, %v539
      %v548 = vmax.f32 %v532, %v540
      %v549 = vsel %vm176, %v541, -inf
      %550 = vmax.xlane.f32.xlu0 %v549
      %v551 = vpop.xlane.xlu0 %550
      %v552 = vsel %vm176, %v542, -inf
      %553 = vmax.xlane.f32.xlu0 %v552
      %v554 = vpop.xlane.xlu0 %553
      %v555 = vsel %vm176, %v543, -inf
      %556 = vmax.xlane.f32.xlu0 %v555
      %v557 = vpop.xlane.xlu0 %556
      %v558 = vsel %vm176, %v544, -inf
      %559 = vmax.xlane.f32.xlu0 %v558
      %v560 = vpop.xlane.xlu0 %559
      %v561 = vsel %vm176, %v545, -inf
      %562 = vmax.xlane.f32.xlu0 %v561
      %v563 = vpop.xlane.xlu0 %562
      %v564 = vsel %vm176, %v546, -inf
      %565 = vmax.xlane.f32.xlu0 %v564
      %v566 = vpop.xlane.xlu0 %565
      %v567 = vsel %vm176, %v547, -inf
      %568 = vmax.xlane.f32.xlu0 %v567
      %v569 = vpop.xlane.xlu0 %568
      %v570 = vsel %vm176, %v548, -inf
      %571 = vmax.xlane.f32.xlu0 %v570
      %v572 = vpop.xlane.xlu0 %571
      %s573 = scalar_lea.vmem %s116, 256
      %574 = vst.msk [vmem:[%s573] sm:$0xff] %vm201, %v551
      %575 = vst.msk [vmem:[%s573 + $0x8] sm:$0xff] %vm201, %v554
      %576 = vst.msk [vmem:[%s573 + $0x10] sm:$0xff] %vm201, %v557
      %577 = vst.msk [vmem:[%s573 + $0x18] sm:$0xff] %vm201, %v560
      %578 = vst.msk [vmem:[%s573 + $0x20] sm:$0xff] %vm201, %v563
      %579 = vst.msk [vmem:[%s573 + $0x28] sm:$0xff] %vm201, %v566
      %580 = vst.msk [vmem:[%s573 + $0x30] sm:$0xff] %vm201, %v569
      %581 = vst.msk [vmem:[%s573 + $0x38] sm:$0xff] %vm201, %v572
      %s582 = scalar_lea.vmem %s111, 1280
      %v583 = vld [vmem:[%s582] sm:$0xff]
      %v584 = vld [vmem:[%s582 + $0x10] sm:$0xff]
      %v585 = vld [vmem:[%s582 + $0x20] sm:$0xff]
      %v586 = vld [vmem:[%s582 + $0x30] sm:$0xff]
      %v587 = vld [vmem:[%s582 + $0x40] sm:$0xff]
      %v588 = vld [vmem:[%s582 + $0x50] sm:$0xff]
      %v589 = vld [vmem:[%s582 + $0x60] sm:$0xff]
      %v590 = vld [vmem:[%s582 + $0x70] sm:$0xff]
      %s591 = scalar_lea.vmem %s111, 1288
      %v592 = vld [vmem:[%s591] sm:$0xff]
      %v593 = vld [vmem:[%s591 + $0x10] sm:$0xff]
      %v594 = vld [vmem:[%s591 + $0x20] sm:$0xff]
      %v595 = vld [vmem:[%s591 + $0x30] sm:$0xff]
      %v596 = vld [vmem:[%s591 + $0x40] sm:$0xff]
      %v597 = vld [vmem:[%s591 + $0x50] sm:$0xff]
      %v598 = vld [vmem:[%s591 + $0x60] sm:$0xff]
      %v599 = vld [vmem:[%s591 + $0x70] sm:$0xff]
      %s600 = scalar_lea.vmem %s111, 1408
      %v601 = vld [vmem:[%s600] sm:$0xff]
      %v602 = vld [vmem:[%s600 + $0x10] sm:$0xff]
      %v603 = vld [vmem:[%s600 + $0x20] sm:$0xff]
      %v604 = vld [vmem:[%s600 + $0x30] sm:$0xff]
      %v605 = vld [vmem:[%s600 + $0x40] sm:$0xff]
      %v606 = vld [vmem:[%s600 + $0x50] sm:$0xff]
      %v607 = vld [vmem:[%s600 + $0x60] sm:$0xff]
      %v608 = vld [vmem:[%s600 + $0x70] sm:$0xff]
      %s609 = scalar_lea.vmem %s111, 1416
      %v610 = vld [vmem:[%s609] sm:$0xff]
      %v611 = vld [vmem:[%s609 + $0x10] sm:$0xff]
      %v612 = vld [vmem:[%s609 + $0x20] sm:$0xff]
      %v613 = vld [vmem:[%s609 + $0x30] sm:$0xff]
      %v614 = vld [vmem:[%s609 + $0x40] sm:$0xff]
      %v615 = vld [vmem:[%s609 + $0x50] sm:$0xff]
      %v616 = vld [vmem:[%s609 + $0x60] sm:$0xff]
      %v617 = vld [vmem:[%s609 + $0x70] sm:$0xff]
      %v618 = vmax.f32 %v583, %v592
      %v619 = vmax.f32 %v584, %v593
      %v620 = vmax.f32 %v585, %v594
      %v621 = vmax.f32 %v586, %v595
      %v622 = vmax.f32 %v587, %v596
      %v623 = vmax.f32 %v588, %v597
      %v624 = vmax.f32 %v589, %v598
      %v625 = vmax.f32 %v590, %v599
      %v626 = vmax.f32 %v601, %v610
      %v627 = vmax.f32 %v602, %v611
      %v628 = vmax.f32 %v603, %v612
      %v629 = vmax.f32 %v604, %v613
      %v630 = vmax.f32 %v605, %v614
      %v631 = vmax.f32 %v606, %v615
      %v632 = vmax.f32 %v607, %v616
      %v633 = vmax.f32 %v608, %v617
      %v634 = vmax.f32 %v618, %v626
      %v635 = vmax.f32 %v619, %v627
      %v636 = vmax.f32 %v620, %v628
      %v637 = vmax.f32 %v621, %v629
      %v638 = vmax.f32 %v622, %v630
      %v639 = vmax.f32 %v623, %v631
      %v640 = vmax.f32 %v624, %v632
      %v641 = vmax.f32 %v625, %v633
      %v642 = vsel %vm176, %v634, -inf
      %643 = vmax.xlane.f32.xlu0 %v642
      %v644 = vpop.xlane.xlu0 %643
      %v645 = vsel %vm176, %v635, -inf
      %646 = vmax.xlane.f32.xlu0 %v645
      %v647 = vpop.xlane.xlu0 %646
      %v648 = vsel %vm176, %v636, -inf
      %649 = vmax.xlane.f32.xlu0 %v648
      %v650 = vpop.xlane.xlu0 %649
      %v651 = vsel %vm176, %v637, -inf
      %652 = vmax.xlane.f32.xlu0 %v651
      %v653 = vpop.xlane.xlu0 %652
      %v654 = vsel %vm176, %v638, -inf
      %655 = vmax.xlane.f32.xlu0 %v654
      %v656 = vpop.xlane.xlu0 %655
      %v657 = vsel %vm176, %v639, -inf
      %658 = vmax.xlane.f32.xlu0 %v657
      %v659 = vpop.xlane.xlu0 %658
      %v660 = vsel %vm176, %v640, -inf
      %661 = vmax.xlane.f32.xlu0 %v660
      %v662 = vpop.xlane.xlu0 %661
      %v663 = vsel %vm176, %v641, -inf
      %664 = vmax.xlane.f32.xlu0 %v663
      %v665 = vpop.xlane.xlu0 %664
      %s666 = scalar_lea.vmem %s116, 320
      %667 = vst.msk [vmem:[%s666] sm:$0xff] %vm201, %v644
      %668 = vst.msk [vmem:[%s666 + $0x8] sm:$0xff] %vm201, %v647
      %669 = vst.msk [vmem:[%s666 + $0x10] sm:$0xff] %vm201, %v650
      %670 = vst.msk [vmem:[%s666 + $0x18] sm:$0xff] %vm201, %v653
      %671 = vst.msk [vmem:[%s666 + $0x20] sm:$0xff] %vm201, %v656
      %672 = vst.msk [vmem:[%s666 + $0x28] sm:$0xff] %vm201, %v659
      %673 = vst.msk [vmem:[%s666 + $0x30] sm:$0xff] %vm201, %v662
      %674 = vst.msk [vmem:[%s666 + $0x38] sm:$0xff] %vm201, %v665
      %s675 = scalar_lea.vmem %s111, 1536
      %v676 = vld [vmem:[%s675] sm:$0xff]
      %v677 = vld [vmem:[%s675 + $0x10] sm:$0xff]
      %v678 = vld [vmem:[%s675 + $0x20] sm:$0xff]
      %v679 = vld [vmem:[%s675 + $0x30] sm:$0xff]
      %v680 = vld [vmem:[%s675 + $0x40] sm:$0xff]
      %v681 = vld [vmem:[%s675 + $0x50] sm:$0xff]
      %v682 = vld [vmem:[%s675 + $0x60] sm:$0xff]
      %v683 = vld [vmem:[%s675 + $0x70] sm:$0xff]
      %s684 = scalar_lea.vmem %s111, 1544
      %v685 = vld [vmem:[%s684] sm:$0xff]
      %v686 = vld [vmem:[%s684 + $0x10] sm:$0xff]
      %v687 = vld [vmem:[%s684 + $0x20] sm:$0xff]
      %v688 = vld [vmem:[%s684 + $0x30] sm:$0xff]
      %v689 = vld [vmem:[%s684 + $0x40] sm:$0xff]
      %v690 = vld [vmem:[%s684 + $0x50] sm:$0xff]
      %v691 = vld [vmem:[%s684 + $0x60] sm:$0xff]
      %v692 = vld [vmem:[%s684 + $0x70] sm:$0xff]
      %s693 = scalar_lea.vmem %s111, 1664
      %v694 = vld [vmem:[%s693] sm:$0xff]
      %v695 = vld [vmem:[%s693 + $0x10] sm:$0xff]
      %v696 = vld [vmem:[%s693 + $0x20] sm:$0xff]
      %v697 = vld [vmem:[%s693 + $0x30] sm:$0xff]
      %v698 = vld [vmem:[%s693 + $0x40] sm:$0xff]
      %v699 = vld [vmem:[%s693 + $0x50] sm:$0xff]
      %v700 = vld [vmem:[%s693 + $0x60] sm:$0xff]
      %v701 = vld [vmem:[%s693 + $0x70] sm:$0xff]
      %s702 = scalar_lea.vmem %s111, 1672
      %v703 = vld [vmem:[%s702] sm:$0xff]
      %v704 = vld [vmem:[%s702 + $0x10] sm:$0xff]
      %v705 = vld [vmem:[%s702 + $0x20] sm:$0xff]
      %v706 = vld [vmem:[%s702 + $0x30] sm:$0xff]
      %v707 = vld [vmem:[%s702 + $0x40] sm:$0xff]
      %v708 = vld [vmem:[%s702 + $0x50] sm:$0xff]
      %v709 = vld [vmem:[%s702 + $0x60] sm:$0xff]
      %v710 = vld [vmem:[%s702 + $0x70] sm:$0xff]
      %v711 = vmax.f32 %v676, %v685
      %v712 = vmax.f32 %v677, %v686
      %v713 = vmax.f32 %v678, %v687
      %v714 = vmax.f32 %v679, %v688
      %v715 = vmax.f32 %v680, %v689
      %v716 = vmax.f32 %v681, %v690
      %v717 = vmax.f32 %v682, %v691
      %v718 = vmax.f32 %v683, %v692
      %v719 = vmax.f32 %v694, %v703
      %v720 = vmax.f32 %v695, %v704
      %v721 = vmax.f32 %v696, %v705
      %v722 = vmax.f32 %v697, %v706
      %v723 = vmax.f32 %v698, %v707
      %v724 = vmax.f32 %v699, %v708
      %v725 = vmax.f32 %v700, %v709
      %v726 = vmax.f32 %v701, %v710
      %v727 = vmax.f32 %v711, %v719
      %v728 = vmax.f32 %v712, %v720
      %v729 = vmax.f32 %v713, %v721
      %v730 = vmax.f32 %v714, %v722
      %v731 = vmax.f32 %v715, %v723
      %v732 = vmax.f32 %v716, %v724
      %v733 = vmax.f32 %v717, %v725
      %v734 = vmax.f32 %v718, %v726
      %v735 = vsel %vm176, %v727, -inf
      %736 = vmax.xlane.f32.xlu0 %v735
      %v737 = vpop.xlane.xlu0 %736
      %v738 = vsel %vm176, %v728, -inf
      %739 = vmax.xlane.f32.xlu0 %v738
      %v740 = vpop.xlane.xlu0 %739
      %v741 = vsel %vm176, %v729, -inf
      %742 = vmax.xlane.f32.xlu0 %v741
      %v743 = vpop.xlane.xlu0 %742
      %v744 = vsel %vm176, %v730, -inf
      %745 = vmax.xlane.f32.xlu0 %v744
      %v746 = vpop.xlane.xlu0 %745
      %v747 = vsel %vm176, %v731, -inf
      %748 = vmax.xlane.f32.xlu0 %v747
      %v749 = vpop.xlane.xlu0 %748
      %v750 = vsel %vm176, %v732, -inf
      %751 = vmax.xlane.f32.xlu0 %v750
      %v752 = vpop.xlane.xlu0 %751
      %v753 = vsel %vm176, %v733, -inf
      %754 = vmax.xlane.f32.xlu0 %v753
      %v755 = vpop.xlane.xlu0 %754
      %v756 = vsel %vm176, %v734, -inf
      %757 = vmax.xlane.f32.xlu0 %v756
      %v758 = vpop.xlane.xlu0 %757
      %s759 = scalar_lea.vmem %s116, 384
      %760 = vst.msk [vmem:[%s759] sm:$0xff] %vm201, %v737
      %761 = vst.msk [vmem:[%s759 + $0x8] sm:$0xff] %vm201, %v740
      %762 = vst.msk [vmem:[%s759 + $0x10] sm:$0xff] %vm201, %v743
      %763 = vst.msk [vmem:[%s759 + $0x18] sm:$0xff] %vm201, %v746
      %764 = vst.msk [vmem:[%s759 + $0x20] sm:$0xff] %vm201, %v749
      %765 = vst.msk [vmem:[%s759 + $0x28] sm:$0xff] %vm201, %v752
      %766 = vst.msk [vmem:[%s759 + $0x30] sm:$0xff] %vm201, %v755
      %767 = vst.msk [vmem:[%s759 + $0x38] sm:$0xff] %vm201, %v758
      %s768 = scalar_lea.vmem %s111, 1792
      %v769 = vld [vmem:[%s768] sm:$0xff]
      %v770 = vld [vmem:[%s768 + $0x10] sm:$0xff]
      %v771 = vld [vmem:[%s768 + $0x20] sm:$0xff]
      %v772 = vld [vmem:[%s768 + $0x30] sm:$0xff]
      %v773 = vld [vmem:[%s768 + $0x40] sm:$0xff]
      %v774 = vld [vmem:[%s768 + $0x50] sm:$0xff]
      %v775 = vld [vmem:[%s768 + $0x60] sm:$0xff]
      %v776 = vld [vmem:[%s768 + $0x70] sm:$0xff]
      %s777 = scalar_lea.vmem %s111, 1800
      %v778 = vld [vmem:[%s777] sm:$0xff]
      %v779 = vld [vmem:[%s777 + $0x10] sm:$0xff]
      %v780 = vld [vmem:[%s777 + $0x20] sm:$0xff]
      %v781 = vld [vmem:[%s777 + $0x30] sm:$0xff]
      %v782 = vld [vmem:[%s777 + $0x40] sm:$0xff]
      %v783 = vld [vmem:[%s777 + $0x50] sm:$0xff]
      %v784 = vld [vmem:[%s777 + $0x60] sm:$0xff]
      %v785 = vld [vmem:[%s777 + $0x70] sm:$0xff]
      %s786 = scalar_lea.vmem %s111, 1920
      %v787 = vld [vmem:[%s786] sm:$0xff]
      %v788 = vld [vmem:[%s786 + $0x10] sm:$0xff]
      %v789 = vld [vmem:[%s786 + $0x20] sm:$0xff]
      %v790 = vld [vmem:[%s786 + $0x30] sm:$0xff]
      %v791 = vld [vmem:[%s786 + $0x40] sm:$0xff]
      %v792 = vld [vmem:[%s786 + $0x50] sm:$0xff]
      %v793 = vld [vmem:[%s786 + $0x60] sm:$0xff]
      %v794 = vld [vmem:[%s786 + $0x70] sm:$0xff]
      %s795 = scalar_lea.vmem %s111, 1928
      %v796 = vld [vmem:[%s795] sm:$0xff]
      %v797 = vld [vmem:[%s795 + $0x10] sm:$0xff]
      %v798 = vld [vmem:[%s795 + $0x20] sm:$0xff]
      %v799 = vld [vmem:[%s795 + $0x30] sm:$0xff]
      %v800 = vld [vmem:[%s795 + $0x40] sm:$0xff]
      %v801 = vld [vmem:[%s795 + $0x50] sm:$0xff]
      %v802 = vld [vmem:[%s795 + $0x60] sm:$0xff]
      %v803 = vld [vmem:[%s795 + $0x70] sm:$0xff]
      %v804 = vmax.f32 %v769, %v778
      %v805 = vmax.f32 %v770, %v779
      %v806 = vmax.f32 %v771, %v780
      %v807 = vmax.f32 %v772, %v781
      %v808 = vmax.f32 %v773, %v782
      %v809 = vmax.f32 %v774, %v783
      %v810 = vmax.f32 %v775, %v784
      %v811 = vmax.f32 %v776, %v785
      %v812 = vmax.f32 %v787, %v796
      %v813 = vmax.f32 %v788, %v797
      %v814 = vmax.f32 %v789, %v798
      %v815 = vmax.f32 %v790, %v799
      %v816 = vmax.f32 %v791, %v800
      %v817 = vmax.f32 %v792, %v801
      %v818 = vmax.f32 %v793, %v802
      %v819 = vmax.f32 %v794, %v803
      %v820 = vmax.f32 %v804, %v812
      %v821 = vmax.f32 %v805, %v813
      %v822 = vmax.f32 %v806, %v814
      %v823 = vmax.f32 %v807, %v815
      %v824 = vmax.f32 %v808, %v816
      %v825 = vmax.f32 %v809, %v817
      %v826 = vmax.f32 %v810, %v818
      %v827 = vmax.f32 %v811, %v819
      %v828 = vsel %vm176, %v820, -inf
      %829 = vmax.xlane.f32.xlu0 %v828
      %v830 = vpop.xlane.xlu0 %829
      %v831 = vsel %vm176, %v821, -inf
      %832 = vmax.xlane.f32.xlu0 %v831
      %v833 = vpop.xlane.xlu0 %832
      %v834 = vsel %vm176, %v822, -inf
      %835 = vmax.xlane.f32.xlu0 %v834
      %v836 = vpop.xlane.xlu0 %835
      %v837 = vsel %vm176, %v823, -inf
      %838 = vmax.xlane.f32.xlu0 %v837
      %v839 = vpop.xlane.xlu0 %838
      %v840 = vsel %vm176, %v824, -inf
      %841 = vmax.xlane.f32.xlu0 %v840
      %v842 = vpop.xlane.xlu0 %841
      %v843 = vsel %vm176, %v825, -inf
      %844 = vmax.xlane.f32.xlu0 %v843
      %v845 = vpop.xlane.xlu0 %844
      %v846 = vsel %vm176, %v826, -inf
      %847 = vmax.xlane.f32.xlu0 %v846
      %v848 = vpop.xlane.xlu0 %847
      %v849 = vsel %vm176, %v827, -inf
      %850 = vmax.xlane.f32.xlu0 %v849
      %v851 = vpop.xlane.xlu0 %850
      %s852 = scalar_lea.vmem %s116, 448
      %853 = vst.msk [vmem:[%s852] sm:$0xff] %vm201, %v830
      %854 = vst.msk [vmem:[%s852 + $0x8] sm:$0xff] %vm201, %v833
      %855 = vst.msk [vmem:[%s852 + $0x10] sm:$0xff] %vm201, %v836
      %856 = vst.msk [vmem:[%s852 + $0x18] sm:$0xff] %vm201, %v839
      %857 = vst.msk [vmem:[%s852 + $0x20] sm:$0xff] %vm201, %v842
      %858 = vst.msk [vmem:[%s852 + $0x28] sm:$0xff] %vm201, %v845
      %859 = vst.msk [vmem:[%s852 + $0x30] sm:$0xff] %vm201, %v848
      %860 = vst.msk [vmem:[%s852 + $0x38] sm:$0xff] %vm201, %v851
      %p861 = scmp.lt.s32.totalorder %s12, 7
      %s862 = scalar_select %p861, %s12, 7
      %s863 = smul.addr %s862, 64
      %s864 = smul.addr %s863, 8
      %s865 = scalar_lea.vmem %s1, %s864
      // Predicated region
      $region25: #{down_forward.4} parent=23 // pred_check
        %p866 = pneg %p56
      $region26: #{down_forward.4} parent=23 // pred_check_branch
        %868 = sbr.rel (%p866) target = $region28
      $region27: #{down_forward.4} parent=23 // pred_region
        _
      $region28: #{down_forward.4} parent=23 // pred_fallthru
        _
    $region24: #{down_forward.4} parent=5 // pred_fallthru
      _
    %p869 = scmp.le.s32.totalorder 2, %s7
    // Predicated region
    $region29: #{down_forward.4} parent=5 // pred_check
      %p870 = pneg %p869
    $region30: #{down_forward.4} parent=5 // pred_check_branch
      %872 = sbr.rel (%p870) target = $region32
    $region31: #{down_forward.4} parent=5 // pred_region
      %s873 = ssub.s32 %s7, 2
      // Predicated region
      $region33: #{down_forward.4} parent=31 // pred_check
        %p874 = pneg %p62
      $region34: #{down_forward.4} parent=31 // pred_check_branch
        %876 = sbr.rel (%p874) target = $region36
      $region35: #{down_forward.4} parent=31 // pred_region
        %p877 = scmp.lt.s32.totalorder %s13, 7
        %s878 = scalar_select %p877, %s13, 7
        %s879 = smul.addr %s878, 64
        %s880 = smul.addr %s879, 8
        %s881 = scalar_lea.vmem %s1, %s880
      $region36: #{down_forward.4} parent=31 // pred_fallthru
        _
    $region32: #{down_forward.4} parent=5 // pred_fallthru
      _
  $region6: #{down_forward.4} parent=0 // loop_footer
    %s11 = sadd.s32 1, %s7
  $region7: #{down_forward.4} parent=0 // loop_footer_branch
    %6 = sbr.rel target = $region3
  $region8: #{down_forward.4} parent=0 // loop_exit
    _

// kernel: down_forward.7
$region0: #{down_forward.7}
  #allocation0 [shape = 'u32[]', space=smem, size = 0x4, offset = 0x4, fixed_abs, tag = 'smem constant byte address 0x4 - core index']
  #allocation1 [shape = 'u32[72,128]{1,0:T(1,128)}', space=vmem, size = 0x9000, scoped, tag = 'internal scratch']
  %s0 = inlined_call_operand.vmem [shape: f32[2,8,512], index: 0, kind: input, shape index: {}]
  %s1 = inlined_call_operand.vmem [shape: f32[8,1], index: 1, kind: input, shape index: {}]
  %s2 = inlined_call_operand.vmem [shape: f32[8,1], index: 2, kind: input, shape index: {}]
  %s3 = inlined_call_operand.vmem [shape: f32[2,8,512], index: 3, kind: output, shape index: {}]
  %s4 = sld [smem:[#allocation0]]
  $region45: #{down_forward.7} parent=0
    _
  %s6 = ssub.s32 1, %s4
  %s7 = scalar_select 0, %s6, %s4
  loop: start=0, step=1, limit=4
  $region2: #{down_forward.7} parent=0 // loop_pre_header
    _
  $region3: #{down_forward.7} parent=0 // loop_header
    %s9 = sphi 0, %s13
    %p10 = scmp.ge.s32.totalorder %s9, 4
    %s19 = sphi 0, %s21
    %s22 = sphi 0, %s19
    %s23 = sphi 0, %s22
    %s39 = sphi 0, %s23
    %s43 = sphi 0, %s43
    %s45 = sphi 0, %s43
    %s46 = sphi 0, %s45
    %s60 = sphi 0, %s46
    %s64 = sphi 0, %s64
    %s66 = sphi 0, %s64
    %s67 = sphi 0, %s66
    %s81 = sphi 0, %s67
    %s87 = sphi 0, %s89
    %s90 = sphi 0, %s87
    %s91 = sphi 0, %s90
    %s107 = sphi 0, %s91
  $region4: #{down_forward.7} parent=0 // loop_header_branch
    %12 = sbr.rel (%p10) target = $region8
  $region5: #{down_forward.7} parent=0 // loop_body
    %s14 = ssub.s32 %s9, 1
    %s15 = ssub.s32 %s9, 2
    %s16 = sadd.s32 %s9, 1
    %s17 = ssub.s32 %s9, %s16
    %p18 = scmp.eq.s32.totalorder %s17, 0
    %s20 = sadd.s32 %s19, 1
    %s21 = scalar_select %p18, %s19, %s20
    %p24 = pneg %p18
    %p25 = scmp.eq.s32.totalorder %s9, 1
    %p26 = por %p24, %p25
    %p27 = scmp.ne.s32.totalorder %s19, %s22
    %p28 = scmp.eq.s32.totalorder %s9, 0
    %p29 = por %p27, %p28
    %p30 = scmp.ne.s32.totalorder %s19, %s22
    %p31 = scmp.eq.s32.totalorder %s14, 1
    %p32 = por %p30, %p31
    %p33 = scmp.ne.s32.totalorder %s22, %s23
    %p34 = scmp.eq.s32.totalorder %s14, 0
    %p35 = por %p33, %p34
    %p36 = scmp.ne.s32.totalorder %s22, %s23
    %p37 = scmp.eq.s32.totalorder %s15, 1
    %p38 = por %p36, %p37
    %p40 = scmp.ne.s32.totalorder %s23, %s39
    %p41 = scmp.eq.s32.totalorder %s15, 0
    %p42 = por %p40, %p41
    %s44 = sadd.s32 %s43, 1
    %p47 = scmp.eq.s32.totalorder %s9, 1
    %p48 = scmp.ne.s32.totalorder %s43, %s45
    %p49 = scmp.eq.s32.totalorder %s9, 0
    %p50 = por %p48, %p49
    %p51 = scmp.ne.s32.totalorder %s43, %s45
    %p52 = scmp.eq.s32.totalorder %s14, 1
    %p53 = por %p51, %p52
    %p54 = scmp.ne.s32.totalorder %s45, %s46
    %p55 = scmp.eq.s32.totalorder %s14, 0
    %p56 = por %p54, %p55
    %p57 = scmp.ne.s32.totalorder %s45, %s46
    %p58 = scmp.eq.s32.totalorder %s15, 1
    %p59 = por %p57, %p58
    %p61 = scmp.ne.s32.totalorder %s46, %s60
    %p62 = scmp.eq.s32.totalorder %s15, 0
    %p63 = por %p61, %p62
    %s65 = sadd.s32 %s64, 1
    %p68 = scmp.eq.s32.totalorder %s9, 1
    %p69 = scmp.ne.s32.totalorder %s64, %s66
    %p70 = scmp.eq.s32.totalorder %s9, 0
    %p71 = por %p69, %p70
    %p72 = scmp.ne.s32.totalorder %s64, %s66
    %p73 = scmp.eq.s32.totalorder %s14, 1
    %p74 = por %p72, %p73
    %p75 = scmp.ne.s32.totalorder %s66, %s67
    %p76 = scmp.eq.s32.totalorder %s14, 0
    %p77 = por %p75, %p76
    %p78 = scmp.ne.s32.totalorder %s66, %s67
    %p79 = scmp.eq.s32.totalorder %s15, 1
    %p80 = por %p78, %p79
    %p82 = scmp.ne.s32.totalorder %s67, %s81
    %p83 = scmp.eq.s32.totalorder %s15, 0
    %p84 = por %p82, %p83
    %s85 = ssub.s32 %s9, %s16
    %p86 = scmp.eq.s32.totalorder %s85, 0
    %s88 = sadd.s32 %s87, 1
    %s89 = scalar_select %p86, %s87, %s88
    %p92 = pneg %p86
    %p93 = scmp.eq.s32.totalorder %s9, 1
    %p94 = por %p92, %p93
    %p95 = scmp.ne.s32.totalorder %s87, %s90
    %p96 = scmp.eq.s32.totalorder %s9, 0
    %p97 = por %p95, %p96
    %p98 = scmp.ne.s32.totalorder %s87, %s90
    %p99 = scmp.eq.s32.totalorder %s14, 1
    %p100 = por %p98, %p99
    %p101 = scmp.ne.s32.totalorder %s90, %s91
    %p102 = scmp.eq.s32.totalorder %s14, 0
    %p103 = por %p101, %p102
    %p104 = scmp.ne.s32.totalorder %s90, %s91
    %p105 = scmp.eq.s32.totalorder %s15, 1
    %p106 = por %p104, %p105
    %p108 = scmp.ne.s32.totalorder %s91, %s107
    %p109 = scmp.eq.s32.totalorder %s15, 0
    %p110 = por %p108, %p109
    %p111 = scmp.le.s32.totalorder 1, %s9
    %p112 = scmp.lt.s32.totalorder %s9, 3
    %p113 = pnand %p111, %p112
    %p114 = pneg %p113
    // Predicated region
    $region9: #{down_forward.7} parent=5 // pred_check
      _
    $region10: #{down_forward.7} parent=5 // pred_check_branch
      %116 = sbr.rel (%p113) target = $region12
    $region11: #{down_forward.7} parent=5 // pred_region
      %s117 = ssub.s32 %s9, 1
      // Predicated region
      $region13: #{down_forward.7} parent=11 // pred_check
        %p118 = pneg %p56
      $region14: #{down_forward.7} parent=11 // pred_check_branch
        %120 = sbr.rel (%p118) target = $region16
      $region15: #{down_forward.7} parent=11 // pred_region
        _
      $region16: #{down_forward.7} parent=11 // pred_fallthru
        _
      // Predicated region
      $region17: #{down_forward.7} parent=11 // pred_check
        %p121 = pneg %p77
      $region18: #{down_forward.7} parent=11 // pred_check_branch
        %123 = sbr.rel (%p121) target = $region20
      $region19: #{down_forward.7} parent=11 // pred_region
        _
      $region20: #{down_forward.7} parent=11 // pred_fallthru
        _
    $region12: #{down_forward.7} parent=5 // pred_fallthru
      _
    %p124 = scmp.lt.s32.totalorder %s9, 2
    // Predicated region
    $region21: #{down_forward.7} parent=5 // pred_check
      %p125 = pneg %p124
    $region22: #{down_forward.7} parent=5 // pred_check_branch
      %127 = sbr.rel (%p125) target = $region24
    $region23: #{down_forward.7} parent=5 // pred_region
      // Predicated region
      $region25: #{down_forward.7} parent=23 // pred_check
        %p128 = pneg %p29
      $region26: #{down_forward.7} parent=23 // pred_check_branch
        %130 = sbr.rel (%p128) target = $region28
      $region27: #{down_forward.7} parent=23 // pred_region
        %p131 = scmp.lt.s32.totalorder %s9, 1
        %s132 = scalar_select %p131, %s9, 1
        %s133 = smul.addr %s132, 4
        %s134 = smul.addr %s133, 8
        %s135 = scalar_lea.vmem %s0, %s134
      $region28: #{down_forward.7} parent=23 // pred_fallthru
        _
    $region24: #{down_forward.7} parent=5 // pred_fallthru
      _
    %p136 = scmp.le.s32.totalorder 1, %s9
    %p137 = scmp.lt.s32.totalorder %s9, 3
    %p138 = pnand %p136, %p137
    %p139 = pneg %p138
    // Predicated region
    $region29: #{down_forward.7} parent=5 // pred_check
      _
    $region30: #{down_forward.7} parent=5 // pred_check_branch
      %141 = sbr.rel (%p138) target = $region32
    $region31: #{down_forward.7} parent=5 // pred_region
      %s142 = ssub.s32 %s9, 1
      %p143 = scmp.lt.s32.totalorder %s14, 1
      %s144 = scalar_select %p143, %s14, 1
      %s145 = smul.addr %s144, 4
      %s146 = smul.addr %s145, 8
      %s147 = scalar_lea.vmem %s0, %s146
      %p148 = pneg %p35
      %p149 = pneg %p32
      %p150 = pneg %p56
      %p151 = pneg %p53
      %p152 = pneg %p77
      %p153 = pneg %p74
      %p154 = pneg %p103
      %p155 = pneg %p100
      %p156 = scmp.lt.s32.totalorder %s14, 1
      %s157 = scalar_select %p156, %s14, 1
      %s158 = smul.addr %s157, 4
      %s159 = smul.addr %s158, 8
      %s160 = scalar_lea.vmem %s3, %s159
      %p161 = scmp.lt.s32.totalorder %s14, 1
      %s162 = scalar_select %p161, %s14, 1
      %s163 = smul.addr %s162, 4
      %s164 = smul.addr %s163, 8
      %s165 = scalar_lea.vmem %s0, %s164
      %p166 = scmp.lt.s32.totalorder %s14, 1
      %s167 = scalar_select %p166, %s14, 1
      %s168 = smul.addr %s167, 4
      %s169 = smul.addr %s168, 8
      %s170 = scalar_lea.vmem %s3, %s169
      %v171 = vld [vmem:[%s165] sm:$0xff]
      %v172 = vld [vmem:[%s165 + $0x8] sm:$0xff]
      %v173 = vld [vmem:[%s165 + $0x10] sm:$0xff]
      %v174 = vld [vmem:[%s165 + $0x18] sm:$0xff]
      %v175 = vld [vmem:[%s1] sm:$0xff]
      %177 = vset.pattern.permute.xlu0 0
      %178 = vperm.xlu0 %177, %v175
      %v179 = vpop.permute.xlu0 %178
      %v181 = vmul.f32 %v171, %v179
      %v182 = vmul.f32 %v172, %v179
      %v183 = vmul.f32 %v173, %v179
      %v184 = vmul.f32 %v174, %v179
      %v185 = vld [vmem:[%s2] sm:$0xff]
      %187 = vset.pattern.permute.xlu0 0
      %188 = vperm.xlu0 %187, %v185
      %v189 = vpop.permute.xlu0 %188
      %v191 = vadd.f32 %v181, %v189
      %v192 = vadd.f32 %v182, %v189
      %v193 = vadd.f32 %v183, %v189
      %v194 = vadd.f32 %v184, %v189
      %v195 = vmax.f32 %v191, 0.0
      %v196 = vmax.f32 %v192, 0.0
      %v197 = vmax.f32 %v193, 0.0
      %v198 = vmax.f32 %v194, 0.0
      %199 = vst [vmem:[%s170] sm:$0xff] %v195
      %200 = vst [vmem:[%s170 + $0x8] sm:$0xff] %v196
      %201 = vst [vmem:[%s170 + $0x10] sm:$0xff] %v197
      %202 = vst [vmem:[%s170 + $0x18] sm:$0xff] %v198
      %p203 = scmp.lt.s32.totalorder %s14, 1
      %s204 = scalar_select %p203, %s14, 1
      %s205 = smul.addr %s204, 4
      %s206 = smul.addr %s205, 8
      %s207 = scalar_lea.vmem %s3, %s206
      // Predicated region
      $region33: #{down_forward.7} parent=31 // pred_check
        %p208 = pneg %p100
      $region34: #{down_forward.7} parent=31 // pred_check_branch
        %210 = sbr.rel (%p208) target = $region36
      $region35: #{down_forward.7} parent=31 // pred_region
        _
      $region36: #{down_forward.7} parent=31 // pred_fallthru
        _
    $region32: #{down_forward.7} parent=5 // pred_fallthru
      _
    %p211 = scmp.le.s32.totalorder 2, %s9
    // Predicated region
    $region37: #{down_forward.7} parent=5 // pred_check
      %p212 = pneg %p211
    $region38: #{down_forward.7} parent=5 // pred_check_branch
      %214 = sbr.rel (%p212) target = $region40
    $region39: #{down_forward.7} parent=5 // pred_region
      %s215 = ssub.s32 %s9, 2
      // Predicated region
      $region41: #{down_forward.7} parent=39 // pred_check
        %p216 = pneg %p106
      $region42: #{down_forward.7} parent=39 // pred_check_branch
        %218 = sbr.rel (%p216) target = $region44
      $region43: #{down_forward.7} parent=39 // pred_region
        %p219 = scmp.lt.s32.totalorder %s15, 1
        %s220 = scalar_select %p219, %s15, 1
        %s221 = smul.addr %s220, 4
        %s222 = smul.addr %s221, 8
        %s223 = scalar_lea.vmem %s3, %s222
      $region44: #{down_forward.7} parent=39 // pred_fallthru
        _
    $region40: #{down_forward.7} parent=5 // pred_fallthru
      _
  $region6: #{down_forward.7} parent=0 // loop_footer
    %s13 = sadd.s32 1, %s9
  $region7: #{down_forward.7} parent=0 // loop_footer_branch
    %8 = sbr.rel target = $region3
  $region8: #{down_forward.7} parent=0 // loop_exit
    _

// kernel: down_forward.5
$region0: #{down_forward.5}
  #allocation0 [shape = 'u32[]', space=smem, size = 0x4, offset = 0x4, fixed_abs, tag = 'smem constant byte address 0x4 - core index']
  #allocation1 [shape = 'u32[72,128]{1,0:T(1,128)}', space=vmem, size = 0x9000, scoped, tag = 'internal scratch']
  #allocation2 [shape = 'f32[8,768]{1,0:T(8,128)}', space=vmem, size = 0x6000, scoped, tag = 'scratch operand']
  #allocation3 [shape = 'f32[216,512]{1,0:T(8,128)}', space=vmem, size = 0x6c000, scoped, tag = 'scratch operand']
  %s0 = inlined_call_operand.vmem [shape: f32[2,8,768], index: 0, kind: input, shape index: {}]
  %s1 = inlined_call_operand.vmem [shape: f32[8,216], index: 1, kind: input, shape index: {}]
  %s2 = inlined_call_operand.vmem [shape: f32[8,1], index: 2, kind: input, shape index: {}, may-alias: {2,3}]
  %s3 = inlined_call_operand.vmem [shape: f32[8,1], index: 3, kind: input, shape index: {}, may-alias: {2,3}]
  %s4 = inlined_call_operand.vmem [shape: f32[1,768], index: 4, kind: input, shape index: {}]
  %s5 = inlined_call_operand.vmem [shape: f32[9,512], index: 5, kind: input, shape index: {}]
  %s6 = inlined_call_operand.vmem [shape: f32[2,8,768], index: 6, kind: output, shape index: {0}]
  %s7 = inlined_call_operand.vmem [shape: f32[2,8,1], index: 7, kind: output, shape index: {1}]
  %s8 = inlined_call_operand.vmem [shape: f32[2,8,1], index: 8, kind: output, shape index: {2}]
  %9 = xla_tuple %s6, %s7, %s8
  %s10 = sld [smem:[#allocation0]]
  $region73: #{down_forward.5} parent=0
    _
  %s12 = ssub.s32 1, %s10
  %s13 = scalar_select 0, %s12, %s10
  loop: start=0, step=1, limit=4
  $region2: #{down_forward.5} parent=0 // loop_pre_header
    _
  $region3: #{down_forward.5} parent=0 // loop_header
    %s15 = sphi 0, %s19
    %p16 = scmp.ge.s32.totalorder %s15, 4
    %s25 = sphi 0, %s27
    %s28 = sphi 0, %s25
    %s29 = sphi 0, %s28
    %s45 = sphi 0, %s29
    %s49 = sphi 0, %s49
    %s51 = sphi 0, %s49
    %s52 = sphi 0, %s51
    %s66 = sphi 0, %s52
    %s70 = sphi 0, %s70
    %s72 = sphi 0, %s70
    %s73 = sphi 0, %s72
    %s87 = sphi 0, %s73
    %s91 = sphi 0, %s91
    %s93 = sphi 0, %s91
    %s94 = sphi 0, %s93
    %s108 = sphi 0, %s94
    %s112 = sphi 0, %s112
    %s114 = sphi 0, %s112
    %s115 = sphi 0, %s114
    %s129 = sphi 0, %s115
    %s133 = sphi 0, %s133
    %s135 = sphi 0, %s133
    %s136 = sphi 0, %s135
    %s150 = sphi 0, %s136
    %s156 = sphi 0, %s158
    %s159 = sphi 0, %s156
    %s160 = sphi 0, %s159
    %s176 = sphi 0, %s160
    %s182 = sphi 0, %s184
    %s185 = sphi 0, %s182
    %s186 = sphi 0, %s185
    %s202 = sphi 0, %s186
    %s208 = sphi 0, %s210
    %s211 = sphi 0, %s208
    %s212 = sphi 0, %s211
    %s228 = sphi 0, %s212
  $region4: #{down_forward.5} parent=0 // loop_header_branch
    %18 = sbr.rel (%p16) target = $region8
  $region5: #{down_forward.5} parent=0 // loop_body
    %s20 = ssub.s32 %s15, 1
    %s21 = ssub.s32 %s15, 2
    %s22 = sadd.s32 %s15, 1
    %s23 = ssub.s32 %s15, %s22
    %p24 = scmp.eq.s32.totalorder %s23, 0
    %s26 = sadd.s32 %s25, 1
    %s27 = scalar_select %p24, %s25, %s26
    %p30 = pneg %p24
    %p31 = scmp.eq.s32.totalorder %s15, 1
    %p32 = por %p30, %p31
    %p33 = scmp.ne.s32.totalorder %s25, %s28
    %p34 = scmp.eq.s32.totalorder %s15, 0
    %p35 = por %p33, %p34
    %p36 = scmp.ne.s32.totalorder %s25, %s28
    %p37 = scmp.eq.s32.totalorder %s20, 1
    %p38 = por %p36, %p37
    %p39 = scmp.ne.s32.totalorder %s28, %s29
    %p40 = scmp.eq.s32.totalorder %s20, 0
    %p41 = por %p39, %p40
    %p42 = scmp.ne.s32.totalorder %s28, %s29
    %p43 = scmp.eq.s32.totalorder %s21, 1
    %p44 = por %p42, %p43
    %p46 = scmp.ne.s32.totalorder %s29, %s45
    %p47 = scmp.eq.s32.totalorder %s21, 0
    %p48 = por %p46, %p47
    %s50 = sadd.s32 %s49, 1
    %p53 = scmp.eq.s32.totalorder %s15, 1
    %p54 = scmp.ne.s32.totalorder %s49, %s51
    %p55 = scmp.eq.s32.totalorder %s15, 0
    %p56 = por %p54, %p55
    %p57 = scmp.ne.s32.totalorder %s49, %s51
    %p58 = scmp.eq.s32.totalorder %s20, 1
    %p59 = por %p57, %p58
    %p60 = scmp.ne.s32.totalorder %s51, %s52
    %p61 = scmp.eq.s32.totalorder %s20, 0
    %p62 = por %p60, %p61
    %p63 = scmp.ne.s32.totalorder %s51, %s52
    %p64 = scmp.eq.s32.totalorder %s21, 1
    %p65 = por %p63, %p64
    %p67 = scmp.ne.s32.totalorder %s52, %s66
    %p68 = scmp.eq.s32.totalorder %s21, 0
    %p69 = por %p67, %p68
    %s71 = sadd.s32 %s70, 1
    %p74 = scmp.eq.s32.totalorder %s15, 1
    %p75 = scmp.ne.s32.totalorder %s70, %s72
    %p76 = scmp.eq.s32.totalorder %s15, 0
    %p77 = por %p75, %p76
    %p78 = scmp.ne.s32.totalorder %s70, %s72
    %p79 = scmp.eq.s32.totalorder %s20, 1
    %p80 = por %p78, %p79
    %p81 = scmp.ne.s32.totalorder %s72, %s73
    %p82 = scmp.eq.s32.totalorder %s20, 0
    %p83 = por %p81, %p82
    %p84 = scmp.ne.s32.totalorder %s72, %s73
    %p85 = scmp.eq.s32.totalorder %s21, 1
    %p86 = por %p84, %p85
    %p88 = scmp.ne.s32.totalorder %s73, %s87
    %p89 = scmp.eq.s32.totalorder %s21, 0
    %p90 = por %p88, %p89
    %s92 = sadd.s32 %s91, 1
    %p95 = scmp.eq.s32.totalorder %s15, 1
    %p96 = scmp.ne.s32.totalorder %s91, %s93
    %p97 = scmp.eq.s32.totalorder %s15, 0
    %p98 = por %p96, %p97
    %p99 = scmp.ne.s32.totalorder %s91, %s93
    %p100 = scmp.eq.s32.totalorder %s20, 1
    %p101 = por %p99, %p100
    %p102 = scmp.ne.s32.totalorder %s93, %s94
    %p103 = scmp.eq.s32.totalorder %s20, 0
    %p104 = por %p102, %p103
    %p105 = scmp.ne.s32.totalorder %s93, %s94
    %p106 = scmp.eq.s32.totalorder %s21, 1
    %p107 = por %p105, %p106
    %p109 = scmp.ne.s32.totalorder %s94, %s108
    %p110 = scmp.eq.s32.totalorder %s21, 0
    %p111 = por %p109, %p110
    %s113 = sadd.s32 %s112, 1
    %p116 = scmp.eq.s32.totalorder %s15, 1
    %p117 = scmp.ne.s32.totalorder %s112, %s114
    %p118 = scmp.eq.s32.totalorder %s15, 0
    %p119 = por %p117, %p118
    %p120 = scmp.ne.s32.totalorder %s112, %s114
    %p121 = scmp.eq.s32.totalorder %s20, 1
    %p122 = por %p120, %p121
    %p123 = scmp.ne.s32.totalorder %s114, %s115
    %p124 = scmp.eq.s32.totalorder %s20, 0
    %p125 = por %p123, %p124
    %p126 = scmp.ne.s32.totalorder %s114, %s115
    %p127 = scmp.eq.s32.totalorder %s21, 1
    %p128 = por %p126, %p127
    %p130 = scmp.ne.s32.totalorder %s115, %s129
    %p131 = scmp.eq.s32.totalorder %s21, 0
    %p132 = por %p130, %p131
    %s134 = sadd.s32 %s133, 1
    %p137 = scmp.eq.s32.totalorder %s15, 1
    %p138 = scmp.ne.s32.totalorder %s133, %s135
    %p139 = scmp.eq.s32.totalorder %s15, 0
    %p140 = por %p138, %p139
    %p141 = scmp.ne.s32.totalorder %s133, %s135
    %p142 = scmp.eq.s32.totalorder %s20, 1
    %p143 = por %p141, %p142
    %p144 = scmp.ne.s32.totalorder %s135, %s136
    %p145 = scmp.eq.s32.totalorder %s20, 0
    %p146 = por %p144, %p145
    %p147 = scmp.ne.s32.totalorder %s135, %s136
    %p148 = scmp.eq.s32.totalorder %s21, 1
    %p149 = por %p147, %p148
    %p151 = scmp.ne.s32.totalorder %s136, %s150
    %p152 = scmp.eq.s32.totalorder %s21, 0
    %p153 = por %p151, %p152
    %s154 = ssub.s32 %s15, %s22
    %p155 = scmp.eq.s32.totalorder %s154, 0
    %s157 = sadd.s32 %s156, 1
    %s158 = scalar_select %p155, %s156, %s157
    %p161 = pneg %p155
    %p162 = scmp.eq.s32.totalorder %s15, 1
    %p163 = por %p161, %p162
    %p164 = scmp.ne.s32.totalorder %s156, %s159
    %p165 = scmp.eq.s32.totalorder %s15, 0
    %p166 = por %p164, %p165
    %p167 = scmp.ne.s32.totalorder %s156, %s159
    %p168 = scmp.eq.s32.totalorder %s20, 1
    %p169 = por %p167, %p168
    %p170 = scmp.ne.s32.totalorder %s159, %s160
    %p171 = scmp.eq.s32.totalorder %s20, 0
    %p172 = por %p170, %p171
    %p173 = scmp.ne.s32.totalorder %s159, %s160
    %p174 = scmp.eq.s32.totalorder %s21, 1
    %p175 = por %p173, %p174
    %p177 = scmp.ne.s32.totalorder %s160, %s176
    %p178 = scmp.eq.s32.totalorder %s21, 0
    %p179 = por %p177, %p178
    %s180 = ssub.s32 %s15, %s22
    %p181 = scmp.eq.s32.totalorder %s180, 0
    %s183 = sadd.s32 %s182, 1
    %s184 = scalar_select %p181, %s182, %s183
    %p187 = pneg %p181
    %p188 = scmp.eq.s32.totalorder %s15, 1
    %p189 = por %p187, %p188
    %p190 = scmp.ne.s32.totalorder %s182, %s185
    %p191 = scmp.eq.s32.totalorder %s15, 0
    %p192 = por %p190, %p191
    %p193 = scmp.ne.s32.totalorder %s182, %s185
    %p194 = scmp.eq.s32.totalorder %s20, 1
    %p195 = por %p193, %p194
    %p196 = scmp.ne.s32.totalorder %s185, %s186
    %p197 = scmp.eq.s32.totalorder %s20, 0
    %p198 = por %p196, %p197
    %p199 = scmp.ne.s32.totalorder %s185, %s186
    %p200 = scmp.eq.s32.totalorder %s21, 1
    %p201 = por %p199, %p200
    %p203 = scmp.ne.s32.totalorder %s186, %s202
    %p204 = scmp.eq.s32.totalorder %s21, 0
    %p205 = por %p203, %p204
    %s206 = ssub.s32 %s15, %s22
    %p207 = scmp.eq.s32.totalorder %s206, 0
    %s209 = sadd.s32 %s208, 1
    %s210 = scalar_select %p207, %s208, %s209
    %p213 = pneg %p207
    %p214 = scmp.eq.s32.totalorder %s15, 1
    %p215 = por %p213, %p214
    %p216 = scmp.ne.s32.totalorder %s208, %s211
    %p217 = scmp.eq.s32.totalorder %s15, 0
    %p218 = por %p216, %p217
    %p219 = scmp.ne.s32.totalorder %s208, %s211
    %p220 = scmp.eq.s32.totalorder %s20, 1
    %p221 = por %p219, %p220
    %p222 = scmp.ne.s32.totalorder %s211, %s212
    %p223 = scmp.eq.s32.totalorder %s20, 0
    %p224 = por %p222, %p223
    %p225 = scmp.ne.s32.totalorder %s211, %s212
    %p226 = scmp.eq.s32.totalorder %s21, 1
    %p227 = por %p225, %p226
    %p229 = scmp.ne.s32.totalorder %s212, %s228
    %p230 = scmp.eq.s32.totalorder %s21, 0
    %p231 = por %p229, %p230
    %p232 = scmp.le.s32.totalorder 1, %s15
    %p233 = scmp.lt.s32.totalorder %s15, 3
    %p234 = pnand %p232, %p233
    %p235 = pneg %p234
    // Predicated region
    $region9: #{down_forward.5} parent=5 // pred_check
      _
    $region10: #{down_forward.5} parent=5 // pred_check_branch
      %237 = sbr.rel (%p234) target = $region12
    $region11: #{down_forward.5} parent=5 // pred_region
      %s238 = ssub.s32 %s15, 1
      // Predicated region
      $region13: #{down_forward.5} parent=11 // pred_check
        %p239 = pneg %p62
      $region14: #{down_forward.5} parent=11 // pred_check_branch
        %241 = sbr.rel (%p239) target = $region16
      $region15: #{down_forward.5} parent=11 // pred_region
        _
      $region16: #{down_forward.5} parent=11 // pred_fallthru
        _
      // Predicated region
      $region17: #{down_forward.5} parent=11 // pred_check
        %p242 = pneg %p83
      $region18: #{down_forward.5} parent=11 // pred_check_branch
        %244 = sbr.rel (%p242) target = $region20
      $region19: #{down_forward.5} parent=11 // pred_region
        _
      $region20: #{down_forward.5} parent=11 // pred_fallthru
        _
      // Predicated region
      $region21: #{down_forward.5} parent=11 // pred_check
        %p245 = pneg %p104
      $region22: #{down_forward.5} parent=11 // pred_check_branch
        %247 = sbr.rel (%p245) target = $region24
      $region23: #{down_forward.5} parent=11 // pred_region
        _
      $region24: #{down_forward.5} parent=11 // pred_fallthru
        _
      // Predicated region
      $region25: #{down_forward.5} parent=11 // pred_check
        %p248 = pneg %p125
      $region26: #{down_forward.5} parent=11 // pred_check_branch
        %250 = sbr.rel (%p248) target = $region28
      $region27: #{down_forward.5} parent=11 // pred_region
        _
      $region28: #{down_forward.5} parent=11 // pred_fallthru
        _
      // Predicated region
      $region29: #{down_forward.5} parent=11 // pred_check
        %p251 = pneg %p146
      $region30: #{down_forward.5} parent=11 // pred_check_branch
        %253 = sbr.rel (%p251) target = $region32
      $region31: #{down_forward.5} parent=11 // pred_region
        _
      $region32: #{down_forward.5} parent=11 // pred_fallthru
        _
    $region12: #{down_forward.5} parent=5 // pred_fallthru
      _
    %p254 = scmp.lt.s32.totalorder %s15, 2
    // Predicated region
    $region33: #{down_forward.5} parent=5 // pred_check
      %p255 = pneg %p254
    $region34: #{down_forward.5} parent=5 // pred_check_branch
      %257 = sbr.rel (%p255) target = $region36
    $region35: #{down_forward.5} parent=5 // pred_region
      // Predicated region
      $region37: #{down_forward.5} parent=35 // pred_check
        %p258 = pneg %p35
      $region38: #{down_forward.5} parent=35 // pred_check_branch
        %260 = sbr.rel (%p258) target = $region40
      $region39: #{down_forward.5} parent=35 // pred_region
        %p261 = scmp.lt.s32.totalorder %s15, 1
        %s262 = scalar_select %p261, %s15, 1
        %s263 = smul.addr %s262, 6
        %s264 = smul.addr %s263, 8
        %s265 = scalar_lea.vmem %s0, %s264
      $region40: #{down_forward.5} parent=35 // pred_fallthru
        _
    $region36: #{down_forward.5} parent=5 // pred_fallthru
      _
    %p266 = scmp.le.s32.totalorder 1, %s15
    %p267 = scmp.lt.s32.totalorder %s15, 3
    %p268 = pnand %p266, %p267
    %p269 = pneg %p268
    // Predicated region
    $region41: #{down_forward.5} parent=5 // pred_check
      _
    $region42: #{down_forward.5} parent=5 // pred_check_branch
      %271 = sbr.rel (%p268) target = $region44
    $region43: #{down_forward.5} parent=5 // pred_region
      %s272 = ssub.s32 %s15, 1
      %p273 = scmp.lt.s32.totalorder %s20, 1
      %s274 = scalar_select %p273, %s20, 1
      %s275 = smul.addr %s274, 6
      %s276 = smul.addr %s275, 8
      %s277 = scalar_lea.vmem %s0, %s276
      %p278 = pneg %p41
      %p279 = pneg %p38
      %p280 = pneg %p62
      %p281 = pneg %p59
      %p282 = pneg %p83
      %p283 = pneg %p80
      %p284 = pneg %p104
      %p285 = pneg %p101
      %p286 = pneg %p125
      %p287 = pneg %p122
      %p288 = pneg %p146
      %p289 = pneg %p143
      %p290 = pneg %p172
      %p291 = pneg %p169
      %p292 = scmp.lt.s32.totalorder %s20, 1
      %s293 = scalar_select %p292, %s20, 1
      %s294 = smul.addr %s293, 6
      %s295 = smul.addr %s294, 8
      %s296 = scalar_lea.vmem %s6, %s295
      %p297 = pneg %p198
      %p298 = pneg %p195
      %p299 = scmp.lt.s32.totalorder %s20, 1
      %s300 = scalar_select %p299, %s20, 1
      %s301 = smul.addr %s300, 8
      %s302 = scalar_lea.vmem %s7, %s301
      %p303 = pneg %p224
      %p304 = pneg %p221
      %p305 = scmp.lt.s32.totalorder %s20, 1
      %s306 = scalar_select %p305, %s20, 1
      %s307 = smul.addr %s306, 8
      %s308 = scalar_lea.vmem %s8, %s307
      %p309 = scmp.lt.s32.totalorder %s20, 1
      %s310 = scalar_select %p309, %s20, 1
      %s311 = smul.addr %s310, 6
      %s312 = smul.addr %s311, 8
      %s313 = scalar_lea.vmem %s0, %s312
      %p314 = scmp.lt.s32.totalorder %s20, 1
      %s315 = scalar_select %p314, %s20, 1
      %s316 = smul.addr %s315, 6
      %s317 = smul.addr %s316, 8
      %s318 = scalar_lea.vmem %s6, %s317
      %p319 = scmp.lt.s32.totalorder %s20, 1
      %s320 = scalar_select %p319, %s20, 1
      %s321 = smul.addr %s320, 8
      %s322 = scalar_lea.vmem %s7, %s321
      %p323 = scmp.lt.s32.totalorder %s20, 1
      %s324 = scalar_select %p323, %s20, 1
      %s325 = smul.addr %s324, 8
      %s326 = scalar_lea.vmem %s8, %s325
      %v327 = vld [vmem:[%s313] sm:$0xff]
      %v328 = vld [vmem:[%s313 + $0x8] sm:$0xff]
      %v329 = vld [vmem:[%s313 + $0x10] sm:$0xff]
      %v330 = vld [vmem:[%s313 + $0x18] sm:$0xff]
      %v331 = vld [vmem:[%s313 + $0x20] sm:$0xff]
      %v332 = vld [vmem:[%s313 + $0x28] sm:$0xff]
      %v333 = vld [vmem:[%s4] sm:$0x3f]
      %v335 = vperm.slane %v333, 0
      %v336 = vperm.slane %v333, 1
      %v337 = vperm.slane %v333, 2
      %v338 = vperm.slane %v333, 3
      %v339 = vperm.slane %v333, 4
      %v340 = vperm.slane %v333, 5
      %v347 = vmul.f32 %v327, %v335
      %v348 = vmul.f32 %v328, %v336
      %v349 = vmul.f32 %v329, %v337
      %v350 = vmul.f32 %v330, %v338
      %v351 = vmul.f32 %v331, %v339
      %v352 = vmul.f32 %v332, %v340
      %353 = vst [vmem:[#allocation2] sm:$0xff] %v347
      %354 = vst [vmem:[#allocation2 + $0x8] sm:$0xff] %v348
      %355 = vst [vmem:[#allocation2 + $0x10] sm:$0xff] %v349
      %356 = vst [vmem:[#allocation2 + $0x18] sm:$0xff] %v350
      %357 = vst [vmem:[#allocation2 + $0x20] sm:$0xff] %v351
      %358 = vst [vmem:[#allocation2 + $0x28] sm:$0xff] %v352
      %v359 = vld [vmem:[#allocation2] sm:$0xff]
      %v360 = vld [vmem:[#allocation2 + $0x8] sm:$0xff]
      %v361 = vld [vmem:[#allocation2 + $0x10] sm:$0xff]
      %v362 = vld [vmem:[#allocation2 + $0x18] sm:$0xff]
      %v363 = vld [vmem:[#allocation2 + $0x20] sm:$0xff]
      %v364 = vld [vmem:[%s5] ss:$8 sm:$0xf]
      %v366 = vperm.slane %v364, 0
      %v367 = vperm.slane %v364, 1
      %v368 = vperm.slane %v364, 2
      %v369 = vperm.slane %v364, 3
      %370 = vrot.lane.b32.xlu0 %v366, 55
      %v371 = vpop.permute.xlu0 %370
      %372 = vrot.lane.b32.xlu0 %v367, 55
      %v373 = vpop.permute.xlu0 %372
      %374 = vrot.lane.b32.xlu0 %v368, 55
      %v375 = vpop.permute.xlu0 %374
      %376 = vrot.lane.b32.xlu0 %v369, 55
      %v377 = vpop.permute.xlu0 %376
      %vm378 = vcmask 449536
      %v379 = vsel %vm378, %v371, %v373
      %v380 = vsel %vm378, %v373, %v375
      %v381 = vsel %vm378, %v375, %v377
      %v387 = vmul.f32 %v359, %v371
      %v388 = vmul.f32 %v360, %v379
      %v389 = vmul.f32 %v361, %v380
      %v390 = vmul.f32 %v362, %v381
      %v391 = vmul.f32 %v363, %v377
      %397 = vrot.lane.b32.xlu0 %v387, 73
      %v398 = vpop.permute.xlu0 %397
      %399 = vrot.lane.b32.xlu0 %v388, 73
      %v400 = vpop.permute.xlu0 %399
      %401 = vrot.lane.b32.xlu0 %v389, 73
      %v402 = vpop.permute.xlu0 %401
      %403 = vrot.lane.b32.xlu0 %v390, 73
      %v404 = vpop.permute.xlu0 %403
      %405 = vrot.lane.b32.xlu0 %v391, 73
      %v406 = vpop.permute.xlu0 %405
      %vm407 = vcmask 596992
      %v408 = vsel %vm407, %v398, %v400
      %v409 = vsel %vm407, %v400, %v402
      %v410 = vsel %vm407, %v402, %v404
      %v411 = vsel %vm407, %v404, %v406
      %416 = vst [vmem:[#allocation3] sm:$0xff] %v408
      %417 = vst [vmem:[#allocation3 + $0x8] sm:$0xff] %v409
      %418 = vst [vmem:[#allocation3 + $0x10] sm:$0xff] %v410
      %419 = vst [vmem:[#allocation3 + $0x18] sm:$0xff] %v411
      %v420 = vld [vmem:[#allocation2] sm:$0xff]
      %v421 = vld [vmem:[#allocation2 + $0x8] sm:$0xff]
      %v422 = vld [vmem:[#allocation2 + $0x10] sm:$0xff]
      %v423 = vld [vmem:[#allocation2 + $0x18] sm:$0xff]
      %v424 = vld [vmem:[#allocation2 + $0x20] sm:$0xff]
      %s425 = scalar_lea.vmem %s5, 1
      %v426 = vld [vmem:[%s425] ss:$8 sm:$0xf]
      %v428 = vperm.slane %v426, 0
      %v429 = vperm.slane %v426, 1
      %v430 = vperm.slane %v426, 2
      %v431 = vperm.slane %v426, 3
      %432 = vrot.lane.b32.xlu0 %v428, 56
      %v433 = vpop.permute.xlu0 %432
      %434 = vrot.lane.b32.xlu0 %v429, 56
      %v435 = vpop.permute.xlu0 %434
      %436 = vrot.lane.b32.xlu0 %v430, 56
      %v437 = vpop.permute.xlu0 %436
      %438 = vrot.lane.b32.xlu0 %v431, 56
      %v439 = vpop.permute.xlu0 %438
      %vm440 = vcmask 457728
      %v441 = vsel %vm440, %v433, %v435
      %v442 = vsel %vm440, %v435, %v437
      %v443 = vsel %vm440, %v437, %v439
      %v449 = vmul.f32 %v420, %v433
      %v450 = vmul.f32 %v421, %v441
      %v451 = vmul.f32 %v422, %v442
      %v452 = vmul.f32 %v423, %v443
      %v453 = vmul.f32 %v424, %v439
      %459 = vrot.lane.b32.xlu0 %v449, 72
      %v460 = vpop.permute.xlu0 %459
      %461 = vrot.lane.b32.xlu0 %v450, 72
      %v462 = vpop.permute.xlu0 %461
      %463 = vrot.lane.b32.xlu0 %v451, 72
      %v464 = vpop.permute.xlu0 %463
      %465 = vrot.lane.b32.xlu0 %v452, 72
      %v466 = vpop.permute.xlu0 %465
      %467 = vrot.lane.b32.xlu0 %v453, 72
      %v468 = vpop.permute.xlu0 %467
      %vm469 = vcmask 588800
      %v470 = vsel %vm469, %v460, %v462
      %v471 = vsel %vm469, %v462, %v464
      %v472 = vsel %vm469, %v464, %v466
      %v473 = vsel %vm469, %v466, %v468
      %478 = vst [vmem:[#allocation3 + $0x20] sm:$0xff] %v470
      %479 = vst [vmem:[#allocation3 + $0x28] sm:$0xff] %v471
      %480 = vst [vmem:[#allocation3 + $0x30] sm:$0xff] %v472
      %481 = vst [vmem:[#allocation3 + $0x38] sm:$0xff] %v473
      %v482 = vld [vmem:[#allocation2] sm:$0xff]
      %v483 = vld [vmem:[#allocation2 + $0x8] sm:$0xff]
      %v484 = vld [vmem:[#allocation2 + $0x10] sm:$0xff]
      %v485 = vld [vmem:[#allocation2 + $0x18] sm:$0xff]
      %v486 = vld [vmem:[#allocation2 + $0x20] sm:$0xff]
      %s487 = scalar_lea.vmem %s5, 2
      %v488 = vld [vmem:[%s487] ss:$8 sm:$0xf]
      %v490 = vperm.slane %v488, 0
      %v491 = vperm.slane %v488, 1
      %v492 = vperm.slane %v488, 2
      %v493 = vperm.slane %v488, 3
      %494 = vrot.lane.b32.xlu0 %v490, 57
      %v495 = vpop.permute.xlu0 %494
      %496 = vrot.lane.b32.xlu0 %v491, 57
      %v497 = vpop.permute.xlu0 %496
      %498 = vrot.lane.b32.xlu0 %v492, 57
      %v499 = vpop.permute.xlu0 %498
      %500 = vrot.lane.b32.xlu0 %v493, 57
      %v501 = vpop.permute.xlu0 %500
      %vm502 = vcmask 465920
      %v503 = vsel %vm502, %v495, %v497
      %v504 = vsel %vm502, %v497, %v499
      %v505 = vsel %vm502, %v499, %v501
      %v511 = vmul.f32 %v482, %v495
      %v512 = vmul.f32 %v483, %v503
      %v513 = vmul.f32 %v484, %v504
      %v514 = vmul.f32 %v485, %v505
      %v515 = vmul.f32 %v486, %v501
      %521 = vrot.lane.b32.xlu0 %v511, 71
      %v522 = vpop.permute.xlu0 %521
      %523 = vrot.lane.b32.xlu0 %v512, 71
      %v524 = vpop.permute.xlu0 %523
      %525 = vrot.lane.b32.xlu0 %v513, 71
      %v526 = vpop.permute.xlu0 %525
      %527 = vrot.lane.b32.xlu0 %v514, 71
      %v528 = vpop.permute.xlu0 %527
      %529 = vrot.lane.b32.xlu0 %v515, 71
      %v530 = vpop.permute.xlu0 %529
      %vm531 = vcmask 580608
      %v532 = vsel %vm531, %v522, %v524
      %v533 = vsel %vm531, %v524, %v526
      %v534 = vsel %vm531, %v526, %v528
      %v535 = vsel %vm531, %v528, %v530
      %540 = vst [vmem:[#allocation3 + $0x40] sm:$0xff] %v532
      %541 = vst [vmem:[#allocation3 + $0x48] sm:$0xff] %v533
      %542 = vst [vmem:[#allocation3 + $0x50] sm:$0xff] %v534
      %543 = vst [vmem:[#allocation3 + $0x58] sm:$0xff] %v535
      %v544 = vld [vmem:[#allocation2] sm:$0xff]
      %v545 = vld [vmem:[#allocation2 + $0x8] sm:$0xff]
      %v546 = vld [vmem:[#allocation2 + $0x10] sm:$0xff]
      %v547 = vld [vmem:[#allocation2 + $0x18] sm:$0xff]
      %v548 = vld [vmem:[#allocation2 + $0x20] sm:$0xff]
      %s549 = scalar_lea.vmem %s5, 3
      %v550 = vld [vmem:[%s549] ss:$8 sm:$0xf]
      %v552 = vperm.slane %v550, 0
      %v553 = vperm.slane %v550, 1
      %v554 = vperm.slane %v550, 2
      %v555 = vperm.slane %v550, 3
      %556 = vrot.lane.b32.xlu0 %v552, 63
      %v557 = vpop.permute.xlu0 %556
      %558 = vrot.lane.b32.xlu0 %v553, 63
      %v559 = vpop.permute.xlu0 %558
      %560 = vrot.lane.b32.xlu0 %v554, 63
      %v561 = vpop.permute.xlu0 %560
      %562 = vrot.lane.b32.xlu0 %v555, 63
      %v563 = vpop.permute.xlu0 %562
      %vm564 = vcmask 515072
      %v565 = vsel %vm564, %v557, %v559
      %v566 = vsel %vm564, %v559, %v561
      %v567 = vsel %vm564, %v561, %v563
      %v573 = vmul.f32 %v544, %v557
      %v574 = vmul.f32 %v545, %v565
      %v575 = vmul.f32 %v546, %v566
      %v576 = vmul.f32 %v547, %v567
      %v577 = vmul.f32 %v548, %v563
      %583 = vrot.lane.b32.xlu0 %v573, 65
      %v584 = vpop.permute.xlu0 %583
      %585 = vrot.lane.b32.xlu0 %v574, 65
      %v586 = vpop.permute.xlu0 %585
      %587 = vrot.lane.b32.xlu0 %v575, 65
      %v588 = vpop.permute.xlu0 %587
      %589 = vrot.lane.b32.xlu0 %v576, 65
      %v590 = vpop.permute.xlu0 %589
      %591 = vrot.lane.b32.xlu0 %v577, 65
      %v592 = vpop.permute.xlu0 %591
      %vm593 = vcmask 531456
      %v594 = vsel %vm593, %v584, %v586
      %v595 = vsel %vm593, %v586, %v588
      %v596 = vsel %vm593, %v588, %v590
      %v597 = vsel %vm593, %v590, %v592
      %602 = vst [vmem:[#allocation3 + $0x60] sm:$0xff] %v594
      %603 = vst [vmem:[#allocation3 + $0x68] sm:$0xff] %v595
      %604 = vst [vmem:[#allocation3 + $0x70] sm:$0xff] %v596
      %605 = vst [vmem:[#allocation3 + $0x78] sm:$0xff] %v597
      %v606 = vld [vmem:[#allocation2] sm:$0xff]
      %v607 = vld [vmem:[#allocation2 + $0x8] sm:$0xff]
      %v608 = vld [vmem:[#allocation2 + $0x10] sm:$0xff]
      %v609 = vld [vmem:[#allocation2 + $0x18] sm:$0xff]
      %v610 = vld [vmem:[#allocation2 + $0x20] sm:$0xff]
      %s611 = scalar_lea.vmem %s5, 4
      %v612 = vld [vmem:[%s611] ss:$8 sm:$0xf]
      %v614 = vperm.slane %v612, 0
      %v615 = vperm.slane %v612, 1
      %v616 = vperm.slane %v612, 2
      %v617 = vperm.slane %v612, 3
      %618 = vrot.lane.b32.xlu0 %v614, 64
      %v619 = vpop.permute.xlu0 %618
      %620 = vrot.lane.b32.xlu0 %v615, 64
      %v621 = vpop.permute.xlu0 %620
      %622 = vrot.lane.b32.xlu0 %v616, 64
      %v623 = vpop.permute.xlu0 %622
      %624 = vrot.lane.b32.xlu0 %v617, 64
      %v625 = vpop.permute.xlu0 %624
      %vm626 = vcmask 523264
      %v627 = vsel %vm626, %v619, %v621
      %v628 = vsel %vm626, %v621, %v623
      %v629 = vsel %vm626, %v623, %v625
      %v635 = vmul.f32 %v606, %v619
      %v636 = vmul.f32 %v607, %v627
      %v637 = vmul.f32 %v608, %v628
      %v638 = vmul.f32 %v609, %v629
      %v639 = vmul.f32 %v610, %v625
      %645 = vrot.lane.b32.xlu0 %v635, 64
      %v646 = vpop.permute.xlu0 %645
      %647 = vrot.lane.b32.xlu0 %v636, 64
      %v648 = vpop.permute.xlu0 %647
      %649 = vrot.lane.b32.xlu0 %v637, 64
      %v650 = vpop.permute.xlu0 %649
      %651 = vrot.lane.b32.xlu0 %v638, 64
      %v652 = vpop.permute.xlu0 %651
      %653 = vrot.lane.b32.xlu0 %v639, 64
      %v654 = vpop.permute.xlu0 %653
      %v655 = vsel %vm626, %v646, %v648
      %v656 = vsel %vm626, %v648, %v650
      %v657 = vsel %vm626, %v650, %v652
      %v658 = vsel %vm626, %v652, %v654
      %663 = vst [vmem:[#allocation3 + $0x80] sm:$0xff] %v655
      %664 = vst [vmem:[#allocation3 + $0x88] sm:$0xff] %v656
      %665 = vst [vmem:[#allocation3 + $0x90] sm:$0xff] %v657
      %666 = vst [vmem:[#allocation3 + $0x98] sm:$0xff] %v658
      %v667 = vld [vmem:[#allocation2] sm:$0xff]
      %v668 = vld [vmem:[#allocation2 + $0x8] sm:$0xff]
      %v669 = vld [vmem:[#allocation2 + $0x10] sm:$0xff]
      %v670 = vld [vmem:[#allocation2 + $0x18] sm:$0xff]
      %v671 = vld [vmem:[#allocation2 + $0x20] sm:$0xff]
      %s672 = scalar_lea.vmem %s5, 5
      %v673 = vld [vmem:[%s672] ss:$8 sm:$0xf]
      %v675 = vperm.slane %v673, 0
      %v676 = vperm.slane %v673, 1
      %v677 = vperm.slane %v673, 2
      %v678 = vperm.slane %v673, 3
      %679 = vrot.lane.b32.xlu0 %v675, 65
      %v680 = vpop.permute.xlu0 %679
      %681 = vrot.lane.b32.xlu0 %v676, 65
      %v682 = vpop.permute.xlu0 %681
      %683 = vrot.lane.b32.xlu0 %v677, 65
      %v684 = vpop.permute.xlu0 %683
      %685 = vrot.lane.b32.xlu0 %v678, 65
      %v686 = vpop.permute.xlu0 %685
      %v687 = vsel %vm593, %v680, %v682
      %v688 = vsel %vm593, %v682, %v684
      %v689 = vsel %vm593, %v684, %v686
      %v695 = vmul.f32 %v667, %v680
      %v696 = vmul.f32 %v668, %v687
      %v697 = vmul.f32 %v669, %v688
      %v698 = vmul.f32 %v670, %v689
      %v699 = vmul.f32 %v671, %v686
      %705 = vrot.lane.b32.xlu0 %v695, 63
      %v706 = vpop.permute.xlu0 %705
      %707 = vrot.lane.b32.xlu0 %v696, 63
      %v708 = vpop.permute.xlu0 %707
      %709 = vrot.lane.b32.xlu0 %v697, 63
      %v710 = vpop.permute.xlu0 %709
      %711 = vrot.lane.b32.xlu0 %v698, 63
      %v712 = vpop.permute.xlu0 %711
      %713 = vrot.lane.b32.xlu0 %v699, 63
      %v714 = vpop.permute.xlu0 %713
      %v715 = vsel %vm564, %v706, %v708
      %v716 = vsel %vm564, %v708, %v710
      %v717 = vsel %vm564, %v710, %v712
      %v718 = vsel %vm564, %v712, %v714
      %723 = vst [vmem:[#allocation3 + $0xa0] sm:$0xff] %v715
      %724 = vst [vmem:[#allocation3 + $0xa8] sm:$0xff] %v716
      %725 = vst [vmem:[#allocation3 + $0xb0] sm:$0xff] %v717
      %726 = vst [vmem:[#allocation3 + $0xb8] sm:$0xff] %v718
      %v727 = vld [vmem:[#allocation2] sm:$0xff]
      %v728 = vld [vmem:[#allocation2 + $0x8] sm:$0xff]
      %v729 = vld [vmem:[#allocation2 + $0x10] sm:$0xff]
      %v730 = vld [vmem:[#allocation2 + $0x18] sm:$0xff]
      %v731 = vld [vmem:[#allocation2 + $0x20] sm:$0xff]
      %s732 = scalar_lea.vmem %s5, 6
      %v733 = vld [vmem:[%s732] ss:$8 sm:$0xf]
      %v735 = vperm.slane %v733, 0
      %v736 = vperm.slane %v733, 1
      %v737 = vperm.slane %v733, 2
      %v738 = vperm.slane %v733, 3
      %739 = vrot.lane.b32.xlu0 %v735, 71
      %v740 = vpop.permute.xlu0 %739
      %741 = vrot.lane.b32.xlu0 %v736, 71
      %v742 = vpop.permute.xlu0 %741
      %743 = vrot.lane.b32.xlu0 %v737, 71
      %v744 = vpop.permute.xlu0 %743
      %745 = vrot.lane.b32.xlu0 %v738, 71
      %v746 = vpop.permute.xlu0 %745
      %v747 = vsel %vm531, %v740, %v742
      %v748 = vsel %vm531, %v742, %v744
      %v749 = vsel %vm531, %v744, %v746
      %v755 = vmul.f32 %v727, %v740
      %v756 = vmul.f32 %v728, %v747
      %v757 = vmul.f32 %v729, %v748
      %v758 = vmul.f32 %v730, %v749
      %v759 = vmul.f32 %v731, %v746
      %765 = vrot.lane.b32.xlu0 %v755, 57
      %v766 = vpop.permute.xlu0 %765
      %767 = vrot.lane.b32.xlu0 %v756, 57
      %v768 = vpop.permute.xlu0 %767
      %769 = vrot.lane.b32.xlu0 %v757, 57
      %v770 = vpop.permute.xlu0 %769
      %771 = vrot.lane.b32.xlu0 %v758, 57
      %v772 = vpop.permute.xlu0 %771
      %773 = vrot.lane.b32.xlu0 %v759, 57
      %v774 = vpop.permute.xlu0 %773
      %v775 = vsel %vm502, %v766, %v768
      %v776 = vsel %vm502, %v768, %v770
      %v777 = vsel %vm502, %v770, %v772
      %v778 = vsel %vm502, %v772, %v774
      %783 = vst [vmem:[#allocation3 + $0xc0] sm:$0xff] %v775
      %784 = vst [vmem:[#allocation3 + $0xc8] sm:$0xff] %v776
      %785 = vst [vmem:[#allocation3 + $0xd0] sm:$0xff] %v777
      %786 = vst [vmem:[#allocation3 + $0xd8] sm:$0xff] %v778
      %v787 = vld [vmem:[#allocation2] sm:$0xff]
      %v788 = vld [vmem:[#allocation2 + $0x8] sm:$0xff]
      %v789 = vld [vmem:[#allocation2 + $0x10] sm:$0xff]
      %v790 = vld [vmem:[#allocation2 + $0x18] sm:$0xff]
      %v791 = vld [vmem:[#allocation2 + $0x20] sm:$0xff]
      %s792 = scalar_lea.vmem %s5, 7
      %v793 = vld [vmem:[%s792] ss:$8 sm:$0xf]
      %v795 = vperm.slane %v793, 0
      %v796 = vperm.slane %v793, 1
      %v797 = vperm.slane %v793, 2
      %v798 = vperm.slane %v793, 3
      %799 = vrot.lane.b32.xlu0 %v795, 72
      %v800 = vpop.permute.xlu0 %799
      %801 = vrot.lane.b32.xlu0 %v796, 72
      %v802 = vpop.permute.xlu0 %801
      %803 = vrot.lane.b32.xlu0 %v797, 72
      %v804 = vpop.permute.xlu0 %803
      %805 = vrot.lane.b32.xlu0 %v798, 72
      %v806 = vpop.permute.xlu0 %805
      %v807 = vsel %vm469, %v800, %v802
      %v808 = vsel %vm469, %v802, %v804
      %v809 = vsel %vm469, %v804, %v806
      %v815 = vmul.f32 %v787, %v800
      %v816 = vmul.f32 %v788, %v807
      %v817 = vmul.f32 %v789, %v808
      %v818 = vmul.f32 %v790, %v809
      %v819 = vmul.f32 %v791, %v806
      %825 = vrot.lane.b32.xlu0 %v815, 56
      %v826 = vpop.permute.xlu0 %825
      %827 = vrot.lane.b32.xlu0 %v816, 56
      %v828 = vpop.permute.xlu0 %827
      %829 = vrot.lane.b32.xlu0 %v817, 56
      %v830 = vpop.permute.xlu0 %829
      %831 = vrot.lane.b32.xlu0 %v818, 56
      %v832 = vpop.permute.xlu0 %831
      %833 = vrot.lane.b32.xlu0 %v819, 56
      %v834 = vpop.permute.xlu0 %833
      %v835 = vsel %vm440, %v826, %v828
      %v836 = vsel %vm440, %v828, %v830
      %v837 = vsel %vm440, %v830, %v832
      %v838 = vsel %vm440, %v832, %v834
      %843 = vst [vmem:[#allocation3 + $0xe0] sm:$0xff] %v835
      %844 = vst [vmem:[#allocation3 + $0xe8] sm:$0xff] %v836
      %845 = vst [vmem:[#allocation3 + $0xf0] sm:$0xff] %v837
      %846 = vst [vmem:[#allocation3 + $0xf8] sm:$0xff] %v838
      %v847 = vld [vmem:[#allocation2] sm:$0xff]
      %v848 = vld [vmem:[#allocation2 + $0x8] sm:$0xff]
      %v849 = vld [vmem:[#allocation2 + $0x10] sm:$0xff]
      %v850 = vld [vmem:[#allocation2 + $0x18] sm:$0xff]
      %v851 = vld [vmem:[#allocation2 + $0x20] sm:$0xff]
      %s852 = scalar_lea.vmem %s5, 32
      %v853 = vld [vmem:[%s852] ss:$8 sm:$0xf]
      %v855 = vperm.slane %v853, 0
      %v856 = vperm.slane %v853, 1
      %v857 = vperm.slane %v853, 2
      %v858 = vperm.slane %v853, 3
      %859 = vrot.lane.b32.xlu0 %v855, 73
      %v860 = vpop.permute.xlu0 %859
      %861 = vrot.lane.b32.xlu0 %v856, 73
      %v862 = vpop.permute.xlu0 %861
      %863 = vrot.lane.b32.xlu0 %v857, 73
      %v864 = vpop.permute.xlu0 %863
      %865 = vrot.lane.b32.xlu0 %v858, 73
      %v866 = vpop.permute.xlu0 %865
      %v867 = vsel %vm407, %v860, %v862
      %v868 = vsel %vm407, %v862, %v864
      %v869 = vsel %vm407, %v864, %v866
      %v875 = vmul.f32 %v847, %v860
      %v876 = vmul.f32 %v848, %v867
      %v877 = vmul.f32 %v849, %v868
      %v878 = vmul.f32 %v850, %v869
      %v879 = vmul.f32 %v851, %v866
      %885 = vrot.lane.b32.xlu0 %v875, 55
      %v886 = vpop.permute.xlu0 %885
      %887 = vrot.lane.b32.xlu0 %v876, 55
      %v888 = vpop.permute.xlu0 %887
      %889 = vrot.lane.b32.xlu0 %v877, 55
      %v890 = vpop.permute.xlu0 %889
      %891 = vrot.lane.b32.xlu0 %v878, 55
      %v892 = vpop.permute.xlu0 %891
      %893 = vrot.lane.b32.xlu0 %v879, 55
      %v894 = vpop.permute.xlu0 %893
      %v895 = vsel %vm378, %v886, %v888
      %v896 = vsel %vm378, %v888, %v890
      %v897 = vsel %vm378, %v890, %v892
      %v898 = vsel %vm378, %v892, %v894
      %903 = vst [vmem:[#allocation3 + $0x100] sm:$0xff] %v895
      %904 = vst [vmem:[#allocation3 + $0x108] sm:$0xff] %v896
      %905 = vst [vmem:[#allocation3 + $0x110] sm:$0xff] %v897
      %906 = vst [vmem:[#allocation3 + $0x118] sm:$0xff] %v898
      %v907 = vld [vmem:[#allocation2] sm:$0xff]
      %v908 = vld [vmem:[#allocation2 + $0x8] sm:$0xff]
      %v909 = vld [vmem:[#allocation2 + $0x10] sm:$0xff]
      %v910 = vld [vmem:[#allocation2 + $0x18] sm:$0xff]
      %v911 = vld [vmem:[#allocation2 + $0x20] sm:$0xff]
      %v912 = vld [vmem:[%s5] ss:$8 sm:$0xf]
      %v914 = vperm.slane %v912, 0
      %v915 = vperm.slane %v912, 1
      %v916 = vperm.slane %v912, 2
      %v917 = vperm.slane %v912, 3
      %918 = vrot.lane.b32.xlu0 %v914, 119
      %v919 = vpop.permute.xlu0 %918
      %920 = vrot.lane.b32.xlu0 %v915, 119
      %v921 = vpop.permute.xlu0 %920
      %922 = vrot.lane.b32.xlu0 %v916, 119
      %v923 = vpop.permute.xlu0 %922
      %924 = vrot.lane.b32.xlu0 %v917, 119
      %v925 = vpop.permute.xlu0 %924
      %vm926 = vcmask 973824
      %v927 = vsel %vm926, %v919, %v921
      %v928 = vsel %vm926, %v921, %v923
      %v929 = vsel %vm926, %v923, %v925
      %v935 = vmul.f32 %v907, %v919
      %v936 = vmul.f32 %v908, %v927
      %v937 = vmul.f32 %v909, %v928
      %v938 = vmul.f32 %v910, %v929
      %v939 = vmul.f32 %v911, %v925
      %945 = vrot.lane.b32.xlu0 %v935, 9
      %v946 = vpop.permute.xlu0 %945
      %947 = vrot.lane.b32.xlu0 %v936, 9
      %v948 = vpop.permute.xlu0 %947
      %949 = vrot.lane.b32.xlu0 %v937, 9
      %v950 = vpop.permute.xlu0 %949
      %951 = vrot.lane.b32.xlu0 %v938, 9
      %v952 = vpop.permute.xlu0 %951
      %953 = vrot.lane.b32.xlu0 %v939, 9
      %v954 = vpop.permute.xlu0 %953
      %vm955 = vcmask 72704
      %v956 = vsel %vm955, %v946, %v948
      %v957 = vsel %vm955, %v948, %v950
      %v958 = vsel %vm955, %v950, %v952
      %v959 = vsel %vm955, %v952, %v954
      %964 = vst [vmem:[#allocation3 + $0x120] sm:$0xff] %v956
      %965 = vst [vmem:[#allocation3 + $0x128] sm:$0xff] %v957
      %966 = vst [vmem:[#allocation3 + $0x130] sm:$0xff] %v958
      %967 = vst [vmem:[#allocation3 + $0x138] sm:$0xff] %v959
      %v968 = vld [vmem:[#allocation2] sm:$0xff]
      %v969 = vld [vmem:[#allocation2 + $0x8] sm:$0xff]
      %v970 = vld [vmem:[#allocation2 + $0x10] sm:$0xff]
      %v971 = vld [vmem:[#allocation2 + $0x18] sm:$0xff]
      %v972 = vld [vmem:[#allocation2 + $0x20] sm:$0xff]
      %v973 = vld [vmem:[%s425] ss:$8 sm:$0xf]
      %v975 = vperm.slane %v973, 0
      %v976 = vperm.slane %v973, 1
      %v977 = vperm.slane %v973, 2
      %v978 = vperm.slane %v973, 3
      %979 = vrot.lane.b32.xlu0 %v975, 120
      %v980 = vpop.permute.xlu0 %979
      %981 = vrot.lane.b32.xlu0 %v976, 120
      %v982 = vpop.permute.xlu0 %981
      %983 = vrot.lane.b32.xlu0 %v977, 120
      %v984 = vpop.permute.xlu0 %983
      %985 = vrot.lane.b32.xlu0 %v978, 120
      %v986 = vpop.permute.xlu0 %985
      %vm987 = vcmask 982016
      %v988 = vsel %vm987, %v980, %v982
      %v989 = vsel %vm987, %v982, %v984
      %v990 = vsel %vm987, %v984, %v986
      %v996 = vmul.f32 %v968, %v980
      %v997 = vmul.f32 %v969, %v988
      %v998 = vmul.f32 %v970, %v989
      %v999 = vmul.f32 %v971, %v990
      %v1000 = vmul.f32 %v972, %v986
      %1006 = vrot.lane.b32.xlu0 %v996, 8
      %v1007 = vpop.permute.xlu0 %1006
      %1008 = vrot.lane.b32.xlu0 %v997, 8
      %v1009 = vpop.permute.xlu0 %1008
      %1010 = vrot.lane.b32.xlu0 %v998, 8
      %v1011 = vpop.permute.xlu0 %1010
      %1012 = vrot.lane.b32.xlu0 %v999, 8
      %v1013 = vpop.permute.xlu0 %1012
      %1014 = vrot.lane.b32.xlu0 %v1000, 8
      %v1015 = vpop.permute.xlu0 %1014
      %vm1016 = vcmask 64512
      %v1017 = vsel %vm1016, %v1007, %v1009
      %v1018 = vsel %vm1016, %v1009, %v1011
      %v1019 = vsel %vm1016, %v1011, %v1013
      %v1020 = vsel %vm1016, %v1013, %v1015
      %1025 = vst [vmem:[#allocation3 + $0x140] sm:$0xff] %v1017
      %1026 = vst [vmem:[#allocation3 + $0x148] sm:$0xff] %v1018
      %1027 = vst [vmem:[#allocation3 + $0x150] sm:$0xff] %v1019
      %1028 = vst [vmem:[#allocation3 + $0x158] sm:$0xff] %v1020
      %v1029 = vld [vmem:[#allocation2] sm:$0xff]
      %v1030 = vld [vmem:[#allocation2 + $0x8] sm:$0xff]
      %v1031 = vld [vmem:[#allocation2 + $0x10] sm:$0xff]
      %v1032 = vld [vmem:[#allocation2 + $0x18] sm:$0xff]
      %v1033 = vld [vmem:[#allocation2 + $0x20] sm:$0xff]
      %v1034 = vld [vmem:[%s487] ss:$8 sm:$0xf]
      %v1036 = vperm.slane %v1034, 0
      %v1037 = vperm.slane %v1034, 1
      %v1038 = vperm.slane %v1034, 2
      %v1039 = vperm.slane %v1034, 3
      %1040 = vrot.lane.b32.xlu0 %v1036, 121
      %v1041 = vpop.permute.xlu0 %1040
      %1042 = vrot.lane.b32.xlu0 %v1037, 121
      %v1043 = vpop.permute.xlu0 %1042
      %1044 = vrot.lane.b32.xlu0 %v1038, 121
      %v1045 = vpop.permute.xlu0 %1044
      %1046 = vrot.lane.b32.xlu0 %v1039, 121
      %v1047 = vpop.permute.xlu0 %1046
      %vm1048 = vcmask 990208
      %v1049 = vsel %vm1048, %v1041, %v1043
      %v1050 = vsel %vm1048, %v1043, %v1045
      %v1051 = vsel %vm1048, %v1045, %v1047
      %v1057 = vmul.f32 %v1029, %v1041
      %v1058 = vmul.f32 %v1030, %v1049
      %v1059 = vmul.f32 %v1031, %v1050
      %v1060 = vmul.f32 %v1032, %v1051
      %v1061 = vmul.f32 %v1033, %v1047
      %1067 = vrot.lane.b32.xlu0 %v1057, 7
      %v1068 = vpop.permute.xlu0 %1067
      %1069 = vrot.lane.b32.xlu0 %v1058, 7
      %v1070 = vpop.permute.xlu0 %1069
      %1071 = vrot.lane.b32.xlu0 %v1059, 7
      %v1072 = vpop.permute.xlu0 %1071
      %1073 = vrot.lane.b32.xlu0 %v1060, 7
      %v1074 = vpop.permute.xlu0 %1073
      %1075 = vrot.lane.b32.xlu0 %v1061, 7
      %v1076 = vpop.permute.xlu0 %1075
      %vm1077 = vcmask 56320
      %v1078 = vsel %vm1077, %v1068, %v1070
      %v1079 = vsel %vm1077, %v1070, %v1072
      %v1080 = vsel %vm1077, %v1072, %v1074
      %v1081 = vsel %vm1077, %v1074, %v1076
      %1086 = vst [vmem:[#allocation3 + $0x160] sm:$0xff] %v1078
      %1087 = vst [vmem:[#allocation3 + $0x168] sm:$0xff] %v1079
      %1088 = vst [vmem:[#allocation3 + $0x170] sm:$0xff] %v1080
      %1089 = vst [vmem:[#allocation3 + $0x178] sm:$0xff] %v1081
      %v1090 = vld [vmem:[#allocation2] sm:$0xff]
      %v1091 = vld [vmem:[#allocation2 + $0x8] sm:$0xff]
      %v1092 = vld [vmem:[#allocation2 + $0x10] sm:$0xff]
      %v1093 = vld [vmem:[#allocation2 + $0x18] sm:$0xff]
      %v1094 = vld [vmem:[#allocation2 + $0x20] sm:$0xff]
      %v1095 = vld [vmem:[%s549] ss:$8 sm:$0xf]
      %v1097 = vperm.slane %v1095, 0
      %v1098 = vperm.slane %v1095, 1
      %v1099 = vperm.slane %v1095, 2
      %v1100 = vperm.slane %v1095, 3
      %1101 = vrot.lane.b32.xlu0 %v1097, 127
      %v1102 = vpop.permute.xlu0 %1101
      %1103 = vrot.lane.b32.xlu0 %v1098, 127
      %v1104 = vpop.permute.xlu0 %1103
      %1105 = vrot.lane.b32.xlu0 %v1099, 127
      %v1106 = vpop.permute.xlu0 %1105
      %1107 = vrot.lane.b32.xlu0 %v1100, 127
      %v1108 = vpop.permute.xlu0 %1107
      %vm1109 = vcmask 1039360
      %v1110 = vsel %vm1109, %v1102, %v1104
      %v1111 = vsel %vm1109, %v1104, %v1106
      %v1112 = vsel %vm1109, %v1106, %v1108
      %v1118 = vmul.f32 %v1090, %v1102
      %v1119 = vmul.f32 %v1091, %v1110
      %v1120 = vmul.f32 %v1092, %v1111
      %v1121 = vmul.f32 %v1093, %v1112
      %v1122 = vmul.f32 %v1094, %v1108
      %1128 = vrot.lane.b32.xlu0 %v1118, 1
      %v1129 = vpop.permute.xlu0 %1128
      %1130 = vrot.lane.b32.xlu0 %v1119, 1
      %v1131 = vpop.permute.xlu0 %1130
      %1132 = vrot.lane.b32.xlu0 %v1120, 1
      %v1133 = vpop.permute.xlu0 %1132
      %1134 = vrot.lane.b32.xlu0 %v1121, 1
      %v1135 = vpop.permute.xlu0 %1134
      %1136 = vrot.lane.b32.xlu0 %v1122, 1
      %v1137 = vpop.permute.xlu0 %1136
      %vm1138 = vcmask 7168
      %v1139 = vsel %vm1138, %v1129, %v1131
      %v1140 = vsel %vm1138, %v1131, %v1133
      %v1141 = vsel %vm1138, %v1133, %v1135
      %v1142 = vsel %vm1138, %v1135, %v1137
      %1147 = vst [vmem:[#allocation3 + $0x180] sm:$0xff] %v1139
      %1148 = vst [vmem:[#allocation3 + $0x188] sm:$0xff] %v1140
      %1149 = vst [vmem:[#allocation3 + $0x190] sm:$0xff] %v1141
      %1150 = vst [vmem:[#allocation3 + $0x198] sm:$0xff] %v1142
      %v1151 = vld [vmem:[#allocation2 + $0x8] sm:$0xff]
      %v1152 = vld [vmem:[#allocation2 + $0x10] sm:$0xff]
      %v1153 = vld [vmem:[#allocation2 + $0x18] sm:$0xff]
      %v1154 = vld [vmem:[#allocation2 + $0x20] sm:$0xff]
      %v1155 = vld [vmem:[%s611] ss:$8 sm:$0xf]
      %v1157 = vperm.slane %v1155, 0
      %v1158 = vperm.slane %v1155, 1
      %v1159 = vperm.slane %v1155, 2
      %v1160 = vperm.slane %v1155, 3
      %v1165 = vmul.f32 %v1151, %v1157
      %v1166 = vmul.f32 %v1152, %v1158
      %v1167 = vmul.f32 %v1153, %v1159
      %v1168 = vmul.f32 %v1154, %v1160
      %1169 = vst [vmem:[#allocation3 + $0x1a0] sm:$0xff] %v1165
      %1170 = vst [vmem:[#allocation3 + $0x1a8] sm:$0xff] %v1166
      %1171 = vst [vmem:[#allocation3 + $0x1b0] sm:$0xff] %v1167
      %1172 = vst [vmem:[#allocation3 + $0x1b8] sm:$0xff] %v1168
      %v1173 = vld [vmem:[#allocation2 + $0x8] sm:$0xff]
      %v1174 = vld [vmem:[#allocation2 + $0x10] sm:$0xff]
      %v1175 = vld [vmem:[#allocation2 + $0x18] sm:$0xff]
      %v1176 = vld [vmem:[#allocation2 + $0x20] sm:$0xff]
      %v1177 = vld [vmem:[#allocation2 + $0x28] sm:$0xff]
      %v1178 = vld [vmem:[%s672] ss:$8 sm:$0xf]
      %v1180 = vperm.slane %v1178, 0
      %v1181 = vperm.slane %v1178, 1
      %v1182 = vperm.slane %v1178, 2
      %v1183 = vperm.slane %v1178, 3
      %1184 = vrot.lane.b32.xlu0 %v1180, 1
      %v1185 = vpop.permute.xlu0 %1184
      %1186 = vrot.lane.b32.xlu0 %v1181, 1
      %v1187 = vpop.permute.xlu0 %1186
      %1188 = vrot.lane.b32.xlu0 %v1182, 1
      %v1189 = vpop.permute.xlu0 %1188
      %1190 = vrot.lane.b32.xlu0 %v1183, 1
      %v1191 = vpop.permute.xlu0 %1190
      %v1192 = vsel %vm1138, %v1185, %v1187
      %v1193 = vsel %vm1138, %v1187, %v1189
      %v1194 = vsel %vm1138, %v1189, %v1191
      %v1200 = vmul.f32 %v1173, %v1185
      %v1201 = vmul.f32 %v1174, %v1192
      %v1202 = vmul.f32 %v1175, %v1193
      %v1203 = vmul.f32 %v1176, %v1194
      %v1204 = vmul.f32 %v1177, %v1191
      %1210 = vrot.lane.b32.xlu0 %v1200, 127
      %v1211 = vpop.permute.xlu0 %1210
      %1212 = vrot.lane.b32.xlu0 %v1201, 127
      %v1213 = vpop.permute.xlu0 %1212
      %1214 = vrot.lane.b32.xlu0 %v1202, 127
      %v1215 = vpop.permute.xlu0 %1214
      %1216 = vrot.lane.b32.xlu0 %v1203, 127
      %v1217 = vpop.permute.xlu0 %1216
      %1218 = vrot.lane.b32.xlu0 %v1204, 127
      %v1219 = vpop.permute.xlu0 %1218
      %v1220 = vsel %vm1109, %v1211, %v1213
      %v1221 = vsel %vm1109, %v1213, %v1215
      %v1222 = vsel %vm1109, %v1215, %v1217
      %v1223 = vsel %vm1109, %v1217, %v1219
      %1228 = vst [vmem:[#allocation3 + $0x1c0] sm:$0xff] %v1220
      %1229 = vst [vmem:[#allocation3 + $0x1c8] sm:$0xff] %v1221
      %1230 = vst [vmem:[#allocation3 + $0x1d0] sm:$0xff] %v1222
      %1231 = vst [vmem:[#allocation3 + $0x1d8] sm:$0xff] %v1223
      %v1232 = vld [vmem:[#allocation2 + $0x8] sm:$0xff]
      %v1233 = vld [vmem:[#allocation2 + $0x10] sm:$0xff]
      %v1234 = vld [vmem:[#allocation2 + $0x18] sm:$0xff]
      %v1235 = vld [vmem:[#allocation2 + $0x20] sm:$0xff]
      %v1236 = vld [vmem:[#allocation2 + $0x28] sm:$0xff]
      %v1237 = vld [vmem:[%s732] ss:$8 sm:$0xf]
      %v1239 = vperm.slane %v1237, 0
      %v1240 = vperm.slane %v1237, 1
      %v1241 = vperm.slane %v1237, 2
      %v1242 = vperm.slane %v1237, 3
      %1243 = vrot.lane.b32.xlu0 %v1239, 7
      %v1244 = vpop.permute.xlu0 %1243
      %1245 = vrot.lane.b32.xlu0 %v1240, 7
      %v1246 = vpop.permute.xlu0 %1245
      %1247 = vrot.lane.b32.xlu0 %v1241, 7
      %v1248 = vpop.permute.xlu0 %1247
      %1249 = vrot.lane.b32.xlu0 %v1242, 7
      %v1250 = vpop.permute.xlu0 %1249
      %v1251 = vsel %vm1077, %v1244, %v1246
      %v1252 = vsel %vm1077, %v1246, %v1248
      %v1253 = vsel %vm1077, %v1248, %v1250
      %v1259 = vmul.f32 %v1232, %v1244
      %v1260 = vmul.f32 %v1233, %v1251
      %v1261 = vmul.f32 %v1234, %v1252
      %v1262 = vmul.f32 %v1235, %v1253
      %v1263 = vmul.f32 %v1236, %v1250
      %1269 = vrot.lane.b32.xlu0 %v1259, 121
      %v1270 = vpop.permute.xlu0 %1269
      %1271 = vrot.lane.b32.xlu0 %v1260, 121
      %v1272 = vpop.permute.xlu0 %1271
      %1273 = vrot.lane.b32.xlu0 %v1261, 121
      %v1274 = vpop.permute.xlu0 %1273
      %1275 = vrot.lane.b32.xlu0 %v1262, 121
      %v1276 = vpop.permute.xlu0 %1275
      %1277 = vrot.lane.b32.xlu0 %v1263, 121
      %v1278 = vpop.permute.xlu0 %1277
      %v1279 = vsel %vm1048, %v1270, %v1272
      %v1280 = vsel %vm1048, %v1272, %v1274
      %v1281 = vsel %vm1048, %v1274, %v1276
      %v1282 = vsel %vm1048, %v1276, %v1278
      %1287 = vst [vmem:[#allocation3 + $0x1e0] sm:$0xff] %v1279
      %1288 = vst [vmem:[#allocation3 + $0x1e8] sm:$0xff] %v1280
      %1289 = vst [vmem:[#allocation3 + $0x1f0] sm:$0xff] %v1281
      %1290 = vst [vmem:[#allocation3 + $0x1f8] sm:$0xff] %v1282
      %v1291 = vld [vmem:[#allocation2 + $0x8] sm:$0xff]
      %v1292 = vld [vmem:[#allocation2 + $0x10] sm:$0xff]
      %v1293 = vld [vmem:[#allocation2 + $0x18] sm:$0xff]
      %v1294 = vld [vmem:[#allocation2 + $0x20] sm:$0xff]
      %v1295 = vld [vmem:[#allocation2 + $0x28] sm:$0xff]
      %v1296 = vld [vmem:[%s792] ss:$8 sm:$0xf]
      %v1298 = vperm.slane %v1296, 0
      %v1299 = vperm.slane %v1296, 1
      %v1300 = vperm.slane %v1296, 2
      %v1301 = vperm.slane %v1296, 3
      %1302 = vrot.lane.b32.xlu0 %v1298, 8
      %v1303 = vpop.permute.xlu0 %1302
      %1304 = vrot.lane.b32.xlu0 %v1299, 8
      %v1305 = vpop.permute.xlu0 %1304
      %1306 = vrot.lane.b32.xlu0 %v1300, 8
      %v1307 = vpop.permute.xlu0 %1306
      %1308 = vrot.lane.b32.xlu0 %v1301, 8
      %v1309 = vpop.permute.xlu0 %1308
      %v1310 = vsel %vm1016, %v1303, %v1305
      %v1311 = vsel %vm1016, %v1305, %v1307
      %v1312 = vsel %vm1016, %v1307, %v1309
      %v1318 = vmul.f32 %v1291, %v1303
      %v1319 = vmul.f32 %v1292, %v1310
      %v1320 = vmul.f32 %v1293, %v1311
      %v1321 = vmul.f32 %v1294, %v1312
      %v1322 = vmul.f32 %v1295, %v1309
      %1328 = vrot.lane.b32.xlu0 %v1318, 120
      %v1329 = vpop.permute.xlu0 %1328
      %1330 = vrot.lane.b32.xlu0 %v1319, 120
      %v1331 = vpop.permute.xlu0 %1330
      %1332 = vrot.lane.b32.xlu0 %v1320, 120
      %v1333 = vpop.permute.xlu0 %1332
      %1334 = vrot.lane.b32.xlu0 %v1321, 120
      %v1335 = vpop.permute.xlu0 %1334
      %1336 = vrot.lane.b32.xlu0 %v1322, 120
      %v1337 = vpop.permute.xlu0 %1336
      %v1338 = vsel %vm987, %v1329, %v1331
      %v1339 = vsel %vm987, %v1331, %v1333
      %v1340 = vsel %vm987, %v1333, %v1335
      %v1341 = vsel %vm987, %v1335, %v1337
      %1346 = vst [vmem:[#allocation3 + $0x200] sm:$0xff] %v1338
      %1347 = vst [vmem:[#allocation3 + $0x208] sm:$0xff] %v1339
      %1348 = vst [vmem:[#allocation3 + $0x210] sm:$0xff] %v1340
      %1349 = vst [vmem:[#allocation3 + $0x218] sm:$0xff] %v1341
      %v1350 = vld [vmem:[#allocation2 + $0x8] sm:$0xff]
      %v1351 = vld [vmem:[#allocation2 + $0x10] sm:$0xff]
      %v1352 = vld [vmem:[#allocation2 + $0x18] sm:$0xff]
      %v1353 = vld [vmem:[#allocation2 + $0x20] sm:$0xff]
      %v1354 = vld [vmem:[#allocation2 + $0x28] sm:$0xff]
      %v1355 = vld [vmem:[%s852] ss:$8 sm:$0xf]
      %v1357 = vperm.slane %v1355, 0
      %v1358 = vperm.slane %v1355, 1
      %v1359 = vperm.slane %v1355, 2
      %v1360 = vperm.slane %v1355, 3
      %1361 = vrot.lane.b32.xlu0 %v1357, 9
      %v1362 = vpop.permute.xlu0 %1361
      %1363 = vrot.lane.b32.xlu0 %v1358, 9
      %v1364 = vpop.permute.xlu0 %1363
      %1365 = vrot.lane.b32.xlu0 %v1359, 9
      %v1366 = vpop.permute.xlu0 %1365
      %1367 = vrot.lane.b32.xlu0 %v1360, 9
      %v1368 = vpop.permute.xlu0 %1367
      %v1369 = vsel %vm955, %v1362, %v1364
      %v1370 = vsel %vm955, %v1364, %v1366
      %v1371 = vsel %vm955, %v1366, %v1368
      %v1377 = vmul.f32 %v1350, %v1362
      %v1378 = vmul.f32 %v1351, %v1369
      %v1379 = vmul.f32 %v1352, %v1370
      %v1380 = vmul.f32 %v1353, %v1371
      %v1381 = vmul.f32 %v1354, %v1368
      %1387 = vrot.lane.b32.xlu0 %v1377, 119
      %v1388 = vpop.permute.xlu0 %1387
      %1389 = vrot.lane.b32.xlu0 %v1378, 119
      %v1390 = vpop.permute.xlu0 %1389
      %1391 = vrot.lane.b32.xlu0 %v1379, 119
      %v1392 = vpop.permute.xlu0 %1391
      %1393 = vrot.lane.b32.xlu0 %v1380, 119
      %v1394 = vpop.permute.xlu0 %1393
      %1395 = vrot.lane.b32.xlu0 %v1381, 119
      %v1396 = vpop.permute.xlu0 %1395
      %v1397 = vsel %vm926, %v1388, %v1390
      %v1398 = vsel %vm926, %v1390, %v1392
      %v1399 = vsel %vm926, %v1392, %v1394
      %v1400 = vsel %vm926, %v1394, %v1396
      %1405 = vst [vmem:[#allocation3 + $0x220] sm:$0xff] %v1397
      %1406 = vst [vmem:[#allocation3 + $0x228] sm:$0xff] %v1398
      %1407 = vst [vmem:[#allocation3 + $0x230] sm:$0xff] %v1399
      %1408 = vst [vmem:[#allocation3 + $0x238] sm:$0xff] %v1400
      %v1409 = vld [vmem:[#allocation2 + $0x8] sm:$0xff]
      %v1410 = vld [vmem:[#allocation2 + $0x10] sm:$0xff]
      %v1411 = vld [vmem:[#allocation2 + $0x18] sm:$0xff]
      %v1412 = vld [vmem:[#allocation2 + $0x20] sm:$0xff]
      %v1413 = vld [vmem:[#allocation2 + $0x28] sm:$0xff]
      %v1414 = vld [vmem:[%s5] ss:$8 sm:$0xf]
      %v1416 = vperm.slane %v1414, 0
      %v1417 = vperm.slane %v1414, 1
      %v1418 = vperm.slane %v1414, 2
      %v1419 = vperm.slane %v1414, 3
      %1420 = vrot.lane.b32.xlu0 %v1416, 55
      %v1421 = vpop.permute.xlu0 %1420
      %1422 = vrot.lane.b32.xlu0 %v1417, 55
      %v1423 = vpop.permute.xlu0 %1422
      %1424 = vrot.lane.b32.xlu0 %v1418, 55
      %v1425 = vpop.permute.xlu0 %1424
      %1426 = vrot.lane.b32.xlu0 %v1419, 55
      %v1427 = vpop.permute.xlu0 %1426
      %v1428 = vsel %vm378, %v1421, %v1423
      %v1429 = vsel %vm378, %v1423, %v1425
      %v1430 = vsel %vm378, %v1425, %v1427
      %v1436 = vmul.f32 %v1409, %v1421
      %v1437 = vmul.f32 %v1410, %v1428
      %v1438 = vmul.f32 %v1411, %v1429
      %v1439 = vmul.f32 %v1412, %v1430
      %v1440 = vmul.f32 %v1413, %v1427
      %1446 = vrot.lane.b32.xlu0 %v1436, 73
      %v1447 = vpop.permute.xlu0 %1446
      %1448 = vrot.lane.b32.xlu0 %v1437, 73
      %v1449 = vpop.permute.xlu0 %1448
      %1450 = vrot.lane.b32.xlu0 %v1438, 73
      %v1451 = vpop.permute.xlu0 %1450
      %1452 = vrot.lane.b32.xlu0 %v1439, 73
      %v1453 = vpop.permute.xlu0 %1452
      %1454 = vrot.lane.b32.xlu0 %v1440, 73
      %v1455 = vpop.permute.xlu0 %1454
      %v1456 = vsel %vm407, %v1447, %v1449
      %v1457 = vsel %vm407, %v1449, %v1451
      %v1458 = vsel %vm407, %v1451, %v1453
      %v1459 = vsel %vm407, %v1453, %v1455
      %1464 = vst [vmem:[#allocation3 + $0x240] sm:$0xff] %v1456
      %1465 = vst [vmem:[#allocation3 + $0x248] sm:$0xff] %v1457
      %1466 = vst [vmem:[#allocation3 + $0x250] sm:$0xff] %v1458
      %1467 = vst [vmem:[#allocation3 + $0x258] sm:$0xff] %v1459
      %v1468 = vld [vmem:[#allocation2 + $0x8] sm:$0xff]
      %v1469 = vld [vmem:[#allocation2 + $0x10] sm:$0xff]
      %v1470 = vld [vmem:[#allocation2 + $0x18] sm:$0xff]
      %v1471 = vld [vmem:[#allocation2 + $0x20] sm:$0xff]
      %v1472 = vld [vmem:[#allocation2 + $0x28] sm:$0xff]
      %v1473 = vld [vmem:[%s425] ss:$8 sm:$0xf]
      %v1475 = vperm.slane %v1473, 0
      %v1476 = vperm.slane %v1473, 1
      %v1477 = vperm.slane %v1473, 2
      %v1478 = vperm.slane %v1473, 3
      %1479 = vrot.lane.b32.xlu0 %v1475, 56
      %v1480 = vpop.permute.xlu0 %1479
      %1481 = vrot.lane.b32.xlu0 %v1476, 56
      %v1482 = vpop.permute.xlu0 %1481
      %1483 = vrot.lane.b32.xlu0 %v1477, 56
      %v1484 = vpop.permute.xlu0 %1483
      %1485 = vrot.lane.b32.xlu0 %v1478, 56
      %v1486 = vpop.permute.xlu0 %1485
      %v1487 = vsel %vm440, %v1480, %v1482
      %v1488 = vsel %vm440, %v1482, %v1484
      %v1489 = vsel %vm440, %v1484, %v1486
      %v1495 = vmul.f32 %v1468, %v1480
      %v1496 = vmul.f32 %v1469, %v1487
      %v1497 = vmul.f32 %v1470, %v1488
      %v1498 = vmul.f32 %v1471, %v1489
      %v1499 = vmul.f32 %v1472, %v1486
      %1505 = vrot.lane.b32.xlu0 %v1495, 72
      %v1506 = vpop.permute.xlu0 %1505
      %1507 = vrot.lane.b32.xlu0 %v1496, 72
      %v1508 = vpop.permute.xlu0 %1507
      %1509 = vrot.lane.b32.xlu0 %v1497, 72
      %v1510 = vpop.permute.xlu0 %1509
      %1511 = vrot.lane.b32.xlu0 %v1498, 72
      %v1512 = vpop.permute.xlu0 %1511
      %1513 = vrot.lane.b32.xlu0 %v1499, 72
      %v1514 = vpop.permute.xlu0 %1513
      %v1515 = vsel %vm469, %v1506, %v1508
      %v1516 = vsel %vm469, %v1508, %v1510
      %v1517 = vsel %vm469, %v1510, %v1512
      %v1518 = vsel %vm469, %v1512, %v1514
      %1523 = vst [vmem:[#allocation3 + $0x260] sm:$0xff] %v1515
      %1524 = vst [vmem:[#allocation3 + $0x268] sm:$0xff] %v1516
      %1525 = vst [vmem:[#allocation3 + $0x270] sm:$0xff] %v1517
      %1526 = vst [vmem:[#allocation3 + $0x278] sm:$0xff] %v1518
      %v1527 = vld [vmem:[#allocation2 + $0x8] sm:$0xff]
      %v1528 = vld [vmem:[#allocation2 + $0x10] sm:$0xff]
      %v1529 = vld [vmem:[#allocation2 + $0x18] sm:$0xff]
      %v1530 = vld [vmem:[#allocation2 + $0x20] sm:$0xff]
      %v1531 = vld [vmem:[#allocation2 + $0x28] sm:$0xff]
      %v1532 = vld [vmem:[%s487] ss:$8 sm:$0xf]
      %v1534 = vperm.slane %v1532, 0
      %v1535 = vperm.slane %v1532, 1
      %v1536 = vperm.slane %v1532, 2
      %v1537 = vperm.slane %v1532, 3
      %1538 = vrot.lane.b32.xlu0 %v1534, 57
      %v1539 = vpop.permute.xlu0 %1538
      %1540 = vrot.lane.b32.xlu0 %v1535, 57
      %v1541 = vpop.permute.xlu0 %1540
      %1542 = vrot.lane.b32.xlu0 %v1536, 57
      %v1543 = vpop.permute.xlu0 %1542
      %1544 = vrot.lane.b32.xlu0 %v1537, 57
      %v1545 = vpop.permute.xlu0 %1544
      %v1546 = vsel %vm502, %v1539, %v1541
      %v1547 = vsel %vm502, %v1541, %v1543
      %v1548 = vsel %vm502, %v1543, %v1545
      %v1554 = vmul.f32 %v1527, %v1539
      %v1555 = vmul.f32 %v1528, %v1546
      %v1556 = vmul.f32 %v1529, %v1547
      %v1557 = vmul.f32 %v1530, %v1548
      %v1558 = vmul.f32 %v1531, %v1545
      %1564 = vrot.lane.b32.xlu0 %v1554, 71
      %v1565 = vpop.permute.xlu0 %1564
      %1566 = vrot.lane.b32.xlu0 %v1555, 71
      %v1567 = vpop.permute.xlu0 %1566
      %1568 = vrot.lane.b32.xlu0 %v1556, 71
      %v1569 = vpop.permute.xlu0 %1568
      %1570 = vrot.lane.b32.xlu0 %v1557, 71
      %v1571 = vpop.permute.xlu0 %1570
      %1572 = vrot.lane.b32.xlu0 %v1558, 71
      %v1573 = vpop.permute.xlu0 %1572
      %v1574 = vsel %vm531, %v1565, %v1567
      %v1575 = vsel %vm531, %v1567, %v1569
      %v1576 = vsel %vm531, %v1569, %v1571
      %v1577 = vsel %vm531, %v1571, %v1573
      %1582 = vst [vmem:[#allocation3 + $0x280] sm:$0xff] %v1574
      %1583 = vst [vmem:[#allocation3 + $0x288] sm:$0xff] %v1575
      %1584 = vst [vmem:[#allocation3 + $0x290] sm:$0xff] %v1576
      %1585 = vst [vmem:[#allocation3 + $0x298] sm:$0xff] %v1577
      %v1586 = vld [vmem:[#allocation2 + $0x8] sm:$0xff]
      %v1587 = vld [vmem:[#allocation2 + $0x10] sm:$0xff]
      %v1588 = vld [vmem:[#allocation2 + $0x18] sm:$0xff]
      %v1589 = vld [vmem:[#allocation2 + $0x20] sm:$0xff]
      %v1590 = vld [vmem:[#allocation2 + $0x28] sm:$0xff]
      %v1591 = vld [vmem:[%s549] ss:$8 sm:$0xf]
      %v1593 = vperm.slane %v1591, 0
      %v1594 = vperm.slane %v1591, 1
      %v1595 = vperm.slane %v1591, 2
      %v1596 = vperm.slane %v1591, 3
      %1597 = vrot.lane.b32.xlu0 %v1593, 63
      %v1598 = vpop.permute.xlu0 %1597
      %1599 = vrot.lane.b32.xlu0 %v1594, 63
      %v1600 = vpop.permute.xlu0 %1599
      %1601 = vrot.lane.b32.xlu0 %v1595, 63
      %v1602 = vpop.permute.xlu0 %1601
      %1603 = vrot.lane.b32.xlu0 %v1596, 63
      %v1604 = vpop.permute.xlu0 %1603
      %v1605 = vsel %vm564, %v1598, %v1600
      %v1606 = vsel %vm564, %v1600, %v1602
      %v1607 = vsel %vm564, %v1602, %v1604
      %v1613 = vmul.f32 %v1586, %v1598
      %v1614 = vmul.f32 %v1587, %v1605
      %v1615 = vmul.f32 %v1588, %v1606
      %v1616 = vmul.f32 %v1589, %v1607
      %v1617 = vmul.f32 %v1590, %v1604
      %1623 = vrot.lane.b32.xlu0 %v1613, 65
      %v1624 = vpop.permute.xlu0 %1623
      %1625 = vrot.lane.b32.xlu0 %v1614, 65
      %v1626 = vpop.permute.xlu0 %1625
      %1627 = vrot.lane.b32.xlu0 %v1615, 65
      %v1628 = vpop.permute.xlu0 %1627
      %1629 = vrot.lane.b32.xlu0 %v1616, 65
      %v1630 = vpop.permute.xlu0 %1629
      %1631 = vrot.lane.b32.xlu0 %v1617, 65
      %v1632 = vpop.permute.xlu0 %1631
      %v1633 = vsel %vm593, %v1624, %v1626
      %v1634 = vsel %vm593, %v1626, %v1628
      %v1635 = vsel %vm593, %v1628, %v1630
      %v1636 = vsel %vm593, %v1630, %v1632
      %1641 = vst [vmem:[#allocation3 + $0x2a0] sm:$0xff] %v1633
      %1642 = vst [vmem:[#allocation3 + $0x2a8] sm:$0xff] %v1634
      %1643 = vst [vmem:[#allocation3 + $0x2b0] sm:$0xff] %v1635
      %1644 = vst [vmem:[#allocation3 + $0x2b8] sm:$0xff] %v1636
      %v1645 = vld [vmem:[#allocation2 + $0x8] sm:$0xff]
      %v1646 = vld [vmem:[#allocation2 + $0x10] sm:$0xff]
      %v1647 = vld [vmem:[#allocation2 + $0x18] sm:$0xff]
      %v1648 = vld [vmem:[#allocation2 + $0x20] sm:$0xff]
      %v1649 = vld [vmem:[#allocation2 + $0x28] sm:$0xff]
      %v1650 = vld [vmem:[%s611] ss:$8 sm:$0xf]
      %v1652 = vperm.slane %v1650, 0
      %v1653 = vperm.slane %v1650, 1
      %v1654 = vperm.slane %v1650, 2
      %v1655 = vperm.slane %v1650, 3
      %1656 = vrot.lane.b32.xlu0 %v1652, 64
      %v1657 = vpop.permute.xlu0 %1656
      %1658 = vrot.lane.b32.xlu0 %v1653, 64
      %v1659 = vpop.permute.xlu0 %1658
      %1660 = vrot.lane.b32.xlu0 %v1654, 64
      %v1661 = vpop.permute.xlu0 %1660
      %1662 = vrot.lane.b32.xlu0 %v1655, 64
      %v1663 = vpop.permute.xlu0 %1662
      %v1664 = vsel %vm626, %v1657, %v1659
      %v1665 = vsel %vm626, %v1659, %v1661
      %v1666 = vsel %vm626, %v1661, %v1663
      %v1672 = vmul.f32 %v1645, %v1657
      %v1673 = vmul.f32 %v1646, %v1664
      %v1674 = vmul.f32 %v1647, %v1665
      %v1675 = vmul.f32 %v1648, %v1666
      %v1676 = vmul.f32 %v1649, %v1663
      %1682 = vrot.lane.b32.xlu0 %v1672, 64
      %v1683 = vpop.permute.xlu0 %1682
      %1684 = vrot.lane.b32.xlu0 %v1673, 64
      %v1685 = vpop.permute.xlu0 %1684
      %1686 = vrot.lane.b32.xlu0 %v1674, 64
      %v1687 = vpop.permute.xlu0 %1686
      %1688 = vrot.lane.b32.xlu0 %v1675, 64
      %v1689 = vpop.permute.xlu0 %1688
      %1690 = vrot.lane.b32.xlu0 %v1676, 64
      %v1691 = vpop.permute.xlu0 %1690
      %v1692 = vsel %vm626, %v1683, %v1685
      %v1693 = vsel %vm626, %v1685, %v1687
      %v1694 = vsel %vm626, %v1687, %v1689
      %v1695 = vsel %vm626, %v1689, %v1691
      %1700 = vst [vmem:[#allocation3 + $0x2c0] sm:$0xff] %v1692
      %1701 = vst [vmem:[#allocation3 + $0x2c8] sm:$0xff] %v1693
      %1702 = vst [vmem:[#allocation3 + $0x2d0] sm:$0xff] %v1694
      %1703 = vst [vmem:[#allocation3 + $0x2d8] sm:$0xff] %v1695
      %v1704 = vld [vmem:[#allocation2 + $0x8] sm:$0xff]
      %v1705 = vld [vmem:[#allocation2 + $0x10] sm:$0xff]
      %v1706 = vld [vmem:[#allocation2 + $0x18] sm:$0xff]
      %v1707 = vld [vmem:[#allocation2 + $0x20] sm:$0xff]
      %v1708 = vld [vmem:[#allocation2 + $0x28] sm:$0xff]
      %v1709 = vld [vmem:[%s672] ss:$8 sm:$0xf]
      %v1711 = vperm.slane %v1709, 0
      %v1712 = vperm.slane %v1709, 1
      %v1713 = vperm.slane %v1709, 2
      %v1714 = vperm.slane %v1709, 3
      %1715 = vrot.lane.b32.xlu0 %v1711, 65
      %v1716 = vpop.permute.xlu0 %1715
      %1717 = vrot.lane.b32.xlu0 %v1712, 65
      %v1718 = vpop.permute.xlu0 %1717
      %1719 = vrot.lane.b32.xlu0 %v1713, 65
      %v1720 = vpop.permute.xlu0 %1719
      %1721 = vrot.lane.b32.xlu0 %v1714, 65
      %v1722 = vpop.permute.xlu0 %1721
      %v1723 = vsel %vm593, %v1716, %v1718
      %v1724 = vsel %vm593, %v1718, %v1720
      %v1725 = vsel %vm593, %v1720, %v1722
      %v1731 = vmul.f32 %v1704, %v1716
      %v1732 = vmul.f32 %v1705, %v1723
      %v1733 = vmul.f32 %v1706, %v1724
      %v1734 = vmul.f32 %v1707, %v1725
      %v1735 = vmul.f32 %v1708, %v1722
      %1741 = vrot.lane.b32.xlu0 %v1731, 63
      %v1742 = vpop.permute.xlu0 %1741
      %1743 = vrot.lane.b32.xlu0 %v1732, 63
      %v1744 = vpop.permute.xlu0 %1743
      %1745 = vrot.lane.b32.xlu0 %v1733, 63
      %v1746 = vpop.permute.xlu0 %1745
      %1747 = vrot.lane.b32.xlu0 %v1734, 63
      %v1748 = vpop.permute.xlu0 %1747
      %1749 = vrot.lane.b32.xlu0 %v1735, 63
      %v1750 = vpop.permute.xlu0 %1749
      %v1751 = vsel %vm564, %v1742, %v1744
      %v1752 = vsel %vm564, %v1744, %v1746
      %v1753 = vsel %vm564, %v1746, %v1748
      %v1754 = vsel %vm564, %v1748, %v1750
      %1759 = vst [vmem:[#allocation3 + $0x2e0] sm:$0xff] %v1751
      %1760 = vst [vmem:[#allocation3 + $0x2e8] sm:$0xff] %v1752
      %1761 = vst [vmem:[#allocation3 + $0x2f0] sm:$0xff] %v1753
      %1762 = vst [vmem:[#allocation3 + $0x2f8] sm:$0xff] %v1754
      %v1763 = vld [vmem:[#allocation2 + $0x8] sm:$0xff]
      %v1764 = vld [vmem:[#allocation2 + $0x10] sm:$0xff]
      %v1765 = vld [vmem:[#allocation2 + $0x18] sm:$0xff]
      %v1766 = vld [vmem:[#allocation2 + $0x20] sm:$0xff]
      %v1767 = vld [vmem:[#allocation2 + $0x28] sm:$0xff]
      %v1768 = vld [vmem:[%s732] ss:$8 sm:$0xf]
      %v1770 = vperm.slane %v1768, 0
      %v1771 = vperm.slane %v1768, 1
      %v1772 = vperm.slane %v1768, 2
      %v1773 = vperm.slane %v1768, 3
      %1774 = vrot.lane.b32.xlu0 %v1770, 71
      %v1775 = vpop.permute.xlu0 %1774
      %1776 = vrot.lane.b32.xlu0 %v1771, 71
      %v1777 = vpop.permute.xlu0 %1776
      %1778 = vrot.lane.b32.xlu0 %v1772, 71
      %v1779 = vpop.permute.xlu0 %1778
      %1780 = vrot.lane.b32.xlu0 %v1773, 71
      %v1781 = vpop.permute.xlu0 %1780
      %v1782 = vsel %vm531, %v1775, %v1777
      %v1783 = vsel %vm531, %v1777, %v1779
      %v1784 = vsel %vm531, %v1779, %v1781
      %v1790 = vmul.f32 %v1763, %v1775
      %v1791 = vmul.f32 %v1764, %v1782
      %v1792 = vmul.f32 %v1765, %v1783
      %v1793 = vmul.f32 %v1766, %v1784
      %v1794 = vmul.f32 %v1767, %v1781
      %1800 = vrot.lane.b32.xlu0 %v1790, 57
      %v1801 = vpop.permute.xlu0 %1800
      %1802 = vrot.lane.b32.xlu0 %v1791, 57
      %v1803 = vpop.permute.xlu0 %1802
      %1804 = vrot.lane.b32.xlu0 %v1792, 57
      %v1805 = vpop.permute.xlu0 %1804
      %1806 = vrot.lane.b32.xlu0 %v1793, 57
      %v1807 = vpop.permute.xlu0 %1806
      %1808 = vrot.lane.b32.xlu0 %v1794, 57
      %v1809 = vpop.permute.xlu0 %1808
      %v1810 = vsel %vm502, %v1801, %v1803
      %v1811 = vsel %vm502, %v1803, %v1805
      %v1812 = vsel %vm502, %v1805, %v1807
      %v1813 = vsel %vm502, %v1807, %v1809
      %1818 = vst [vmem:[#allocation3 + $0x300] sm:$0xff] %v1810
      %1819 = vst [vmem:[#allocation3 + $0x308] sm:$0xff] %v1811
      %1820 = vst [vmem:[#allocation3 + $0x310] sm:$0xff] %v1812
      %1821 = vst [vmem:[#allocation3 + $0x318] sm:$0xff] %v1813
      %v1822 = vld [vmem:[#allocation2 + $0x8] sm:$0xff]
      %v1823 = vld [vmem:[#allocation2 + $0x10] sm:$0xff]
      %v1824 = vld [vmem:[#allocation2 + $0x18] sm:$0xff]
      %v1825 = vld [vmem:[#allocation2 + $0x20] sm:$0xff]
      %v1826 = vld [vmem:[#allocation2 + $0x28] sm:$0xff]
      %v1827 = vld [vmem:[%s792] ss:$8 sm:$0xf]
      %v1829 = vperm.slane %v1827, 0
      %v1830 = vperm.slane %v1827, 1
      %v1831 = vperm.slane %v1827, 2
      %v1832 = vperm.slane %v1827, 3
      %1833 = vrot.lane.b32.xlu0 %v1829, 72
      %v1834 = vpop.permute.xlu0 %1833
      %1835 = vrot.lane.b32.xlu0 %v1830, 72
      %v1836 = vpop.permute.xlu0 %1835
      %1837 = vrot.lane.b32.xlu0 %v1831, 72
      %v1838 = vpop.permute.xlu0 %1837
      %1839 = vrot.lane.b32.xlu0 %v1832, 72
      %v1840 = vpop.permute.xlu0 %1839
      %v1841 = vsel %vm469, %v1834, %v1836
      %v1842 = vsel %vm469, %v1836, %v1838
      %v1843 = vsel %vm469, %v1838, %v1840
      %v1849 = vmul.f32 %v1822, %v1834
      %v1850 = vmul.f32 %v1823, %v1841
      %v1851 = vmul.f32 %v1824, %v1842
      %v1852 = vmul.f32 %v1825, %v1843
      %v1853 = vmul.f32 %v1826, %v1840
      %1859 = vrot.lane.b32.xlu0 %v1849, 56
      %v1860 = vpop.permute.xlu0 %1859
      %1861 = vrot.lane.b32.xlu0 %v1850, 56
      %v1862 = vpop.permute.xlu0 %1861
      %1863 = vrot.lane.b32.xlu0 %v1851, 56
      %v1864 = vpop.permute.xlu0 %1863
      %1865 = vrot.lane.b32.xlu0 %v1852, 56
      %v1866 = vpop.permute.xlu0 %1865
      %1867 = vrot.lane.b32.xlu0 %v1853, 56
      %v1868 = vpop.permute.xlu0 %1867
      %v1869 = vsel %vm440, %v1860, %v1862
      %v1870 = vsel %vm440, %v1862, %v1864
      %v1871 = vsel %vm440, %v1864, %v1866
      %v1872 = vsel %vm440, %v1866, %v1868
      %1877 = vst [vmem:[#allocation3 + $0x320] sm:$0xff] %v1869
      %1878 = vst [vmem:[#allocation3 + $0x328] sm:$0xff] %v1870
      %1879 = vst [vmem:[#allocation3 + $0x330] sm:$0xff] %v1871
      %1880 = vst [vmem:[#allocation3 + $0x338] sm:$0xff] %v1872
      %v1881 = vld [vmem:[#allocation2 + $0x8] sm:$0xff]
      %v1882 = vld [vmem:[#allocation2 + $0x10] sm:$0xff]
      %v1883 = vld [vmem:[#allocation2 + $0x18] sm:$0xff]
      %v1884 = vld [vmem:[#allocation2 + $0x20] sm:$0xff]
      %v1885 = vld [vmem:[#allocation2 + $0x28] sm:$0xff]
      %v1886 = vld [vmem:[%s852] ss:$8 sm:$0xf]
      %v1888 = vperm.slane %v1886, 0
      %v1889 = vperm.slane %v1886, 1
      %v1890 = vperm.slane %v1886, 2
      %v1891 = vperm.slane %v1886, 3
      %1892 = vrot.lane.b32.xlu0 %v1888, 73
      %v1893 = vpop.permute.xlu0 %1892
      %1894 = vrot.lane.b32.xlu0 %v1889, 73
      %v1895 = vpop.permute.xlu0 %1894
      %1896 = vrot.lane.b32.xlu0 %v1890, 73
      %v1897 = vpop.permute.xlu0 %1896
      %1898 = vrot.lane.b32.xlu0 %v1891, 73
      %v1899 = vpop.permute.xlu0 %1898
      %v1900 = vsel %vm407, %v1893, %v1895
      %v1901 = vsel %vm407, %v1895, %v1897
      %v1902 = vsel %vm407, %v1897, %v1899
      %v1908 = vmul.f32 %v1881, %v1893
      %v1909 = vmul.f32 %v1882, %v1900
      %v1910 = vmul.f32 %v1883, %v1901
      %v1911 = vmul.f32 %v1884, %v1902
      %v1912 = vmul.f32 %v1885, %v1899
      %1918 = vrot.lane.b32.xlu0 %v1908, 55
      %v1919 = vpop.permute.xlu0 %1918
      %1920 = vrot.lane.b32.xlu0 %v1909, 55
      %v1921 = vpop.permute.xlu0 %1920
      %1922 = vrot.lane.b32.xlu0 %v1910, 55
      %v1923 = vpop.permute.xlu0 %1922
      %1924 = vrot.lane.b32.xlu0 %v1911, 55
      %v1925 = vpop.permute.xlu0 %1924
      %1926 = vrot.lane.b32.xlu0 %v1912, 55
      %v1927 = vpop.permute.xlu0 %1926
      %v1928 = vsel %vm378, %v1919, %v1921
      %v1929 = vsel %vm378, %v1921, %v1923
      %v1930 = vsel %vm378, %v1923, %v1925
      %v1931 = vsel %vm378, %v1925, %v1927
      %1936 = vst [vmem:[#allocation3 + $0x340] sm:$0xff] %v1928
      %1937 = vst [vmem:[#allocation3 + $0x348] sm:$0xff] %v1929
      %1938 = vst [vmem:[#allocation3 + $0x350] sm:$0xff] %v1930
      %1939 = vst [vmem:[#allocation3 + $0x358] sm:$0xff] %v1931
      %v1940 = vld [vmem:[%s1] sm:$0xff]
      %v1941 = vld [vmem:[%s1 + $0x8] sm:$0xff]
      %v1942 = vld [vmem:[#allocation3] sm:$0xff]
      %v1943 = vld [vmem:[#allocation3 + $0x8] sm:$0xff]
      %v1944 = vld [vmem:[#allocation3 + $0x10] sm:$0xff]
      %v1945 = vld [vmem:[#allocation3 + $0x18] sm:$0xff]
      %v1946 = vld [vmem:[#allocation3 + $0x20] sm:$0xff]
      %v1947 = vld [vmem:[#allocation3 + $0x28] sm:$0xff]
      %v1948 = vld [vmem:[#allocation3 + $0x30] sm:$0xff]
      %v1949 = vld [vmem:[#allocation3 + $0x38] sm:$0xff]
      %v1950 = vld [vmem:[#allocation3 + $0x40] sm:$0xff]
      %v1951 = vld [vmem:[#allocation3 + $0x48] sm:$0xff]
      %v1952 = vld [vmem:[#allocation3 + $0x50] sm:$0xff]
      %v1953 = vld [vmem:[#allocation3 + $0x58] sm:$0xff]
      %v1954 = vld [vmem:[#allocation3 + $0x60] sm:$0xff]
      %v1955 = vld [vmem:[#allocation3 + $0x68] sm:$0xff]
      %v1956 = vld [vmem:[#allocation3 + $0x70] sm:$0xff]
      %v1957 = vld [vmem:[#allocation3 + $0x78] sm:$0xff]
      %v1958 = vld [vmem:[#allocation3 + $0x80] sm:$0xff]
      %v1959 = vld [vmem:[#allocation3 + $0x88] sm:$0xff]
      %v1960 = vld [vmem:[#allocation3 + $0x90] sm:$0xff]
      %v1961 = vld [vmem:[#allocation3 + $0x98] sm:$0xff]
      %v1962 = vld [vmem:[#allocation3 + $0xa0] sm:$0xff]
      %v1963 = vld [vmem:[#allocation3 + $0xa8] sm:$0xff]
      %v1964 = vld [vmem:[#allocation3 + $0xb0] sm:$0xff]
      %v1965 = vld [vmem:[#allocation3 + $0xb8] sm:$0xff]
      %v1966 = vld [vmem:[#allocation3 + $0xc0] sm:$0xff]
      %v1967 = vld [vmem:[#allocation3 + $0xc8] sm:$0xff]
      %v1968 = vld [vmem:[#allocation3 + $0xd0] sm:$0xff]
      %v1969 = vld [vmem:[#allocation3 + $0xd8] sm:$0xff]
      %v1970 = vld [vmem:[#allocation3 + $0xe0] sm:$0xff]
      %v1971 = vld [vmem:[#allocation3 + $0xe8] sm:$0xff]
      %v1972 = vld [vmem:[#allocation3 + $0xf0] sm:$0xff]
      %v1973 = vld [vmem:[#allocation3 + $0xf8] sm:$0xff]
      %v1974 = vld [vmem:[#allocation3 + $0x100] sm:$0xff]
      %v1975 = vld [vmem:[#allocation3 + $0x108] sm:$0xff]
      %v1976 = vld [vmem:[#allocation3 + $0x110] sm:$0xff]
      %v1977 = vld [vmem:[#allocation3 + $0x118] sm:$0xff]
      %v1978 = vld [vmem:[#allocation3 + $0x120] sm:$0xff]
      %v1979 = vld [vmem:[#allocation3 + $0x128] sm:$0xff]
      %v1980 = vld [vmem:[#allocation3 + $0x130] sm:$0xff]
      %v1981 = vld [vmem:[#allocation3 + $0x138] sm:$0xff]
      %v1982 = vld [vmem:[#allocation3 + $0x140] sm:$0xff]
      %v1983 = vld [vmem:[#allocation3 + $0x148] sm:$0xff]
      %v1984 = vld [vmem:[#allocation3 + $0x150] sm:$0xff]
      %v1985 = vld [vmem:[#allocation3 + $0x158] sm:$0xff]
      %v1986 = vld [vmem:[#allocation3 + $0x160] sm:$0xff]
      %v1987 = vld [vmem:[#allocation3 + $0x168] sm:$0xff]
      %v1988 = vld [vmem:[#allocation3 + $0x170] sm:$0xff]
      %v1989 = vld [vmem:[#allocation3 + $0x178] sm:$0xff]
      %v1990 = vld [vmem:[#allocation3 + $0x180] sm:$0xff]
      %v1991 = vld [vmem:[#allocation3 + $0x188] sm:$0xff]
      %v1992 = vld [vmem:[#allocation3 + $0x190] sm:$0xff]
      %v1993 = vld [vmem:[#allocation3 + $0x198] sm:$0xff]
      %v1994 = vld [vmem:[#allocation3 + $0x1a0] sm:$0xff]
      %v1995 = vld [vmem:[#allocation3 + $0x1a8] sm:$0xff]
      %v1996 = vld [vmem:[#allocation3 + $0x1b0] sm:$0xff]
      %v1997 = vld [vmem:[#allocation3 + $0x1b8] sm:$0xff]
      %v1998 = vld [vmem:[#allocation3 + $0x1c0] sm:$0xff]
      %v1999 = vld [vmem:[#allocation3 + $0x1c8] sm:$0xff]
      %v2000 = vld [vmem:[#allocation3 + $0x1d0] sm:$0xff]
      %v2001 = vld [vmem:[#allocation3 + $0x1d8] sm:$0xff]
      %v2002 = vld [vmem:[#allocation3 + $0x1e0] sm:$0xff]
      %v2003 = vld [vmem:[#allocation3 + $0x1e8] sm:$0xff]
      %v2004 = vld [vmem:[#allocation3 + $0x1f0] sm:$0xff]
      %v2005 = vld [vmem:[#allocation3 + $0x1f8] sm:$0xff]
      %v2006 = vld [vmem:[#allocation3 + $0x200] sm:$0xff]
      %v2007 = vld [vmem:[#allocation3 + $0x208] sm:$0xff]
      %v2008 = vld [vmem:[#allocation3 + $0x210] sm:$0xff]
      %v2009 = vld [vmem:[#allocation3 + $0x218] sm:$0xff]
      %v2010 = vld [vmem:[#allocation3 + $0x220] sm:$0xff]
      %v2011 = vld [vmem:[#allocation3 + $0x228] sm:$0xff]
      %v2012 = vld [vmem:[#allocation3 + $0x230] sm:$0xff]
      %v2013 = vld [vmem:[#allocation3 + $0x238] sm:$0xff]
      %v2014 = vld [vmem:[#allocation3 + $0x240] sm:$0xff]
      %v2015 = vld [vmem:[#allocation3 + $0x248] sm:$0xff]
      %v2016 = vld [vmem:[#allocation3 + $0x250] sm:$0xff]
      %v2017 = vld [vmem:[#allocation3 + $0x258] sm:$0xff]
      %v2018 = vld [vmem:[#allocation3 + $0x260] sm:$0xff]
      %v2019 = vld [vmem:[#allocation3 + $0x268] sm:$0xff]
      %v2020 = vld [vmem:[#allocation3 + $0x270] sm:$0xff]
      %v2021 = vld [vmem:[#allocation3 + $0x278] sm:$0xff]
      %v2022 = vld [vmem:[#allocation3 + $0x280] sm:$0xff]
      %v2023 = vld [vmem:[#allocation3 + $0x288] sm:$0xff]
      %v2024 = vld [vmem:[#allocation3 + $0x290] sm:$0xff]
      %v2025 = vld [vmem:[#allocation3 + $0x298] sm:$0xff]
      %v2026 = vld [vmem:[#allocation3 + $0x2a0] sm:$0xff]
      %v2027 = vld [vmem:[#allocation3 + $0x2a8] sm:$0xff]
      %v2028 = vld [vmem:[#allocation3 + $0x2b0] sm:$0xff]
      %v2029 = vld [vmem:[#allocation3 + $0x2b8] sm:$0xff]
      %v2030 = vld [vmem:[#allocation3 + $0x2c0] sm:$0xff]
      %v2031 = vld [vmem:[#allocation3 + $0x2c8] sm:$0xff]
      %v2032 = vld [vmem:[#allocation3 + $0x2d0] sm:$0xff]
      %v2033 = vld [vmem:[#allocation3 + $0x2d8] sm:$0xff]
      %v2034 = vld [vmem:[#allocation3 + $0x2e0] sm:$0xff]
      %v2035 = vld [vmem:[#allocation3 + $0x2e8] sm:$0xff]
      %v2036 = vld [vmem:[#allocation3 + $0x2f0] sm:$0xff]
      %v2037 = vld [vmem:[#allocation3 + $0x2f8] sm:$0xff]
      %v2038 = vld [vmem:[#allocation3 + $0x300] sm:$0xff]
      %v2039 = vld [vmem:[#allocation3 + $0x308] sm:$0xff]
      %v2040 = vld [vmem:[#allocation3 + $0x310] sm:$0xff]
      %v2041 = vld [vmem:[#allocation3 + $0x318] sm:$0xff]
      %v2042 = vld [vmem:[#allocation3 + $0x320] sm:$0xff]
      %v2043 = vld [vmem:[#allocation3 + $0x328] sm:$0xff]
      %v2044 = vld [vmem:[#allocation3 + $0x330] sm:$0xff]
      %v2045 = vld [vmem:[#allocation3 + $0x338] sm:$0xff]
      %v2046 = vld [vmem:[#allocation3 + $0x340] sm:$0xff]
      %v2047 = vld [vmem:[#allocation3 + $0x348] sm:$0xff]
      %v2048 = vld [vmem:[#allocation3 + $0x350] sm:$0xff]
      %v2049 = vld [vmem:[#allocation3 + $0x358] sm:$0xff]
      %vm2050 = vcmask 719872
      %v2052 = vsel %vm2050, %v1941, 0
      %2054 = vmatpush.msra.mxu0 %v2002
      %2055 = vmatpush.msra.mxu0 %v1998
      %2056 = vmatpush.msra.mxu0 %v1994
      %2057 = vmatpush.msra.mxu0 %v1990
      %2058 = vmatpush.msra.mxu0 %v1986
      %2059 = vmatpush.msra.mxu0 %v1982
      %2060 = vmatpush.msra.mxu0 %v1978
      %2061 = vmatpush.msra.mxu0 %v1974
      %2062 = vmatpush.msra.mxu0 %v1970
      %2063 = vmatpush.msra.mxu0 %v1966
      %2064 = vmatpush.msra.mxu0 %v1962
      %2065 = vmatpush.msra.mxu0 %v1958
      %2066 = vmatpush.msra.mxu0 %v1954
      %2067 = vmatpush.msra.mxu0 %v1950
      %2068 = vmatpush.msra.mxu0 %v1946
      %2069 = vmatpush.msra.mxu0 %v1942
      %2070 = vmatmul.f32.gmra.mxu0 %v1940
      %v2071 = vpop.f32.mrf.mxu0
      %v2072 = vadd.f32 0.0, %v2071
      %2073 = vdwg.mxu0
      %2074 = vmatpush.msra.mxu0 0.0
      %2075 = vmatpush.msra.mxu0 0.0
      %2076 = vmatpush.msra.mxu0 0.0
      %2077 = vmatpush.msra.mxu0 0.0
      %2078 = vmatpush.msra.mxu0 0.0
      %2079 = vmatpush.msra.mxu0 %v2046
      %2080 = vmatpush.msra.mxu0 %v2042
      %2081 = vmatpush.msra.mxu0 %v2038
      %2082 = vmatpush.msra.mxu0 %v2034
      %2083 = vmatpush.msra.mxu0 %v2030
      %2084 = vmatpush.msra.mxu0 %v2026
      %2085 = vmatpush.msra.mxu0 %v2022
      %2086 = vmatpush.msra.mxu0 %v2018
      %2087 = vmatpush.msra.mxu0 %v2014
      %2088 = vmatpush.msra.mxu0 %v2010
      %2089 = vmatpush.msra.mxu0 %v2006
      %2090 = vmatmul.f32.gmra.mxu0 %v2052
      %v2091 = vpop.f32.mrf.mxu0
      %v2092 = vadd.f32 %v2072, %v2091
      %2093 = vdwg.mxu0
      %2094 = vmatpush.msra.mxu0 %v2003
      %2095 = vmatpush.msra.mxu0 %v1999
      %2096 = vmatpush.msra.mxu0 %v1995
      %2097 = vmatpush.msra.mxu0 %v1991
      %2098 = vmatpush.msra.mxu0 %v1987
      %2099 = vmatpush.msra.mxu0 %v1983
      %2100 = vmatpush.msra.mxu0 %v1979
      %2101 = vmatpush.msra.mxu0 %v1975
      %2102 = vmatpush.msra.mxu0 %v1971
      %2103 = vmatpush.msra.mxu0 %v1967
      %2104 = vmatpush.msra.mxu0 %v1963
      %2105 = vmatpush.msra.mxu0 %v1959
      %2106 = vmatpush.msra.mxu0 %v1955
      %2107 = vmatpush.msra.mxu0 %v1951
      %2108 = vmatpush.msra.mxu0 %v1947
      %2109 = vmatpush.msra.mxu0 %v1943
      %2110 = vmatmul.f32.gmra.mxu0 %v1940
      %v2111 = vpop.f32.mrf.mxu0
      %v2112 = vadd.f32 0.0, %v2111
      %2113 = vdwg.mxu0
      %2114 = vmatpush.msra.mxu0 0.0
      %2115 = vmatpush.msra.mxu0 0.0
      %2116 = vmatpush.msra.mxu0 0.0
      %2117 = vmatpush.msra.mxu0 0.0
      %2118 = vmatpush.msra.mxu0 0.0
      %2119 = vmatpush.msra.mxu0 %v2047
      %2120 = vmatpush.msra.mxu0 %v2043
      %2121 = vmatpush.msra.mxu0 %v2039
      %2122 = vmatpush.msra.mxu0 %v2035
      %2123 = vmatpush.msra.mxu0 %v2031
      %2124 = vmatpush.msra.mxu0 %v2027
      %2125 = vmatpush.msra.mxu0 %v2023
      %2126 = vmatpush.msra.mxu0 %v2019
      %2127 = vmatpush.msra.mxu0 %v2015
      %2128 = vmatpush.msra.mxu0 %v2011
      %2129 = vmatpush.msra.mxu0 %v2007
      %2130 = vmatmul.f32.gmra.mxu0 %v2052
      %v2131 = vpop.f32.mrf.mxu0
      %v2132 = vadd.f32 %v2112, %v2131
      %2133 = vdwg.mxu0
      %2134 = vmatpush.msra.mxu0 %v2004
      %2135 = vmatpush.msra.mxu0 %v2000
      %2136 = vmatpush.msra.mxu0 %v1996
      %2137 = vmatpush.msra.mxu0 %v1992
      %2138 = vmatpush.msra.mxu0 %v1988
      %2139 = vmatpush.msra.mxu0 %v1984
      %2140 = vmatpush.msra.mxu0 %v1980
      %2141 = vmatpush.msra.mxu0 %v1976
      %2142 = vmatpush.msra.mxu0 %v1972
      %2143 = vmatpush.msra.mxu0 %v1968
      %2144 = vmatpush.msra.mxu0 %v1964
      %2145 = vmatpush.msra.mxu0 %v1960
      %2146 = vmatpush.msra.mxu0 %v1956
      %2147 = vmatpush.msra.mxu0 %v1952
      %2148 = vmatpush.msra.mxu0 %v1948
      %2149 = vmatpush.msra.mxu0 %v1944
      %2150 = vmatmul.f32.gmra.mxu0 %v1940
      %v2151 = vpop.f32.mrf.mxu0
      %v2152 = vadd.f32 0.0, %v2151
      %2153 = vdwg.mxu0
      %2154 = vmatpush.msra.mxu0 0.0
      %2155 = vmatpush.msra.mxu0 0.0
      %2156 = vmatpush.msra.mxu0 0.0
      %2157 = vmatpush.msra.mxu0 0.0
      %2158 = vmatpush.msra.mxu0 0.0
      %2159 = vmatpush.msra.mxu0 %v2048
      %2160 = vmatpush.msra.mxu0 %v2044
      %2161 = vmatpush.msra.mxu0 %v2040
      %2162 = vmatpush.msra.mxu0 %v2036
      %2163 = vmatpush.msra.mxu0 %v2032
      %2164 = vmatpush.msra.mxu0 %v2028
      %2165 = vmatpush.msra.mxu0 %v2024
      %2166 = vmatpush.msra.mxu0 %v2020
      %2167 = vmatpush.msra.mxu0 %v2016
      %2168 = vmatpush.msra.mxu0 %v2012
      %2169 = vmatpush.msra.mxu0 %v2008
      %2170 = vmatmul.f32.gmra.mxu0 %v2052
      %v2171 = vpop.f32.mrf.mxu0
      %v2172 = vadd.f32 %v2152, %v2171
      %2173 = vdwg.mxu0
      %2174 = vmatpush.msra.mxu0 %v2005
      %2175 = vmatpush.msra.mxu0 %v2001
      %2176 = vmatpush.msra.mxu0 %v1997
      %2177 = vmatpush.msra.mxu0 %v1993
      %2178 = vmatpush.msra.mxu0 %v1989
      %2179 = vmatpush.msra.mxu0 %v1985
      %2180 = vmatpush.msra.mxu0 %v1981
      %2181 = vmatpush.msra.mxu0 %v1977
      %2182 = vmatpush.msra.mxu0 %v1973
      %2183 = vmatpush.msra.mxu0 %v1969
      %2184 = vmatpush.msra.mxu0 %v1965
      %2185 = vmatpush.msra.mxu0 %v1961
      %2186 = vmatpush.msra.mxu0 %v1957
      %2187 = vmatpush.msra.mxu0 %v1953
      %2188 = vmatpush.msra.mxu0 %v1949
      %2189 = vmatpush.msra.mxu0 %v1945
      %2190 = vmatmul.f32.gmra.mxu0 %v1940
      %v2191 = vpop.f32.mrf.mxu0
      %v2192 = vadd.f32 0.0, %v2191
      %2193 = vdwg.mxu0
      %2194 = vmatpush.msra.mxu0 0.0
      %2195 = vmatpush.msra.mxu0 0.0
      %2196 = vmatpush.msra.mxu0 0.0
      %2197 = vmatpush.msra.mxu0 0.0
      %2198 = vmatpush.msra.mxu0 0.0
      %2199 = vmatpush.msra.mxu0 %v2049
      %2200 = vmatpush.msra.mxu0 %v2045
      %2201 = vmatpush.msra.mxu0 %v2041
      %2202 = vmatpush.msra.mxu0 %v2037
      %2203 = vmatpush.msra.mxu0 %v2033
      %2204 = vmatpush.msra.mxu0 %v2029
      %2205 = vmatpush.msra.mxu0 %v2025
      %2206 = vmatpush.msra.mxu0 %v2021
      %2207 = vmatpush.msra.mxu0 %v2017
      %2208 = vmatpush.msra.mxu0 %v2013
      %2209 = vmatpush.msra.mxu0 %v2009
      %2210 = vmatmul.f32.gmra.mxu0 %v2052
      %v2211 = vpop.f32.mrf.mxu0
      %v2212 = vadd.f32 %v2192, %v2211
      %2213 = vdwg.mxu0
      %2214 = vst [vmem:[%s318] sm:$0xff] 0.0
      %2215 = vst [vmem:[%s318 + $0x8] sm:$0xff] %v2092
      %2216 = vst [vmem:[%s318 + $0x10] sm:$0xff] %v2132
      %2217 = vst [vmem:[%s318 + $0x18] sm:$0xff] %v2172
      %2218 = vst [vmem:[%s318 + $0x20] sm:$0xff] %v2212
      %2219 = vst [vmem:[%s318 + $0x28] sm:$0xff] 0.0
      %v2220 = vadd.f32 %v2092, %v2132
      %v2221 = vadd.f32 %v2220, %v2172
      %v2222 = vadd.f32 %v2221, %v2212
      %2223 = vadd.xlane.f32.xlu0 %v2222
      %v2224 = vpop.xlane.xlu0 %2223
      %2225 = vst.msk [vmem:[%s322] sm:$0xff] %vm1138, %v2224
      %v2226 = vmul.f32 %v2092, %v2092
      %v2227 = vmul.f32 %v2132, %v2132
      %v2228 = vmul.f32 %v2172, %v2172
      %v2229 = vmul.f32 %v2212, %v2212
      %v2230 = vadd.f32 %v2226, %v2227
      %v2231 = vadd.f32 %v2230, %v2228
      %v2232 = vadd.f32 %v2231, %v2229
      %2233 = vadd.xlane.f32.xlu0 %v2232
      %v2234 = vpop.xlane.xlu0 %2233
      %2235 = vst.msk [vmem:[%s326] sm:$0xff] %vm1138, %v2234
      %p2236 = scmp.lt.s32.totalorder %s20, 1
      %s2237 = scalar_select %p2236, %s20, 1
      %s2238 = smul.addr %s2237, 6
      %s2239 = smul.addr %s2238, 8
      %s2240 = scalar_lea.vmem %s6, %s2239
      %p2241 = scmp.lt.s32.totalorder %s20, 1
      %s2242 = scalar_select %p2241, %s20, 1
      %s2243 = smul.addr %s2242, 8
      %s2244 = scalar_lea.vmem %s7, %s2243
      %p2245 = scmp.lt.s32.totalorder %s20, 1
      %s2246 = scalar_select %p2245, %s20, 1
      %s2247 = smul.addr %s2246, 8
      %s2248 = scalar_lea.vmem %s8, %s2247
      // Predicated region
      $region45: #{down_forward.5} parent=43 // pred_check
        %p2249 = pneg %p169
      $region46: #{down_forward.5} parent=43 // pred_check_branch
        %2251 = sbr.rel (%p2249) target = $region48
      $region47: #{down_forward.5} parent=43 // pred_region
        _
      $region48: #{down_forward.5} parent=43 // pred_fallthru
        _
      // Predicated region
      $region49: #{down_forward.5} parent=43 // pred_check
        %p2252 = pneg %p195
      $region50: #{down_forward.5} parent=43 // pred_check_branch
        %2254 = sbr.rel (%p2252) target = $region52
      $region51: #{down_forward.5} parent=43 // pred_region
        _
      $region52: #{down_forward.5} parent=43 // pred_fallthru
        _
      // Predicated region
      $region53: #{down_forward.5} parent=43 // pred_check
        %p2255 = pneg %p221
      $region54: #{down_forward.5} parent=43 // pred_check_branch
        %2257 = sbr.rel (%p2255) target = $region56
      $region55: #{down_forward.5} parent=43 // pred_region
        _
      $region56: #{down_forward.5} parent=43 // pred_fallthru
        _
    $region44: #{down_forward.5} parent=5 // pred_fallthru
      _
    %p2258 = scmp.le.s32.totalorder 2, %s15
    // Predicated region
    $region57: #{down_forward.5} parent=5 // pred_check
      %p2259 = pneg %p2258
    $region58: #{down_forward.5} parent=5 // pred_check_branch
      %2261 = sbr.rel (%p2259) target = $region60
    $region59: #{down_forward.5} parent=5 // pred_region
      %s2262 = ssub.s32 %s15, 2
      // Predicated region
      $region61: #{down_forward.5} parent=59 // pred_check
        %p2263 = pneg %p175
      $region62: #{down_forward.5} parent=59 // pred_check_branch
        %2265 = sbr.rel (%p2263) target = $region64
      $region63: #{down_forward.5} parent=59 // pred_region
        %p2266 = scmp.lt.s32.totalorder %s21, 1
        %s2267 = scalar_select %p2266, %s21, 1
        %s2268 = smul.addr %s2267, 6
        %s2269 = smul.addr %s2268, 8
        %s2270 = scalar_lea.vmem %s6, %s2269
      $region64: #{down_forward.5} parent=59 // pred_fallthru
        _
      // Predicated region
      $region65: #{down_forward.5} parent=59 // pred_check
        %p2271 = pneg %p201
      $region66: #{down_forward.5} parent=59 // pred_check_branch
        %2273 = sbr.rel (%p2271) target = $region68
      $region67: #{down_forward.5} parent=59 // pred_region
        %p2274 = scmp.lt.s32.totalorder %s21, 1
        %s2275 = scalar_select %p2274, %s21, 1
        %s2276 = smul.addr %s2275, 8
        %s2277 = scalar_lea.vmem %s7, %s2276
      $region68: #{down_forward.5} parent=59 // pred_fallthru
        _
      // Predicated region
      $region69: #{down_forward.5} parent=59 // pred_check
        %p2278 = pneg %p227
      $region70: #{down_forward.5} parent=59 // pred_check_branch
        %2280 = sbr.rel (%p2278) target = $region72
      $region71: #{down_forward.5} parent=59 // pred_region
        %p2281 = scmp.lt.s32.totalorder %s21, 1
        %s2282 = scalar_select %p2281, %s21, 1
        %s2283 = smul.addr %s2282, 8
        %s2284 = scalar_lea.vmem %s8, %s2283
      $region72: #{down_forward.5} parent=59 // pred_fallthru
        _
    $region60: #{down_forward.5} parent=5 // pred_fallthru
      _
  $region6: #{down_forward.5} parent=0 // loop_footer
    %s19 = sadd.s32 1, %s15
  $region7: #{down_forward.5} parent=0 // loop_footer_branch
    %14 = sbr.rel target = $region3
  $region8: #{down_forward.5} parent=0 // loop_exit
    _

// kernel: down_forward.6
$region0: #{down_forward.6}
  #allocation0 [shape = 'u32[]', space=smem, size = 0x4, offset = 0x4, fixed_abs, tag = 'smem constant byte address 0x4 - core index']
  #allocation1 [shape = 'u32[72,128]{1,0:T(1,128)}', space=vmem, size = 0x9000, scoped, tag = 'internal scratch']
  #allocation2 [shape = 'f32[8,768]{1,0:T(8,128)}', space=vmem, size = 0x6000, scoped, tag = 'scratch operand']
  #allocation3 [shape = 'f32[216,512]{1,0:T(8,128)}', space=vmem, size = 0x6c000, scoped, tag = 'scratch operand']
  %s0 = inlined_call_operand.vmem [shape: f32[2,8,768], index: 0, kind: input, shape index: {}]
  %s1 = inlined_call_operand.vmem [shape: f32[8,216], index: 1, kind: input, shape index: {}]
  %s2 = inlined_call_operand.vmem [shape: f32[8,1], index: 2, kind: input, shape index: {}]
  %s3 = inlined_call_operand.vmem [shape: f32[8,1], index: 3, kind: input, shape index: {}]
  %s4 = inlined_call_operand.vmem [shape: f32[1,768], index: 4, kind: input, shape index: {}]
  %s5 = inlined_call_operand.vmem [shape: f32[9,512], index: 5, kind: input, shape index: {}]
  %s6 = inlined_call_operand.vmem [shape: f32[2,8,512], index: 6, kind: output, shape index: {0}]
  %s7 = inlined_call_operand.vmem [shape: f32[2,8,1], index: 7, kind: output, shape index: {1}]
  %s8 = inlined_call_operand.vmem [shape: f32[2,8,1], index: 8, kind: output, shape index: {2}]
  %9 = xla_tuple %s6, %s7, %s8
  %s10 = sld [smem:[#allocation0]]
  $region73: #{down_forward.6} parent=0
    _
  %s12 = ssub.s32 1, %s10
  %s13 = scalar_select 0, %s12, %s10
  loop: start=0, step=1, limit=4
  $region2: #{down_forward.6} parent=0 // loop_pre_header
    _
  $region3: #{down_forward.6} parent=0 // loop_header
    %s15 = sphi 0, %s19
    %p16 = scmp.ge.s32.totalorder %s15, 4
    %s25 = sphi 0, %s27
    %s28 = sphi 0, %s25
    %s29 = sphi 0, %s28
    %s45 = sphi 0, %s29
    %s49 = sphi 0, %s49
    %s51 = sphi 0, %s49
    %s52 = sphi 0, %s51
    %s66 = sphi 0, %s52
    %s70 = sphi 0, %s70
    %s72 = sphi 0, %s70
    %s73 = sphi 0, %s72
    %s87 = sphi 0, %s73
    %s91 = sphi 0, %s91
    %s93 = sphi 0, %s91
    %s94 = sphi 0, %s93
    %s108 = sphi 0, %s94
    %s112 = sphi 0, %s112
    %s114 = sphi 0, %s112
    %s115 = sphi 0, %s114
    %s129 = sphi 0, %s115
    %s133 = sphi 0, %s133
    %s135 = sphi 0, %s133
    %s136 = sphi 0, %s135
    %s150 = sphi 0, %s136
    %s156 = sphi 0, %s158
    %s159 = sphi 0, %s156
    %s160 = sphi 0, %s159
    %s176 = sphi 0, %s160
    %s182 = sphi 0, %s184
    %s185 = sphi 0, %s182
    %s186 = sphi 0, %s185
    %s202 = sphi 0, %s186
    %s208 = sphi 0, %s210
    %s211 = sphi 0, %s208
    %s212 = sphi 0, %s211
    %s228 = sphi 0, %s212
  $region4: #{down_forward.6} parent=0 // loop_header_branch
    %18 = sbr.rel (%p16) target = $region8
  $region5: #{down_forward.6} parent=0 // loop_body
    %s20 = ssub.s32 %s15, 1
    %s21 = ssub.s32 %s15, 2
    %s22 = sadd.s32 %s15, 1
    %s23 = ssub.s32 %s15, %s22
    %p24 = scmp.eq.s32.totalorder %s23, 0
    %s26 = sadd.s32 %s25, 1
    %s27 = scalar_select %p24, %s25, %s26
    %p30 = pneg %p24
    %p31 = scmp.eq.s32.totalorder %s15, 1
    %p32 = por %p30, %p31
    %p33 = scmp.ne.s32.totalorder %s25, %s28
    %p34 = scmp.eq.s32.totalorder %s15, 0
    %p35 = por %p33, %p34
    %p36 = scmp.ne.s32.totalorder %s25, %s28
    %p37 = scmp.eq.s32.totalorder %s20, 1
    %p38 = por %p36, %p37
    %p39 = scmp.ne.s32.totalorder %s28, %s29
    %p40 = scmp.eq.s32.totalorder %s20, 0
    %p41 = por %p39, %p40
    %p42 = scmp.ne.s32.totalorder %s28, %s29
    %p43 = scmp.eq.s32.totalorder %s21, 1
    %p44 = por %p42, %p43
    %p46 = scmp.ne.s32.totalorder %s29, %s45
    %p47 = scmp.eq.s32.totalorder %s21, 0
    %p48 = por %p46, %p47
    %s50 = sadd.s32 %s49, 1
    %p53 = scmp.eq.s32.totalorder %s15, 1
    %p54 = scmp.ne.s32.totalorder %s49, %s51
    %p55 = scmp.eq.s32.totalorder %s15, 0
    %p56 = por %p54, %p55
    %p57 = scmp.ne.s32.totalorder %s49, %s51
    %p58 = scmp.eq.s32.totalorder %s20, 1
    %p59 = por %p57, %p58
    %p60 = scmp.ne.s32.totalorder %s51, %s52
    %p61 = scmp.eq.s32.totalorder %s20, 0
    %p62 = por %p60, %p61
    %p63 = scmp.ne.s32.totalorder %s51, %s52
    %p64 = scmp.eq.s32.totalorder %s21, 1
    %p65 = por %p63, %p64
    %p67 = scmp.ne.s32.totalorder %s52, %s66
    %p68 = scmp.eq.s32.totalorder %s21, 0
    %p69 = por %p67, %p68
    %s71 = sadd.s32 %s70, 1
    %p74 = scmp.eq.s32.totalorder %s15, 1
    %p75 = scmp.ne.s32.totalorder %s70, %s72
    %p76 = scmp.eq.s32.totalorder %s15, 0
    %p77 = por %p75, %p76
    %p78 = scmp.ne.s32.totalorder %s70, %s72
    %p79 = scmp.eq.s32.totalorder %s20, 1
    %p80 = por %p78, %p79
    %p81 = scmp.ne.s32.totalorder %s72, %s73
    %p82 = scmp.eq.s32.totalorder %s20, 0
    %p83 = por %p81, %p82
    %p84 = scmp.ne.s32.totalorder %s72, %s73
    %p85 = scmp.eq.s32.totalorder %s21, 1
    %p86 = por %p84, %p85
    %p88 = scmp.ne.s32.totalorder %s73, %s87
    %p89 = scmp.eq.s32.totalorder %s21, 0
    %p90 = por %p88, %p89
    %s92 = sadd.s32 %s91, 1
    %p95 = scmp.eq.s32.totalorder %s15, 1
    %p96 = scmp.ne.s32.totalorder %s91, %s93
    %p97 = scmp.eq.s32.totalorder %s15, 0
    %p98 = por %p96, %p97
    %p99 = scmp.ne.s32.totalorder %s91, %s93
    %p100 = scmp.eq.s32.totalorder %s20, 1
    %p101 = por %p99, %p100
    %p102 = scmp.ne.s32.totalorder %s93, %s94
    %p103 = scmp.eq.s32.totalorder %s20, 0
    %p104 = por %p102, %p103
    %p105 = scmp.ne.s32.totalorder %s93, %s94
    %p106 = scmp.eq.s32.totalorder %s21, 1
    %p107 = por %p105, %p106
    %p109 = scmp.ne.s32.totalorder %s94, %s108
    %p110 = scmp.eq.s32.totalorder %s21, 0
    %p111 = por %p109, %p110
    %s113 = sadd.s32 %s112, 1
    %p116 = scmp.eq.s32.totalorder %s15, 1
    %p117 = scmp.ne.s32.totalorder %s112, %s114
    %p118 = scmp.eq.s32.totalorder %s15, 0
    %p119 = por %p117, %p118
    %p120 = scmp.ne.s32.totalorder %s112, %s114
    %p121 = scmp.eq.s32.totalorder %s20, 1
    %p122 = por %p120, %p121
    %p123 = scmp.ne.s32.totalorder %s114, %s115
    %p124 = scmp.eq.s32.totalorder %s20, 0
    %p125 = por %p123, %p124
    %p126 = scmp.ne.s32.totalorder %s114, %s115
    %p127 = scmp.eq.s32.totalorder %s21, 1
    %p128 = por %p126, %p127
    %p130 = scmp.ne.s32.totalorder %s115, %s129
    %p131 = scmp.eq.s32.totalorder %s21, 0
    %p132 = por %p130, %p131
    %s134 = sadd.s32 %s133, 1
    %p137 = scmp.eq.s32.totalorder %s15, 1
    %p138 = scmp.ne.s32.totalorder %s133, %s135
    %p139 = scmp.eq.s32.totalorder %s15, 0
    %p140 = por %p138, %p139
    %p141 = scmp.ne.s32.totalorder %s133, %s135
    %p142 = scmp.eq.s32.totalorder %s20, 1
    %p143 = por %p141, %p142
    %p144 = scmp.ne.s32.totalorder %s135, %s136
    %p145 = scmp.eq.s32.totalorder %s20, 0
    %p146 = por %p144, %p145
    %p147 = scmp.ne.s32.totalorder %s135, %s136
    %p148 = scmp.eq.s32.totalorder %s21, 1
    %p149 = por %p147, %p148
    %p151 = scmp.ne.s32.totalorder %s136, %s150
    %p152 = scmp.eq.s32.totalorder %s21, 0
    %p153 = por %p151, %p152
    %s154 = ssub.s32 %s15, %s22
    %p155 = scmp.eq.s32.totalorder %s154, 0
    %s157 = sadd.s32 %s156, 1
    %s158 = scalar_select %p155, %s156, %s157
    %p161 = pneg %p155
    %p162 = scmp.eq.s32.totalorder %s15, 1
    %p163 = por %p161, %p162
    %p164 = scmp.ne.s32.totalorder %s156, %s159
    %p165 = scmp.eq.s32.totalorder %s15, 0
    %p166 = por %p164, %p165
    %p167 = scmp.ne.s32.totalorder %s156, %s159
    %p168 = scmp.eq.s32.totalorder %s20, 1
    %p169 = por %p167, %p168
    %p170 = scmp.ne.s32.totalorder %s159, %s160
    %p171 = scmp.eq.s32.totalorder %s20, 0
    %p172 = por %p170, %p171
    %p173 = scmp.ne.s32.totalorder %s159, %s160
    %p174 = scmp.eq.s32.totalorder %s21, 1
    %p175 = por %p173, %p174
    %p177 = scmp.ne.s32.totalorder %s160, %s176
    %p178 = scmp.eq.s32.totalorder %s21, 0
    %p179 = por %p177, %p178
    %s180 = ssub.s32 %s15, %s22
    %p181 = scmp.eq.s32.totalorder %s180, 0
    %s183 = sadd.s32 %s182, 1
    %s184 = scalar_select %p181, %s182, %s183
    %p187 = pneg %p181
    %p188 = scmp.eq.s32.totalorder %s15, 1
    %p189 = por %p187, %p188
    %p190 = scmp.ne.s32.totalorder %s182, %s185
    %p191 = scmp.eq.s32.totalorder %s15, 0
    %p192 = por %p190, %p191
    %p193 = scmp.ne.s32.totalorder %s182, %s185
    %p194 = scmp.eq.s32.totalorder %s20, 1
    %p195 = por %p193, %p194
    %p196 = scmp.ne.s32.totalorder %s185, %s186
    %p197 = scmp.eq.s32.totalorder %s20, 0
    %p198 = por %p196, %p197
    %p199 = scmp.ne.s32.totalorder %s185, %s186
    %p200 = scmp.eq.s32.totalorder %s21, 1
    %p201 = por %p199, %p200
    %p203 = scmp.ne.s32.totalorder %s186, %s202
    %p204 = scmp.eq.s32.totalorder %s21, 0
    %p205 = por %p203, %p204
    %s206 = ssub.s32 %s15, %s22
    %p207 = scmp.eq.s32.totalorder %s206, 0
    %s209 = sadd.s32 %s208, 1
    %s210 = scalar_select %p207, %s208, %s209
    %p213 = pneg %p207
    %p214 = scmp.eq.s32.totalorder %s15, 1
    %p215 = por %p213, %p214
    %p216 = scmp.ne.s32.totalorder %s208, %s211
    %p217 = scmp.eq.s32.totalorder %s15, 0
    %p218 = por %p216, %p217
    %p219 = scmp.ne.s32.totalorder %s208, %s211
    %p220 = scmp.eq.s32.totalorder %s20, 1
    %p221 = por %p219, %p220
    %p222 = scmp.ne.s32.totalorder %s211, %s212
    %p223 = scmp.eq.s32.totalorder %s20, 0
    %p224 = por %p222, %p223
    %p225 = scmp.ne.s32.totalorder %s211, %s212
    %p226 = scmp.eq.s32.totalorder %s21, 1
    %p227 = por %p225, %p226
    %p229 = scmp.ne.s32.totalorder %s212, %s228
    %p230 = scmp.eq.s32.totalorder %s21, 0
    %p231 = por %p229, %p230
    %p232 = scmp.le.s32.totalorder 1, %s15
    %p233 = scmp.lt.s32.totalorder %s15, 3
    %p234 = pnand %p232, %p233
    %p235 = pneg %p234
    // Predicated region
    $region9: #{down_forward.6} parent=5 // pred_check
      _
    $region10: #{down_forward.6} parent=5 // pred_check_branch
      %237 = sbr.rel (%p234) target = $region12
    $region11: #{down_forward.6} parent=5 // pred_region
      %s238 = ssub.s32 %s15, 1
      // Predicated region
      $region13: #{down_forward.6} parent=11 // pred_check
        %p239 = pneg %p62
      $region14: #{down_forward.6} parent=11 // pred_check_branch
        %241 = sbr.rel (%p239) target = $region16
      $region15: #{down_forward.6} parent=11 // pred_region
        _
      $region16: #{down_forward.6} parent=11 // pred_fallthru
        _
      // Predicated region
      $region17: #{down_forward.6} parent=11 // pred_check
        %p242 = pneg %p83
      $region18: #{down_forward.6} parent=11 // pred_check_branch
        %244 = sbr.rel (%p242) target = $region20
      $region19: #{down_forward.6} parent=11 // pred_region
        _
      $region20: #{down_forward.6} parent=11 // pred_fallthru
        _
      // Predicated region
      $region21: #{down_forward.6} parent=11 // pred_check
        %p245 = pneg %p104
      $region22: #{down_forward.6} parent=11 // pred_check_branch
        %247 = sbr.rel (%p245) target = $region24
      $region23: #{down_forward.6} parent=11 // pred_region
        _
      $region24: #{down_forward.6} parent=11 // pred_fallthru
        _
      // Predicated region
      $region25: #{down_forward.6} parent=11 // pred_check
        %p248 = pneg %p125
      $region26: #{down_forward.6} parent=11 // pred_check_branch
        %250 = sbr.rel (%p248) target = $region28
      $region27: #{down_forward.6} parent=11 // pred_region
        _
      $region28: #{down_forward.6} parent=11 // pred_fallthru
        _
      // Predicated region
      $region29: #{down_forward.6} parent=11 // pred_check
        %p251 = pneg %p146
      $region30: #{down_forward.6} parent=11 // pred_check_branch
        %253 = sbr.rel (%p251) target = $region32
      $region31: #{down_forward.6} parent=11 // pred_region
        _
      $region32: #{down_forward.6} parent=11 // pred_fallthru
        _
    $region12: #{down_forward.6} parent=5 // pred_fallthru
      _
    %p254 = scmp.lt.s32.totalorder %s15, 2
    // Predicated region
    $region33: #{down_forward.6} parent=5 // pred_check
      %p255 = pneg %p254
    $region34: #{down_forward.6} parent=5 // pred_check_branch
      %257 = sbr.rel (%p255) target = $region36
    $region35: #{down_forward.6} parent=5 // pred_region
      // Predicated region
      $region37: #{down_forward.6} parent=35 // pred_check
        %p258 = pneg %p35
      $region38: #{down_forward.6} parent=35 // pred_check_branch
        %260 = sbr.rel (%p258) target = $region40
      $region39: #{down_forward.6} parent=35 // pred_region
        %p261 = scmp.lt.s32.totalorder %s15, 1
        %s262 = scalar_select %p261, %s15, 1
        %s263 = smul.addr %s262, 6
        %s264 = smul.addr %s263, 8
        %s265 = scalar_lea.vmem %s0, %s264
      $region40: #{down_forward.6} parent=35 // pred_fallthru
        _
    $region36: #{down_forward.6} parent=5 // pred_fallthru
      _
    %p266 = scmp.le.s32.totalorder 1, %s15
    %p267 = scmp.lt.s32.totalorder %s15, 3
    %p268 = pnand %p266, %p267
    %p269 = pneg %p268
    // Predicated region
    $region41: #{down_forward.6} parent=5 // pred_check
      _
    $region42: #{down_forward.6} parent=5 // pred_check_branch
      %271 = sbr.rel (%p268) target = $region44
    $region43: #{down_forward.6} parent=5 // pred_region
      %s272 = ssub.s32 %s15, 1
      %p273 = scmp.lt.s32.totalorder %s20, 1
      %s274 = scalar_select %p273, %s20, 1
      %s275 = smul.addr %s274, 6
      %s276 = smul.addr %s275, 8
      %s277 = scalar_lea.vmem %s0, %s276
      %p278 = pneg %p41
      %p279 = pneg %p38
      %p280 = pneg %p62
      %p281 = pneg %p59
      %p282 = pneg %p83
      %p283 = pneg %p80
      %p284 = pneg %p104
      %p285 = pneg %p101
      %p286 = pneg %p125
      %p287 = pneg %p122
      %p288 = pneg %p146
      %p289 = pneg %p143
      %p290 = pneg %p172
      %p291 = pneg %p169
      %p292 = scmp.lt.s32.totalorder %s20, 1
      %s293 = scalar_select %p292, %s20, 1
      %s294 = smul.addr %s293, 4
      %s295 = smul.addr %s294, 8
      %s296 = scalar_lea.vmem %s6, %s295
      %p297 = pneg %p198
      %p298 = pneg %p195
      %p299 = scmp.lt.s32.totalorder %s20, 1
      %s300 = scalar_select %p299, %s20, 1
      %s301 = smul.addr %s300, 8
      %s302 = scalar_lea.vmem %s7, %s301
      %p303 = pneg %p224
      %p304 = pneg %p221
      %p305 = scmp.lt.s32.totalorder %s20, 1
      %s306 = scalar_select %p305, %s20, 1
      %s307 = smul.addr %s306, 8
      %s308 = scalar_lea.vmem %s8, %s307
      %p309 = scmp.lt.s32.totalorder %s20, 1
      %s310 = scalar_select %p309, %s20, 1
      %s311 = smul.addr %s310, 6
      %s312 = smul.addr %s311, 8
      %s313 = scalar_lea.vmem %s0, %s312
      %p314 = scmp.lt.s32.totalorder %s20, 1
      %s315 = scalar_select %p314, %s20, 1
      %s316 = smul.addr %s315, 4
      %s317 = smul.addr %s316, 8
      %s318 = scalar_lea.vmem %s6, %s317
      %p319 = scmp.lt.s32.totalorder %s20, 1
      %s320 = scalar_select %p319, %s20, 1
      %s321 = smul.addr %s320, 8
      %s322 = scalar_lea.vmem %s7, %s321
      %p323 = scmp.lt.s32.totalorder %s20, 1
      %s324 = scalar_select %p323, %s20, 1
      %s325 = smul.addr %s324, 8
      %s326 = scalar_lea.vmem %s8, %s325
      %v327 = vld [vmem:[%s313] sm:$0xff]
      %v328 = vld [vmem:[%s313 + $0x8] sm:$0xff]
      %v329 = vld [vmem:[%s313 + $0x10] sm:$0xff]
      %v330 = vld [vmem:[%s313 + $0x18] sm:$0xff]
      %v331 = vld [vmem:[%s313 + $0x20] sm:$0xff]
      %v332 = vld [vmem:[%s313 + $0x28] sm:$0xff]
      %v333 = vld [vmem:[%s2] sm:$0xff]
      %335 = vset.pattern.permute.xlu0 0
      %336 = vperm.xlu0 %335, %v333
      %v337 = vpop.permute.xlu0 %336
      %v339 = vmul.f32 %v327, %v337
      %v340 = vmul.f32 %v328, %v337
      %v341 = vmul.f32 %v329, %v337
      %v342 = vmul.f32 %v330, %v337
      %v343 = vmul.f32 %v331, %v337
      %v344 = vmul.f32 %v332, %v337
      %v345 = vld [vmem:[%s3] sm:$0xff]
      %347 = vset.pattern.permute.xlu0 0
      %348 = vperm.xlu0 %347, %v345
      %v349 = vpop.permute.xlu0 %348
      %v351 = vadd.f32 %v339, %v349
      %v352 = vadd.f32 %v340, %v349
      %v353 = vadd.f32 %v341, %v349
      %v354 = vadd.f32 %v342, %v349
      %v355 = vadd.f32 %v343, %v349
      %v356 = vadd.f32 %v344, %v349
      %v357 = vmax.f32 %v351, 0.0
      %v358 = vmax.f32 %v352, 0.0
      %v359 = vmax.f32 %v353, 0.0
      %v360 = vmax.f32 %v354, 0.0
      %v361 = vmax.f32 %v355, 0.0
      %v362 = vmax.f32 %v356, 0.0
      %v363 = vld [vmem:[%s4] sm:$0x3f]
      %v365 = vperm.slane %v363, 0
      %v366 = vperm.slane %v363, 1
      %v367 = vperm.slane %v363, 2
      %v368 = vperm.slane %v363, 3
      %v369 = vperm.slane %v363, 4
      %v370 = vperm.slane %v363, 5
      %v377 = vmul.f32 %v357, %v365
      %v378 = vmul.f32 %v358, %v366
      %v379 = vmul.f32 %v359, %v367
      %v380 = vmul.f32 %v360, %v368
      %v381 = vmul.f32 %v361, %v369
      %v382 = vmul.f32 %v362, %v370
      %383 = vst [vmem:[#allocation2] sm:$0xff] %v377
      %384 = vst [vmem:[#allocation2 + $0x8] sm:$0xff] %v378
      %385 = vst [vmem:[#allocation2 + $0x10] sm:$0xff] %v379
      %386 = vst [vmem:[#allocation2 + $0x18] sm:$0xff] %v380
      %387 = vst [vmem:[#allocation2 + $0x20] sm:$0xff] %v381
      %388 = vst [vmem:[#allocation2 + $0x28] sm:$0xff] %v382
      %v389 = vld [vmem:[#allocation2] sm:$0xff]
      %v390 = vld [vmem:[#allocation2 + $0x8] sm:$0xff]
      %v391 = vld [vmem:[#allocation2 + $0x10] sm:$0xff]
      %v392 = vld [vmem:[#allocation2 + $0x18] sm:$0xff]
      %v393 = vld [vmem:[#allocation2 + $0x20] sm:$0xff]
      %v394 = vld [vmem:[%s5] ss:$8 sm:$0xf]
      %v396 = vperm.slane %v394, 0
      %v397 = vperm.slane %v394, 1
      %v398 = vperm.slane %v394, 2
      %v399 = vperm.slane %v394, 3
      %400 = vrot.lane.b32.xlu0 %v396, 55
      %v401 = vpop.permute.xlu0 %400
      %402 = vrot.lane.b32.xlu0 %v397, 55
      %v403 = vpop.permute.xlu0 %402
      %404 = vrot.lane.b32.xlu0 %v398, 55
      %v405 = vpop.permute.xlu0 %404
      %406 = vrot.lane.b32.xlu0 %v399, 55
      %v407 = vpop.permute.xlu0 %406
      %vm408 = vcmask 449536
      %v409 = vsel %vm408, %v401, %v403
      %v410 = vsel %vm408, %v403, %v405
      %v411 = vsel %vm408, %v405, %v407
      %v417 = vmul.f32 %v389, %v401
      %v418 = vmul.f32 %v390, %v409
      %v419 = vmul.f32 %v391, %v410
      %v420 = vmul.f32 %v392, %v411
      %v421 = vmul.f32 %v393, %v407
      %427 = vrot.lane.b32.xlu0 %v417, 73
      %v428 = vpop.permute.xlu0 %427
      %429 = vrot.lane.b32.xlu0 %v418, 73
      %v430 = vpop.permute.xlu0 %429
      %431 = vrot.lane.b32.xlu0 %v419, 73
      %v432 = vpop.permute.xlu0 %431
      %433 = vrot.lane.b32.xlu0 %v420, 73
      %v434 = vpop.permute.xlu0 %433
      %435 = vrot.lane.b32.xlu0 %v421, 73
      %v436 = vpop.permute.xlu0 %435
      %vm437 = vcmask 596992
      %v438 = vsel %vm437, %v428, %v430
      %v439 = vsel %vm437, %v430, %v432
      %v440 = vsel %vm437, %v432, %v434
      %v441 = vsel %vm437, %v434, %v436
      %446 = vst [vmem:[#allocation3] sm:$0xff] %v438
      %447 = vst [vmem:[#allocation3 + $0x8] sm:$0xff] %v439
      %448 = vst [vmem:[#allocation3 + $0x10] sm:$0xff] %v440
      %449 = vst [vmem:[#allocation3 + $0x18] sm:$0xff] %v441
      %v450 = vld [vmem:[#allocation2] sm:$0xff]
      %v451 = vld [vmem:[#allocation2 + $0x8] sm:$0xff]
      %v452 = vld [vmem:[#allocation2 + $0x10] sm:$0xff]
      %v453 = vld [vmem:[#allocation2 + $0x18] sm:$0xff]
      %v454 = vld [vmem:[#allocation2 + $0x20] sm:$0xff]
      %s455 = scalar_lea.vmem %s5, 1
      %v456 = vld [vmem:[%s455] ss:$8 sm:$0xf]
      %v458 = vperm.slane %v456, 0
      %v459 = vperm.slane %v456, 1
      %v460 = vperm.slane %v456, 2
      %v461 = vperm.slane %v456, 3
      %462 = vrot.lane.b32.xlu0 %v458, 56
      %v463 = vpop.permute.xlu0 %462
      %464 = vrot.lane.b32.xlu0 %v459, 56
      %v465 = vpop.permute.xlu0 %464
      %466 = vrot.lane.b32.xlu0 %v460, 56
      %v467 = vpop.permute.xlu0 %466
      %468 = vrot.lane.b32.xlu0 %v461, 56
      %v469 = vpop.permute.xlu0 %468
      %vm470 = vcmask 457728
      %v471 = vsel %vm470, %v463, %v465
      %v472 = vsel %vm470, %v465, %v467
      %v473 = vsel %vm470, %v467, %v469
      %v479 = vmul.f32 %v450, %v463
      %v480 = vmul.f32 %v451, %v471
      %v481 = vmul.f32 %v452, %v472
      %v482 = vmul.f32 %v453, %v473
      %v483 = vmul.f32 %v454, %v469
      %489 = vrot.lane.b32.xlu0 %v479, 72
      %v490 = vpop.permute.xlu0 %489
      %491 = vrot.lane.b32.xlu0 %v480, 72
      %v492 = vpop.permute.xlu0 %491
      %493 = vrot.lane.b32.xlu0 %v481, 72
      %v494 = vpop.permute.xlu0 %493
      %495 = vrot.lane.b32.xlu0 %v482, 72
      %v496 = vpop.permute.xlu0 %495
      %497 = vrot.lane.b32.xlu0 %v483, 72
      %v498 = vpop.permute.xlu0 %497
      %vm499 = vcmask 588800
      %v500 = vsel %vm499, %v490, %v492
      %v501 = vsel %vm499, %v492, %v494
      %v502 = vsel %vm499, %v494, %v496
      %v503 = vsel %vm499, %v496, %v498
      %508 = vst [vmem:[#allocation3 + $0x20] sm:$0xff] %v500
      %509 = vst [vmem:[#allocation3 + $0x28] sm:$0xff] %v501
      %510 = vst [vmem:[#allocation3 + $0x30] sm:$0xff] %v502
      %511 = vst [vmem:[#allocation3 + $0x38] sm:$0xff] %v503
      %v512 = vld [vmem:[#allocation2] sm:$0xff]
      %v513 = vld [vmem:[#allocation2 + $0x8] sm:$0xff]
      %v514 = vld [vmem:[#allocation2 + $0x10] sm:$0xff]
      %v515 = vld [vmem:[#allocation2 + $0x18] sm:$0xff]
      %v516 = vld [vmem:[#allocation2 + $0x20] sm:$0xff]
      %s517 = scalar_lea.vmem %s5, 2
      %v518 = vld [vmem:[%s517] ss:$8 sm:$0xf]
      %v520 = vperm.slane %v518, 0
      %v521 = vperm.slane %v518, 1
      %v522 = vperm.slane %v518, 2
      %v523 = vperm.slane %v518, 3
      %524 = vrot.lane.b32.xlu0 %v520, 57
      %v525 = vpop.permute.xlu0 %524
      %526 = vrot.lane.b32.xlu0 %v521, 57
      %v527 = vpop.permute.xlu0 %526
      %528 = vrot.lane.b32.xlu0 %v522, 57
      %v529 = vpop.permute.xlu0 %528
      %530 = vrot.lane.b32.xlu0 %v523, 57
      %v531 = vpop.permute.xlu0 %530
      %vm532 = vcmask 465920
      %v533 = vsel %vm532, %v525, %v527
      %v534 = vsel %vm532, %v527, %v529
      %v535 = vsel %vm532, %v529, %v531
      %v541 = vmul.f32 %v512, %v525
      %v542 = vmul.f32 %v513, %v533
      %v543 = vmul.f32 %v514, %v534
      %v544 = vmul.f32 %v515, %v535
      %v545 = vmul.f32 %v516, %v531
      %551 = vrot.lane.b32.xlu0 %v541, 71
      %v552 = vpop.permute.xlu0 %551
      %553 = vrot.lane.b32.xlu0 %v542, 71
      %v554 = vpop.permute.xlu0 %553
      %555 = vrot.lane.b32.xlu0 %v543, 71
      %v556 = vpop.permute.xlu0 %555
      %557 = vrot.lane.b32.xlu0 %v544, 71
      %v558 = vpop.permute.xlu0 %557
      %559 = vrot.lane.b32.xlu0 %v545, 71
      %v560 = vpop.permute.xlu0 %559
      %vm561 = vcmask 580608
      %v562 = vsel %vm561, %v552, %v554
      %v563 = vsel %vm561, %v554, %v556
      %v564 = vsel %vm561, %v556, %v558
      %v565 = vsel %vm561, %v558, %v560
      %570 = vst [vmem:[#allocation3 + $0x40] sm:$0xff] %v562
      %571 = vst [vmem:[#allocation3 + $0x48] sm:$0xff] %v563
      %572 = vst [vmem:[#allocation3 + $0x50] sm:$0xff] %v564
      %573 = vst [vmem:[#allocation3 + $0x58] sm:$0xff] %v565
      %v574 = vld [vmem:[#allocation2] sm:$0xff]
      %v575 = vld [vmem:[#allocation2 + $0x8] sm:$0xff]
      %v576 = vld [vmem:[#allocation2 + $0x10] sm:$0xff]
      %v577 = vld [vmem:[#allocation2 + $0x18] sm:$0xff]
      %v578 = vld [vmem:[#allocation2 + $0x20] sm:$0xff]
      %s579 = scalar_lea.vmem %s5, 3
      %v580 = vld [vmem:[%s579] ss:$8 sm:$0xf]
      %v582 = vperm.slane %v580, 0
      %v583 = vperm.slane %v580, 1
      %v584 = vperm.slane %v580, 2
      %v585 = vperm.slane %v580, 3
      %586 = vrot.lane.b32.xlu0 %v582, 63
      %v587 = vpop.permute.xlu0 %586
      %588 = vrot.lane.b32.xlu0 %v583, 63
      %v589 = vpop.permute.xlu0 %588
      %590 = vrot.lane.b32.xlu0 %v584, 63
      %v591 = vpop.permute.xlu0 %590
      %592 = vrot.lane.b32.xlu0 %v585, 63
      %v593 = vpop.permute.xlu0 %592
      %vm594 = vcmask 515072
      %v595 = vsel %vm594, %v587, %v589
      %v596 = vsel %vm594, %v589, %v591
      %v597 = vsel %vm594, %v591, %v593
      %v603 = vmul.f32 %v574, %v587
      %v604 = vmul.f32 %v575, %v595
      %v605 = vmul.f32 %v576, %v596
      %v606 = vmul.f32 %v577, %v597
      %v607 = vmul.f32 %v578, %v593
      %613 = vrot.lane.b32.xlu0 %v603, 65
      %v614 = vpop.permute.xlu0 %613
      %615 = vrot.lane.b32.xlu0 %v604, 65
      %v616 = vpop.permute.xlu0 %615
      %617 = vrot.lane.b32.xlu0 %v605, 65
      %v618 = vpop.permute.xlu0 %617
      %619 = vrot.lane.b32.xlu0 %v606, 65
      %v620 = vpop.permute.xlu0 %619
      %621 = vrot.lane.b32.xlu0 %v607, 65
      %v622 = vpop.permute.xlu0 %621
      %vm623 = vcmask 531456
      %v624 = vsel %vm623, %v614, %v616
      %v625 = vsel %vm623, %v616, %v618
      %v626 = vsel %vm623, %v618, %v620
      %v627 = vsel %vm623, %v620, %v622
      %632 = vst [vmem:[#allocation3 + $0x60] sm:$0xff] %v624
      %633 = vst [vmem:[#allocation3 + $0x68] sm:$0xff] %v625
      %634 = vst [vmem:[#allocation3 + $0x70] sm:$0xff] %v626
      %635 = vst [vmem:[#allocation3 + $0x78] sm:$0xff] %v627
      %v636 = vld [vmem:[#allocation2] sm:$0xff]
      %v637 = vld [vmem:[#allocation2 + $0x8] sm:$0xff]
      %v638 = vld [vmem:[#allocation2 + $0x10] sm:$0xff]
      %v639 = vld [vmem:[#allocation2 + $0x18] sm:$0xff]
      %v640 = vld [vmem:[#allocation2 + $0x20] sm:$0xff]
      %s641 = scalar_lea.vmem %s5, 4
      %v642 = vld [vmem:[%s641] ss:$8 sm:$0xf]
      %v644 = vperm.slane %v642, 0
      %v645 = vperm.slane %v642, 1
      %v646 = vperm.slane %v642, 2
      %v647 = vperm.slane %v642, 3
      %648 = vrot.lane.b32.xlu0 %v644, 64
      %v649 = vpop.permute.xlu0 %648
      %650 = vrot.lane.b32.xlu0 %v645, 64
      %v651 = vpop.permute.xlu0 %650
      %652 = vrot.lane.b32.xlu0 %v646, 64
      %v653 = vpop.permute.xlu0 %652
      %654 = vrot.lane.b32.xlu0 %v647, 64
      %v655 = vpop.permute.xlu0 %654
      %vm656 = vcmask 523264
      %v657 = vsel %vm656, %v649, %v651
      %v658 = vsel %vm656, %v651, %v653
      %v659 = vsel %vm656, %v653, %v655
      %v665 = vmul.f32 %v636, %v649
      %v666 = vmul.f32 %v637, %v657
      %v667 = vmul.f32 %v638, %v658
      %v668 = vmul.f32 %v639, %v659
      %v669 = vmul.f32 %v640, %v655
      %675 = vrot.lane.b32.xlu0 %v665, 64
      %v676 = vpop.permute.xlu0 %675
      %677 = vrot.lane.b32.xlu0 %v666, 64
      %v678 = vpop.permute.xlu0 %677
      %679 = vrot.lane.b32.xlu0 %v667, 64
      %v680 = vpop.permute.xlu0 %679
      %681 = vrot.lane.b32.xlu0 %v668, 64
      %v682 = vpop.permute.xlu0 %681
      %683 = vrot.lane.b32.xlu0 %v669, 64
      %v684 = vpop.permute.xlu0 %683
      %v685 = vsel %vm656, %v676, %v678
      %v686 = vsel %vm656, %v678, %v680
      %v687 = vsel %vm656, %v680, %v682
      %v688 = vsel %vm656, %v682, %v684
      %693 = vst [vmem:[#allocation3 + $0x80] sm:$0xff] %v685
      %694 = vst [vmem:[#allocation3 + $0x88] sm:$0xff] %v686
      %695 = vst [vmem:[#allocation3 + $0x90] sm:$0xff] %v687
      %696 = vst [vmem:[#allocation3 + $0x98] sm:$0xff] %v688
      %v697 = vld [vmem:[#allocation2] sm:$0xff]
      %v698 = vld [vmem:[#allocation2 + $0x8] sm:$0xff]
      %v699 = vld [vmem:[#allocation2 + $0x10] sm:$0xff]
      %v700 = vld [vmem:[#allocation2 + $0x18] sm:$0xff]
      %v701 = vld [vmem:[#allocation2 + $0x20] sm:$0xff]
      %s702 = scalar_lea.vmem %s5, 5
      %v703 = vld [vmem:[%s702] ss:$8 sm:$0xf]
      %v705 = vperm.slane %v703, 0
      %v706 = vperm.slane %v703, 1
      %v707 = vperm.slane %v703, 2
      %v708 = vperm.slane %v703, 3
      %709 = vrot.lane.b32.xlu0 %v705, 65
      %v710 = vpop.permute.xlu0 %709
      %711 = vrot.lane.b32.xlu0 %v706, 65
      %v712 = vpop.permute.xlu0 %711
      %713 = vrot.lane.b32.xlu0 %v707, 65
      %v714 = vpop.permute.xlu0 %713
      %715 = vrot.lane.b32.xlu0 %v708, 65
      %v716 = vpop.permute.xlu0 %715
      %v717 = vsel %vm623, %v710, %v712
      %v718 = vsel %vm623, %v712, %v714
      %v719 = vsel %vm623, %v714, %v716
      %v725 = vmul.f32 %v697, %v710
      %v726 = vmul.f32 %v698, %v717
      %v727 = vmul.f32 %v699, %v718
      %v728 = vmul.f32 %v700, %v719
      %v729 = vmul.f32 %v701, %v716
      %735 = vrot.lane.b32.xlu0 %v725, 63
      %v736 = vpop.permute.xlu0 %735
      %737 = vrot.lane.b32.xlu0 %v726, 63
      %v738 = vpop.permute.xlu0 %737
      %739 = vrot.lane.b32.xlu0 %v727, 63
      %v740 = vpop.permute.xlu0 %739
      %741 = vrot.lane.b32.xlu0 %v728, 63
      %v742 = vpop.permute.xlu0 %741
      %743 = vrot.lane.b32.xlu0 %v729, 63
      %v744 = vpop.permute.xlu0 %743
      %v745 = vsel %vm594, %v736, %v738
      %v746 = vsel %vm594, %v738, %v740
      %v747 = vsel %vm594, %v740, %v742
      %v748 = vsel %vm594, %v742, %v744
      %753 = vst [vmem:[#allocation3 + $0xa0] sm:$0xff] %v745
      %754 = vst [vmem:[#allocation3 + $0xa8] sm:$0xff] %v746
      %755 = vst [vmem:[#allocation3 + $0xb0] sm:$0xff] %v747
      %756 = vst [vmem:[#allocation3 + $0xb8] sm:$0xff] %v748
      %v757 = vld [vmem:[#allocation2] sm:$0xff]
      %v758 = vld [vmem:[#allocation2 + $0x8] sm:$0xff]
      %v759 = vld [vmem:[#allocation2 + $0x10] sm:$0xff]
      %v760 = vld [vmem:[#allocation2 + $0x18] sm:$0xff]
      %v761 = vld [vmem:[#allocation2 + $0x20] sm:$0xff]
      %s762 = scalar_lea.vmem %s5, 6
      %v763 = vld [vmem:[%s762] ss:$8 sm:$0xf]
      %v765 = vperm.slane %v763, 0
      %v766 = vperm.slane %v763, 1
      %v767 = vperm.slane %v763, 2
      %v768 = vperm.slane %v763, 3
      %769 = vrot.lane.b32.xlu0 %v765, 71
      %v770 = vpop.permute.xlu0 %769
      %771 = vrot.lane.b32.xlu0 %v766, 71
      %v772 = vpop.permute.xlu0 %771
      %773 = vrot.lane.b32.xlu0 %v767, 71
      %v774 = vpop.permute.xlu0 %773
      %775 = vrot.lane.b32.xlu0 %v768, 71
      %v776 = vpop.permute.xlu0 %775
      %v777 = vsel %vm561, %v770, %v772
      %v778 = vsel %vm561, %v772, %v774
      %v779 = vsel %vm561, %v774, %v776
      %v785 = vmul.f32 %v757, %v770
      %v786 = vmul.f32 %v758, %v777
      %v787 = vmul.f32 %v759, %v778
      %v788 = vmul.f32 %v760, %v779
      %v789 = vmul.f32 %v761, %v776
      %795 = vrot.lane.b32.xlu0 %v785, 57
      %v796 = vpop.permute.xlu0 %795
      %797 = vrot.lane.b32.xlu0 %v786, 57
      %v798 = vpop.permute.xlu0 %797
      %799 = vrot.lane.b32.xlu0 %v787, 57
      %v800 = vpop.permute.xlu0 %799
      %801 = vrot.lane.b32.xlu0 %v788, 57
      %v802 = vpop.permute.xlu0 %801
      %803 = vrot.lane.b32.xlu0 %v789, 57
      %v804 = vpop.permute.xlu0 %803
      %v805 = vsel %vm532, %v796, %v798
      %v806 = vsel %vm532, %v798, %v800
      %v807 = vsel %vm532, %v800, %v802
      %v808 = vsel %vm532, %v802, %v804
      %813 = vst [vmem:[#allocation3 + $0xc0] sm:$0xff] %v805
      %814 = vst [vmem:[#allocation3 + $0xc8] sm:$0xff] %v806
      %815 = vst [vmem:[#allocation3 + $0xd0] sm:$0xff] %v807
      %816 = vst [vmem:[#allocation3 + $0xd8] sm:$0xff] %v808
      %v817 = vld [vmem:[#allocation2] sm:$0xff]
      %v818 = vld [vmem:[#allocation2 + $0x8] sm:$0xff]
      %v819 = vld [vmem:[#allocation2 + $0x10] sm:$0xff]
      %v820 = vld [vmem:[#allocation2 + $0x18] sm:$0xff]
      %v821 = vld [vmem:[#allocation2 + $0x20] sm:$0xff]
      %s822 = scalar_lea.vmem %s5, 7
      %v823 = vld [vmem:[%s822] ss:$8 sm:$0xf]
      %v825 = vperm.slane %v823, 0
      %v826 = vperm.slane %v823, 1
      %v827 = vperm.slane %v823, 2
      %v828 = vperm.slane %v823, 3
      %829 = vrot.lane.b32.xlu0 %v825, 72
      %v830 = vpop.permute.xlu0 %829
      %831 = vrot.lane.b32.xlu0 %v826, 72
      %v832 = vpop.permute.xlu0 %831
      %833 = vrot.lane.b32.xlu0 %v827, 72
      %v834 = vpop.permute.xlu0 %833
      %835 = vrot.lane.b32.xlu0 %v828, 72
      %v836 = vpop.permute.xlu0 %835
      %v837 = vsel %vm499, %v830, %v832
      %v838 = vsel %vm499, %v832, %v834
      %v839 = vsel %vm499, %v834, %v836
      %v845 = vmul.f32 %v817, %v830
      %v846 = vmul.f32 %v818, %v837
      %v847 = vmul.f32 %v819, %v838
      %v848 = vmul.f32 %v820, %v839
      %v849 = vmul.f32 %v821, %v836
      %855 = vrot.lane.b32.xlu0 %v845, 56
      %v856 = vpop.permute.xlu0 %855
      %857 = vrot.lane.b32.xlu0 %v846, 56
      %v858 = vpop.permute.xlu0 %857
      %859 = vrot.lane.b32.xlu0 %v847, 56
      %v860 = vpop.permute.xlu0 %859
      %861 = vrot.lane.b32.xlu0 %v848, 56
      %v862 = vpop.permute.xlu0 %861
      %863 = vrot.lane.b32.xlu0 %v849, 56
      %v864 = vpop.permute.xlu0 %863
      %v865 = vsel %vm470, %v856, %v858
      %v866 = vsel %vm470, %v858, %v860
      %v867 = vsel %vm470, %v860, %v862
      %v868 = vsel %vm470, %v862, %v864
      %873 = vst [vmem:[#allocation3 + $0xe0] sm:$0xff] %v865
      %874 = vst [vmem:[#allocation3 + $0xe8] sm:$0xff] %v866
      %875 = vst [vmem:[#allocation3 + $0xf0] sm:$0xff] %v867
      %876 = vst [vmem:[#allocation3 + $0xf8] sm:$0xff] %v868
      %v877 = vld [vmem:[#allocation2] sm:$0xff]
      %v878 = vld [vmem:[#allocation2 + $0x8] sm:$0xff]
      %v879 = vld [vmem:[#allocation2 + $0x10] sm:$0xff]
      %v880 = vld [vmem:[#allocation2 + $0x18] sm:$0xff]
      %v881 = vld [vmem:[#allocation2 + $0x20] sm:$0xff]
      %s882 = scalar_lea.vmem %s5, 32
      %v883 = vld [vmem:[%s882] ss:$8 sm:$0xf]
      %v885 = vperm.slane %v883, 0
      %v886 = vperm.slane %v883, 1
      %v887 = vperm.slane %v883, 2
      %v888 = vperm.slane %v883, 3
      %889 = vrot.lane.b32.xlu0 %v885, 73
      %v890 = vpop.permute.xlu0 %889
      %891 = vrot.lane.b32.xlu0 %v886, 73
      %v892 = vpop.permute.xlu0 %891
      %893 = vrot.lane.b32.xlu0 %v887, 73
      %v894 = vpop.permute.xlu0 %893
      %895 = vrot.lane.b32.xlu0 %v888, 73
      %v896 = vpop.permute.xlu0 %895
      %v897 = vsel %vm437, %v890, %v892
      %v898 = vsel %vm437, %v892, %v894
      %v899 = vsel %vm437, %v894, %v896
      %v905 = vmul.f32 %v877, %v890
      %v906 = vmul.f32 %v878, %v897
      %v907 = vmul.f32 %v879, %v898
      %v908 = vmul.f32 %v880, %v899
      %v909 = vmul.f32 %v881, %v896
      %915 = vrot.lane.b32.xlu0 %v905, 55
      %v916 = vpop.permute.xlu0 %915
      %917 = vrot.lane.b32.xlu0 %v906, 55
      %v918 = vpop.permute.xlu0 %917
      %919 = vrot.lane.b32.xlu0 %v907, 55
      %v920 = vpop.permute.xlu0 %919
      %921 = vrot.lane.b32.xlu0 %v908, 55
      %v922 = vpop.permute.xlu0 %921
      %923 = vrot.lane.b32.xlu0 %v909, 55
      %v924 = vpop.permute.xlu0 %923
      %v925 = vsel %vm408, %v916, %v918
      %v926 = vsel %vm408, %v918, %v920
      %v927 = vsel %vm408, %v920, %v922
      %v928 = vsel %vm408, %v922, %v924
      %933 = vst [vmem:[#allocation3 + $0x100] sm:$0xff] %v925
      %934 = vst [vmem:[#allocation3 + $0x108] sm:$0xff] %v926
      %935 = vst [vmem:[#allocation3 + $0x110] sm:$0xff] %v927
      %936 = vst [vmem:[#allocation3 + $0x118] sm:$0xff] %v928
      %v937 = vld [vmem:[#allocation2] sm:$0xff]
      %v938 = vld [vmem:[#allocation2 + $0x8] sm:$0xff]
      %v939 = vld [vmem:[#allocation2 + $0x10] sm:$0xff]
      %v940 = vld [vmem:[#allocation2 + $0x18] sm:$0xff]
      %v941 = vld [vmem:[#allocation2 + $0x20] sm:$0xff]
      %v942 = vld [vmem:[%s5] ss:$8 sm:$0xf]
      %v944 = vperm.slane %v942, 0
      %v945 = vperm.slane %v942, 1
      %v946 = vperm.slane %v942, 2
      %v947 = vperm.slane %v942, 3
      %948 = vrot.lane.b32.xlu0 %v944, 119
      %v949 = vpop.permute.xlu0 %948
      %950 = vrot.lane.b32.xlu0 %v945, 119
      %v951 = vpop.permute.xlu0 %950
      %952 = vrot.lane.b32.xlu0 %v946, 119
      %v953 = vpop.permute.xlu0 %952
      %954 = vrot.lane.b32.xlu0 %v947, 119
      %v955 = vpop.permute.xlu0 %954
      %vm956 = vcmask 973824
      %v957 = vsel %vm956, %v949, %v951
      %v958 = vsel %vm956, %v951, %v953
      %v959 = vsel %vm956, %v953, %v955
      %v965 = vmul.f32 %v937, %v949
      %v966 = vmul.f32 %v938, %v957
      %v967 = vmul.f32 %v939, %v958
      %v968 = vmul.f32 %v940, %v959
      %v969 = vmul.f32 %v941, %v955
      %975 = vrot.lane.b32.xlu0 %v965, 9
      %v976 = vpop.permute.xlu0 %975
      %977 = vrot.lane.b32.xlu0 %v966, 9
      %v978 = vpop.permute.xlu0 %977
      %979 = vrot.lane.b32.xlu0 %v967, 9
      %v980 = vpop.permute.xlu0 %979
      %981 = vrot.lane.b32.xlu0 %v968, 9
      %v982 = vpop.permute.xlu0 %981
      %983 = vrot.lane.b32.xlu0 %v969, 9
      %v984 = vpop.permute.xlu0 %983
      %vm985 = vcmask 72704
      %v986 = vsel %vm985, %v976, %v978
      %v987 = vsel %vm985, %v978, %v980
      %v988 = vsel %vm985, %v980, %v982
      %v989 = vsel %vm985, %v982, %v984
      %994 = vst [vmem:[#allocation3 + $0x120] sm:$0xff] %v986
      %995 = vst [vmem:[#allocation3 + $0x128] sm:$0xff] %v987
      %996 = vst [vmem:[#allocation3 + $0x130] sm:$0xff] %v988
      %997 = vst [vmem:[#allocation3 + $0x138] sm:$0xff] %v989
      %v998 = vld [vmem:[#allocation2] sm:$0xff]
      %v999 = vld [vmem:[#allocation2 + $0x8] sm:$0xff]
      %v1000 = vld [vmem:[#allocation2 + $0x10] sm:$0xff]
      %v1001 = vld [vmem:[#allocation2 + $0x18] sm:$0xff]
      %v1002 = vld [vmem:[#allocation2 + $0x20] sm:$0xff]
      %v1003 = vld [vmem:[%s455] ss:$8 sm:$0xf]
      %v1005 = vperm.slane %v1003, 0
      %v1006 = vperm.slane %v1003, 1
      %v1007 = vperm.slane %v1003, 2
      %v1008 = vperm.slane %v1003, 3
      %1009 = vrot.lane.b32.xlu0 %v1005, 120
      %v1010 = vpop.permute.xlu0 %1009
      %1011 = vrot.lane.b32.xlu0 %v1006, 120
      %v1012 = vpop.permute.xlu0 %1011
      %1013 = vrot.lane.b32.xlu0 %v1007, 120
      %v1014 = vpop.permute.xlu0 %1013
      %1015 = vrot.lane.b32.xlu0 %v1008, 120
      %v1016 = vpop.permute.xlu0 %1015
      %vm1017 = vcmask 982016
      %v1018 = vsel %vm1017, %v1010, %v1012
      %v1019 = vsel %vm1017, %v1012, %v1014
      %v1020 = vsel %vm1017, %v1014, %v1016
      %v1026 = vmul.f32 %v998, %v1010
      %v1027 = vmul.f32 %v999, %v1018
      %v1028 = vmul.f32 %v1000, %v1019
      %v1029 = vmul.f32 %v1001, %v1020
      %v1030 = vmul.f32 %v1002, %v1016
      %1036 = vrot.lane.b32.xlu0 %v1026, 8
      %v1037 = vpop.permute.xlu0 %1036
      %1038 = vrot.lane.b32.xlu0 %v1027, 8
      %v1039 = vpop.permute.xlu0 %1038
      %1040 = vrot.lane.b32.xlu0 %v1028, 8
      %v1041 = vpop.permute.xlu0 %1040
      %1042 = vrot.lane.b32.xlu0 %v1029, 8
      %v1043 = vpop.permute.xlu0 %1042
      %1044 = vrot.lane.b32.xlu0 %v1030, 8
      %v1045 = vpop.permute.xlu0 %1044
      %vm1046 = vcmask 64512
      %v1047 = vsel %vm1046, %v1037, %v1039
      %v1048 = vsel %vm1046, %v1039, %v1041
      %v1049 = vsel %vm1046, %v1041, %v1043
      %v1050 = vsel %vm1046, %v1043, %v1045
      %1055 = vst [vmem:[#allocation3 + $0x140] sm:$0xff] %v1047
      %1056 = vst [vmem:[#allocation3 + $0x148] sm:$0xff] %v1048
      %1057 = vst [vmem:[#allocation3 + $0x150] sm:$0xff] %v1049
      %1058 = vst [vmem:[#allocation3 + $0x158] sm:$0xff] %v1050
      %v1059 = vld [vmem:[#allocation2] sm:$0xff]
      %v1060 = vld [vmem:[#allocation2 + $0x8] sm:$0xff]
      %v1061 = vld [vmem:[#allocation2 + $0x10] sm:$0xff]
      %v1062 = vld [vmem:[#allocation2 + $0x18] sm:$0xff]
      %v1063 = vld [vmem:[#allocation2 + $0x20] sm:$0xff]
      %v1064 = vld [vmem:[%s517] ss:$8 sm:$0xf]
      %v1066 = vperm.slane %v1064, 0
      %v1067 = vperm.slane %v1064, 1
      %v1068 = vperm.slane %v1064, 2
      %v1069 = vperm.slane %v1064, 3
      %1070 = vrot.lane.b32.xlu0 %v1066, 121
      %v1071 = vpop.permute.xlu0 %1070
      %1072 = vrot.lane.b32.xlu0 %v1067, 121
      %v1073 = vpop.permute.xlu0 %1072
      %1074 = vrot.lane.b32.xlu0 %v1068, 121
      %v1075 = vpop.permute.xlu0 %1074
      %1076 = vrot.lane.b32.xlu0 %v1069, 121
      %v1077 = vpop.permute.xlu0 %1076
      %vm1078 = vcmask 990208
      %v1079 = vsel %vm1078, %v1071, %v1073
      %v1080 = vsel %vm1078, %v1073, %v1075
      %v1081 = vsel %vm1078, %v1075, %v1077
      %v1087 = vmul.f32 %v1059, %v1071
      %v1088 = vmul.f32 %v1060, %v1079
      %v1089 = vmul.f32 %v1061, %v1080
      %v1090 = vmul.f32 %v1062, %v1081
      %v1091 = vmul.f32 %v1063, %v1077
      %1097 = vrot.lane.b32.xlu0 %v1087, 7
      %v1098 = vpop.permute.xlu0 %1097
      %1099 = vrot.lane.b32.xlu0 %v1088, 7
      %v1100 = vpop.permute.xlu0 %1099
      %1101 = vrot.lane.b32.xlu0 %v1089, 7
      %v1102 = vpop.permute.xlu0 %1101
      %1103 = vrot.lane.b32.xlu0 %v1090, 7
      %v1104 = vpop.permute.xlu0 %1103
      %1105 = vrot.lane.b32.xlu0 %v1091, 7
      %v1106 = vpop.permute.xlu0 %1105
      %vm1107 = vcmask 56320
      %v1108 = vsel %vm1107, %v1098, %v1100
      %v1109 = vsel %vm1107, %v1100, %v1102
      %v1110 = vsel %vm1107, %v1102, %v1104
      %v1111 = vsel %vm1107, %v1104, %v1106
      %1116 = vst [vmem:[#allocation3 + $0x160] sm:$0xff] %v1108
      %1117 = vst [vmem:[#allocation3 + $0x168] sm:$0xff] %v1109
      %1118 = vst [vmem:[#allocation3 + $0x170] sm:$0xff] %v1110
      %1119 = vst [vmem:[#allocation3 + $0x178] sm:$0xff] %v1111
      %v1120 = vld [vmem:[#allocation2] sm:$0xff]
      %v1121 = vld [vmem:[#allocation2 + $0x8] sm:$0xff]
      %v1122 = vld [vmem:[#allocation2 + $0x10] sm:$0xff]
      %v1123 = vld [vmem:[#allocation2 + $0x18] sm:$0xff]
      %v1124 = vld [vmem:[#allocation2 + $0x20] sm:$0xff]
      %v1125 = vld [vmem:[%s579] ss:$8 sm:$0xf]
      %v1127 = vperm.slane %v1125, 0
      %v1128 = vperm.slane %v1125, 1
      %v1129 = vperm.slane %v1125, 2
      %v1130 = vperm.slane %v1125, 3
      %1131 = vrot.lane.b32.xlu0 %v1127, 127
      %v1132 = vpop.permute.xlu0 %1131
      %1133 = vrot.lane.b32.xlu0 %v1128, 127
      %v1134 = vpop.permute.xlu0 %1133
      %1135 = vrot.lane.b32.xlu0 %v1129, 127
      %v1136 = vpop.permute.xlu0 %1135
      %1137 = vrot.lane.b32.xlu0 %v1130, 127
      %v1138 = vpop.permute.xlu0 %1137
      %vm1139 = vcmask 1039360
      %v1140 = vsel %vm1139, %v1132, %v1134
      %v1141 = vsel %vm1139, %v1134, %v1136
      %v1142 = vsel %vm1139, %v1136, %v1138
      %v1148 = vmul.f32 %v1120, %v1132
      %v1149 = vmul.f32 %v1121, %v1140
      %v1150 = vmul.f32 %v1122, %v1141
      %v1151 = vmul.f32 %v1123, %v1142
      %v1152 = vmul.f32 %v1124, %v1138
      %1158 = vrot.lane.b32.xlu0 %v1148, 1
      %v1159 = vpop.permute.xlu0 %1158
      %1160 = vrot.lane.b32.xlu0 %v1149, 1
      %v1161 = vpop.permute.xlu0 %1160
      %1162 = vrot.lane.b32.xlu0 %v1150, 1
      %v1163 = vpop.permute.xlu0 %1162
      %1164 = vrot.lane.b32.xlu0 %v1151, 1
      %v1165 = vpop.permute.xlu0 %1164
      %1166 = vrot.lane.b32.xlu0 %v1152, 1
      %v1167 = vpop.permute.xlu0 %1166
      %vm1168 = vcmask 7168
      %v1169 = vsel %vm1168, %v1159, %v1161
      %v1170 = vsel %vm1168, %v1161, %v1163
      %v1171 = vsel %vm1168, %v1163, %v1165
      %v1172 = vsel %vm1168, %v1165, %v1167
      %1177 = vst [vmem:[#allocation3 + $0x180] sm:$0xff] %v1169
      %1178 = vst [vmem:[#allocation3 + $0x188] sm:$0xff] %v1170
      %1179 = vst [vmem:[#allocation3 + $0x190] sm:$0xff] %v1171
      %1180 = vst [vmem:[#allocation3 + $0x198] sm:$0xff] %v1172
      %v1181 = vld [vmem:[#allocation2 + $0x8] sm:$0xff]
      %v1182 = vld [vmem:[#allocation2 + $0x10] sm:$0xff]
      %v1183 = vld [vmem:[#allocation2 + $0x18] sm:$0xff]
      %v1184 = vld [vmem:[#allocation2 + $0x20] sm:$0xff]
      %v1185 = vld [vmem:[%s641] ss:$8 sm:$0xf]
      %v1187 = vperm.slane %v1185, 0
      %v1188 = vperm.slane %v1185, 1
      %v1189 = vperm.slane %v1185, 2
      %v1190 = vperm.slane %v1185, 3
      %v1195 = vmul.f32 %v1181, %v1187
      %v1196 = vmul.f32 %v1182, %v1188
      %v1197 = vmul.f32 %v1183, %v1189
      %v1198 = vmul.f32 %v1184, %v1190
      %1199 = vst [vmem:[#allocation3 + $0x1a0] sm:$0xff] %v1195
      %1200 = vst [vmem:[#allocation3 + $0x1a8] sm:$0xff] %v1196
      %1201 = vst [vmem:[#allocation3 + $0x1b0] sm:$0xff] %v1197
      %1202 = vst [vmem:[#allocation3 + $0x1b8] sm:$0xff] %v1198
      %v1203 = vld [vmem:[#allocation2 + $0x8] sm:$0xff]
      %v1204 = vld [vmem:[#allocation2 + $0x10] sm:$0xff]
      %v1205 = vld [vmem:[#allocation2 + $0x18] sm:$0xff]
      %v1206 = vld [vmem:[#allocation2 + $0x20] sm:$0xff]
      %v1207 = vld [vmem:[#allocation2 + $0x28] sm:$0xff]
      %v1208 = vld [vmem:[%s702] ss:$8 sm:$0xf]
      %v1210 = vperm.slane %v1208, 0
      %v1211 = vperm.slane %v1208, 1
      %v1212 = vperm.slane %v1208, 2
      %v1213 = vperm.slane %v1208, 3
      %1214 = vrot.lane.b32.xlu0 %v1210, 1
      %v1215 = vpop.permute.xlu0 %1214
      %1216 = vrot.lane.b32.xlu0 %v1211, 1
      %v1217 = vpop.permute.xlu0 %1216
      %1218 = vrot.lane.b32.xlu0 %v1212, 1
      %v1219 = vpop.permute.xlu0 %1218
      %1220 = vrot.lane.b32.xlu0 %v1213, 1
      %v1221 = vpop.permute.xlu0 %1220
      %v1222 = vsel %vm1168, %v1215, %v1217
      %v1223 = vsel %vm1168, %v1217, %v1219
      %v1224 = vsel %vm1168, %v1219, %v1221
      %v1230 = vmul.f32 %v1203, %v1215
      %v1231 = vmul.f32 %v1204, %v1222
      %v1232 = vmul.f32 %v1205, %v1223
      %v1233 = vmul.f32 %v1206, %v1224
      %v1234 = vmul.f32 %v1207, %v1221
      %1240 = vrot.lane.b32.xlu0 %v1230, 127
      %v1241 = vpop.permute.xlu0 %1240
      %1242 = vrot.lane.b32.xlu0 %v1231, 127
      %v1243 = vpop.permute.xlu0 %1242
      %1244 = vrot.lane.b32.xlu0 %v1232, 127
      %v1245 = vpop.permute.xlu0 %1244
      %1246 = vrot.lane.b32.xlu0 %v1233, 127
      %v1247 = vpop.permute.xlu0 %1246
      %1248 = vrot.lane.b32.xlu0 %v1234, 127
      %v1249 = vpop.permute.xlu0 %1248
      %v1250 = vsel %vm1139, %v1241, %v1243
      %v1251 = vsel %vm1139, %v1243, %v1245
      %v1252 = vsel %vm1139, %v1245, %v1247
      %v1253 = vsel %vm1139, %v1247, %v1249
      %1258 = vst [vmem:[#allocation3 + $0x1c0] sm:$0xff] %v1250
      %1259 = vst [vmem:[#allocation3 + $0x1c8] sm:$0xff] %v1251
      %1260 = vst [vmem:[#allocation3 + $0x1d0] sm:$0xff] %v1252
      %1261 = vst [vmem:[#allocation3 + $0x1d8] sm:$0xff] %v1253
      %v1262 = vld [vmem:[#allocation2 + $0x8] sm:$0xff]
      %v1263 = vld [vmem:[#allocation2 + $0x10] sm:$0xff]
      %v1264 = vld [vmem:[#allocation2 + $0x18] sm:$0xff]
      %v1265 = vld [vmem:[#allocation2 + $0x20] sm:$0xff]
      %v1266 = vld [vmem:[#allocation2 + $0x28] sm:$0xff]
      %v1267 = vld [vmem:[%s762] ss:$8 sm:$0xf]
      %v1269 = vperm.slane %v1267, 0
      %v1270 = vperm.slane %v1267, 1
      %v1271 = vperm.slane %v1267, 2
      %v1272 = vperm.slane %v1267, 3
      %1273 = vrot.lane.b32.xlu0 %v1269, 7
      %v1274 = vpop.permute.xlu0 %1273
      %1275 = vrot.lane.b32.xlu0 %v1270, 7
      %v1276 = vpop.permute.xlu0 %1275
      %1277 = vrot.lane.b32.xlu0 %v1271, 7
      %v1278 = vpop.permute.xlu0 %1277
      %1279 = vrot.lane.b32.xlu0 %v1272, 7
      %v1280 = vpop.permute.xlu0 %1279
      %v1281 = vsel %vm1107, %v1274, %v1276
      %v1282 = vsel %vm1107, %v1276, %v1278
      %v1283 = vsel %vm1107, %v1278, %v1280
      %v1289 = vmul.f32 %v1262, %v1274
      %v1290 = vmul.f32 %v1263, %v1281
      %v1291 = vmul.f32 %v1264, %v1282
      %v1292 = vmul.f32 %v1265, %v1283
      %v1293 = vmul.f32 %v1266, %v1280
      %1299 = vrot.lane.b32.xlu0 %v1289, 121
      %v1300 = vpop.permute.xlu0 %1299
      %1301 = vrot.lane.b32.xlu0 %v1290, 121
      %v1302 = vpop.permute.xlu0 %1301
      %1303 = vrot.lane.b32.xlu0 %v1291, 121
      %v1304 = vpop.permute.xlu0 %1303
      %1305 = vrot.lane.b32.xlu0 %v1292, 121
      %v1306 = vpop.permute.xlu0 %1305
      %1307 = vrot.lane.b32.xlu0 %v1293, 121
      %v1308 = vpop.permute.xlu0 %1307
      %v1309 = vsel %vm1078, %v1300, %v1302
      %v1310 = vsel %vm1078, %v1302, %v1304
      %v1311 = vsel %vm1078, %v1304, %v1306
      %v1312 = vsel %vm1078, %v1306, %v1308
      %1317 = vst [vmem:[#allocation3 + $0x1e0] sm:$0xff] %v1309
      %1318 = vst [vmem:[#allocation3 + $0x1e8] sm:$0xff] %v1310
      %1319 = vst [vmem:[#allocation3 + $0x1f0] sm:$0xff] %v1311
      %1320 = vst [vmem:[#allocation3 + $0x1f8] sm:$0xff] %v1312
      %v1321 = vld [vmem:[#allocation2 + $0x8] sm:$0xff]
      %v1322 = vld [vmem:[#allocation2 + $0x10] sm:$0xff]
      %v1323 = vld [vmem:[#allocation2 + $0x18] sm:$0xff]
      %v1324 = vld [vmem:[#allocation2 + $0x20] sm:$0xff]
      %v1325 = vld [vmem:[#allocation2 + $0x28] sm:$0xff]
      %v1326 = vld [vmem:[%s822] ss:$8 sm:$0xf]
      %v1328 = vperm.slane %v1326, 0
      %v1329 = vperm.slane %v1326, 1
      %v1330 = vperm.slane %v1326, 2
      %v1331 = vperm.slane %v1326, 3
      %1332 = vrot.lane.b32.xlu0 %v1328, 8
      %v1333 = vpop.permute.xlu0 %1332
      %1334 = vrot.lane.b32.xlu0 %v1329, 8
      %v1335 = vpop.permute.xlu0 %1334
      %1336 = vrot.lane.b32.xlu0 %v1330, 8
      %v1337 = vpop.permute.xlu0 %1336
      %1338 = vrot.lane.b32.xlu0 %v1331, 8
      %v1339 = vpop.permute.xlu0 %1338
      %v1340 = vsel %vm1046, %v1333, %v1335
      %v1341 = vsel %vm1046, %v1335, %v1337
      %v1342 = vsel %vm1046, %v1337, %v1339
      %v1348 = vmul.f32 %v1321, %v1333
      %v1349 = vmul.f32 %v1322, %v1340
      %v1350 = vmul.f32 %v1323, %v1341
      %v1351 = vmul.f32 %v1324, %v1342
      %v1352 = vmul.f32 %v1325, %v1339
      %1358 = vrot.lane.b32.xlu0 %v1348, 120
      %v1359 = vpop.permute.xlu0 %1358
      %1360 = vrot.lane.b32.xlu0 %v1349, 120
      %v1361 = vpop.permute.xlu0 %1360
      %1362 = vrot.lane.b32.xlu0 %v1350, 120
      %v1363 = vpop.permute.xlu0 %1362
      %1364 = vrot.lane.b32.xlu0 %v1351, 120
      %v1365 = vpop.permute.xlu0 %1364
      %1366 = vrot.lane.b32.xlu0 %v1352, 120
      %v1367 = vpop.permute.xlu0 %1366
      %v1368 = vsel %vm1017, %v1359, %v1361
      %v1369 = vsel %vm1017, %v1361, %v1363
      %v1370 = vsel %vm1017, %v1363, %v1365
      %v1371 = vsel %vm1017, %v1365, %v1367
      %1376 = vst [vmem:[#allocation3 + $0x200] sm:$0xff] %v1368
      %1377 = vst [vmem:[#allocation3 + $0x208] sm:$0xff] %v1369
      %1378 = vst [vmem:[#allocation3 + $0x210] sm:$0xff] %v1370
      %1379 = vst [vmem:[#allocation3 + $0x218] sm:$0xff] %v1371
      %v1380 = vld [vmem:[#allocation2 + $0x8] sm:$0xff]
      %v1381 = vld [vmem:[#allocation2 + $0x10] sm:$0xff]
      %v1382 = vld [vmem:[#allocation2 + $0x18] sm:$0xff]
      %v1383 = vld [vmem:[#allocation2 + $0x20] sm:$0xff]
      %v1384 = vld [vmem:[#allocation2 + $0x28] sm:$0xff]
      %v1385 = vld [vmem:[%s882] ss:$8 sm:$0xf]
      %v1387 = vperm.slane %v1385, 0
      %v1388 = vperm.slane %v1385, 1
      %v1389 = vperm.slane %v1385, 2
      %v1390 = vperm.slane %v1385, 3
      %1391 = vrot.lane.b32.xlu0 %v1387, 9
      %v1392 = vpop.permute.xlu0 %1391
      %1393 = vrot.lane.b32.xlu0 %v1388, 9
      %v1394 = vpop.permute.xlu0 %1393
      %1395 = vrot.lane.b32.xlu0 %v1389, 9
      %v1396 = vpop.permute.xlu0 %1395
      %1397 = vrot.lane.b32.xlu0 %v1390, 9
      %v1398 = vpop.permute.xlu0 %1397
      %v1399 = vsel %vm985, %v1392, %v1394
      %v1400 = vsel %vm985, %v1394, %v1396
      %v1401 = vsel %vm985, %v1396, %v1398
      %v1407 = vmul.f32 %v1380, %v1392
      %v1408 = vmul.f32 %v1381, %v1399
      %v1409 = vmul.f32 %v1382, %v1400
      %v1410 = vmul.f32 %v1383, %v1401
      %v1411 = vmul.f32 %v1384, %v1398
      %1417 = vrot.lane.b32.xlu0 %v1407, 119
      %v1418 = vpop.permute.xlu0 %1417
      %1419 = vrot.lane.b32.xlu0 %v1408, 119
      %v1420 = vpop.permute.xlu0 %1419
      %1421 = vrot.lane.b32.xlu0 %v1409, 119
      %v1422 = vpop.permute.xlu0 %1421
      %1423 = vrot.lane.b32.xlu0 %v1410, 119
      %v1424 = vpop.permute.xlu0 %1423
      %1425 = vrot.lane.b32.xlu0 %v1411, 119
      %v1426 = vpop.permute.xlu0 %1425
      %v1427 = vsel %vm956, %v1418, %v1420
      %v1428 = vsel %vm956, %v1420, %v1422
      %v1429 = vsel %vm956, %v1422, %v1424
      %v1430 = vsel %vm956, %v1424, %v1426
      %1435 = vst [vmem:[#allocation3 + $0x220] sm:$0xff] %v1427
      %1436 = vst [vmem:[#allocation3 + $0x228] sm:$0xff] %v1428
      %1437 = vst [vmem:[#allocation3 + $0x230] sm:$0xff] %v1429
      %1438 = vst [vmem:[#allocation3 + $0x238] sm:$0xff] %v1430
      %v1439 = vld [vmem:[#allocation2 + $0x8] sm:$0xff]
      %v1440 = vld [vmem:[#allocation2 + $0x10] sm:$0xff]
      %v1441 = vld [vmem:[#allocation2 + $0x18] sm:$0xff]
      %v1442 = vld [vmem:[#allocation2 + $0x20] sm:$0xff]
      %v1443 = vld [vmem:[#allocation2 + $0x28] sm:$0xff]
      %v1444 = vld [vmem:[%s5] ss:$8 sm:$0xf]
      %v1446 = vperm.slane %v1444, 0
      %v1447 = vperm.slane %v1444, 1
      %v1448 = vperm.slane %v1444, 2
      %v1449 = vperm.slane %v1444, 3
      %1450 = vrot.lane.b32.xlu0 %v1446, 55
      %v1451 = vpop.permute.xlu0 %1450
      %1452 = vrot.lane.b32.xlu0 %v1447, 55
      %v1453 = vpop.permute.xlu0 %1452
      %1454 = vrot.lane.b32.xlu0 %v1448, 55
      %v1455 = vpop.permute.xlu0 %1454
      %1456 = vrot.lane.b32.xlu0 %v1449, 55
      %v1457 = vpop.permute.xlu0 %1456
      %v1458 = vsel %vm408, %v1451, %v1453
      %v1459 = vsel %vm408, %v1453, %v1455
      %v1460 = vsel %vm408, %v1455, %v1457
      %v1466 = vmul.f32 %v1439, %v1451
      %v1467 = vmul.f32 %v1440, %v1458
      %v1468 = vmul.f32 %v1441, %v1459
      %v1469 = vmul.f32 %v1442, %v1460
      %v1470 = vmul.f32 %v1443, %v1457
      %1476 = vrot.lane.b32.xlu0 %v1466, 73
      %v1477 = vpop.permute.xlu0 %1476
      %1478 = vrot.lane.b32.xlu0 %v1467, 73
      %v1479 = vpop.permute.xlu0 %1478
      %1480 = vrot.lane.b32.xlu0 %v1468, 73
      %v1481 = vpop.permute.xlu0 %1480
      %1482 = vrot.lane.b32.xlu0 %v1469, 73
      %v1483 = vpop.permute.xlu0 %1482
      %1484 = vrot.lane.b32.xlu0 %v1470, 73
      %v1485 = vpop.permute.xlu0 %1484
      %v1486 = vsel %vm437, %v1477, %v1479
      %v1487 = vsel %vm437, %v1479, %v1481
      %v1488 = vsel %vm437, %v1481, %v1483
      %v1489 = vsel %vm437, %v1483, %v1485
      %1494 = vst [vmem:[#allocation3 + $0x240] sm:$0xff] %v1486
      %1495 = vst [vmem:[#allocation3 + $0x248] sm:$0xff] %v1487
      %1496 = vst [vmem:[#allocation3 + $0x250] sm:$0xff] %v1488
      %1497 = vst [vmem:[#allocation3 + $0x258] sm:$0xff] %v1489
      %v1498 = vld [vmem:[#allocation2 + $0x8] sm:$0xff]
      %v1499 = vld [vmem:[#allocation2 + $0x10] sm:$0xff]
      %v1500 = vld [vmem:[#allocation2 + $0x18] sm:$0xff]
      %v1501 = vld [vmem:[#allocation2 + $0x20] sm:$0xff]
      %v1502 = vld [vmem:[#allocation2 + $0x28] sm:$0xff]
      %v1503 = vld [vmem:[%s455] ss:$8 sm:$0xf]
      %v1505 = vperm.slane %v1503, 0
      %v1506 = vperm.slane %v1503, 1
      %v1507 = vperm.slane %v1503, 2
      %v1508 = vperm.slane %v1503, 3
      %1509 = vrot.lane.b32.xlu0 %v1505, 56
      %v1510 = vpop.permute.xlu0 %1509
      %1511 = vrot.lane.b32.xlu0 %v1506, 56
      %v1512 = vpop.permute.xlu0 %1511
      %1513 = vrot.lane.b32.xlu0 %v1507, 56
      %v1514 = vpop.permute.xlu0 %1513
      %1515 = vrot.lane.b32.xlu0 %v1508, 56
      %v1516 = vpop.permute.xlu0 %1515
      %v1517 = vsel %vm470, %v1510, %v1512
      %v1518 = vsel %vm470, %v1512, %v1514
      %v1519 = vsel %vm470, %v1514, %v1516
      %v1525 = vmul.f32 %v1498, %v1510
      %v1526 = vmul.f32 %v1499, %v1517
      %v1527 = vmul.f32 %v1500, %v1518
      %v1528 = vmul.f32 %v1501, %v1519
      %v1529 = vmul.f32 %v1502, %v1516
      %1535 = vrot.lane.b32.xlu0 %v1525, 72
      %v1536 = vpop.permute.xlu0 %1535
      %1537 = vrot.lane.b32.xlu0 %v1526, 72
      %v1538 = vpop.permute.xlu0 %1537
      %1539 = vrot.lane.b32.xlu0 %v1527, 72
      %v1540 = vpop.permute.xlu0 %1539
      %1541 = vrot.lane.b32.xlu0 %v1528, 72
      %v1542 = vpop.permute.xlu0 %1541
      %1543 = vrot.lane.b32.xlu0 %v1529, 72
      %v1544 = vpop.permute.xlu0 %1543
      %v1545 = vsel %vm499, %v1536, %v1538
      %v1546 = vsel %vm499, %v1538, %v1540
      %v1547 = vsel %vm499, %v1540, %v1542
      %v1548 = vsel %vm499, %v1542, %v1544
      %1553 = vst [vmem:[#allocation3 + $0x260] sm:$0xff] %v1545
      %1554 = vst [vmem:[#allocation3 + $0x268] sm:$0xff] %v1546
      %1555 = vst [vmem:[#allocation3 + $0x270] sm:$0xff] %v1547
      %1556 = vst [vmem:[#allocation3 + $0x278] sm:$0xff] %v1548
      %v1557 = vld [vmem:[#allocation2 + $0x8] sm:$0xff]
      %v1558 = vld [vmem:[#allocation2 + $0x10] sm:$0xff]
      %v1559 = vld [vmem:[#allocation2 + $0x18] sm:$0xff]
      %v1560 = vld [vmem:[#allocation2 + $0x20] sm:$0xff]
      %v1561 = vld [vmem:[#allocation2 + $0x28] sm:$0xff]
      %v1562 = vld [vmem:[%s517] ss:$8 sm:$0xf]
      %v1564 = vperm.slane %v1562, 0
      %v1565 = vperm.slane %v1562, 1
      %v1566 = vperm.slane %v1562, 2
      %v1567 = vperm.slane %v1562, 3
      %1568 = vrot.lane.b32.xlu0 %v1564, 57
      %v1569 = vpop.permute.xlu0 %1568
      %1570 = vrot.lane.b32.xlu0 %v1565, 57
      %v1571 = vpop.permute.xlu0 %1570
      %1572 = vrot.lane.b32.xlu0 %v1566, 57
      %v1573 = vpop.permute.xlu0 %1572
      %1574 = vrot.lane.b32.xlu0 %v1567, 57
      %v1575 = vpop.permute.xlu0 %1574
      %v1576 = vsel %vm532, %v1569, %v1571
      %v1577 = vsel %vm532, %v1571, %v1573
      %v1578 = vsel %vm532, %v1573, %v1575
      %v1584 = vmul.f32 %v1557, %v1569
      %v1585 = vmul.f32 %v1558, %v1576
      %v1586 = vmul.f32 %v1559, %v1577
      %v1587 = vmul.f32 %v1560, %v1578
      %v1588 = vmul.f32 %v1561, %v1575
      %1594 = vrot.lane.b32.xlu0 %v1584, 71
      %v1595 = vpop.permute.xlu0 %1594
      %1596 = vrot.lane.b32.xlu0 %v1585, 71
      %v1597 = vpop.permute.xlu0 %1596
      %1598 = vrot.lane.b32.xlu0 %v1586, 71
      %v1599 = vpop.permute.xlu0 %1598
      %1600 = vrot.lane.b32.xlu0 %v1587, 71
      %v1601 = vpop.permute.xlu0 %1600
      %1602 = vrot.lane.b32.xlu0 %v1588, 71
      %v1603 = vpop.permute.xlu0 %1602
      %v1604 = vsel %vm561, %v1595, %v1597
      %v1605 = vsel %vm561, %v1597, %v1599
      %v1606 = vsel %vm561, %v1599, %v1601
      %v1607 = vsel %vm561, %v1601, %v1603
      %1612 = vst [vmem:[#allocation3 + $0x280] sm:$0xff] %v1604
      %1613 = vst [vmem:[#allocation3 + $0x288] sm:$0xff] %v1605
      %1614 = vst [vmem:[#allocation3 + $0x290] sm:$0xff] %v1606
      %1615 = vst [vmem:[#allocation3 + $0x298] sm:$0xff] %v1607
      %v1616 = vld [vmem:[#allocation2 + $0x8] sm:$0xff]
      %v1617 = vld [vmem:[#allocation2 + $0x10] sm:$0xff]
      %v1618 = vld [vmem:[#allocation2 + $0x18] sm:$0xff]
      %v1619 = vld [vmem:[#allocation2 + $0x20] sm:$0xff]
      %v1620 = vld [vmem:[#allocation2 + $0x28] sm:$0xff]
      %v1621 = vld [vmem:[%s579] ss:$8 sm:$0xf]
      %v1623 = vperm.slane %v1621, 0
      %v1624 = vperm.slane %v1621, 1
      %v1625 = vperm.slane %v1621, 2
      %v1626 = vperm.slane %v1621, 3
      %1627 = vrot.lane.b32.xlu0 %v1623, 63
      %v1628 = vpop.permute.xlu0 %1627
      %1629 = vrot.lane.b32.xlu0 %v1624, 63
      %v1630 = vpop.permute.xlu0 %1629
      %1631 = vrot.lane.b32.xlu0 %v1625, 63
      %v1632 = vpop.permute.xlu0 %1631
      %1633 = vrot.lane.b32.xlu0 %v1626, 63
      %v1634 = vpop.permute.xlu0 %1633
      %v1635 = vsel %vm594, %v1628, %v1630
      %v1636 = vsel %vm594, %v1630, %v1632
      %v1637 = vsel %vm594, %v1632, %v1634
      %v1643 = vmul.f32 %v1616, %v1628
      %v1644 = vmul.f32 %v1617, %v1635
      %v1645 = vmul.f32 %v1618, %v1636
      %v1646 = vmul.f32 %v1619, %v1637
      %v1647 = vmul.f32 %v1620, %v1634
      %1653 = vrot.lane.b32.xlu0 %v1643, 65
      %v1654 = vpop.permute.xlu0 %1653
      %1655 = vrot.lane.b32.xlu0 %v1644, 65
      %v1656 = vpop.permute.xlu0 %1655
      %1657 = vrot.lane.b32.xlu0 %v1645, 65
      %v1658 = vpop.permute.xlu0 %1657
      %1659 = vrot.lane.b32.xlu0 %v1646, 65
      %v1660 = vpop.permute.xlu0 %1659
      %1661 = vrot.lane.b32.xlu0 %v1647, 65
      %v1662 = vpop.permute.xlu0 %1661
      %v1663 = vsel %vm623, %v1654, %v1656
      %v1664 = vsel %vm623, %v1656, %v1658
      %v1665 = vsel %vm623, %v1658, %v1660
      %v1666 = vsel %vm623, %v1660, %v1662
      %1671 = vst [vmem:[#allocation3 + $0x2a0] sm:$0xff] %v1663
      %1672 = vst [vmem:[#allocation3 + $0x2a8] sm:$0xff] %v1664
      %1673 = vst [vmem:[#allocation3 + $0x2b0] sm:$0xff] %v1665
      %1674 = vst [vmem:[#allocation3 + $0x2b8] sm:$0xff] %v1666
      %v1675 = vld [vmem:[#allocation2 + $0x8] sm:$0xff]
      %v1676 = vld [vmem:[#allocation2 + $0x10] sm:$0xff]
      %v1677 = vld [vmem:[#allocation2 + $0x18] sm:$0xff]
      %v1678 = vld [vmem:[#allocation2 + $0x20] sm:$0xff]
      %v1679 = vld [vmem:[#allocation2 + $0x28] sm:$0xff]
      %v1680 = vld [vmem:[%s641] ss:$8 sm:$0xf]
      %v1682 = vperm.slane %v1680, 0
      %v1683 = vperm.slane %v1680, 1
      %v1684 = vperm.slane %v1680, 2
      %v1685 = vperm.slane %v1680, 3
      %1686 = vrot.lane.b32.xlu0 %v1682, 64
      %v1687 = vpop.permute.xlu0 %1686
      %1688 = vrot.lane.b32.xlu0 %v1683, 64
      %v1689 = vpop.permute.xlu0 %1688
      %1690 = vrot.lane.b32.xlu0 %v1684, 64
      %v1691 = vpop.permute.xlu0 %1690
      %1692 = vrot.lane.b32.xlu0 %v1685, 64
      %v1693 = vpop.permute.xlu0 %1692
      %v1694 = vsel %vm656, %v1687, %v1689
      %v1695 = vsel %vm656, %v1689, %v1691
      %v1696 = vsel %vm656, %v1691, %v1693
      %v1702 = vmul.f32 %v1675, %v1687
      %v1703 = vmul.f32 %v1676, %v1694
      %v1704 = vmul.f32 %v1677, %v1695
      %v1705 = vmul.f32 %v1678, %v1696
      %v1706 = vmul.f32 %v1679, %v1693
      %1712 = vrot.lane.b32.xlu0 %v1702, 64
      %v1713 = vpop.permute.xlu0 %1712
      %1714 = vrot.lane.b32.xlu0 %v1703, 64
      %v1715 = vpop.permute.xlu0 %1714
      %1716 = vrot.lane.b32.xlu0 %v1704, 64
      %v1717 = vpop.permute.xlu0 %1716
      %1718 = vrot.lane.b32.xlu0 %v1705, 64
      %v1719 = vpop.permute.xlu0 %1718
      %1720 = vrot.lane.b32.xlu0 %v1706, 64
      %v1721 = vpop.permute.xlu0 %1720
      %v1722 = vsel %vm656, %v1713, %v1715
      %v1723 = vsel %vm656, %v1715, %v1717
      %v1724 = vsel %vm656, %v1717, %v1719
      %v1725 = vsel %vm656, %v1719, %v1721
      %1730 = vst [vmem:[#allocation3 + $0x2c0] sm:$0xff] %v1722
      %1731 = vst [vmem:[#allocation3 + $0x2c8] sm:$0xff] %v1723
      %1732 = vst [vmem:[#allocation3 + $0x2d0] sm:$0xff] %v1724
      %1733 = vst [vmem:[#allocation3 + $0x2d8] sm:$0xff] %v1725
      %v1734 = vld [vmem:[#allocation2 + $0x8] sm:$0xff]
      %v1735 = vld [vmem:[#allocation2 + $0x10] sm:$0xff]
      %v1736 = vld [vmem:[#allocation2 + $0x18] sm:$0xff]
      %v1737 = vld [vmem:[#allocation2 + $0x20] sm:$0xff]
      %v1738 = vld [vmem:[#allocation2 + $0x28] sm:$0xff]
      %v1739 = vld [vmem:[%s702] ss:$8 sm:$0xf]
      %v1741 = vperm.slane %v1739, 0
      %v1742 = vperm.slane %v1739, 1
      %v1743 = vperm.slane %v1739, 2
      %v1744 = vperm.slane %v1739, 3
      %1745 = vrot.lane.b32.xlu0 %v1741, 65
      %v1746 = vpop.permute.xlu0 %1745
      %1747 = vrot.lane.b32.xlu0 %v1742, 65
      %v1748 = vpop.permute.xlu0 %1747
      %1749 = vrot.lane.b32.xlu0 %v1743, 65
      %v1750 = vpop.permute.xlu0 %1749
      %1751 = vrot.lane.b32.xlu0 %v1744, 65
      %v1752 = vpop.permute.xlu0 %1751
      %v1753 = vsel %vm623, %v1746, %v1748
      %v1754 = vsel %vm623, %v1748, %v1750
      %v1755 = vsel %vm623, %v1750, %v1752
      %v1761 = vmul.f32 %v1734, %v1746
      %v1762 = vmul.f32 %v1735, %v1753
      %v1763 = vmul.f32 %v1736, %v1754
      %v1764 = vmul.f32 %v1737, %v1755
      %v1765 = vmul.f32 %v1738, %v1752
      %1771 = vrot.lane.b32.xlu0 %v1761, 63
      %v1772 = vpop.permute.xlu0 %1771
      %1773 = vrot.lane.b32.xlu0 %v1762, 63
      %v1774 = vpop.permute.xlu0 %1773
      %1775 = vrot.lane.b32.xlu0 %v1763, 63
      %v1776 = vpop.permute.xlu0 %1775
      %1777 = vrot.lane.b32.xlu0 %v1764, 63
      %v1778 = vpop.permute.xlu0 %1777
      %1779 = vrot.lane.b32.xlu0 %v1765, 63
      %v1780 = vpop.permute.xlu0 %1779
      %v1781 = vsel %vm594, %v1772, %v1774
      %v1782 = vsel %vm594, %v1774, %v1776
      %v1783 = vsel %vm594, %v1776, %v1778
      %v1784 = vsel %vm594, %v1778, %v1780
      %1789 = vst [vmem:[#allocation3 + $0x2e0] sm:$0xff] %v1781
      %1790 = vst [vmem:[#allocation3 + $0x2e8] sm:$0xff] %v1782
      %1791 = vst [vmem:[#allocation3 + $0x2f0] sm:$0xff] %v1783
      %1792 = vst [vmem:[#allocation3 + $0x2f8] sm:$0xff] %v1784
      %v1793 = vld [vmem:[#allocation2 + $0x8] sm:$0xff]
      %v1794 = vld [vmem:[#allocation2 + $0x10] sm:$0xff]
      %v1795 = vld [vmem:[#allocation2 + $0x18] sm:$0xff]
      %v1796 = vld [vmem:[#allocation2 + $0x20] sm:$0xff]
      %v1797 = vld [vmem:[#allocation2 + $0x28] sm:$0xff]
      %v1798 = vld [vmem:[%s762] ss:$8 sm:$0xf]
      %v1800 = vperm.slane %v1798, 0
      %v1801 = vperm.slane %v1798, 1
      %v1802 = vperm.slane %v1798, 2
      %v1803 = vperm.slane %v1798, 3
      %1804 = vrot.lane.b32.xlu0 %v1800, 71
      %v1805 = vpop.permute.xlu0 %1804
      %1806 = vrot.lane.b32.xlu0 %v1801, 71
      %v1807 = vpop.permute.xlu0 %1806
      %1808 = vrot.lane.b32.xlu0 %v1802, 71
      %v1809 = vpop.permute.xlu0 %1808
      %1810 = vrot.lane.b32.xlu0 %v1803, 71
      %v1811 = vpop.permute.xlu0 %1810
      %v1812 = vsel %vm561, %v1805, %v1807
      %v1813 = vsel %vm561, %v1807, %v1809
      %v1814 = vsel %vm561, %v1809, %v1811
      %v1820 = vmul.f32 %v1793, %v1805
      %v1821 = vmul.f32 %v1794, %v1812
      %v1822 = vmul.f32 %v1795, %v1813
      %v1823 = vmul.f32 %v1796, %v1814
      %v1824 = vmul.f32 %v1797, %v1811
      %1830 = vrot.lane.b32.xlu0 %v1820, 57
      %v1831 = vpop.permute.xlu0 %1830
      %1832 = vrot.lane.b32.xlu0 %v1821, 57
      %v1833 = vpop.permute.xlu0 %1832
      %1834 = vrot.lane.b32.xlu0 %v1822, 57
      %v1835 = vpop.permute.xlu0 %1834
      %1836 = vrot.lane.b32.xlu0 %v1823, 57
      %v1837 = vpop.permute.xlu0 %1836
      %1838 = vrot.lane.b32.xlu0 %v1824, 57
      %v1839 = vpop.permute.xlu0 %1838
      %v1840 = vsel %vm532, %v1831, %v1833
      %v1841 = vsel %vm532, %v1833, %v1835
      %v1842 = vsel %vm532, %v1835, %v1837
      %v1843 = vsel %vm532, %v1837, %v1839
      %1848 = vst [vmem:[#allocation3 + $0x300] sm:$0xff] %v1840
      %1849 = vst [vmem:[#allocation3 + $0x308] sm:$0xff] %v1841
      %1850 = vst [vmem:[#allocation3 + $0x310] sm:$0xff] %v1842
      %1851 = vst [vmem:[#allocation3 + $0x318] sm:$0xff] %v1843
      %v1852 = vld [vmem:[#allocation2 + $0x8] sm:$0xff]
      %v1853 = vld [vmem:[#allocation2 + $0x10] sm:$0xff]
      %v1854 = vld [vmem:[#allocation2 + $0x18] sm:$0xff]
      %v1855 = vld [vmem:[#allocation2 + $0x20] sm:$0xff]
      %v1856 = vld [vmem:[#allocation2 + $0x28] sm:$0xff]
      %v1857 = vld [vmem:[%s822] ss:$8 sm:$0xf]
      %v1859 = vperm.slane %v1857, 0
      %v1860 = vperm.slane %v1857, 1
      %v1861 = vperm.slane %v1857, 2
      %v1862 = vperm.slane %v1857, 3
      %1863 = vrot.lane.b32.xlu0 %v1859, 72
      %v1864 = vpop.permute.xlu0 %1863
      %1865 = vrot.lane.b32.xlu0 %v1860, 72
      %v1866 = vpop.permute.xlu0 %1865
      %1867 = vrot.lane.b32.xlu0 %v1861, 72
      %v1868 = vpop.permute.xlu0 %1867
      %1869 = vrot.lane.b32.xlu0 %v1862, 72
      %v1870 = vpop.permute.xlu0 %1869
      %v1871 = vsel %vm499, %v1864, %v1866
      %v1872 = vsel %vm499, %v1866, %v1868
      %v1873 = vsel %vm499, %v1868, %v1870
      %v1879 = vmul.f32 %v1852, %v1864
      %v1880 = vmul.f32 %v1853, %v1871
      %v1881 = vmul.f32 %v1854, %v1872
      %v1882 = vmul.f32 %v1855, %v1873
      %v1883 = vmul.f32 %v1856, %v1870
      %1889 = vrot.lane.b32.xlu0 %v1879, 56
      %v1890 = vpop.permute.xlu0 %1889
      %1891 = vrot.lane.b32.xlu0 %v1880, 56
      %v1892 = vpop.permute.xlu0 %1891
      %1893 = vrot.lane.b32.xlu0 %v1881, 56
      %v1894 = vpop.permute.xlu0 %1893
      %1895 = vrot.lane.b32.xlu0 %v1882, 56
      %v1896 = vpop.permute.xlu0 %1895
      %1897 = vrot.lane.b32.xlu0 %v1883, 56
      %v1898 = vpop.permute.xlu0 %1897
      %v1899 = vsel %vm470, %v1890, %v1892
      %v1900 = vsel %vm470, %v1892, %v1894
      %v1901 = vsel %vm470, %v1894, %v1896
      %v1902 = vsel %vm470, %v1896, %v1898
      %1907 = vst [vmem:[#allocation3 + $0x320] sm:$0xff] %v1899
      %1908 = vst [vmem:[#allocation3 + $0x328] sm:$0xff] %v1900
      %1909 = vst [vmem:[#allocation3 + $0x330] sm:$0xff] %v1901
      %1910 = vst [vmem:[#allocation3 + $0x338] sm:$0xff] %v1902
      %v1911 = vld [vmem:[#allocation2 + $0x8] sm:$0xff]
      %v1912 = vld [vmem:[#allocation2 + $0x10] sm:$0xff]
      %v1913 = vld [vmem:[#allocation2 + $0x18] sm:$0xff]
      %v1914 = vld [vmem:[#allocation2 + $0x20] sm:$0xff]
      %v1915 = vld [vmem:[#allocation2 + $0x28] sm:$0xff]
      %v1916 = vld [vmem:[%s882] ss:$8 sm:$0xf]
      %v1918 = vperm.slane %v1916, 0
      %v1919 = vperm.slane %v1916, 1
      %v1920 = vperm.slane %v1916, 2
      %v1921 = vperm.slane %v1916, 3
      %1922 = vrot.lane.b32.xlu0 %v1918, 73
      %v1923 = vpop.permute.xlu0 %1922
      %1924 = vrot.lane.b32.xlu0 %v1919, 73
      %v1925 = vpop.permute.xlu0 %1924
      %1926 = vrot.lane.b32.xlu0 %v1920, 73
      %v1927 = vpop.permute.xlu0 %1926
      %1928 = vrot.lane.b32.xlu0 %v1921, 73
      %v1929 = vpop.permute.xlu0 %1928
      %v1930 = vsel %vm437, %v1923, %v1925
      %v1931 = vsel %vm437, %v1925, %v1927
      %v1932 = vsel %vm437, %v1927, %v1929
      %v1938 = vmul.f32 %v1911, %v1923
      %v1939 = vmul.f32 %v1912, %v1930
      %v1940 = vmul.f32 %v1913, %v1931
      %v1941 = vmul.f32 %v1914, %v1932
      %v1942 = vmul.f32 %v1915, %v1929
      %1948 = vrot.lane.b32.xlu0 %v1938, 55
      %v1949 = vpop.permute.xlu0 %1948
      %1950 = vrot.lane.b32.xlu0 %v1939, 55
      %v1951 = vpop.permute.xlu0 %1950
      %1952 = vrot.lane.b32.xlu0 %v1940, 55
      %v1953 = vpop.permute.xlu0 %1952
      %1954 = vrot.lane.b32.xlu0 %v1941, 55
      %v1955 = vpop.permute.xlu0 %1954
      %1956 = vrot.lane.b32.xlu0 %v1942, 55
      %v1957 = vpop.permute.xlu0 %1956
      %v1958 = vsel %vm408, %v1949, %v1951
      %v1959 = vsel %vm408, %v1951, %v1953
      %v1960 = vsel %vm408, %v1953, %v1955
      %v1961 = vsel %vm408, %v1955, %v1957
      %1966 = vst [vmem:[#allocation3 + $0x340] sm:$0xff] %v1958
      %1967 = vst [vmem:[#allocation3 + $0x348] sm:$0xff] %v1959
      %1968 = vst [vmem:[#allocation3 + $0x350] sm:$0xff] %v1960
      %1969 = vst [vmem:[#allocation3 + $0x358] sm:$0xff] %v1961
      %v1970 = vld [vmem:[%s1] sm:$0xff]
      %v1971 = vld [vmem:[%s1 + $0x8] sm:$0xff]
      %v1972 = vld [vmem:[#allocation3] sm:$0xff]
      %v1973 = vld [vmem:[#allocation3 + $0x8] sm:$0xff]
      %v1974 = vld [vmem:[#allocation3 + $0x10] sm:$0xff]
      %v1975 = vld [vmem:[#allocation3 + $0x18] sm:$0xff]
      %v1976 = vld [vmem:[#allocation3 + $0x20] sm:$0xff]
      %v1977 = vld [vmem:[#allocation3 + $0x28] sm:$0xff]
      %v1978 = vld [vmem:[#allocation3 + $0x30] sm:$0xff]
      %v1979 = vld [vmem:[#allocation3 + $0x38] sm:$0xff]
      %v1980 = vld [vmem:[#allocation3 + $0x40] sm:$0xff]
      %v1981 = vld [vmem:[#allocation3 + $0x48] sm:$0xff]
      %v1982 = vld [vmem:[#allocation3 + $0x50] sm:$0xff]
      %v1983 = vld [vmem:[#allocation3 + $0x58] sm:$0xff]
      %v1984 = vld [vmem:[#allocation3 + $0x60] sm:$0xff]
      %v1985 = vld [vmem:[#allocation3 + $0x68] sm:$0xff]
      %v1986 = vld [vmem:[#allocation3 + $0x70] sm:$0xff]
      %v1987 = vld [vmem:[#allocation3 + $0x78] sm:$0xff]
      %v1988 = vld [vmem:[#allocation3 + $0x80] sm:$0xff]
      %v1989 = vld [vmem:[#allocation3 + $0x88] sm:$0xff]
      %v1990 = vld [vmem:[#allocation3 + $0x90] sm:$0xff]
      %v1991 = vld [vmem:[#allocation3 + $0x98] sm:$0xff]
      %v1992 = vld [vmem:[#allocation3 + $0xa0] sm:$0xff]
      %v1993 = vld [vmem:[#allocation3 + $0xa8] sm:$0xff]
      %v1994 = vld [vmem:[#allocation3 + $0xb0] sm:$0xff]
      %v1995 = vld [vmem:[#allocation3 + $0xb8] sm:$0xff]
      %v1996 = vld [vmem:[#allocation3 + $0xc0] sm:$0xff]
      %v1997 = vld [vmem:[#allocation3 + $0xc8] sm:$0xff]
      %v1998 = vld [vmem:[#allocation3 + $0xd0] sm:$0xff]
      %v1999 = vld [vmem:[#allocation3 + $0xd8] sm:$0xff]
      %v2000 = vld [vmem:[#allocation3 + $0xe0] sm:$0xff]
      %v2001 = vld [vmem:[#allocation3 + $0xe8] sm:$0xff]
      %v2002 = vld [vmem:[#allocation3 + $0xf0] sm:$0xff]
      %v2003 = vld [vmem:[#allocation3 + $0xf8] sm:$0xff]
      %v2004 = vld [vmem:[#allocation3 + $0x100] sm:$0xff]
      %v2005 = vld [vmem:[#allocation3 + $0x108] sm:$0xff]
      %v2006 = vld [vmem:[#allocation3 + $0x110] sm:$0xff]
      %v2007 = vld [vmem:[#allocation3 + $0x118] sm:$0xff]
      %v2008 = vld [vmem:[#allocation3 + $0x120] sm:$0xff]
      %v2009 = vld [vmem:[#allocation3 + $0x128] sm:$0xff]
      %v2010 = vld [vmem:[#allocation3 + $0x130] sm:$0xff]
      %v2011 = vld [vmem:[#allocation3 + $0x138] sm:$0xff]
      %v2012 = vld [vmem:[#allocation3 + $0x140] sm:$0xff]
      %v2013 = vld [vmem:[#allocation3 + $0x148] sm:$0xff]
      %v2014 = vld [vmem:[#allocation3 + $0x150] sm:$0xff]
      %v2015 = vld [vmem:[#allocation3 + $0x158] sm:$0xff]
      %v2016 = vld [vmem:[#allocation3 + $0x160] sm:$0xff]
      %v2017 = vld [vmem:[#allocation3 + $0x168] sm:$0xff]
      %v2018 = vld [vmem:[#allocation3 + $0x170] sm:$0xff]
      %v2019 = vld [vmem:[#allocation3 + $0x178] sm:$0xff]
      %v2020 = vld [vmem:[#allocation3 + $0x180] sm:$0xff]
      %v2021 = vld [vmem:[#allocation3 + $0x188] sm:$0xff]
      %v2022 = vld [vmem:[#allocation3 + $0x190] sm:$0xff]
      %v2023 = vld [vmem:[#allocation3 + $0x198] sm:$0xff]
      %v2024 = vld [vmem:[#allocation3 + $0x1a0] sm:$0xff]
      %v2025 = vld [vmem:[#allocation3 + $0x1a8] sm:$0xff]
      %v2026 = vld [vmem:[#allocation3 + $0x1b0] sm:$0xff]
      %v2027 = vld [vmem:[#allocation3 + $0x1b8] sm:$0xff]
      %v2028 = vld [vmem:[#allocation3 + $0x1c0] sm:$0xff]
      %v2029 = vld [vmem:[#allocation3 + $0x1c8] sm:$0xff]
      %v2030 = vld [vmem:[#allocation3 + $0x1d0] sm:$0xff]
      %v2031 = vld [vmem:[#allocation3 + $0x1d8] sm:$0xff]
      %v2032 = vld [vmem:[#allocation3 + $0x1e0] sm:$0xff]
      %v2033 = vld [vmem:[#allocation3 + $0x1e8] sm:$0xff]
      %v2034 = vld [vmem:[#allocation3 + $0x1f0] sm:$0xff]
      %v2035 = vld [vmem:[#allocation3 + $0x1f8] sm:$0xff]
      %v2036 = vld [vmem:[#allocation3 + $0x200] sm:$0xff]
      %v2037 = vld [vmem:[#allocation3 + $0x208] sm:$0xff]
      %v2038 = vld [vmem:[#allocation3 + $0x210] sm:$0xff]
      %v2039 = vld [vmem:[#allocation3 + $0x218] sm:$0xff]
      %v2040 = vld [vmem:[#allocation3 + $0x220] sm:$0xff]
      %v2041 = vld [vmem:[#allocation3 + $0x228] sm:$0xff]
      %v2042 = vld [vmem:[#allocation3 + $0x230] sm:$0xff]
      %v2043 = vld [vmem:[#allocation3 + $0x238] sm:$0xff]
      %v2044 = vld [vmem:[#allocation3 + $0x240] sm:$0xff]
      %v2045 = vld [vmem:[#allocation3 + $0x248] sm:$0xff]
      %v2046 = vld [vmem:[#allocation3 + $0x250] sm:$0xff]
      %v2047 = vld [vmem:[#allocation3 + $0x258] sm:$0xff]
      %v2048 = vld [vmem:[#allocation3 + $0x260] sm:$0xff]
      %v2049 = vld [vmem:[#allocation3 + $0x268] sm:$0xff]
      %v2050 = vld [vmem:[#allocation3 + $0x270] sm:$0xff]
      %v2051 = vld [vmem:[#allocation3 + $0x278] sm:$0xff]
      %v2052 = vld [vmem:[#allocation3 + $0x280] sm:$0xff]
      %v2053 = vld [vmem:[#allocation3 + $0x288] sm:$0xff]
      %v2054 = vld [vmem:[#allocation3 + $0x290] sm:$0xff]
      %v2055 = vld [vmem:[#allocation3 + $0x298] sm:$0xff]
      %v2056 = vld [vmem:[#allocation3 + $0x2a0] sm:$0xff]
      %v2057 = vld [vmem:[#allocation3 + $0x2a8] sm:$0xff]
      %v2058 = vld [vmem:[#allocation3 + $0x2b0] sm:$0xff]
      %v2059 = vld [vmem:[#allocation3 + $0x2b8] sm:$0xff]
      %v2060 = vld [vmem:[#allocation3 + $0x2c0] sm:$0xff]
      %v2061 = vld [vmem:[#allocation3 + $0x2c8] sm:$0xff]
      %v2062 = vld [vmem:[#allocation3 + $0x2d0] sm:$0xff]
      %v2063 = vld [vmem:[#allocation3 + $0x2d8] sm:$0xff]
      %v2064 = vld [vmem:[#allocation3 + $0x2e0] sm:$0xff]
      %v2065 = vld [vmem:[#allocation3 + $0x2e8] sm:$0xff]
      %v2066 = vld [vmem:[#allocation3 + $0x2f0] sm:$0xff]
      %v2067 = vld [vmem:[#allocation3 + $0x2f8] sm:$0xff]
      %v2068 = vld [vmem:[#allocation3 + $0x300] sm:$0xff]
      %v2069 = vld [vmem:[#allocation3 + $0x308] sm:$0xff]
      %v2070 = vld [vmem:[#allocation3 + $0x310] sm:$0xff]
      %v2071 = vld [vmem:[#allocation3 + $0x318] sm:$0xff]
      %v2072 = vld [vmem:[#allocation3 + $0x320] sm:$0xff]
      %v2073 = vld [vmem:[#allocation3 + $0x328] sm:$0xff]
      %v2074 = vld [vmem:[#allocation3 + $0x330] sm:$0xff]
      %v2075 = vld [vmem:[#allocation3 + $0x338] sm:$0xff]
      %v2076 = vld [vmem:[#allocation3 + $0x340] sm:$0xff]
      %v2077 = vld [vmem:[#allocation3 + $0x348] sm:$0xff]
      %v2078 = vld [vmem:[#allocation3 + $0x350] sm:$0xff]
      %v2079 = vld [vmem:[#allocation3 + $0x358] sm:$0xff]
      %vm2080 = vcmask 719872
      %v2082 = vsel %vm2080, %v1971, 0
      %2084 = vmatpush.msra.mxu0 %v2032
      %2085 = vmatpush.msra.mxu0 %v2028
      %2086 = vmatpush.msra.mxu0 %v2024
      %2087 = vmatpush.msra.mxu0 %v2020
      %2088 = vmatpush.msra.mxu0 %v2016
      %2089 = vmatpush.msra.mxu0 %v2012
      %2090 = vmatpush.msra.mxu0 %v2008
      %2091 = vmatpush.msra.mxu0 %v2004
      %2092 = vmatpush.msra.mxu0 %v2000
      %2093 = vmatpush.msra.mxu0 %v1996
      %2094 = vmatpush.msra.mxu0 %v1992
      %2095 = vmatpush.msra.mxu0 %v1988
      %2096 = vmatpush.msra.mxu0 %v1984
      %2097 = vmatpush.msra.mxu0 %v1980
      %2098 = vmatpush.msra.mxu0 %v1976
      %2099 = vmatpush.msra.mxu0 %v1972
      %2100 = vmatmul.f32.gmra.mxu0 %v1970
      %v2101 = vpop.f32.mrf.mxu0
      %v2102 = vadd.f32 0.0, %v2101
      %2103 = vdwg.mxu0
      %2104 = vmatpush.msra.mxu0 0.0
      %2105 = vmatpush.msra.mxu0 0.0
      %2106 = vmatpush.msra.mxu0 0.0
      %2107 = vmatpush.msra.mxu0 0.0
      %2108 = vmatpush.msra.mxu0 0.0
      %2109 = vmatpush.msra.mxu0 %v2076
      %2110 = vmatpush.msra.mxu0 %v2072
      %2111 = vmatpush.msra.mxu0 %v2068
      %2112 = vmatpush.msra.mxu0 %v2064
      %2113 = vmatpush.msra.mxu0 %v2060
      %2114 = vmatpush.msra.mxu0 %v2056
      %2115 = vmatpush.msra.mxu0 %v2052
      %2116 = vmatpush.msra.mxu0 %v2048
      %2117 = vmatpush.msra.mxu0 %v2044
      %2118 = vmatpush.msra.mxu0 %v2040
      %2119 = vmatpush.msra.mxu0 %v2036
      %2120 = vmatmul.f32.gmra.mxu0 %v2082
      %v2121 = vpop.f32.mrf.mxu0
      %v2122 = vadd.f32 %v2102, %v2121
      %2123 = vdwg.mxu0
      %2124 = vmatpush.msra.mxu0 %v2033
      %2125 = vmatpush.msra.mxu0 %v2029
      %2126 = vmatpush.msra.mxu0 %v2025
      %2127 = vmatpush.msra.mxu0 %v2021
      %2128 = vmatpush.msra.mxu0 %v2017
      %2129 = vmatpush.msra.mxu0 %v2013
      %2130 = vmatpush.msra.mxu0 %v2009
      %2131 = vmatpush.msra.mxu0 %v2005
      %2132 = vmatpush.msra.mxu0 %v2001
      %2133 = vmatpush.msra.mxu0 %v1997
      %2134 = vmatpush.msra.mxu0 %v1993
      %2135 = vmatpush.msra.mxu0 %v1989
      %2136 = vmatpush.msra.mxu0 %v1985
      %2137 = vmatpush.msra.mxu0 %v1981
      %2138 = vmatpush.msra.mxu0 %v1977
      %2139 = vmatpush.msra.mxu0 %v1973
      %2140 = vmatmul.f32.gmra.mxu0 %v1970
      %v2141 = vpop.f32.mrf.mxu0
      %v2142 = vadd.f32 0.0, %v2141
      %2143 = vdwg.mxu0
      %2144 = vmatpush.msra.mxu0 0.0
      %2145 = vmatpush.msra.mxu0 0.0
      %2146 = vmatpush.msra.mxu0 0.0
      %2147 = vmatpush.msra.mxu0 0.0
      %2148 = vmatpush.msra.mxu0 0.0
      %2149 = vmatpush.msra.mxu0 %v2077
      %2150 = vmatpush.msra.mxu0 %v2073
      %2151 = vmatpush.msra.mxu0 %v2069
      %2152 = vmatpush.msra.mxu0 %v2065
      %2153 = vmatpush.msra.mxu0 %v2061
      %2154 = vmatpush.msra.mxu0 %v2057
      %2155 = vmatpush.msra.mxu0 %v2053
      %2156 = vmatpush.msra.mxu0 %v2049
      %2157 = vmatpush.msra.mxu0 %v2045
      %2158 = vmatpush.msra.mxu0 %v2041
      %2159 = vmatpush.msra.mxu0 %v2037
      %2160 = vmatmul.f32.gmra.mxu0 %v2082
      %v2161 = vpop.f32.mrf.mxu0
      %v2162 = vadd.f32 %v2142, %v2161
      %2163 = vdwg.mxu0
      %2164 = vmatpush.msra.mxu0 %v2034
      %2165 = vmatpush.msra.mxu0 %v2030
      %2166 = vmatpush.msra.mxu0 %v2026
      %2167 = vmatpush.msra.mxu0 %v2022
      %2168 = vmatpush.msra.mxu0 %v2018
      %2169 = vmatpush.msra.mxu0 %v2014
      %2170 = vmatpush.msra.mxu0 %v2010
      %2171 = vmatpush.msra.mxu0 %v2006
      %2172 = vmatpush.msra.mxu0 %v2002
      %2173 = vmatpush.msra.mxu0 %v1998
      %2174 = vmatpush.msra.mxu0 %v1994
      %2175 = vmatpush.msra.mxu0 %v1990
      %2176 = vmatpush.msra.mxu0 %v1986
      %2177 = vmatpush.msra.mxu0 %v1982
      %2178 = vmatpush.msra.mxu0 %v1978
      %2179 = vmatpush.msra.mxu0 %v1974
      %2180 = vmatmul.f32.gmra.mxu0 %v1970
      %v2181 = vpop.f32.mrf.mxu0
      %v2182 = vadd.f32 0.0, %v2181
      %2183 = vdwg.mxu0
      %2184 = vmatpush.msra.mxu0 0.0
      %2185 = vmatpush.msra.mxu0 0.0
      %2186 = vmatpush.msra.mxu0 0.0
      %2187 = vmatpush.msra.mxu0 0.0
      %2188 = vmatpush.msra.mxu0 0.0
      %2189 = vmatpush.msra.mxu0 %v2078
      %2190 = vmatpush.msra.mxu0 %v2074
      %2191 = vmatpush.msra.mxu0 %v2070
      %2192 = vmatpush.msra.mxu0 %v2066
      %2193 = vmatpush.msra.mxu0 %v2062
      %2194 = vmatpush.msra.mxu0 %v2058
      %2195 = vmatpush.msra.mxu0 %v2054
      %2196 = vmatpush.msra.mxu0 %v2050
      %2197 = vmatpush.msra.mxu0 %v2046
      %2198 = vmatpush.msra.mxu0 %v2042
      %2199 = vmatpush.msra.mxu0 %v2038
      %2200 = vmatmul.f32.gmra.mxu0 %v2082
      %v2201 = vpop.f32.mrf.mxu0
      %v2202 = vadd.f32 %v2182, %v2201
      %2203 = vdwg.mxu0
      %2204 = vmatpush.msra.mxu0 %v2035
      %2205 = vmatpush.msra.mxu0 %v2031
      %2206 = vmatpush.msra.mxu0 %v2027
      %2207 = vmatpush.msra.mxu0 %v2023
      %2208 = vmatpush.msra.mxu0 %v2019
      %2209 = vmatpush.msra.mxu0 %v2015
      %2210 = vmatpush.msra.mxu0 %v2011
      %2211 = vmatpush.msra.mxu0 %v2007
      %2212 = vmatpush.msra.mxu0 %v2003
      %2213 = vmatpush.msra.mxu0 %v1999
      %2214 = vmatpush.msra.mxu0 %v1995
      %2215 = vmatpush.msra.mxu0 %v1991
      %2216 = vmatpush.msra.mxu0 %v1987
      %2217 = vmatpush.msra.mxu0 %v1983
      %2218 = vmatpush.msra.mxu0 %v1979
      %2219 = vmatpush.msra.mxu0 %v1975
      %2220 = vmatmul.f32.gmra.mxu0 %v1970
      %v2221 = vpop.f32.mrf.mxu0
      %v2222 = vadd.f32 0.0, %v2221
      %2223 = vdwg.mxu0
      %2224 = vmatpush.msra.mxu0 0.0
      %2225 = vmatpush.msra.mxu0 0.0
      %2226 = vmatpush.msra.mxu0 0.0
      %2227 = vmatpush.msra.mxu0 0.0
      %2228 = vmatpush.msra.mxu0 0.0
      %2229 = vmatpush.msra.mxu0 %v2079
      %2230 = vmatpush.msra.mxu0 %v2075
      %2231 = vmatpush.msra.mxu0 %v2071
      %2232 = vmatpush.msra.mxu0 %v2067
      %2233 = vmatpush.msra.mxu0 %v2063
      %2234 = vmatpush.msra.mxu0 %v2059
      %2235 = vmatpush.msra.mxu0 %v2055
      %2236 = vmatpush.msra.mxu0 %v2051
      %2237 = vmatpush.msra.mxu0 %v2047
      %2238 = vmatpush.msra.mxu0 %v2043
      %2239 = vmatpush.msra.mxu0 %v2039
      %2240 = vmatmul.f32.gmra.mxu0 %v2082
      %v2241 = vpop.f32.mrf.mxu0
      %v2242 = vadd.f32 %v2222, %v2241
      %2243 = vdwg.mxu0
      %2244 = vst [vmem:[%s318] sm:$0xff] %v2122
      %2245 = vst [vmem:[%s318 + $0x8] sm:$0xff] %v2162
      %2246 = vst [vmem:[%s318 + $0x10] sm:$0xff] %v2202
      %2247 = vst [vmem:[%s318 + $0x18] sm:$0xff] %v2242
      %v2248 = vadd.f32 %v2122, %v2162
      %v2249 = vadd.f32 %v2248, %v2202
      %v2250 = vadd.f32 %v2249, %v2242
      %2251 = vadd.xlane.f32.xlu0 %v2250
      %v2252 = vpop.xlane.xlu0 %2251
      %2253 = vst.msk [vmem:[%s322] sm:$0xff] %vm1168, %v2252
      %v2254 = vmul.f32 %v2122, %v2122
      %v2255 = vmul.f32 %v2162, %v2162
      %v2256 = vmul.f32 %v2202, %v2202
      %v2257 = vmul.f32 %v2242, %v2242
      %v2258 = vadd.f32 %v2254, %v2255
      %v2259 = vadd.f32 %v2258, %v2256
      %v2260 = vadd.f32 %v2259, %v2257
      %2261 = vadd.xlane.f32.xlu0 %v2260
      %v2262 = vpop.xlane.xlu0 %2261
      %2263 = vst.msk [vmem:[%s326] sm:$0xff] %vm1168, %v2262
      %p2264 = scmp.lt.s32.totalorder %s20, 1
      %s2265 = scalar_select %p2264, %s20, 1
      %s2266 = smul.addr %s2265, 4
      %s2267 = smul.addr %s2266, 8
      %s2268 = scalar_lea.vmem %s6, %s2267
      %p2269 = scmp.lt.s32.totalorder %s20, 1
      %s2270 = scalar_select %p2269, %s20, 1
      %s2271 = smul.addr %s2270, 8
      %s2272 = scalar_lea.vmem %s7, %s2271
      %p2273 = scmp.lt.s32.totalorder %s20, 1
      %s2274 = scalar_select %p2273, %s20, 1
      %s2275 = smul.addr %s2274, 8
      %s2276 = scalar_lea.vmem %s8, %s2275
      // Predicated region
      $region45: #{down_forward.6} parent=43 // pred_check
        %p2277 = pneg %p169
      $region46: #{down_forward.6} parent=43 // pred_check_branch
        %2279 = sbr.rel (%p2277) target = $region48
      $region47: #{down_forward.6} parent=43 // pred_region
        _
      $region48: #{down_forward.6} parent=43 // pred_fallthru
        _
      // Predicated region
      $region49: #{down_forward.6} parent=43 // pred_check
        %p2280 = pneg %p195
      $region50: #{down_forward.6} parent=43 // pred_check_branch
        %2282 = sbr.rel (%p2280) target = $region52
      $region51: #{down_forward.6} parent=43 // pred_region
        _
      $region52: #{down_forward.6} parent=43 // pred_fallthru
        _
      // Predicated region
      $region53: #{down_forward.6} parent=43 // pred_check
        %p2283 = pneg %p221
      $region54: #{down_forward.6} parent=43 // pred_check_branch
        %2285 = sbr.rel (%p2283) target = $region56
      $region55: #{down_forward.6} parent=43 // pred_region
        _
      $region56: #{down_forward.6} parent=43 // pred_fallthru
        _
    $region44: #{down_forward.6} parent=5 // pred_fallthru
      _
    %p2286 = scmp.le.s32.totalorder 2, %s15
    // Predicated region
    $region57: #{down_forward.6} parent=5 // pred_check
      %p2287 = pneg %p2286
    $region58: #{down_forward.6} parent=5 // pred_check_branch
      %2289 = sbr.rel (%p2287) target = $region60
    $region59: #{down_forward.6} parent=5 // pred_region
      %s2290 = ssub.s32 %s15, 2
      // Predicated region
      $region61: #{down_forward.6} parent=59 // pred_check
        %p2291 = pneg %p175
      $region62: #{down_forward.6} parent=59 // pred_check_branch
        %2293 = sbr.rel (%p2291) target = $region64
      $region63: #{down_forward.6} parent=59 // pred_region
        %p2294 = scmp.lt.s32.totalorder %s21, 1
        %s2295 = scalar_select %p2294, %s21, 1
        %s2296 = smul.addr %s2295, 4
        %s2297 = smul.addr %s2296, 8
        %s2298 = scalar_lea.vmem %s6, %s2297
      $region64: #{down_forward.6} parent=59 // pred_fallthru
        _
      // Predicated region
      $region65: #{down_forward.6} parent=59 // pred_check
        %p2299 = pneg %p201
      $region66: #{down_forward.6} parent=59 // pred_check_branch
        %2301 = sbr.rel (%p2299) target = $region68
      $region67: #{down_forward.6} parent=59 // pred_region
        %p2302 = scmp.lt.s32.totalorder %s21, 1
        %s2303 = scalar_select %p2302, %s21, 1
        %s2304 = smul.addr %s2303, 8
        %s2305 = scalar_lea.vmem %s7, %s2304
      $region68: #{down_forward.6} parent=59 // pred_fallthru
        _
      // Predicated region
      $region69: #{down_forward.6} parent=59 // pred_check
        %p2306 = pneg %p227
      $region70: #{down_forward.6} parent=59 // pred_check_branch
        %2308 = sbr.rel (%p2306) target = $region72
      $region71: #{down_forward.6} parent=59 // pred_region
        %p2309 = scmp.lt.s32.totalorder %s21, 1
        %s2310 = scalar_select %p2309, %s21, 1
        %s2311 = smul.addr %s2310, 8
        %s2312 = scalar_lea.vmem %s8, %s2311
      $region72: #{down_forward.6} parent=59 // pred_fallthru
        _
    $region60: #{down_forward.6} parent=5 // pred_fallthru
      _
  $region6: #{down_forward.6} parent=0 // loop_footer
    %s19 = sadd.s32 1, %s15
  $region7: #{down_forward.6} parent=0 // loop_footer_branch
    %14 = sbr.rel target = $region3
  $region8: #{down_forward.6} parent=0 // loop_exit
    _

</llo_original>
